<compile_context>
chip_gen: v7x
topology: tpu7x:2x2x1
jax: 0.10.0
libtpu: 0.0.40
codegen_flags: <defaults>
</compile_context>

<pallas_src>
import random

import jax
import jax.numpy as jnp
from jax.experimental import pallas as pl
from jax.experimental.pallas import tpu as pltpu

# ---------------- model sizes (small, synthetic) ----------------
INPUT_DIM = 16    # src vocab
OUTPUT_DIM = 16   # trg vocab (decoder.output_dim)
ENC_EMB = 8
DEC_EMB = 8
ENC_HID = 16
DEC_HID = 16
SRC_LEN = 6
TRG_LEN = 8
BATCH = 2


def _gru_update(gi, gh, h_prev, H):
    # PyTorch GRUCell semantics, gate order (r, z, n); b_hn stays inside r*(...)
    r = jax.nn.sigmoid(gi[:, 0:H] + gh[:, 0:H])
    z = jax.nn.sigmoid(gi[:, H:2 * H] + gh[:, H:2 * H])
    n = jnp.tanh(gi[:, 2 * H:3 * H] + r * gh[:, 2 * H:3 * H])
    return (1.0 - z) * n + z * h_prev


# ---------------- the single fused kernel ----------------
def seq2seq_kernel(src_ref, trg_ref, tf_ref,                 # SMEM (scalar prefetch)
                   enc_emb_ref, enc_w_ref, enc_fc_w_ref,     # VMEM weights
                   attn_wh_ref, attn_we_ref, dec_emb_ref,
                   dec_w_ref, fc_out_w_ref, vecs_ref,
                   out_ref):                                 # (T, B, V) output (VMEM-resident)
    H = ENC_HID
    D = DEC_HID

    # ---- packed small constants; broadcasts hoisted (built exactly once) ----
    bg_enc = jnp.broadcast_to(vecs_ref[0:1, :], (BATCH, 12 * H))            # enc gate bias
    b_fc = jnp.broadcast_to(vecs_ref[1:2, 0:D], (BATCH, D))                 # enc fc bias
    ab = vecs_ref[2:3, 0:D]                                                 # attn bias (1, D)
    av3 = jnp.broadcast_to(vecs_ref[3:4, 0:D].reshape(1, 1, D),
                           (BATCH, SRC_LEN, D))                             # attn v
    bg_dec = jnp.broadcast_to(vecs_ref[4:5, 0:6 * D], (BATCH, 6 * D))       # dec gate bias
    b_out = jnp.broadcast_to(vecs_ref[5:6, 0:OUTPUT_DIM], (BATCH, OUTPUT_DIM))

    # ---- encoder embeddings built in-kernel (one-hot @ table, stays in VMEM) ----
    iota_in = jax.lax.broadcasted_iota(jnp.int32, (1, INPUT_DIM), 1)
    embs = []
    for t in range(SRC_LEN):
        oh = jnp.concatenate(
            [(iota_in == src_ref[t, b]).astype(jnp.float32) for b in range(BATCH)],
            axis=0)                                                         # (B, INPUT_DIM)
        embs.append(jnp.dot(oh, enc_emb_ref[...],
                            preferred_element_type=jnp.float32))            # (B, ENC_EMB)

    # ---- fused bidirectional GRU: fwd+bwd in one block-diag matmul per step ----
    h_f = jnp.zeros((BATCH, H), jnp.float32)
    h_b = jnp.zeros((BATCH, H), jnp.float32)
    fwd = [None] * SRC_LEN
    bwd = [None] * SRC_LEN
    for t in range(SRC_LEN):                                  # static unroll (S small & fixed)
        xh = jnp.concatenate([embs[t], h_f, embs[SRC_LEN - 1 - t], h_b], axis=-1)  # (B, 48)
        g = jnp.dot(xh, enc_w_ref[...], preferred_element_type=jnp.float32) + bg_enc
        h_f = _gru_update(g[:, 0:3 * H], g[:, 3 * H:6 * H], h_f, H)
        h_b = _gru_update(g[:, 6 * H:9 * H], g[:, 9 * H:12 * H], h_b, H)
        fwd[t] = h_f
        bwd[SRC_LEN - 1 - t] = h_b

    enc3 = jnp.stack([jnp.concatenate([fwd[t], bwd[t]], axis=-1)
                      for t in range(SRC_LEN)], axis=1)                     # (B, S, 2H)
    hidden = jnp.tanh(
        jnp.dot(jnp.concatenate([h_f, h_b], axis=-1), enc_fc_w_ref[...],
                preferred_element_type=jnp.float32) + b_fc)                 # (B, D)

    # ---- step-invariant attention term hoisted out of the decode loop ----
    e_e = jnp.einsum("bse,ed->bsd", enc3, attn_we_ref[...],
                     preferred_element_type=jnp.float32) + ab               # (B, S, D)

    # ---- decoder: 7 fully-unrolled steps; carries live in vregs ----
    iota_out = jax.lax.broadcasted_iota(jnp.int32, (1, OUTPUT_DIM), 1)

    def tok_onehot(row):
        return jnp.concatenate(
            [(iota_out == trg_ref[row, b]).astype(jnp.float32) for b in range(BATCH)],
            axis=0)                                                         # (B, OUTPUT_DIM)

    inp_oh = tok_onehot(0)                                    # input = trg[0]
    preds = [jnp.zeros((BATCH, OUTPUT_DIM), jnp.float32)]     # outputs[0] stays zero
    for t in range(1, TRG_LEN):
        emb = jnp.dot(inp_oh, dec_emb_ref[...],
                      preferred_element_type=jnp.float32)                   # (B, DEC_EMB)

        # attention (exact softmax division, per correctness feedback)
        e_h = jnp.dot(hidden, attn_wh_ref[...], preferred_element_type=jnp.float32)
        energy = jnp.tanh(e_e + e_h[:, None, :])                            # (B, S, D)
        scores = jnp.sum(energy * av3, axis=-1)                             # (B, S)
        scores = scores - jnp.max(scores, axis=1, keepdims=True)
        pexp = jnp.exp(scores)
        attn = pexp / jnp.sum(pexp, axis=1, keepdims=True)
        weighted = jnp.sum(attn[:, :, None] * enc3, axis=1)                 # (B, 2H)

        # fused GRU cell: one MXU call on [emb ; weighted ; hidden]
        xh = jnp.concatenate([emb, weighted, hidden], axis=-1)              # (B, 56)
        g = jnp.dot(xh, dec_w_ref[...], preferred_element_type=jnp.float32) + bg_dec
        hidden = _gru_update(g[:, 0:3 * D], g[:, 3 * D:6 * D], hidden, D)

        # output projection
        fc_in = jnp.concatenate([hidden, weighted, emb], axis=-1)           # (B, 56)
        pred = jnp.dot(fc_in, fc_out_w_ref[...],
                       preferred_element_type=jnp.float32) + b_out
        preds.append(pred)

        # next input token: teacher forcing vs argmax, as one-hot data blend
        m = jnp.max(pred, axis=1, keepdims=True)
        vid = jax.lax.broadcasted_iota(jnp.int32, pred.shape, 1)
        first = jnp.min(jnp.where(pred == m, vid, OUTPUT_DIM), axis=1, keepdims=True)
        top1_oh = (vid == first).astype(jnp.float32)                        # first argmax
        sel = (tf_ref[t - 1] == 1).astype(jnp.float32)
        inp_oh = sel * tok_onehot(t) + (1.0 - sel) * top1_oh

    out_ref[...] = jnp.stack(preds, axis=0)                   # single full-block store


def _build_call(p):
    vmem_in = (p["enc_emb"], p["enc_w_big"], p["enc_fc_w"], p["attn_wh"],
               p["attn_we"], p["dec_emb"], p["dec_w_big"], p["fc_out_w"], p["vecs"])
    c2 = lambda i, *_: (0, 0)
    grid_spec = pltpu.PrefetchScalarGridSpec(
        num_scalar_prefetch=3,                     # src tokens, trg tokens, tf mask -> SMEM
        grid=(1,),                                 # single invocation; all loops in-kernel
        in_specs=[pl.BlockSpec(a.shape, c2) for a in vmem_in],
        out_specs=pl.BlockSpec((TRG_LEN, BATCH, OUTPUT_DIM), lambda i, *_: (0, 0, 0)),
    )
    return pl.pallas_call(
        seq2seq_kernel,
        out_shape=jax.ShapeDtypeStruct((TRG_LEN, BATCH, OUTPUT_DIM), jnp.float32),
        grid_spec=grid_spec,
        compiler_params=pltpu.CompilerParams(dimension_semantics=("arbitrary",)),
    ), vmem_in


@jax.jit
def seq2seq_forward(params, src, trg, tf_mask):
    call, vmem_in = _build_call(params)
    return call(src, trg, tf_mask, *vmem_in)                  # one pallas_call total


def make_tf_mask(trg_len, ratio, seed):
    # deterministic stand-in for the PyTorch module's per-step random.random()
    # TODO(synk): per-step host RNG inside the loop has no in-kernel equivalent;
    # the draws are precomputed into this mask instead.
    rng = random.Random(seed)
    return jnp.asarray([1 if rng.random() < ratio else 0 for _ in range(trg_len - 1)],
                       dtype=jnp.int32)


# ---------------- parameters ----------------
def init_params(key):
    ks = jax.random.split(key, 32)
    it = iter(range(32))

    def nrm(shape, scale=0.1):
        return (scale * jax.random.normal(ks[next(it)], shape)).astype(jnp.float32)

    p = {}
    p["enc_emb"] = nrm((INPUT_DIM, ENC_EMB))
    for d in ("f", "b"):
        p[f"enc_wih_{d}"] = nrm((ENC_EMB, 3 * ENC_HID))
        p[f"enc_whh_{d}"] = nrm((ENC_HID, 3 * ENC_HID))
        p[f"enc_bih_{d}"] = nrm((1, 3 * ENC_HID))
        p[f"enc_bhh_{d}"] = nrm((1, 3 * ENC_HID))
    p["enc_fc_w"] = nrm((2 * ENC_HID, DEC_HID))
    p["enc_fc_b"] = nrm((1, DEC_HID))
    p["attn_wh"] = nrm((DEC_HID, DEC_HID))
    p["attn_we"] = nrm((2 * ENC_HID, DEC_HID))
    p["attn_b"] = nrm((1, DEC_HID))
    p["attn_v"] = nrm((1, DEC_HID))
    p["dec_emb"] = nrm((OUTPUT_DIM, DEC_EMB))
    p["dec_wih"] = nrm((DEC_EMB + 2 * ENC_HID, 3 * DEC_HID))
    p["dec_whh"] = nrm((DEC_HID, 3 * DEC_HID))
    p["dec_bih"] = nrm((1, 3 * DEC_HID))
    p["dec_bhh"] = nrm((1, 3 * DEC_HID))
    p["fc_out_w"] = nrm((DEC_HID + 2 * ENC_HID + DEC_EMB, OUTPUT_DIM))
    p["fc_out_b"] = nrm((1, OUTPUT_DIM))
    return p


def prepare_fused(p):
    """Assemble block-diagonal fused GRU weights and the packed constant block."""
    E, H = ENC_EMB, ENC_HID
    w_enc = jnp.zeros((2 * (E + H), 12 * H), jnp.float32)
    w_enc = w_enc.at[0:E, 0:3 * H].set(p["enc_wih_f"])
    w_enc = w_enc.at[E:E + H, 3 * H:6 * H].set(p["enc_whh_f"])
    w_enc = w_enc.at[E + H:2 * E + H, 6 * H:9 * H].set(p["enc_wih_b"])
    w_enc = w_enc.at[2 * E + H:, 9 * H:12 * H].set(p["enc_whh_b"])
    b_enc = jnp.concatenate([p["enc_bih_f"], p["enc_bhh_f"],
                             p["enc_bih_b"], p["enc_bhh_b"]], axis=1)        # (1, 12H)

    IN = DEC_EMB + 2 * ENC_HID
    D = DEC_HID
    w_dec = jnp.zeros((IN + D, 6 * D), jnp.float32)
    w_dec = w_dec.at[0:IN, 0:3 * D].set(p["dec_wih"])
    w_dec = w_dec.at[IN:, 3 * D:6 * D].set(p["dec_whh"])
    b_dec = jnp.concatenate([p["dec_bih"], p["dec_bhh"]], axis=1)            # (1, 6D)

    # pack all tiny (1, X) constants into one (6, 12H) array (one DMA, sublane rows)
    vecs = jnp.zeros((6, 12 * H), jnp.float32)
    vecs = vecs.at[0, :12 * H].set(b_enc[0])
    vecs = vecs.at[1, :D].set(p["enc_fc_b"][0])
    vecs = vecs.at[2, :D].set(p["attn_b"][0])
    vecs = vecs.at[3, :D].set(p["attn_v"][0])
    vecs = vecs.at[4, :6 * D].set(b_dec[0])
    vecs = vecs.at[5, :OUTPUT_DIM].set(p["fc_out_b"][0])

    fused = dict(p)
    fused.update(enc_w_big=w_enc, dec_w_big=w_dec, vecs=vecs)
    return fused


# ---------------- pure-JAX reference (for numerical validation) --------------
def _gru_ref(x, h, wih, whh, bih, bhh):
    H = h.shape[-1]
    gi = x @ wih + bih
    gh = h @ whh + bhh
    r = jax.nn.sigmoid(gi[:, :H] + gh[:, :H])
    z = jax.nn.sigmoid(gi[:, H:2 * H] + gh[:, H:2 * H])
    n = jnp.tanh(gi[:, 2 * H:] + r * gh[:, 2 * H:])
    return (1.0 - z) * n + z * h


def reference_forward(p, src, trg, tf_mask):
    S, B = src.shape
    T = trg.shape[0]
    emb = p["enc_emb"][src]
    h_f = jnp.zeros((B, ENC_HID), jnp.float32)
    h_b = jnp.zeros((B, ENC_HID), jnp.float32)
    fwd, bwd = [], [None] * S
    for t in range(S):
        h_f = _gru_ref(emb[t], h_f, p["enc_wih_f"], p["enc_whh_f"],
                       p["enc_bih_f"], p["enc_bhh_f"])
        fwd.append(h_f)
    for t in reversed(range(S)):
        h_b = _gru_ref(emb[t], h_b, p["enc_wih_b"], p["enc_whh_b"],
                       p["enc_bih_b"], p["enc_bhh_b"])
        bwd[t] = h_b
    enc_b = jnp.stack([jnp.concatenate([fwd[t], bwd[t]], -1) for t in range(S)], 1)
    hidden = jnp.tanh(jnp.concatenate([h_f, h_b], -1) @ p["enc_fc_w"] + p["enc_fc_b"])
    outputs = [jnp.zeros((B, OUTPUT_DIM), jnp.float32)]
    inp = trg[0]
    for t in range(1, T):
        e = p["dec_emb"][inp]
        e_h = hidden @ p["attn_wh"]
        e_e = jnp.einsum("bse,ed->bsd", enc_b, p["attn_we"])
        energy = jnp.tanh(e_e + e_h[:, None, :] + p["attn_b"])
        sc = jnp.einsum("bsd,d->bs", energy, p["attn_v"][0])
        a = jax.nn.softmax(sc, axis=1)
        weighted = jnp.sum(a[:, :, None] * enc_b, axis=1)
        rnn_in = jnp.concatenate([e, weighted], -1)
        hidden = _gru_ref(rnn_in, hidden, p["dec_wih"], p["dec_whh"],
                          p["dec_bih"], p["dec_bhh"])
        pred = jnp.concatenate([hidden, weighted, e], -1) @ p["fc_out_w"] + p["fc_out_b"]
        outputs.append(pred)
        top1 = jnp.argmax(pred, axis=1).astype(trg.dtype)
        inp = jnp.where(tf_mask[t - 1] == 1, trg[t], top1)
    return jnp.stack(outputs, 0)


if __name__ == "__main__":
    key = jax.random.PRNGKey(0)
    kp, ks, kt = jax.random.split(key, 3)
    raw = init_params(kp)
    params = prepare_fused(raw)
    src = jax.random.randint(ks, (SRC_LEN, BATCH), 0, INPUT_DIM, dtype=jnp.int32)
    trg = jax.random.randint(kt, (TRG_LEN, BATCH), 0, OUTPUT_DIM, dtype=jnp.int32)
    tf_mask = make_tf_mask(TRG_LEN, 0.5, seed=0)

    out = seq2seq_forward(params, src, trg, tf_mask)
    out = jax.block_until_ready(out)
    assert out.shape == (TRG_LEN, BATCH, OUTPUT_DIM)
    assert bool(jnp.all(out[0] == 0.0))

    # numerical check vs pure-JAX reference under full teacher forcing
    # (token path is then data-independent; only kernel numerics are compared)
    tf_all = jnp.ones((TRG_LEN - 1,), jnp.int32)
    got = jax.block_until_ready(seq2seq_forward(params, src, trg, tf_all))
    want = reference_forward(raw, src, trg, tf_all)
    assert bool(jnp.allclose(got, want, atol=1e-3, rtol=1e-3)), \
        float(jnp.max(jnp.abs(got - want)))

    print("KERNEL_OK")
</pallas_src>

<mosaic_0001>
module attributes {stable_mosaic.version = 11 : i64} {
  func.func @seq2seq_kernel(%arg0: i32, %arg1: memref<6x2xi32, #tpu.memory_space<smem>>, %arg2: memref<8x2xi32, #tpu.memory_space<smem>>, %arg3: memref<7xi32, #tpu.memory_space<smem>>, %arg4: memref<16x8xf32, #tpu.memory_space<vmem>>, %arg5: memref<48x192xf32, #tpu.memory_space<vmem>>, %arg6: memref<32x16xf32, #tpu.memory_space<vmem>>, %arg7: memref<16x16xf32, #tpu.memory_space<vmem>>, %arg8: memref<32x16xf32, #tpu.memory_space<vmem>>, %arg9: memref<16x8xf32, #tpu.memory_space<vmem>>, %arg10: memref<56x96xf32, #tpu.memory_space<vmem>>, %arg11: memref<56x16xf32, #tpu.memory_space<vmem>>, %arg12: memref<6x192xf32, #tpu.memory_space<vmem>>, %arg13: memref<8x2x16xf32, #tpu.memory_space<vmem>>) attributes {dimension_semantics = [#tpu.dimension_semantics<arbitrary>], iteration_bounds = array<i64: 1>, scalar_prefetch = 3 : i64, scratch_operands = 0 : i64, tpu.core_type = #tpu.core_type<tc>, window_params = [{pipeline_mode = #tpu.pipeline_mode<synchronous>, transform_indices = @transform_0, window_bounds = array<i64: 16, 8>}, {pipeline_mode = #tpu.pipeline_mode<synchronous>, transform_indices = @transform_1, window_bounds = array<i64: 48, 192>}, {pipeline_mode = #tpu.pipeline_mode<synchronous>, transform_indices = @transform_2, window_bounds = array<i64: 32, 16>}, {pipeline_mode = #tpu.pipeline_mode<synchronous>, transform_indices = @transform_3, window_bounds = array<i64: 16, 16>}, {pipeline_mode = #tpu.pipeline_mode<synchronous>, transform_indices = @transform_4, window_bounds = array<i64: 32, 16>}, {pipeline_mode = #tpu.pipeline_mode<synchronous>, transform_indices = @transform_5, window_bounds = array<i64: 16, 8>}, {pipeline_mode = #tpu.pipeline_mode<synchronous>, transform_indices = @transform_6, window_bounds = array<i64: 56, 96>}, {pipeline_mode = #tpu.pipeline_mode<synchronous>, transform_indices = @transform_7, window_bounds = array<i64: 56, 16>}, {pipeline_mode = #tpu.pipeline_mode<synchronous>, transform_indices = @transform_8, window_bounds = array<i64: 6, 192>}, {pipeline_mode = #tpu.pipeline_mode<synchronous>, transform_indices = @transform_9, window_bounds = array<i64: 8, 2, 16>}]} {
    %c0 = arith.constant 0 : index
    %c0_0 = arith.constant 0 : index
    %0 = vector.load %arg12[%c0, %c0_0] : memref<6x192xf32, #tpu.memory_space<vmem>>, vector<1x192xf32>
    %1 = vector.shape_cast %0 : vector<1x192xf32> to vector<1x192xf32>
    %2 = vector.broadcast %1 : vector<1x192xf32> to vector<2x192xf32>
    %c1 = arith.constant 1 : index
    %c0_1 = arith.constant 0 : index
    %3 = vector.load %arg12[%c1, %c0_1] : memref<6x192xf32, #tpu.memory_space<vmem>>, vector<1x16xf32>
    %4 = vector.shape_cast %3 : vector<1x16xf32> to vector<1x16xf32>
    %5 = vector.broadcast %4 : vector<1x16xf32> to vector<2x16xf32>
    %c2 = arith.constant 2 : index
    %c0_2 = arith.constant 0 : index
    %6 = vector.load %arg12[%c2, %c0_2] : memref<6x192xf32, #tpu.memory_space<vmem>>, vector<1x16xf32>
    %c3 = arith.constant 3 : index
    %c0_3 = arith.constant 0 : index
    %7 = vector.load %arg12[%c3, %c0_3] : memref<6x192xf32, #tpu.memory_space<vmem>>, vector<1x16xf32>
    %8 = vector.shape_cast %7 : vector<1x16xf32> to vector<1x1x16xf32>
    %9 = vector.shape_cast %8 : vector<1x1x16xf32> to vector<1x1x16xf32>
    %10 = vector.broadcast %9 : vector<1x1x16xf32> to vector<2x6x16xf32>
    %c4 = arith.constant 4 : index
    %c0_4 = arith.constant 0 : index
    %11 = vector.load %arg12[%c4, %c0_4] : memref<6x192xf32, #tpu.memory_space<vmem>>, vector<1x96xf32>
    %12 = vector.shape_cast %11 : vector<1x96xf32> to vector<1x96xf32>
    %13 = vector.broadcast %12 : vector<1x96xf32> to vector<2x96xf32>
    %c5 = arith.constant 5 : index
    %c0_5 = arith.constant 0 : index
    %14 = vector.load %arg12[%c5, %c0_5] : memref<6x192xf32, #tpu.memory_space<vmem>>, vector<1x16xf32>
    %15 = vector.shape_cast %14 : vector<1x16xf32> to vector<1x16xf32>
    %16 = vector.broadcast %15 : vector<1x16xf32> to vector<2x16xf32>
    %17 = tpu.iota {dimensions = array<i32: 1>} : vector<1x16xi32>
    %c0_6 = arith.constant 0 : index
    %c0_7 = arith.constant 0 : index
    %18 = memref.load %arg1[%c0_6, %c0_7] : memref<6x2xi32, #tpu.memory_space<smem>>
    %19 = vector.broadcast %18 : i32 to vector<1x16xi32>
    %20 = arith.cmpi eq, %17, %19 : vector<1x16xi32>
    %21 = arith.extui %20 : vector<1x16xi1> to vector<1x16xi32>
    %22 = arith.sitofp %21 : vector<1x16xi32> to vector<1x16xf32>
    %c0_8 = arith.constant 0 : index
    %c1_9 = arith.constant 1 : index
    %23 = memref.load %arg1[%c0_8, %c1_9] : memref<6x2xi32, #tpu.memory_space<smem>>
    %24 = vector.broadcast %23 : i32 to vector<1x16xi32>
    %25 = arith.cmpi eq, %17, %24 : vector<1x16xi32>
    %26 = arith.extui %25 : vector<1x16xi1> to vector<1x16xi32>
    %27 = arith.sitofp %26 : vector<1x16xi32> to vector<1x16xf32>
    %28 = tpu.concatenate %22, %27 in 0 : vector<1x16xf32>, vector<1x16xf32> -> vector<2x16xf32>
    %c0_10 = arith.constant 0 : index
    %c0_11 = arith.constant 0 : index
    %29 = vector.load %arg4[%c0_10, %c0_11] : memref<16x8xf32, #tpu.memory_space<vmem>>, vector<16x8xf32>
    %cst = arith.constant dense<0.000000e+00> : vector<2x8xf32>
    %30 = tpu.matmul %28, %29, %cst {dimension_numbers = #tpu.dot_dimension_numbers<[1], [0], [0], [1], [0, 0, 1, 1], [], []>} : vector<2x16xf32>, vector<16x8xf32>, vector<2x8xf32> -> vector<2x8xf32>
    %c1_12 = arith.constant 1 : index
    %c0_13 = arith.constant 0 : index
    %31 = memref.load %arg1[%c1_12, %c0_13] : memref<6x2xi32, #tpu.memory_space<smem>>
    %32 = vector.broadcast %31 : i32 to vector<1x16xi32>
    %33 = arith.cmpi eq, %17, %32 : vector<1x16xi32>
    %34 = arith.extui %33 : vector<1x16xi1> to vector<1x16xi32>
    %35 = arith.sitofp %34 : vector<1x16xi32> to vector<1x16xf32>
    %c1_14 = arith.constant 1 : index
    %c1_15 = arith.constant 1 : index
    %36 = memref.load %arg1[%c1_14, %c1_15] : memref<6x2xi32, #tpu.memory_space<smem>>
    %37 = vector.broadcast %36 : i32 to vector<1x16xi32>
    %38 = arith.cmpi eq, %17, %37 : vector<1x16xi32>
    %39 = arith.extui %38 : vector<1x16xi1> to vector<1x16xi32>
    %40 = arith.sitofp %39 : vector<1x16xi32> to vector<1x16xf32>
    %41 = tpu.concatenate %35, %40 in 0 : vector<1x16xf32>, vector<1x16xf32> -> vector<2x16xf32>
    %c0_16 = arith.constant 0 : index
    %c0_17 = arith.constant 0 : index
    %42 = vector.load %arg4[%c0_16, %c0_17] : memref<16x8xf32, #tpu.memory_space<vmem>>, vector<16x8xf32>
    %cst_18 = arith.constant dense<0.000000e+00> : vector<2x8xf32>
    %43 = tpu.matmul %41, %42, %cst_18 {dimension_numbers = #tpu.dot_dimension_numbers<[1], [0], [0], [1], [0, 0, 1, 1], [], []>} : vector<2x16xf32>, vector<16x8xf32>, vector<2x8xf32> -> vector<2x8xf32>
    %c2_19 = arith.constant 2 : index
    %c0_20 = arith.constant 0 : index
    %44 = memref.load %arg1[%c2_19, %c0_20] : memref<6x2xi32, #tpu.memory_space<smem>>
    %45 = vector.broadcast %44 : i32 to vector<1x16xi32>
    %46 = arith.cmpi eq, %17, %45 : vector<1x16xi32>
    %47 = arith.extui %46 : vector<1x16xi1> to vector<1x16xi32>
    %48 = arith.sitofp %47 : vector<1x16xi32> to vector<1x16xf32>
    %c2_21 = arith.constant 2 : index
    %c1_22 = arith.constant 1 : index
    %49 = memref.load %arg1[%c2_21, %c1_22] : memref<6x2xi32, #tpu.memory_space<smem>>
    %50 = vector.broadcast %49 : i32 to vector<1x16xi32>
    %51 = arith.cmpi eq, %17, %50 : vector<1x16xi32>
    %52 = arith.extui %51 : vector<1x16xi1> to vector<1x16xi32>
    %53 = arith.sitofp %52 : vector<1x16xi32> to vector<1x16xf32>
    %54 = tpu.concatenate %48, %53 in 0 : vector<1x16xf32>, vector<1x16xf32> -> vector<2x16xf32>
    %c0_23 = arith.constant 0 : index
    %c0_24 = arith.constant 0 : index
    %55 = vector.load %arg4[%c0_23, %c0_24] : memref<16x8xf32, #tpu.memory_space<vmem>>, vector<16x8xf32>
    %cst_25 = arith.constant dense<0.000000e+00> : vector<2x8xf32>
    %56 = tpu.matmul %54, %55, %cst_25 {dimension_numbers = #tpu.dot_dimension_numbers<[1], [0], [0], [1], [0, 0, 1, 1], [], []>} : vector<2x16xf32>, vector<16x8xf32>, vector<2x8xf32> -> vector<2x8xf32>
    %c3_26 = arith.constant 3 : index
    %c0_27 = arith.constant 0 : index
    %57 = memref.load %arg1[%c3_26, %c0_27] : memref<6x2xi32, #tpu.memory_space<smem>>
    %58 = vector.broadcast %57 : i32 to vector<1x16xi32>
    %59 = arith.cmpi eq, %17, %58 : vector<1x16xi32>
    %60 = arith.extui %59 : vector<1x16xi1> to vector<1x16xi32>
    %61 = arith.sitofp %60 : vector<1x16xi32> to vector<1x16xf32>
    %c3_28 = arith.constant 3 : index
    %c1_29 = arith.constant 1 : index
    %62 = memref.load %arg1[%c3_28, %c1_29] : memref<6x2xi32, #tpu.memory_space<smem>>
    %63 = vector.broadcast %62 : i32 to vector<1x16xi32>
    %64 = arith.cmpi eq, %17, %63 : vector<1x16xi32>
    %65 = arith.extui %64 : vector<1x16xi1> to vector<1x16xi32>
    %66 = arith.sitofp %65 : vector<1x16xi32> to vector<1x16xf32>
    %67 = tpu.concatenate %61, %66 in 0 : vector<1x16xf32>, vector<1x16xf32> -> vector<2x16xf32>
    %c0_30 = arith.constant 0 : index
    %c0_31 = arith.constant 0 : index
    %68 = vector.load %arg4[%c0_30, %c0_31] : memref<16x8xf32, #tpu.memory_space<vmem>>, vector<16x8xf32>
    %cst_32 = arith.constant dense<0.000000e+00> : vector<2x8xf32>
    %69 = tpu.matmul %67, %68, %cst_32 {dimension_numbers = #tpu.dot_dimension_numbers<[1], [0], [0], [1], [0, 0, 1, 1], [], []>} : vector<2x16xf32>, vector<16x8xf32>, vector<2x8xf32> -> vector<2x8xf32>
    %c4_33 = arith.constant 4 : index
    %c0_34 = arith.constant 0 : index
    %70 = memref.load %arg1[%c4_33, %c0_34] : memref<6x2xi32, #tpu.memory_space<smem>>
    %71 = vector.broadcast %70 : i32 to vector<1x16xi32>
    %72 = arith.cmpi eq, %17, %71 : vector<1x16xi32>
    %73 = arith.extui %72 : vector<1x16xi1> to vector<1x16xi32>
    %74 = arith.sitofp %73 : vector<1x16xi32> to vector<1x16xf32>
    %c4_35 = arith.constant 4 : index
    %c1_36 = arith.constant 1 : index
    %75 = memref.load %arg1[%c4_35, %c1_36] : memref<6x2xi32, #tpu.memory_space<smem>>
    %76 = vector.broadcast %75 : i32 to vector<1x16xi32>
    %77 = arith.cmpi eq, %17, %76 : vector<1x16xi32>
    %78 = arith.extui %77 : vector<1x16xi1> to vector<1x16xi32>
    %79 = arith.sitofp %78 : vector<1x16xi32> to vector<1x16xf32>
    %80 = tpu.concatenate %74, %79 in 0 : vector<1x16xf32>, vector<1x16xf32> -> vector<2x16xf32>
    %c0_37 = arith.constant 0 : index
    %c0_38 = arith.constant 0 : index
    %81 = vector.load %arg4[%c0_37, %c0_38] : memref<16x8xf32, #tpu.memory_space<vmem>>, vector<16x8xf32>
    %cst_39 = arith.constant dense<0.000000e+00> : vector<2x8xf32>
    %82 = tpu.matmul %80, %81, %cst_39 {dimension_numbers = #tpu.dot_dimension_numbers<[1], [0], [0], [1], [0, 0, 1, 1], [], []>} : vector<2x16xf32>, vector<16x8xf32>, vector<2x8xf32> -> vector<2x8xf32>
    %c5_40 = arith.constant 5 : index
    %c0_41 = arith.constant 0 : index
    %83 = memref.load %arg1[%c5_40, %c0_41] : memref<6x2xi32, #tpu.memory_space<smem>>
    %84 = vector.broadcast %83 : i32 to vector<1x16xi32>
    %85 = arith.cmpi eq, %17, %84 : vector<1x16xi32>
    %86 = arith.extui %85 : vector<1x16xi1> to vector<1x16xi32>
    %87 = arith.sitofp %86 : vector<1x16xi32> to vector<1x16xf32>
    %c5_42 = arith.constant 5 : index
    %c1_43 = arith.constant 1 : index
    %88 = memref.load %arg1[%c5_42, %c1_43] : memref<6x2xi32, #tpu.memory_space<smem>>
    %89 = vector.broadcast %88 : i32 to vector<1x16xi32>
    %90 = arith.cmpi eq, %17, %89 : vector<1x16xi32>
    %91 = arith.extui %90 : vector<1x16xi1> to vector<1x16xi32>
    %92 = arith.sitofp %91 : vector<1x16xi32> to vector<1x16xf32>
    %93 = tpu.concatenate %87, %92 in 0 : vector<1x16xf32>, vector<1x16xf32> -> vector<2x16xf32>
    %c0_44 = arith.constant 0 : index
    %c0_45 = arith.constant 0 : index
    %94 = vector.load %arg4[%c0_44, %c0_45] : memref<16x8xf32, #tpu.memory_space<vmem>>, vector<16x8xf32>
    %cst_46 = arith.constant dense<0.000000e+00> : vector<2x8xf32>
    %95 = tpu.matmul %93, %94, %cst_46 {dimension_numbers = #tpu.dot_dimension_numbers<[1], [0], [0], [1], [0, 0, 1, 1], [], []>} : vector<2x16xf32>, vector<16x8xf32>, vector<2x8xf32> -> vector<2x8xf32>
    %cst_47 = arith.constant 0.000000e+00 : f32
    %96 = vector.broadcast %cst_47 : f32 to vector<2x16xf32>
    %cst_48 = arith.constant 0.000000e+00 : f32
    %97 = vector.broadcast %cst_48 : f32 to vector<2x16xf32>
    %98 = tpu.concatenate %30, %96, %95, %97 in 1 : vector<2x8xf32>, vector<2x16xf32>, vector<2x8xf32>, vector<2x16xf32> -> vector<2x48xf32>
    %c0_49 = arith.constant 0 : index
    %c0_50 = arith.constant 0 : index
    %99 = vector.load %arg5[%c0_49, %c0_50] : memref<48x192xf32, #tpu.memory_space<vmem>>, vector<48x192xf32>
    %cst_51 = arith.constant dense<0.000000e+00> : vector<2x192xf32>
    %100 = tpu.matmul %98, %99, %cst_51 {dimension_numbers = #tpu.dot_dimension_numbers<[1], [0], [0], [1], [0, 0, 1, 1], [], []>} : vector<2x48xf32>, vector<48x192xf32>, vector<2x192xf32> -> vector<2x192xf32>
    %101 = arith.addf %100, %2 : vector<2x192xf32>
    %102 = vector.extract_strided_slice %101 {offsets = [0, 0], sizes = [2, 48], strides = [1, 1]} : vector<2x192xf32> to vector<2x48xf32>
    %103 = vector.extract_strided_slice %101 {offsets = [0, 48], sizes = [2, 48], strides = [1, 1]} : vector<2x192xf32> to vector<2x48xf32>
    %104 = vector.extract_strided_slice %102 {offsets = [0, 0], sizes = [2, 16], strides = [1, 1]} : vector<2x48xf32> to vector<2x16xf32>
    %105 = vector.extract_strided_slice %103 {offsets = [0, 0], sizes = [2, 16], strides = [1, 1]} : vector<2x48xf32> to vector<2x16xf32>
    %106 = arith.addf %104, %105 : vector<2x16xf32>
    %107 = arith.negf %106 : vector<2x16xf32>
    %108 = math.exp %107 : vector<2x16xf32>
    %cst_52 = arith.constant 1.000000e+00 : f32
    %109 = vector.broadcast %cst_52 : f32 to vector<2x16xf32>
    %110 = arith.addf %109, %108 : vector<2x16xf32>
    %111 = arith.divf %109, %110 : vector<2x16xf32>
    %112 = vector.extract_strided_slice %102 {offsets = [0, 16], sizes = [2, 16], strides = [1, 1]} : vector<2x48xf32> to vector<2x16xf32>
    %113 = vector.extract_strided_slice %103 {offsets = [0, 16], sizes = [2, 16], strides = [1, 1]} : vector<2x48xf32> to vector<2x16xf32>
    %114 = arith.addf %112, %113 : vector<2x16xf32>
    %115 = arith.negf %114 : vector<2x16xf32>
    %116 = math.exp %115 : vector<2x16xf32>
    %cst_53 = arith.constant 1.000000e+00 : f32
    %117 = vector.broadcast %cst_53 : f32 to vector<2x16xf32>
    %118 = arith.addf %117, %116 : vector<2x16xf32>
    %119 = arith.divf %117, %118 : vector<2x16xf32>
    %120 = vector.extract_strided_slice %102 {offsets = [0, 32], sizes = [2, 16], strides = [1, 1]} : vector<2x48xf32> to vector<2x16xf32>
    %121 = vector.extract_strided_slice %103 {offsets = [0, 32], sizes = [2, 16], strides = [1, 1]} : vector<2x48xf32> to vector<2x16xf32>
    %122 = arith.mulf %111, %121 : vector<2x16xf32>
    %123 = arith.addf %120, %122 : vector<2x16xf32>
    %124 = math.tanh %123 : vector<2x16xf32>
    %cst_54 = arith.constant 1.000000e+00 : f32
    %125 = vector.broadcast %cst_54 : f32 to vector<2x16xf32>
    %126 = arith.subf %125, %119 : vector<2x16xf32>
    %127 = arith.mulf %126, %124 : vector<2x16xf32>
    %128 = arith.mulf %119, %96 : vector<2x16xf32>
    %129 = arith.addf %127, %128 : vector<2x16xf32>
    %130 = vector.extract_strided_slice %101 {offsets = [0, 96], sizes = [2, 48], strides = [1, 1]} : vector<2x192xf32> to vector<2x48xf32>
    %131 = vector.extract_strided_slice %101 {offsets = [0, 144], sizes = [2, 48], strides = [1, 1]} : vector<2x192xf32> to vector<2x48xf32>
    %132 = vector.extract_strided_slice %130 {offsets = [0, 0], sizes = [2, 16], strides = [1, 1]} : vector<2x48xf32> to vector<2x16xf32>
    %133 = vector.extract_strided_slice %131 {offsets = [0, 0], sizes = [2, 16], strides = [1, 1]} : vector<2x48xf32> to vector<2x16xf32>
    %134 = arith.addf %132, %133 : vector<2x16xf32>
    %135 = arith.negf %134 : vector<2x16xf32>
    %136 = math.exp %135 : vector<2x16xf32>
    %cst_55 = arith.constant 1.000000e+00 : f32
    %137 = vector.broadcast %cst_55 : f32 to vector<2x16xf32>
    %138 = arith.addf %137, %136 : vector<2x16xf32>
    %139 = arith.divf %137, %138 : vector<2x16xf32>
    %140 = vector.extract_strided_slice %130 {offsets = [0, 16], sizes = [2, 16], strides = [1, 1]} : vector<2x48xf32> to vector<2x16xf32>
    %141 = vector.extract_strided_slice %131 {offsets = [0, 16], sizes = [2, 16], strides = [1, 1]} : vector<2x48xf32> to vector<2x16xf32>
    %142 = arith.addf %140, %141 : vector<2x16xf32>
    %143 = arith.negf %142 : vector<2x16xf32>
    %144 = math.exp %143 : vector<2x16xf32>
    %cst_56 = arith.constant 1.000000e+00 : f32
    %145 = vector.broadcast %cst_56 : f32 to vector<2x16xf32>
    %146 = arith.addf %145, %144 : vector<2x16xf32>
    %147 = arith.divf %145, %146 : vector<2x16xf32>
    %148 = vector.extract_strided_slice %130 {offsets = [0, 32], sizes = [2, 16], strides = [1, 1]} : vector<2x48xf32> to vector<2x16xf32>
    %149 = vector.extract_strided_slice %131 {offsets = [0, 32], sizes = [2, 16], strides = [1, 1]} : vector<2x48xf32> to vector<2x16xf32>
    %150 = arith.mulf %139, %149 : vector<2x16xf32>
    %151 = arith.addf %148, %150 : vector<2x16xf32>
    %152 = math.tanh %151 : vector<2x16xf32>
    %cst_57 = arith.constant 1.000000e+00 : f32
    %153 = vector.broadcast %cst_57 : f32 to vector<2x16xf32>
    %154 = arith.subf %153, %147 : vector<2x16xf32>
    %155 = arith.mulf %154, %152 : vector<2x16xf32>
    %156 = arith.mulf %147, %97 : vector<2x16xf32>
    %157 = arith.addf %155, %156 : vector<2x16xf32>
    %158 = tpu.concatenate %43, %129, %82, %157 in 1 : vector<2x8xf32>, vector<2x16xf32>, vector<2x8xf32>, vector<2x16xf32> -> vector<2x48xf32>
    %c0_58 = arith.constant 0 : index
    %c0_59 = arith.constant 0 : index
    %159 = vector.load %arg5[%c0_58, %c0_59] : memref<48x192xf32, #tpu.memory_space<vmem>>, vector<48x192xf32>
    %cst_60 = arith.constant dense<0.000000e+00> : vector<2x192xf32>
    %160 = tpu.matmul %158, %159, %cst_60 {dimension_numbers = #tpu.dot_dimension_numbers<[1], [0], [0], [1], [0, 0, 1, 1], [], []>} : vector<2x48xf32>, vector<48x192xf32>, vector<2x192xf32> -> vector<2x192xf32>
    %161 = arith.addf %160, %2 : vector<2x192xf32>
    %162 = vector.extract_strided_slice %161 {offsets = [0, 0], sizes = [2, 48], strides = [1, 1]} : vector<2x192xf32> to vector<2x48xf32>
    %163 = vector.extract_strided_slice %161 {offsets = [0, 48], sizes = [2, 48], strides = [1, 1]} : vector<2x192xf32> to vector<2x48xf32>
    %164 = vector.extract_strided_slice %162 {offsets = [0, 0], sizes = [2, 16], strides = [1, 1]} : vector<2x48xf32> to vector<2x16xf32>
    %165 = vector.extract_strided_slice %163 {offsets = [0, 0], sizes = [2, 16], strides = [1, 1]} : vector<2x48xf32> to vector<2x16xf32>
    %166 = arith.addf %164, %165 : vector<2x16xf32>
    %167 = arith.negf %166 : vector<2x16xf32>
    %168 = math.exp %167 : vector<2x16xf32>
    %cst_61 = arith.constant 1.000000e+00 : f32
    %169 = vector.broadcast %cst_61 : f32 to vector<2x16xf32>
    %170 = arith.addf %169, %168 : vector<2x16xf32>
    %171 = arith.divf %169, %170 : vector<2x16xf32>
    %172 = vector.extract_strided_slice %162 {offsets = [0, 16], sizes = [2, 16], strides = [1, 1]} : vector<2x48xf32> to vector<2x16xf32>
    %173 = vector.extract_strided_slice %163 {offsets = [0, 16], sizes = [2, 16], strides = [1, 1]} : vector<2x48xf32> to vector<2x16xf32>
    %174 = arith.addf %172, %173 : vector<2x16xf32>
    %175 = arith.negf %174 : vector<2x16xf32>
    %176 = math.exp %175 : vector<2x16xf32>
    %cst_62 = arith.constant 1.000000e+00 : f32
    %177 = vector.broadcast %cst_62 : f32 to vector<2x16xf32>
    %178 = arith.addf %177, %176 : vector<2x16xf32>
    %179 = arith.divf %177, %178 : vector<2x16xf32>
    %180 = vector.extract_strided_slice %162 {offsets = [0, 32], sizes = [2, 16], strides = [1, 1]} : vector<2x48xf32> to vector<2x16xf32>
    %181 = vector.extract_strided_slice %163 {offsets = [0, 32], sizes = [2, 16], strides = [1, 1]} : vector<2x48xf32> to vector<2x16xf32>
    %182 = arith.mulf %171, %181 : vector<2x16xf32>
    %183 = arith.addf %180, %182 : vector<2x16xf32>
    %184 = math.tanh %183 : vector<2x16xf32>
    %cst_63 = arith.constant 1.000000e+00 : f32
    %185 = vector.broadcast %cst_63 : f32 to vector<2x16xf32>
    %186 = arith.subf %185, %179 : vector<2x16xf32>
    %187 = arith.mulf %186, %184 : vector<2x16xf32>
    %188 = arith.mulf %179, %129 : vector<2x16xf32>
    %189 = arith.addf %187, %188 : vector<2x16xf32>
    %190 = vector.extract_strided_slice %161 {offsets = [0, 96], sizes = [2, 48], strides = [1, 1]} : vector<2x192xf32> to vector<2x48xf32>
    %191 = vector.extract_strided_slice %161 {offsets = [0, 144], sizes = [2, 48], strides = [1, 1]} : vector<2x192xf32> to vector<2x48xf32>
    %192 = vector.extract_strided_slice %190 {offsets = [0, 0], sizes = [2, 16], strides = [1, 1]} : vector<2x48xf32> to vector<2x16xf32>
    %193 = vector.extract_strided_slice %191 {offsets = [0, 0], sizes = [2, 16], strides = [1, 1]} : vector<2x48xf32> to vector<2x16xf32>
    %194 = arith.addf %192, %193 : vector<2x16xf32>
    %195 = arith.negf %194 : vector<2x16xf32>
    %196 = math.exp %195 : vector<2x16xf32>
    %cst_64 = arith.constant 1.000000e+00 : f32
    %197 = vector.broadcast %cst_64 : f32 to vector<2x16xf32>
    %198 = arith.addf %197, %196 : vector<2x16xf32>
    %199 = arith.divf %197, %198 : vector<2x16xf32>
    %200 = vector.extract_strided_slice %190 {offsets = [0, 16], sizes = [2, 16], strides = [1, 1]} : vector<2x48xf32> to vector<2x16xf32>
    %201 = vector.extract_strided_slice %191 {offsets = [0, 16], sizes = [2, 16], strides = [1, 1]} : vector<2x48xf32> to vector<2x16xf32>
    %202 = arith.addf %200, %201 : vector<2x16xf32>
    %203 = arith.negf %202 : vector<2x16xf32>
    %204 = math.exp %203 : vector<2x16xf32>
    %cst_65 = arith.constant 1.000000e+00 : f32
    %205 = vector.broadcast %cst_65 : f32 to vector<2x16xf32>
    %206 = arith.addf %205, %204 : vector<2x16xf32>
    %207 = arith.divf %205, %206 : vector<2x16xf32>
    %208 = vector.extract_strided_slice %190 {offsets = [0, 32], sizes = [2, 16], strides = [1, 1]} : vector<2x48xf32> to vector<2x16xf32>
    %209 = vector.extract_strided_slice %191 {offsets = [0, 32], sizes = [2, 16], strides = [1, 1]} : vector<2x48xf32> to vector<2x16xf32>
    %210 = arith.mulf %199, %209 : vector<2x16xf32>
    %211 = arith.addf %208, %210 : vector<2x16xf32>
    %212 = math.tanh %211 : vector<2x16xf32>
    %cst_66 = arith.constant 1.000000e+00 : f32
    %213 = vector.broadcast %cst_66 : f32 to vector<2x16xf32>
    %214 = arith.subf %213, %207 : vector<2x16xf32>
    %215 = arith.mulf %214, %212 : vector<2x16xf32>
    %216 = arith.mulf %207, %157 : vector<2x16xf32>
    %217 = arith.addf %215, %216 : vector<2x16xf32>
    %218 = tpu.concatenate %56, %189, %69, %217 in 1 : vector<2x8xf32>, vector<2x16xf32>, vector<2x8xf32>, vector<2x16xf32> -> vector<2x48xf32>
    %c0_67 = arith.constant 0 : index
    %c0_68 = arith.constant 0 : index
    %219 = vector.load %arg5[%c0_67, %c0_68] : memref<48x192xf32, #tpu.memory_space<vmem>>, vector<48x192xf32>
    %cst_69 = arith.constant dense<0.000000e+00> : vector<2x192xf32>
    %220 = tpu.matmul %218, %219, %cst_69 {dimension_numbers = #tpu.dot_dimension_numbers<[1], [0], [0], [1], [0, 0, 1, 1], [], []>} : vector<2x48xf32>, vector<48x192xf32>, vector<2x192xf32> -> vector<2x192xf32>
    %221 = arith.addf %220, %2 : vector<2x192xf32>
    %222 = vector.extract_strided_slice %221 {offsets = [0, 0], sizes = [2, 48], strides = [1, 1]} : vector<2x192xf32> to vector<2x48xf32>
    %223 = vector.extract_strided_slice %221 {offsets = [0, 48], sizes = [2, 48], strides = [1, 1]} : vector<2x192xf32> to vector<2x48xf32>
    %224 = vector.extract_strided_slice %222 {offsets = [0, 0], sizes = [2, 16], strides = [1, 1]} : vector<2x48xf32> to vector<2x16xf32>
    %225 = vector.extract_strided_slice %223 {offsets = [0, 0], sizes = [2, 16], strides = [1, 1]} : vector<2x48xf32> to vector<2x16xf32>
    %226 = arith.addf %224, %225 : vector<2x16xf32>
    %227 = arith.negf %226 : vector<2x16xf32>
    %228 = math.exp %227 : vector<2x16xf32>
    %cst_70 = arith.constant 1.000000e+00 : f32
    %229 = vector.broadcast %cst_70 : f32 to vector<2x16xf32>
    %230 = arith.addf %229, %228 : vector<2x16xf32>
    %231 = arith.divf %229, %230 : vector<2x16xf32>
    %232 = vector.extract_strided_slice %222 {offsets = [0, 16], sizes = [2, 16], strides = [1, 1]} : vector<2x48xf32> to vector<2x16xf32>
    %233 = vector.extract_strided_slice %223 {offsets = [0, 16], sizes = [2, 16], strides = [1, 1]} : vector<2x48xf32> to vector<2x16xf32>
    %234 = arith.addf %232, %233 : vector<2x16xf32>
    %235 = arith.negf %234 : vector<2x16xf32>
    %236 = math.exp %235 : vector<2x16xf32>
    %cst_71 = arith.constant 1.000000e+00 : f32
    %237 = vector.broadcast %cst_71 : f32 to vector<2x16xf32>
    %238 = arith.addf %237, %236 : vector<2x16xf32>
    %239 = arith.divf %237, %238 : vector<2x16xf32>
    %240 = vector.extract_strided_slice %222 {offsets = [0, 32], sizes = [2, 16], strides = [1, 1]} : vector<2x48xf32> to vector<2x16xf32>
    %241 = vector.extract_strided_slice %223 {offsets = [0, 32], sizes = [2, 16], strides = [1, 1]} : vector<2x48xf32> to vector<2x16xf32>
    %242 = arith.mulf %231, %241 : vector<2x16xf32>
    %243 = arith.addf %240, %242 : vector<2x16xf32>
    %244 = math.tanh %243 : vector<2x16xf32>
    %cst_72 = arith.constant 1.000000e+00 : f32
    %245 = vector.broadcast %cst_72 : f32 to vector<2x16xf32>
    %246 = arith.subf %245, %239 : vector<2x16xf32>
    %247 = arith.mulf %246, %244 : vector<2x16xf32>
    %248 = arith.mulf %239, %189 : vector<2x16xf32>
    %249 = arith.addf %247, %248 : vector<2x16xf32>
    %250 = vector.extract_strided_slice %221 {offsets = [0, 96], sizes = [2, 48], strides = [1, 1]} : vector<2x192xf32> to vector<2x48xf32>
    %251 = vector.extract_strided_slice %221 {offsets = [0, 144], sizes = [2, 48], strides = [1, 1]} : vector<2x192xf32> to vector<2x48xf32>
    %252 = vector.extract_strided_slice %250 {offsets = [0, 0], sizes = [2, 16], strides = [1, 1]} : vector<2x48xf32> to vector<2x16xf32>
    %253 = vector.extract_strided_slice %251 {offsets = [0, 0], sizes = [2, 16], strides = [1, 1]} : vector<2x48xf32> to vector<2x16xf32>
    %254 = arith.addf %252, %253 : vector<2x16xf32>
    %255 = arith.negf %254 : vector<2x16xf32>
    %256 = math.exp %255 : vector<2x16xf32>
    %cst_73 = arith.constant 1.000000e+00 : f32
    %257 = vector.broadcast %cst_73 : f32 to vector<2x16xf32>
    %258 = arith.addf %257, %256 : vector<2x16xf32>
    %259 = arith.divf %257, %258 : vector<2x16xf32>
    %260 = vector.extract_strided_slice %250 {offsets = [0, 16], sizes = [2, 16], strides = [1, 1]} : vector<2x48xf32> to vector<2x16xf32>
    %261 = vector.extract_strided_slice %251 {offsets = [0, 16], sizes = [2, 16], strides = [1, 1]} : vector<2x48xf32> to vector<2x16xf32>
    %262 = arith.addf %260, %261 : vector<2x16xf32>
    %263 = arith.negf %262 : vector<2x16xf32>
    %264 = math.exp %263 : vector<2x16xf32>
    %cst_74 = arith.constant 1.000000e+00 : f32
    %265 = vector.broadcast %cst_74 : f32 to vector<2x16xf32>
    %266 = arith.addf %265, %264 : vector<2x16xf32>
    %267 = arith.divf %265, %266 : vector<2x16xf32>
    %268 = vector.extract_strided_slice %250 {offsets = [0, 32], sizes = [2, 16], strides = [1, 1]} : vector<2x48xf32> to vector<2x16xf32>
    %269 = vector.extract_strided_slice %251 {offsets = [0, 32], sizes = [2, 16], strides = [1, 1]} : vector<2x48xf32> to vector<2x16xf32>
    %270 = arith.mulf %259, %269 : vector<2x16xf32>
    %271 = arith.addf %268, %270 : vector<2x16xf32>
    %272 = math.tanh %271 : vector<2x16xf32>
    %cst_75 = arith.constant 1.000000e+00 : f32
    %273 = vector.broadcast %cst_75 : f32 to vector<2x16xf32>
    %274 = arith.subf %273, %267 : vector<2x16xf32>
    %275 = arith.mulf %274, %272 : vector<2x16xf32>
    %276 = arith.mulf %267, %217 : vector<2x16xf32>
    %277 = arith.addf %275, %276 : vector<2x16xf32>
    %278 = tpu.concatenate %69, %249, %56, %277 in 1 : vector<2x8xf32>, vector<2x16xf32>, vector<2x8xf32>, vector<2x16xf32> -> vector<2x48xf32>
    %c0_76 = arith.constant 0 : index
    %c0_77 = arith.constant 0 : index
    %279 = vector.load %arg5[%c0_76, %c0_77] : memref<48x192xf32, #tpu.memory_space<vmem>>, vector<48x192xf32>
    %cst_78 = arith.constant dense<0.000000e+00> : vector<2x192xf32>
    %280 = tpu.matmul %278, %279, %cst_78 {dimension_numbers = #tpu.dot_dimension_numbers<[1], [0], [0], [1], [0, 0, 1, 1], [], []>} : vector<2x48xf32>, vector<48x192xf32>, vector<2x192xf32> -> vector<2x192xf32>
    %281 = arith.addf %280, %2 : vector<2x192xf32>
    %282 = vector.extract_strided_slice %281 {offsets = [0, 0], sizes = [2, 48], strides = [1, 1]} : vector<2x192xf32> to vector<2x48xf32>
    %283 = vector.extract_strided_slice %281 {offsets = [0, 48], sizes = [2, 48], strides = [1, 1]} : vector<2x192xf32> to vector<2x48xf32>
    %284 = vector.extract_strided_slice %282 {offsets = [0, 0], sizes = [2, 16], strides = [1, 1]} : vector<2x48xf32> to vector<2x16xf32>
    %285 = vector.extract_strided_slice %283 {offsets = [0, 0], sizes = [2, 16], strides = [1, 1]} : vector<2x48xf32> to vector<2x16xf32>
    %286 = arith.addf %284, %285 : vector<2x16xf32>
    %287 = arith.negf %286 : vector<2x16xf32>
    %288 = math.exp %287 : vector<2x16xf32>
    %cst_79 = arith.constant 1.000000e+00 : f32
    %289 = vector.broadcast %cst_79 : f32 to vector<2x16xf32>
    %290 = arith.addf %289, %288 : vector<2x16xf32>
    %291 = arith.divf %289, %290 : vector<2x16xf32>
    %292 = vector.extract_strided_slice %282 {offsets = [0, 16], sizes = [2, 16], strides = [1, 1]} : vector<2x48xf32> to vector<2x16xf32>
    %293 = vector.extract_strided_slice %283 {offsets = [0, 16], sizes = [2, 16], strides = [1, 1]} : vector<2x48xf32> to vector<2x16xf32>
    %294 = arith.addf %292, %293 : vector<2x16xf32>
    %295 = arith.negf %294 : vector<2x16xf32>
    %296 = math.exp %295 : vector<2x16xf32>
    %cst_80 = arith.constant 1.000000e+00 : f32
    %297 = vector.broadcast %cst_80 : f32 to vector<2x16xf32>
    %298 = arith.addf %297, %296 : vector<2x16xf32>
    %299 = arith.divf %297, %298 : vector<2x16xf32>
    %300 = vector.extract_strided_slice %282 {offsets = [0, 32], sizes = [2, 16], strides = [1, 1]} : vector<2x48xf32> to vector<2x16xf32>
    %301 = vector.extract_strided_slice %283 {offsets = [0, 32], sizes = [2, 16], strides = [1, 1]} : vector<2x48xf32> to vector<2x16xf32>
    %302 = arith.mulf %291, %301 : vector<2x16xf32>
    %303 = arith.addf %300, %302 : vector<2x16xf32>
    %304 = math.tanh %303 : vector<2x16xf32>
    %cst_81 = arith.constant 1.000000e+00 : f32
    %305 = vector.broadcast %cst_81 : f32 to vector<2x16xf32>
    %306 = arith.subf %305, %299 : vector<2x16xf32>
    %307 = arith.mulf %306, %304 : vector<2x16xf32>
    %308 = arith.mulf %299, %249 : vector<2x16xf32>
    %309 = arith.addf %307, %308 : vector<2x16xf32>
    %310 = vector.extract_strided_slice %281 {offsets = [0, 96], sizes = [2, 48], strides = [1, 1]} : vector<2x192xf32> to vector<2x48xf32>
    %311 = vector.extract_strided_slice %281 {offsets = [0, 144], sizes = [2, 48], strides = [1, 1]} : vector<2x192xf32> to vector<2x48xf32>
    %312 = vector.extract_strided_slice %310 {offsets = [0, 0], sizes = [2, 16], strides = [1, 1]} : vector<2x48xf32> to vector<2x16xf32>
    %313 = vector.extract_strided_slice %311 {offsets = [0, 0], sizes = [2, 16], strides = [1, 1]} : vector<2x48xf32> to vector<2x16xf32>
    %314 = arith.addf %312, %313 : vector<2x16xf32>
    %315 = arith.negf %314 : vector<2x16xf32>
    %316 = math.exp %315 : vector<2x16xf32>
    %cst_82 = arith.constant 1.000000e+00 : f32
    %317 = vector.broadcast %cst_82 : f32 to vector<2x16xf32>
    %318 = arith.addf %317, %316 : vector<2x16xf32>
    %319 = arith.divf %317, %318 : vector<2x16xf32>
    %320 = vector.extract_strided_slice %310 {offsets = [0, 16], sizes = [2, 16], strides = [1, 1]} : vector<2x48xf32> to vector<2x16xf32>
    %321 = vector.extract_strided_slice %311 {offsets = [0, 16], sizes = [2, 16], strides = [1, 1]} : vector<2x48xf32> to vector<2x16xf32>
    %322 = arith.addf %320, %321 : vector<2x16xf32>
    %323 = arith.negf %322 : vector<2x16xf32>
    %324 = math.exp %323 : vector<2x16xf32>
    %cst_83 = arith.constant 1.000000e+00 : f32
    %325 = vector.broadcast %cst_83 : f32 to vector<2x16xf32>
    %326 = arith.addf %325, %324 : vector<2x16xf32>
    %327 = arith.divf %325, %326 : vector<2x16xf32>
    %328 = vector.extract_strided_slice %310 {offsets = [0, 32], sizes = [2, 16], strides = [1, 1]} : vector<2x48xf32> to vector<2x16xf32>
    %329 = vector.extract_strided_slice %311 {offsets = [0, 32], sizes = [2, 16], strides = [1, 1]} : vector<2x48xf32> to vector<2x16xf32>
    %330 = arith.mulf %319, %329 : vector<2x16xf32>
    %331 = arith.addf %328, %330 : vector<2x16xf32>
    %332 = math.tanh %331 : vector<2x16xf32>
    %cst_84 = arith.constant 1.000000e+00 : f32
    %333 = vector.broadcast %cst_84 : f32 to vector<2x16xf32>
    %334 = arith.subf %333, %327 : vector<2x16xf32>
    %335 = arith.mulf %334, %332 : vector<2x16xf32>
    %336 = arith.mulf %327, %277 : vector<2x16xf32>
    %337 = arith.addf %335, %336 : vector<2x16xf32>
    %338 = tpu.concatenate %82, %309, %43, %337 in 1 : vector<2x8xf32>, vector<2x16xf32>, vector<2x8xf32>, vector<2x16xf32> -> vector<2x48xf32>
    %c0_85 = arith.constant 0 : index
    %c0_86 = arith.constant 0 : index
    %339 = vector.load %arg5[%c0_85, %c0_86] : memref<48x192xf32, #tpu.memory_space<vmem>>, vector<48x192xf32>
    %cst_87 = arith.constant dense<0.000000e+00> : vector<2x192xf32>
    %340 = tpu.matmul %338, %339, %cst_87 {dimension_numbers = #tpu.dot_dimension_numbers<[1], [0], [0], [1], [0, 0, 1, 1], [], []>} : vector<2x48xf32>, vector<48x192xf32>, vector<2x192xf32> -> vector<2x192xf32>
    %341 = arith.addf %340, %2 : vector<2x192xf32>
    %342 = vector.extract_strided_slice %341 {offsets = [0, 0], sizes = [2, 48], strides = [1, 1]} : vector<2x192xf32> to vector<2x48xf32>
    %343 = vector.extract_strided_slice %341 {offsets = [0, 48], sizes = [2, 48], strides = [1, 1]} : vector<2x192xf32> to vector<2x48xf32>
    %344 = vector.extract_strided_slice %342 {offsets = [0, 0], sizes = [2, 16], strides = [1, 1]} : vector<2x48xf32> to vector<2x16xf32>
    %345 = vector.extract_strided_slice %343 {offsets = [0, 0], sizes = [2, 16], strides = [1, 1]} : vector<2x48xf32> to vector<2x16xf32>
    %346 = arith.addf %344, %345 : vector<2x16xf32>
    %347 = arith.negf %346 : vector<2x16xf32>
    %348 = math.exp %347 : vector<2x16xf32>
    %cst_88 = arith.constant 1.000000e+00 : f32
    %349 = vector.broadcast %cst_88 : f32 to vector<2x16xf32>
    %350 = arith.addf %349, %348 : vector<2x16xf32>
    %351 = arith.divf %349, %350 : vector<2x16xf32>
    %352 = vector.extract_strided_slice %342 {offsets = [0, 16], sizes = [2, 16], strides = [1, 1]} : vector<2x48xf32> to vector<2x16xf32>
    %353 = vector.extract_strided_slice %343 {offsets = [0, 16], sizes = [2, 16], strides = [1, 1]} : vector<2x48xf32> to vector<2x16xf32>
    %354 = arith.addf %352, %353 : vector<2x16xf32>
    %355 = arith.negf %354 : vector<2x16xf32>
    %356 = math.exp %355 : vector<2x16xf32>
    %cst_89 = arith.constant 1.000000e+00 : f32
    %357 = vector.broadcast %cst_89 : f32 to vector<2x16xf32>
    %358 = arith.addf %357, %356 : vector<2x16xf32>
    %359 = arith.divf %357, %358 : vector<2x16xf32>
    %360 = vector.extract_strided_slice %342 {offsets = [0, 32], sizes = [2, 16], strides = [1, 1]} : vector<2x48xf32> to vector<2x16xf32>
    %361 = vector.extract_strided_slice %343 {offsets = [0, 32], sizes = [2, 16], strides = [1, 1]} : vector<2x48xf32> to vector<2x16xf32>
    %362 = arith.mulf %351, %361 : vector<2x16xf32>
    %363 = arith.addf %360, %362 : vector<2x16xf32>
    %364 = math.tanh %363 : vector<2x16xf32>
    %cst_90 = arith.constant 1.000000e+00 : f32
    %365 = vector.broadcast %cst_90 : f32 to vector<2x16xf32>
    %366 = arith.subf %365, %359 : vector<2x16xf32>
    %367 = arith.mulf %366, %364 : vector<2x16xf32>
    %368 = arith.mulf %359, %309 : vector<2x16xf32>
    %369 = arith.addf %367, %368 : vector<2x16xf32>
    %370 = vector.extract_strided_slice %341 {offsets = [0, 96], sizes = [2, 48], strides = [1, 1]} : vector<2x192xf32> to vector<2x48xf32>
    %371 = vector.extract_strided_slice %341 {offsets = [0, 144], sizes = [2, 48], strides = [1, 1]} : vector<2x192xf32> to vector<2x48xf32>
    %372 = vector.extract_strided_slice %370 {offsets = [0, 0], sizes = [2, 16], strides = [1, 1]} : vector<2x48xf32> to vector<2x16xf32>
    %373 = vector.extract_strided_slice %371 {offsets = [0, 0], sizes = [2, 16], strides = [1, 1]} : vector<2x48xf32> to vector<2x16xf32>
    %374 = arith.addf %372, %373 : vector<2x16xf32>
    %375 = arith.negf %374 : vector<2x16xf32>
    %376 = math.exp %375 : vector<2x16xf32>
    %cst_91 = arith.constant 1.000000e+00 : f32
    %377 = vector.broadcast %cst_91 : f32 to vector<2x16xf32>
    %378 = arith.addf %377, %376 : vector<2x16xf32>
    %379 = arith.divf %377, %378 : vector<2x16xf32>
    %380 = vector.extract_strided_slice %370 {offsets = [0, 16], sizes = [2, 16], strides = [1, 1]} : vector<2x48xf32> to vector<2x16xf32>
    %381 = vector.extract_strided_slice %371 {offsets = [0, 16], sizes = [2, 16], strides = [1, 1]} : vector<2x48xf32> to vector<2x16xf32>
    %382 = arith.addf %380, %381 : vector<2x16xf32>
    %383 = arith.negf %382 : vector<2x16xf32>
    %384 = math.exp %383 : vector<2x16xf32>
    %cst_92 = arith.constant 1.000000e+00 : f32
    %385 = vector.broadcast %cst_92 : f32 to vector<2x16xf32>
    %386 = arith.addf %385, %384 : vector<2x16xf32>
    %387 = arith.divf %385, %386 : vector<2x16xf32>
    %388 = vector.extract_strided_slice %370 {offsets = [0, 32], sizes = [2, 16], strides = [1, 1]} : vector<2x48xf32> to vector<2x16xf32>
    %389 = vector.extract_strided_slice %371 {offsets = [0, 32], sizes = [2, 16], strides = [1, 1]} : vector<2x48xf32> to vector<2x16xf32>
    %390 = arith.mulf %379, %389 : vector<2x16xf32>
    %391 = arith.addf %388, %390 : vector<2x16xf32>
    %392 = math.tanh %391 : vector<2x16xf32>
    %cst_93 = arith.constant 1.000000e+00 : f32
    %393 = vector.broadcast %cst_93 : f32 to vector<2x16xf32>
    %394 = arith.subf %393, %387 : vector<2x16xf32>
    %395 = arith.mulf %394, %392 : vector<2x16xf32>
    %396 = arith.mulf %387, %337 : vector<2x16xf32>
    %397 = arith.addf %395, %396 : vector<2x16xf32>
    %398 = tpu.concatenate %95, %369, %30, %397 in 1 : vector<2x8xf32>, vector<2x16xf32>, vector<2x8xf32>, vector<2x16xf32> -> vector<2x48xf32>
    %c0_94 = arith.constant 0 : index
    %c0_95 = arith.constant 0 : index
    %399 = vector.load %arg5[%c0_94, %c0_95] : memref<48x192xf32, #tpu.memory_space<vmem>>, vector<48x192xf32>
    %cst_96 = arith.constant dense<0.000000e+00> : vector<2x192xf32>
    %400 = tpu.matmul %398, %399, %cst_96 {dimension_numbers = #tpu.dot_dimension_numbers<[1], [0], [0], [1], [0, 0, 1, 1], [], []>} : vector<2x48xf32>, vector<48x192xf32>, vector<2x192xf32> -> vector<2x192xf32>
    %401 = arith.addf %400, %2 : vector<2x192xf32>
    %402 = vector.extract_strided_slice %401 {offsets = [0, 0], sizes = [2, 48], strides = [1, 1]} : vector<2x192xf32> to vector<2x48xf32>
    %403 = vector.extract_strided_slice %401 {offsets = [0, 48], sizes = [2, 48], strides = [1, 1]} : vector<2x192xf32> to vector<2x48xf32>
    %404 = vector.extract_strided_slice %402 {offsets = [0, 0], sizes = [2, 16], strides = [1, 1]} : vector<2x48xf32> to vector<2x16xf32>
    %405 = vector.extract_strided_slice %403 {offsets = [0, 0], sizes = [2, 16], strides = [1, 1]} : vector<2x48xf32> to vector<2x16xf32>
    %406 = arith.addf %404, %405 : vector<2x16xf32>
    %407 = arith.negf %406 : vector<2x16xf32>
    %408 = math.exp %407 : vector<2x16xf32>
    %cst_97 = arith.constant 1.000000e+00 : f32
    %409 = vector.broadcast %cst_97 : f32 to vector<2x16xf32>
    %410 = arith.addf %409, %408 : vector<2x16xf32>
    %411 = arith.divf %409, %410 : vector<2x16xf32>
    %412 = vector.extract_strided_slice %402 {offsets = [0, 16], sizes = [2, 16], strides = [1, 1]} : vector<2x48xf32> to vector<2x16xf32>
    %413 = vector.extract_strided_slice %403 {offsets = [0, 16], sizes = [2, 16], strides = [1, 1]} : vector<2x48xf32> to vector<2x16xf32>
    %414 = arith.addf %412, %413 : vector<2x16xf32>
    %415 = arith.negf %414 : vector<2x16xf32>
    %416 = math.exp %415 : vector<2x16xf32>
    %cst_98 = arith.constant 1.000000e+00 : f32
    %417 = vector.broadcast %cst_98 : f32 to vector<2x16xf32>
    %418 = arith.addf %417, %416 : vector<2x16xf32>
    %419 = arith.divf %417, %418 : vector<2x16xf32>
    %420 = vector.extract_strided_slice %402 {offsets = [0, 32], sizes = [2, 16], strides = [1, 1]} : vector<2x48xf32> to vector<2x16xf32>
    %421 = vector.extract_strided_slice %403 {offsets = [0, 32], sizes = [2, 16], strides = [1, 1]} : vector<2x48xf32> to vector<2x16xf32>
    %422 = arith.mulf %411, %421 : vector<2x16xf32>
    %423 = arith.addf %420, %422 : vector<2x16xf32>
    %424 = math.tanh %423 : vector<2x16xf32>
    %cst_99 = arith.constant 1.000000e+00 : f32
    %425 = vector.broadcast %cst_99 : f32 to vector<2x16xf32>
    %426 = arith.subf %425, %419 : vector<2x16xf32>
    %427 = arith.mulf %426, %424 : vector<2x16xf32>
    %428 = arith.mulf %419, %369 : vector<2x16xf32>
    %429 = arith.addf %427, %428 : vector<2x16xf32>
    %430 = vector.extract_strided_slice %401 {offsets = [0, 96], sizes = [2, 48], strides = [1, 1]} : vector<2x192xf32> to vector<2x48xf32>
    %431 = vector.extract_strided_slice %401 {offsets = [0, 144], sizes = [2, 48], strides = [1, 1]} : vector<2x192xf32> to vector<2x48xf32>
    %432 = vector.extract_strided_slice %430 {offsets = [0, 0], sizes = [2, 16], strides = [1, 1]} : vector<2x48xf32> to vector<2x16xf32>
    %433 = vector.extract_strided_slice %431 {offsets = [0, 0], sizes = [2, 16], strides = [1, 1]} : vector<2x48xf32> to vector<2x16xf32>
    %434 = arith.addf %432, %433 : vector<2x16xf32>
    %435 = arith.negf %434 : vector<2x16xf32>
    %436 = math.exp %435 : vector<2x16xf32>
    %cst_100 = arith.constant 1.000000e+00 : f32
    %437 = vector.broadcast %cst_100 : f32 to vector<2x16xf32>
    %438 = arith.addf %437, %436 : vector<2x16xf32>
    %439 = arith.divf %437, %438 : vector<2x16xf32>
    %440 = vector.extract_strided_slice %430 {offsets = [0, 16], sizes = [2, 16], strides = [1, 1]} : vector<2x48xf32> to vector<2x16xf32>
    %441 = vector.extract_strided_slice %431 {offsets = [0, 16], sizes = [2, 16], strides = [1, 1]} : vector<2x48xf32> to vector<2x16xf32>
    %442 = arith.addf %440, %441 : vector<2x16xf32>
    %443 = arith.negf %442 : vector<2x16xf32>
    %444 = math.exp %443 : vector<2x16xf32>
    %cst_101 = arith.constant 1.000000e+00 : f32
    %445 = vector.broadcast %cst_101 : f32 to vector<2x16xf32>
    %446 = arith.addf %445, %444 : vector<2x16xf32>
    %447 = arith.divf %445, %446 : vector<2x16xf32>
    %448 = vector.extract_strided_slice %430 {offsets = [0, 32], sizes = [2, 16], strides = [1, 1]} : vector<2x48xf32> to vector<2x16xf32>
    %449 = vector.extract_strided_slice %431 {offsets = [0, 32], sizes = [2, 16], strides = [1, 1]} : vector<2x48xf32> to vector<2x16xf32>
    %450 = arith.mulf %439, %449 : vector<2x16xf32>
    %451 = arith.addf %448, %450 : vector<2x16xf32>
    %452 = math.tanh %451 : vector<2x16xf32>
    %cst_102 = arith.constant 1.000000e+00 : f32
    %453 = vector.broadcast %cst_102 : f32 to vector<2x16xf32>
    %454 = arith.subf %453, %447 : vector<2x16xf32>
    %455 = arith.mulf %454, %452 : vector<2x16xf32>
    %456 = arith.mulf %447, %397 : vector<2x16xf32>
    %457 = arith.addf %455, %456 : vector<2x16xf32>
    %458 = tpu.concatenate %129, %457 in 1 : vector<2x16xf32>, vector<2x16xf32> -> vector<2x32xf32>
    %459 = tpu.concatenate %189, %397 in 1 : vector<2x16xf32>, vector<2x16xf32> -> vector<2x32xf32>
    %460 = tpu.concatenate %249, %337 in 1 : vector<2x16xf32>, vector<2x16xf32> -> vector<2x32xf32>
    %461 = tpu.concatenate %309, %277 in 1 : vector<2x16xf32>, vector<2x16xf32> -> vector<2x32xf32>
    %462 = tpu.concatenate %369, %217 in 1 : vector<2x16xf32>, vector<2x16xf32> -> vector<2x32xf32>
    %463 = tpu.concatenate %429, %157 in 1 : vector<2x16xf32>, vector<2x16xf32> -> vector<2x32xf32>
    %464 = vector.shape_cast %458 : vector<2x32xf32> to vector<2x1x32xf32>
    %465 = vector.shape_cast %459 : vector<2x32xf32> to vector<2x1x32xf32>
    %466 = vector.shape_cast %460 : vector<2x32xf32> to vector<2x1x32xf32>
    %467 = vector.shape_cast %461 : vector<2x32xf32> to vector<2x1x32xf32>
    %468 = vector.shape_cast %462 : vector<2x32xf32> to vector<2x1x32xf32>
    %469 = vector.shape_cast %463 : vector<2x32xf32> to vector<2x1x32xf32>
    %470 = tpu.concatenate %464, %465, %466, %467, %468, %469 in 1 : vector<2x1x32xf32>, vector<2x1x32xf32>, vector<2x1x32xf32>, vector<2x1x32xf32>, vector<2x1x32xf32>, vector<2x1x32xf32> -> vector<2x6x32xf32>
    %471 = tpu.concatenate %429, %457 in 1 : vector<2x16xf32>, vector<2x16xf32> -> vector<2x32xf32>
    %c0_103 = arith.constant 0 : index
    %c0_104 = arith.constant 0 : index
    %472 = vector.load %arg6[%c0_103, %c0_104] : memref<32x16xf32, #tpu.memory_space<vmem>>, vector<32x16xf32>
    %cst_105 = arith.constant dense<0.000000e+00> : vector<2x16xf32>
    %473 = tpu.matmul %471, %472, %cst_105 {dimension_numbers = #tpu.dot_dimension_numbers<[1], [0], [0], [1], [0, 0, 1, 1], [], []>} : vector<2x32xf32>, vector<32x16xf32>, vector<2x16xf32> -> vector<2x16xf32>
    %474 = arith.addf %473, %5 : vector<2x16xf32>
    %475 = math.tanh %474 : vector<2x16xf32>
    %c0_106 = arith.constant 0 : index
    %c0_107 = arith.constant 0 : index
    %476 = vector.load %arg8[%c0_106, %c0_107] : memref<32x16xf32, #tpu.memory_space<vmem>>, vector<32x16xf32>
    "tpu.trace_start"() <{level = 10 : i32, message = "bse,ed->bsd"}> : () -> ()
    %cst_108 = arith.constant dense<0.000000e+00> : vector<2x6x16xf32>
    %477 = tpu.matmul %470, %476, %cst_108 {dimension_numbers = #tpu.dot_dimension_numbers<[2], [0], [0, 1], [1], [0, 0, 0, 1, 1, 1], [], []>} : vector<2x6x32xf32>, vector<32x16xf32>, vector<2x6x16xf32> -> vector<2x6x16xf32>
    "tpu.trace_stop"() : () -> ()
    %478 = vector.shape_cast %6 : vector<1x16xf32> to vector<1x1x16xf32>
    %479 = vector.broadcast %478 : vector<1x1x16xf32> to vector<2x6x16xf32>
    %480 = arith.addf %477, %479 : vector<2x6x16xf32>
    %481 = tpu.iota {dimensions = array<i32: 1>} : vector<1x16xi32>
    %c0_109 = arith.constant 0 : index
    %c0_110 = arith.constant 0 : index
    %482 = memref.load %arg2[%c0_109, %c0_110] : memref<8x2xi32, #tpu.memory_space<smem>>
    %483 = vector.broadcast %482 : i32 to vector<1x16xi32>
    %484 = arith.cmpi eq, %481, %483 : vector<1x16xi32>
    %485 = arith.extui %484 : vector<1x16xi1> to vector<1x16xi32>
    %486 = arith.sitofp %485 : vector<1x16xi32> to vector<1x16xf32>
    %c0_111 = arith.constant 0 : index
    %c1_112 = arith.constant 1 : index
    %487 = memref.load %arg2[%c0_111, %c1_112] : memref<8x2xi32, #tpu.memory_space<smem>>
    %488 = vector.broadcast %487 : i32 to vector<1x16xi32>
    %489 = arith.cmpi eq, %481, %488 : vector<1x16xi32>
    %490 = arith.extui %489 : vector<1x16xi1> to vector<1x16xi32>
    %491 = arith.sitofp %490 : vector<1x16xi32> to vector<1x16xf32>
    %492 = tpu.concatenate %486, %491 in 0 : vector<1x16xf32>, vector<1x16xf32> -> vector<2x16xf32>
    %cst_113 = arith.constant 0.000000e+00 : f32
    %493 = vector.broadcast %cst_113 : f32 to vector<2x16xf32>
    %c0_114 = arith.constant 0 : index
    %c0_115 = arith.constant 0 : index
    %494 = vector.load %arg9[%c0_114, %c0_115] : memref<16x8xf32, #tpu.memory_space<vmem>>, vector<16x8xf32>
    %cst_116 = arith.constant dense<0.000000e+00> : vector<2x8xf32>
    %495 = tpu.matmul %492, %494, %cst_116 {dimension_numbers = #tpu.dot_dimension_numbers<[1], [0], [0], [1], [0, 0, 1, 1], [], []>} : vector<2x16xf32>, vector<16x8xf32>, vector<2x8xf32> -> vector<2x8xf32>
    %c0_117 = arith.constant 0 : index
    %c0_118 = arith.constant 0 : index
    %496 = vector.load %arg7[%c0_117, %c0_118] : memref<16x16xf32, #tpu.memory_space<vmem>>, vector<16x16xf32>
    %cst_119 = arith.constant dense<0.000000e+00> : vector<2x16xf32>
    %497 = tpu.matmul %475, %496, %cst_119 {dimension_numbers = #tpu.dot_dimension_numbers<[1], [0], [0], [1], [0, 0, 1, 1], [], []>} : vector<2x16xf32>, vector<16x16xf32>, vector<2x16xf32> -> vector<2x16xf32>
    %498 = vector.shape_cast %497 : vector<2x16xf32> to vector<2x1x16xf32>
    %499 = vector.broadcast %498 : vector<2x1x16xf32> to vector<2x6x16xf32>
    %500 = arith.addf %480, %499 : vector<2x6x16xf32>
    %501 = math.tanh %500 : vector<2x6x16xf32>
    %502 = arith.mulf %501, %10 : vector<2x6x16xf32>
    %cst_120 = arith.constant dense<0.000000e+00> : vector<2x6xf32>
    %503 = vector.multi_reduction <add>, %502, %cst_120 [2] : vector<2x6x16xf32> to vector<2x6xf32>
    %cst_121 = arith.constant dense<0xFF800000> : vector<2xf32>
    %504 = vector.multi_reduction <maximumf>, %503, %cst_121 [1] : vector<2x6xf32> to vector<2xf32>
    %505 = vector.shape_cast %504 : vector<2xf32> to vector<2x1xf32>
    %506 = vector.broadcast %505 : vector<2x1xf32> to vector<2x6xf32>
    %507 = arith.subf %503, %506 : vector<2x6xf32>
    %508 = math.exp %507 : vector<2x6xf32>
    %cst_122 = arith.constant dense<0.000000e+00> : vector<2xf32>
    %509 = vector.multi_reduction <add>, %508, %cst_122 [1] : vector<2x6xf32> to vector<2xf32>
    %510 = vector.shape_cast %509 : vector<2xf32> to vector<2x1xf32>
    %511 = vector.broadcast %510 : vector<2x1xf32> to vector<2x6xf32>
    %512 = arith.divf %508, %511 : vector<2x6xf32>
    %513 = vector.shape_cast %512 : vector<2x6xf32> to vector<2x6x1xf32>
    %514 = vector.broadcast %513 : vector<2x6x1xf32> to vector<2x6x32xf32>
    %515 = arith.mulf %514, %470 : vector<2x6x32xf32>
    %cst_123 = arith.constant dense<0.000000e+00> : vector<2x32xf32>
    %516 = vector.multi_reduction <add>, %515, %cst_123 [1] : vector<2x6x32xf32> to vector<2x32xf32>
    %517 = tpu.concatenate %495, %516, %475 in 1 : vector<2x8xf32>, vector<2x32xf32>, vector<2x16xf32> -> vector<2x56xf32>
    %c0_124 = arith.constant 0 : index
    %c0_125 = arith.constant 0 : index
    %518 = vector.load %arg10[%c0_124, %c0_125] : memref<56x96xf32, #tpu.memory_space<vmem>>, vector<56x96xf32>
    %cst_126 = arith.constant dense<0.000000e+00> : vector<2x96xf32>
    %519 = tpu.matmul %517, %518, %cst_126 {dimension_numbers = #tpu.dot_dimension_numbers<[1], [0], [0], [1], [0, 0, 1, 1], [], []>} : vector<2x56xf32>, vector<56x96xf32>, vector<2x96xf32> -> vector<2x96xf32>
    %520 = arith.addf %519, %13 : vector<2x96xf32>
    %521 = vector.extract_strided_slice %520 {offsets = [0, 0], sizes = [2, 48], strides = [1, 1]} : vector<2x96xf32> to vector<2x48xf32>
    %522 = vector.extract_strided_slice %520 {offsets = [0, 48], sizes = [2, 48], strides = [1, 1]} : vector<2x96xf32> to vector<2x48xf32>
    %523 = vector.extract_strided_slice %521 {offsets = [0, 0], sizes = [2, 16], strides = [1, 1]} : vector<2x48xf32> to vector<2x16xf32>
    %524 = vector.extract_strided_slice %522 {offsets = [0, 0], sizes = [2, 16], strides = [1, 1]} : vector<2x48xf32> to vector<2x16xf32>
    %525 = arith.addf %523, %524 : vector<2x16xf32>
    %526 = arith.negf %525 : vector<2x16xf32>
    %527 = math.exp %526 : vector<2x16xf32>
    %cst_127 = arith.constant 1.000000e+00 : f32
    %528 = vector.broadcast %cst_127 : f32 to vector<2x16xf32>
    %529 = arith.addf %528, %527 : vector<2x16xf32>
    %530 = arith.divf %528, %529 : vector<2x16xf32>
    %531 = vector.extract_strided_slice %521 {offsets = [0, 16], sizes = [2, 16], strides = [1, 1]} : vector<2x48xf32> to vector<2x16xf32>
    %532 = vector.extract_strided_slice %522 {offsets = [0, 16], sizes = [2, 16], strides = [1, 1]} : vector<2x48xf32> to vector<2x16xf32>
    %533 = arith.addf %531, %532 : vector<2x16xf32>
    %534 = arith.negf %533 : vector<2x16xf32>
    %535 = math.exp %534 : vector<2x16xf32>
    %cst_128 = arith.constant 1.000000e+00 : f32
    %536 = vector.broadcast %cst_128 : f32 to vector<2x16xf32>
    %537 = arith.addf %536, %535 : vector<2x16xf32>
    %538 = arith.divf %536, %537 : vector<2x16xf32>
    %539 = vector.extract_strided_slice %521 {offsets = [0, 32], sizes = [2, 16], strides = [1, 1]} : vector<2x48xf32> to vector<2x16xf32>
    %540 = vector.extract_strided_slice %522 {offsets = [0, 32], sizes = [2, 16], strides = [1, 1]} : vector<2x48xf32> to vector<2x16xf32>
    %541 = arith.mulf %530, %540 : vector<2x16xf32>
    %542 = arith.addf %539, %541 : vector<2x16xf32>
    %543 = math.tanh %542 : vector<2x16xf32>
    %cst_129 = arith.constant 1.000000e+00 : f32
    %544 = vector.broadcast %cst_129 : f32 to vector<2x16xf32>
    %545 = arith.subf %544, %538 : vector<2x16xf32>
    %546 = arith.mulf %545, %543 : vector<2x16xf32>
    %547 = arith.mulf %538, %475 : vector<2x16xf32>
    %548 = arith.addf %546, %547 : vector<2x16xf32>
    %549 = tpu.concatenate %548, %516, %495 in 1 : vector<2x16xf32>, vector<2x32xf32>, vector<2x8xf32> -> vector<2x56xf32>
    %c0_130 = arith.constant 0 : index
    %c0_131 = arith.constant 0 : index
    %550 = vector.load %arg11[%c0_130, %c0_131] : memref<56x16xf32, #tpu.memory_space<vmem>>, vector<56x16xf32>
    %cst_132 = arith.constant dense<0.000000e+00> : vector<2x16xf32>
    %551 = tpu.matmul %549, %550, %cst_132 {dimension_numbers = #tpu.dot_dimension_numbers<[1], [0], [0], [1], [0, 0, 1, 1], [], []>} : vector<2x56xf32>, vector<56x16xf32>, vector<2x16xf32> -> vector<2x16xf32>
    %552 = arith.addf %551, %16 : vector<2x16xf32>
    %cst_133 = arith.constant dense<0xFF800000> : vector<2xf32>
    %553 = vector.multi_reduction <maximumf>, %552, %cst_133 [1] : vector<2x16xf32> to vector<2xf32>
    %554 = vector.shape_cast %553 : vector<2xf32> to vector<2x1xf32>
    %555 = tpu.iota {dimensions = array<i32: 1>} : vector<2x16xi32>
    %556 = vector.broadcast %554 : vector<2x1xf32> to vector<2x16xf32>
    %557 = arith.cmpf oeq, %552, %556 : vector<2x16xf32>
    %c16_i32 = arith.constant 16 : i32
    %558 = vector.broadcast %c16_i32 : i32 to vector<2x16xi32>
    %559 = arith.select %557, %555, %558 : vector<2x16xi1>, vector<2x16xi32>
    %cst_134 = arith.constant dense<2147483647> : vector<2xi32>
    %560 = vector.multi_reduction <minsi>, %559, %cst_134 [1] : vector<2x16xi32> to vector<2xi32>
    %561 = vector.shape_cast %560 : vector<2xi32> to vector<2x1xi32>
    %562 = vector.broadcast %561 : vector<2x1xi32> to vector<2x16xi32>
    %563 = arith.cmpi eq, %555, %562 : vector<2x16xi32>
    %564 = arith.extui %563 : vector<2x16xi1> to vector<2x16xi32>
    %565 = arith.sitofp %564 : vector<2x16xi32> to vector<2x16xf32>
    %c0_135 = arith.constant 0 : index
    %566 = memref.load %arg3[%c0_135] : memref<7xi32, #tpu.memory_space<smem>>
    %c1_i32 = arith.constant 1 : i32
    %567 = arith.cmpi eq, %566, %c1_i32 : i32
    %568 = arith.extui %567 : i1 to i32
    %569 = arith.sitofp %568 : i32 to f32
    %c1_136 = arith.constant 1 : index
    %c0_137 = arith.constant 0 : index
    %570 = memref.load %arg2[%c1_136, %c0_137] : memref<8x2xi32, #tpu.memory_space<smem>>
    %571 = vector.broadcast %570 : i32 to vector<1x16xi32>
    %572 = arith.cmpi eq, %481, %571 : vector<1x16xi32>
    %573 = arith.extui %572 : vector<1x16xi1> to vector<1x16xi32>
    %574 = arith.sitofp %573 : vector<1x16xi32> to vector<1x16xf32>
    %c1_138 = arith.constant 1 : index
    %c1_139 = arith.constant 1 : index
    %575 = memref.load %arg2[%c1_138, %c1_139] : memref<8x2xi32, #tpu.memory_space<smem>>
    %576 = vector.broadcast %575 : i32 to vector<1x16xi32>
    %577 = arith.cmpi eq, %481, %576 : vector<1x16xi32>
    %578 = arith.extui %577 : vector<1x16xi1> to vector<1x16xi32>
    %579 = arith.sitofp %578 : vector<1x16xi32> to vector<1x16xf32>
    %580 = tpu.concatenate %574, %579 in 0 : vector<1x16xf32>, vector<1x16xf32> -> vector<2x16xf32>
    %581 = vector.broadcast %569 : f32 to vector<2x16xf32>
    %582 = arith.mulf %581, %580 : vector<2x16xf32>
    %cst_140 = arith.constant 1.000000e+00 : f32
    %583 = arith.subf %cst_140, %569 : f32
    %584 = vector.broadcast %583 : f32 to vector<2x16xf32>
    %585 = arith.mulf %584, %565 : vector<2x16xf32>
    %586 = arith.addf %582, %585 : vector<2x16xf32>
    %c0_141 = arith.constant 0 : index
    %c0_142 = arith.constant 0 : index
    %587 = vector.load %arg9[%c0_141, %c0_142] : memref<16x8xf32, #tpu.memory_space<vmem>>, vector<16x8xf32>
    %cst_143 = arith.constant dense<0.000000e+00> : vector<2x8xf32>
    %588 = tpu.matmul %586, %587, %cst_143 {dimension_numbers = #tpu.dot_dimension_numbers<[1], [0], [0], [1], [0, 0, 1, 1], [], []>} : vector<2x16xf32>, vector<16x8xf32>, vector<2x8xf32> -> vector<2x8xf32>
    %c0_144 = arith.constant 0 : index
    %c0_145 = arith.constant 0 : index
    %589 = vector.load %arg7[%c0_144, %c0_145] : memref<16x16xf32, #tpu.memory_space<vmem>>, vector<16x16xf32>
    %cst_146 = arith.constant dense<0.000000e+00> : vector<2x16xf32>
    %590 = tpu.matmul %548, %589, %cst_146 {dimension_numbers = #tpu.dot_dimension_numbers<[1], [0], [0], [1], [0, 0, 1, 1], [], []>} : vector<2x16xf32>, vector<16x16xf32>, vector<2x16xf32> -> vector<2x16xf32>
    %591 = vector.shape_cast %590 : vector<2x16xf32> to vector<2x1x16xf32>
    %592 = vector.broadcast %591 : vector<2x1x16xf32> to vector<2x6x16xf32>
    %593 = arith.addf %480, %592 : vector<2x6x16xf32>
    %594 = math.tanh %593 : vector<2x6x16xf32>
    %595 = arith.mulf %594, %10 : vector<2x6x16xf32>
    %cst_147 = arith.constant dense<0.000000e+00> : vector<2x6xf32>
    %596 = vector.multi_reduction <add>, %595, %cst_147 [2] : vector<2x6x16xf32> to vector<2x6xf32>
    %cst_148 = arith.constant dense<0xFF800000> : vector<2xf32>
    %597 = vector.multi_reduction <maximumf>, %596, %cst_148 [1] : vector<2x6xf32> to vector<2xf32>
    %598 = vector.shape_cast %597 : vector<2xf32> to vector<2x1xf32>
    %599 = vector.broadcast %598 : vector<2x1xf32> to vector<2x6xf32>
    %600 = arith.subf %596, %599 : vector<2x6xf32>
    %601 = math.exp %600 : vector<2x6xf32>
    %cst_149 = arith.constant dense<0.000000e+00> : vector<2xf32>
    %602 = vector.multi_reduction <add>, %601, %cst_149 [1] : vector<2x6xf32> to vector<2xf32>
    %603 = vector.shape_cast %602 : vector<2xf32> to vector<2x1xf32>
    %604 = vector.broadcast %603 : vector<2x1xf32> to vector<2x6xf32>
    %605 = arith.divf %601, %604 : vector<2x6xf32>
    %606 = vector.shape_cast %605 : vector<2x6xf32> to vector<2x6x1xf32>
    %607 = vector.broadcast %606 : vector<2x6x1xf32> to vector<2x6x32xf32>
    %608 = arith.mulf %607, %470 : vector<2x6x32xf32>
    %cst_150 = arith.constant dense<0.000000e+00> : vector<2x32xf32>
    %609 = vector.multi_reduction <add>, %608, %cst_150 [1] : vector<2x6x32xf32> to vector<2x32xf32>
    %610 = tpu.concatenate %588, %609, %548 in 1 : vector<2x8xf32>, vector<2x32xf32>, vector<2x16xf32> -> vector<2x56xf32>
    %c0_151 = arith.constant 0 : index
    %c0_152 = arith.constant 0 : index
    %611 = vector.load %arg10[%c0_151, %c0_152] : memref<56x96xf32, #tpu.memory_space<vmem>>, vector<56x96xf32>
    %cst_153 = arith.constant dense<0.000000e+00> : vector<2x96xf32>
    %612 = tpu.matmul %610, %611, %cst_153 {dimension_numbers = #tpu.dot_dimension_numbers<[1], [0], [0], [1], [0, 0, 1, 1], [], []>} : vector<2x56xf32>, vector<56x96xf32>, vector<2x96xf32> -> vector<2x96xf32>
    %613 = arith.addf %612, %13 : vector<2x96xf32>
    %614 = vector.extract_strided_slice %613 {offsets = [0, 0], sizes = [2, 48], strides = [1, 1]} : vector<2x96xf32> to vector<2x48xf32>
    %615 = vector.extract_strided_slice %613 {offsets = [0, 48], sizes = [2, 48], strides = [1, 1]} : vector<2x96xf32> to vector<2x48xf32>
    %616 = vector.extract_strided_slice %614 {offsets = [0, 0], sizes = [2, 16], strides = [1, 1]} : vector<2x48xf32> to vector<2x16xf32>
    %617 = vector.extract_strided_slice %615 {offsets = [0, 0], sizes = [2, 16], strides = [1, 1]} : vector<2x48xf32> to vector<2x16xf32>
    %618 = arith.addf %616, %617 : vector<2x16xf32>
    %619 = arith.negf %618 : vector<2x16xf32>
    %620 = math.exp %619 : vector<2x16xf32>
    %cst_154 = arith.constant 1.000000e+00 : f32
    %621 = vector.broadcast %cst_154 : f32 to vector<2x16xf32>
    %622 = arith.addf %621, %620 : vector<2x16xf32>
    %623 = arith.divf %621, %622 : vector<2x16xf32>
    %624 = vector.extract_strided_slice %614 {offsets = [0, 16], sizes = [2, 16], strides = [1, 1]} : vector<2x48xf32> to vector<2x16xf32>
    %625 = vector.extract_strided_slice %615 {offsets = [0, 16], sizes = [2, 16], strides = [1, 1]} : vector<2x48xf32> to vector<2x16xf32>
    %626 = arith.addf %624, %625 : vector<2x16xf32>
    %627 = arith.negf %626 : vector<2x16xf32>
    %628 = math.exp %627 : vector<2x16xf32>
    %cst_155 = arith.constant 1.000000e+00 : f32
    %629 = vector.broadcast %cst_155 : f32 to vector<2x16xf32>
    %630 = arith.addf %629, %628 : vector<2x16xf32>
    %631 = arith.divf %629, %630 : vector<2x16xf32>
    %632 = vector.extract_strided_slice %614 {offsets = [0, 32], sizes = [2, 16], strides = [1, 1]} : vector<2x48xf32> to vector<2x16xf32>
    %633 = vector.extract_strided_slice %615 {offsets = [0, 32], sizes = [2, 16], strides = [1, 1]} : vector<2x48xf32> to vector<2x16xf32>
    %634 = arith.mulf %623, %633 : vector<2x16xf32>
    %635 = arith.addf %632, %634 : vector<2x16xf32>
    %636 = math.tanh %635 : vector<2x16xf32>
    %cst_156 = arith.constant 1.000000e+00 : f32
    %637 = vector.broadcast %cst_156 : f32 to vector<2x16xf32>
    %638 = arith.subf %637, %631 : vector<2x16xf32>
    %639 = arith.mulf %638, %636 : vector<2x16xf32>
    %640 = arith.mulf %631, %548 : vector<2x16xf32>
    %641 = arith.addf %639, %640 : vector<2x16xf32>
    %642 = tpu.concatenate %641, %609, %588 in 1 : vector<2x16xf32>, vector<2x32xf32>, vector<2x8xf32> -> vector<2x56xf32>
    %c0_157 = arith.constant 0 : index
    %c0_158 = arith.constant 0 : index
    %643 = vector.load %arg11[%c0_157, %c0_158] : memref<56x16xf32, #tpu.memory_space<vmem>>, vector<56x16xf32>
    %cst_159 = arith.constant dense<0.000000e+00> : vector<2x16xf32>
    %644 = tpu.matmul %642, %643, %cst_159 {dimension_numbers = #tpu.dot_dimension_numbers<[1], [0], [0], [1], [0, 0, 1, 1], [], []>} : vector<2x56xf32>, vector<56x16xf32>, vector<2x16xf32> -> vector<2x16xf32>
    %645 = arith.addf %644, %16 : vector<2x16xf32>
    %cst_160 = arith.constant dense<0xFF800000> : vector<2xf32>
    %646 = vector.multi_reduction <maximumf>, %645, %cst_160 [1] : vector<2x16xf32> to vector<2xf32>
    %647 = vector.shape_cast %646 : vector<2xf32> to vector<2x1xf32>
    %648 = tpu.iota {dimensions = array<i32: 1>} : vector<2x16xi32>
    %649 = vector.broadcast %647 : vector<2x1xf32> to vector<2x16xf32>
    %650 = arith.cmpf oeq, %645, %649 : vector<2x16xf32>
    %c16_i32_161 = arith.constant 16 : i32
    %651 = vector.broadcast %c16_i32_161 : i32 to vector<2x16xi32>
    %652 = arith.select %650, %648, %651 : vector<2x16xi1>, vector<2x16xi32>
    %cst_162 = arith.constant dense<2147483647> : vector<2xi32>
    %653 = vector.multi_reduction <minsi>, %652, %cst_162 [1] : vector<2x16xi32> to vector<2xi32>
    %654 = vector.shape_cast %653 : vector<2xi32> to vector<2x1xi32>
    %655 = vector.broadcast %654 : vector<2x1xi32> to vector<2x16xi32>
    %656 = arith.cmpi eq, %648, %655 : vector<2x16xi32>
    %657 = arith.extui %656 : vector<2x16xi1> to vector<2x16xi32>
    %658 = arith.sitofp %657 : vector<2x16xi32> to vector<2x16xf32>
    %c1_163 = arith.constant 1 : index
    %659 = memref.load %arg3[%c1_163] : memref<7xi32, #tpu.memory_space<smem>>
    %c1_i32_164 = arith.constant 1 : i32
    %660 = arith.cmpi eq, %659, %c1_i32_164 : i32
    %661 = arith.extui %660 : i1 to i32
    %662 = arith.sitofp %661 : i32 to f32
    %c2_165 = arith.constant 2 : index
    %c0_166 = arith.constant 0 : index
    %663 = memref.load %arg2[%c2_165, %c0_166] : memref<8x2xi32, #tpu.memory_space<smem>>
    %664 = vector.broadcast %663 : i32 to vector<1x16xi32>
    %665 = arith.cmpi eq, %481, %664 : vector<1x16xi32>
    %666 = arith.extui %665 : vector<1x16xi1> to vector<1x16xi32>
    %667 = arith.sitofp %666 : vector<1x16xi32> to vector<1x16xf32>
    %c2_167 = arith.constant 2 : index
    %c1_168 = arith.constant 1 : index
    %668 = memref.load %arg2[%c2_167, %c1_168] : memref<8x2xi32, #tpu.memory_space<smem>>
    %669 = vector.broadcast %668 : i32 to vector<1x16xi32>
    %670 = arith.cmpi eq, %481, %669 : vector<1x16xi32>
    %671 = arith.extui %670 : vector<1x16xi1> to vector<1x16xi32>
    %672 = arith.sitofp %671 : vector<1x16xi32> to vector<1x16xf32>
    %673 = tpu.concatenate %667, %672 in 0 : vector<1x16xf32>, vector<1x16xf32> -> vector<2x16xf32>
    %674 = vector.broadcast %662 : f32 to vector<2x16xf32>
    %675 = arith.mulf %674, %673 : vector<2x16xf32>
    %cst_169 = arith.constant 1.000000e+00 : f32
    %676 = arith.subf %cst_169, %662 : f32
    %677 = vector.broadcast %676 : f32 to vector<2x16xf32>
    %678 = arith.mulf %677, %658 : vector<2x16xf32>
    %679 = arith.addf %675, %678 : vector<2x16xf32>
    %c0_170 = arith.constant 0 : index
    %c0_171 = arith.constant 0 : index
    %680 = vector.load %arg9[%c0_170, %c0_171] : memref<16x8xf32, #tpu.memory_space<vmem>>, vector<16x8xf32>
    %cst_172 = arith.constant dense<0.000000e+00> : vector<2x8xf32>
    %681 = tpu.matmul %679, %680, %cst_172 {dimension_numbers = #tpu.dot_dimension_numbers<[1], [0], [0], [1], [0, 0, 1, 1], [], []>} : vector<2x16xf32>, vector<16x8xf32>, vector<2x8xf32> -> vector<2x8xf32>
    %c0_173 = arith.constant 0 : index
    %c0_174 = arith.constant 0 : index
    %682 = vector.load %arg7[%c0_173, %c0_174] : memref<16x16xf32, #tpu.memory_space<vmem>>, vector<16x16xf32>
    %cst_175 = arith.constant dense<0.000000e+00> : vector<2x16xf32>
    %683 = tpu.matmul %641, %682, %cst_175 {dimension_numbers = #tpu.dot_dimension_numbers<[1], [0], [0], [1], [0, 0, 1, 1], [], []>} : vector<2x16xf32>, vector<16x16xf32>, vector<2x16xf32> -> vector<2x16xf32>
    %684 = vector.shape_cast %683 : vector<2x16xf32> to vector<2x1x16xf32>
    %685 = vector.broadcast %684 : vector<2x1x16xf32> to vector<2x6x16xf32>
    %686 = arith.addf %480, %685 : vector<2x6x16xf32>
    %687 = math.tanh %686 : vector<2x6x16xf32>
    %688 = arith.mulf %687, %10 : vector<2x6x16xf32>
    %cst_176 = arith.constant dense<0.000000e+00> : vector<2x6xf32>
    %689 = vector.multi_reduction <add>, %688, %cst_176 [2] : vector<2x6x16xf32> to vector<2x6xf32>
    %cst_177 = arith.constant dense<0xFF800000> : vector<2xf32>
    %690 = vector.multi_reduction <maximumf>, %689, %cst_177 [1] : vector<2x6xf32> to vector<2xf32>
    %691 = vector.shape_cast %690 : vector<2xf32> to vector<2x1xf32>
    %692 = vector.broadcast %691 : vector<2x1xf32> to vector<2x6xf32>
    %693 = arith.subf %689, %692 : vector<2x6xf32>
    %694 = math.exp %693 : vector<2x6xf32>
    %cst_178 = arith.constant dense<0.000000e+00> : vector<2xf32>
    %695 = vector.multi_reduction <add>, %694, %cst_178 [1] : vector<2x6xf32> to vector<2xf32>
    %696 = vector.shape_cast %695 : vector<2xf32> to vector<2x1xf32>
    %697 = vector.broadcast %696 : vector<2x1xf32> to vector<2x6xf32>
    %698 = arith.divf %694, %697 : vector<2x6xf32>
    %699 = vector.shape_cast %698 : vector<2x6xf32> to vector<2x6x1xf32>
    %700 = vector.broadcast %699 : vector<2x6x1xf32> to vector<2x6x32xf32>
    %701 = arith.mulf %700, %470 : vector<2x6x32xf32>
    %cst_179 = arith.constant dense<0.000000e+00> : vector<2x32xf32>
    %702 = vector.multi_reduction <add>, %701, %cst_179 [1] : vector<2x6x32xf32> to vector<2x32xf32>
    %703 = tpu.concatenate %681, %702, %641 in 1 : vector<2x8xf32>, vector<2x32xf32>, vector<2x16xf32> -> vector<2x56xf32>
    %c0_180 = arith.constant 0 : index
    %c0_181 = arith.constant 0 : index
    %704 = vector.load %arg10[%c0_180, %c0_181] : memref<56x96xf32, #tpu.memory_space<vmem>>, vector<56x96xf32>
    %cst_182 = arith.constant dense<0.000000e+00> : vector<2x96xf32>
    %705 = tpu.matmul %703, %704, %cst_182 {dimension_numbers = #tpu.dot_dimension_numbers<[1], [0], [0], [1], [0, 0, 1, 1], [], []>} : vector<2x56xf32>, vector<56x96xf32>, vector<2x96xf32> -> vector<2x96xf32>
    %706 = arith.addf %705, %13 : vector<2x96xf32>
    %707 = vector.extract_strided_slice %706 {offsets = [0, 0], sizes = [2, 48], strides = [1, 1]} : vector<2x96xf32> to vector<2x48xf32>
    %708 = vector.extract_strided_slice %706 {offsets = [0, 48], sizes = [2, 48], strides = [1, 1]} : vector<2x96xf32> to vector<2x48xf32>
    %709 = vector.extract_strided_slice %707 {offsets = [0, 0], sizes = [2, 16], strides = [1, 1]} : vector<2x48xf32> to vector<2x16xf32>
    %710 = vector.extract_strided_slice %708 {offsets = [0, 0], sizes = [2, 16], strides = [1, 1]} : vector<2x48xf32> to vector<2x16xf32>
    %711 = arith.addf %709, %710 : vector<2x16xf32>
    %712 = arith.negf %711 : vector<2x16xf32>
    %713 = math.exp %712 : vector<2x16xf32>
    %cst_183 = arith.constant 1.000000e+00 : f32
    %714 = vector.broadcast %cst_183 : f32 to vector<2x16xf32>
    %715 = arith.addf %714, %713 : vector<2x16xf32>
    %716 = arith.divf %714, %715 : vector<2x16xf32>
    %717 = vector.extract_strided_slice %707 {offsets = [0, 16], sizes = [2, 16], strides = [1, 1]} : vector<2x48xf32> to vector<2x16xf32>
    %718 = vector.extract_strided_slice %708 {offsets = [0, 16], sizes = [2, 16], strides = [1, 1]} : vector<2x48xf32> to vector<2x16xf32>
    %719 = arith.addf %717, %718 : vector<2x16xf32>
    %720 = arith.negf %719 : vector<2x16xf32>
    %721 = math.exp %720 : vector<2x16xf32>
    %cst_184 = arith.constant 1.000000e+00 : f32
    %722 = vector.broadcast %cst_184 : f32 to vector<2x16xf32>
    %723 = arith.addf %722, %721 : vector<2x16xf32>
    %724 = arith.divf %722, %723 : vector<2x16xf32>
    %725 = vector.extract_strided_slice %707 {offsets = [0, 32], sizes = [2, 16], strides = [1, 1]} : vector<2x48xf32> to vector<2x16xf32>
    %726 = vector.extract_strided_slice %708 {offsets = [0, 32], sizes = [2, 16], strides = [1, 1]} : vector<2x48xf32> to vector<2x16xf32>
    %727 = arith.mulf %716, %726 : vector<2x16xf32>
    %728 = arith.addf %725, %727 : vector<2x16xf32>
    %729 = math.tanh %728 : vector<2x16xf32>
    %cst_185 = arith.constant 1.000000e+00 : f32
    %730 = vector.broadcast %cst_185 : f32 to vector<2x16xf32>
    %731 = arith.subf %730, %724 : vector<2x16xf32>
    %732 = arith.mulf %731, %729 : vector<2x16xf32>
    %733 = arith.mulf %724, %641 : vector<2x16xf32>
    %734 = arith.addf %732, %733 : vector<2x16xf32>
    %735 = tpu.concatenate %734, %702, %681 in 1 : vector<2x16xf32>, vector<2x32xf32>, vector<2x8xf32> -> vector<2x56xf32>
    %c0_186 = arith.constant 0 : index
    %c0_187 = arith.constant 0 : index
    %736 = vector.load %arg11[%c0_186, %c0_187] : memref<56x16xf32, #tpu.memory_space<vmem>>, vector<56x16xf32>
    %cst_188 = arith.constant dense<0.000000e+00> : vector<2x16xf32>
    %737 = tpu.matmul %735, %736, %cst_188 {dimension_numbers = #tpu.dot_dimension_numbers<[1], [0], [0], [1], [0, 0, 1, 1], [], []>} : vector<2x56xf32>, vector<56x16xf32>, vector<2x16xf32> -> vector<2x16xf32>
    %738 = arith.addf %737, %16 : vector<2x16xf32>
    %cst_189 = arith.constant dense<0xFF800000> : vector<2xf32>
    %739 = vector.multi_reduction <maximumf>, %738, %cst_189 [1] : vector<2x16xf32> to vector<2xf32>
    %740 = vector.shape_cast %739 : vector<2xf32> to vector<2x1xf32>
    %741 = tpu.iota {dimensions = array<i32: 1>} : vector<2x16xi32>
    %742 = vector.broadcast %740 : vector<2x1xf32> to vector<2x16xf32>
    %743 = arith.cmpf oeq, %738, %742 : vector<2x16xf32>
    %c16_i32_190 = arith.constant 16 : i32
    %744 = vector.broadcast %c16_i32_190 : i32 to vector<2x16xi32>
    %745 = arith.select %743, %741, %744 : vector<2x16xi1>, vector<2x16xi32>
    %cst_191 = arith.constant dense<2147483647> : vector<2xi32>
    %746 = vector.multi_reduction <minsi>, %745, %cst_191 [1] : vector<2x16xi32> to vector<2xi32>
    %747 = vector.shape_cast %746 : vector<2xi32> to vector<2x1xi32>
    %748 = vector.broadcast %747 : vector<2x1xi32> to vector<2x16xi32>
    %749 = arith.cmpi eq, %741, %748 : vector<2x16xi32>
    %750 = arith.extui %749 : vector<2x16xi1> to vector<2x16xi32>
    %751 = arith.sitofp %750 : vector<2x16xi32> to vector<2x16xf32>
    %c2_192 = arith.constant 2 : index
    %752 = memref.load %arg3[%c2_192] : memref<7xi32, #tpu.memory_space<smem>>
    %c1_i32_193 = arith.constant 1 : i32
    %753 = arith.cmpi eq, %752, %c1_i32_193 : i32
    %754 = arith.extui %753 : i1 to i32
    %755 = arith.sitofp %754 : i32 to f32
    %c3_194 = arith.constant 3 : index
    %c0_195 = arith.constant 0 : index
    %756 = memref.load %arg2[%c3_194, %c0_195] : memref<8x2xi32, #tpu.memory_space<smem>>
    %757 = vector.broadcast %756 : i32 to vector<1x16xi32>
    %758 = arith.cmpi eq, %481, %757 : vector<1x16xi32>
    %759 = arith.extui %758 : vector<1x16xi1> to vector<1x16xi32>
    %760 = arith.sitofp %759 : vector<1x16xi32> to vector<1x16xf32>
    %c3_196 = arith.constant 3 : index
    %c1_197 = arith.constant 1 : index
    %761 = memref.load %arg2[%c3_196, %c1_197] : memref<8x2xi32, #tpu.memory_space<smem>>
    %762 = vector.broadcast %761 : i32 to vector<1x16xi32>
    %763 = arith.cmpi eq, %481, %762 : vector<1x16xi32>
    %764 = arith.extui %763 : vector<1x16xi1> to vector<1x16xi32>
    %765 = arith.sitofp %764 : vector<1x16xi32> to vector<1x16xf32>
    %766 = tpu.concatenate %760, %765 in 0 : vector<1x16xf32>, vector<1x16xf32> -> vector<2x16xf32>
    %767 = vector.broadcast %755 : f32 to vector<2x16xf32>
    %768 = arith.mulf %767, %766 : vector<2x16xf32>
    %cst_198 = arith.constant 1.000000e+00 : f32
    %769 = arith.subf %cst_198, %755 : f32
    %770 = vector.broadcast %769 : f32 to vector<2x16xf32>
    %771 = arith.mulf %770, %751 : vector<2x16xf32>
    %772 = arith.addf %768, %771 : vector<2x16xf32>
    %c0_199 = arith.constant 0 : index
    %c0_200 = arith.constant 0 : index
    %773 = vector.load %arg9[%c0_199, %c0_200] : memref<16x8xf32, #tpu.memory_space<vmem>>, vector<16x8xf32>
    %cst_201 = arith.constant dense<0.000000e+00> : vector<2x8xf32>
    %774 = tpu.matmul %772, %773, %cst_201 {dimension_numbers = #tpu.dot_dimension_numbers<[1], [0], [0], [1], [0, 0, 1, 1], [], []>} : vector<2x16xf32>, vector<16x8xf32>, vector<2x8xf32> -> vector<2x8xf32>
    %c0_202 = arith.constant 0 : index
    %c0_203 = arith.constant 0 : index
    %775 = vector.load %arg7[%c0_202, %c0_203] : memref<16x16xf32, #tpu.memory_space<vmem>>, vector<16x16xf32>
    %cst_204 = arith.constant dense<0.000000e+00> : vector<2x16xf32>
    %776 = tpu.matmul %734, %775, %cst_204 {dimension_numbers = #tpu.dot_dimension_numbers<[1], [0], [0], [1], [0, 0, 1, 1], [], []>} : vector<2x16xf32>, vector<16x16xf32>, vector<2x16xf32> -> vector<2x16xf32>
    %777 = vector.shape_cast %776 : vector<2x16xf32> to vector<2x1x16xf32>
    %778 = vector.broadcast %777 : vector<2x1x16xf32> to vector<2x6x16xf32>
    %779 = arith.addf %480, %778 : vector<2x6x16xf32>
    %780 = math.tanh %779 : vector<2x6x16xf32>
    %781 = arith.mulf %780, %10 : vector<2x6x16xf32>
    %cst_205 = arith.constant dense<0.000000e+00> : vector<2x6xf32>
    %782 = vector.multi_reduction <add>, %781, %cst_205 [2] : vector<2x6x16xf32> to vector<2x6xf32>
    %cst_206 = arith.constant dense<0xFF800000> : vector<2xf32>
    %783 = vector.multi_reduction <maximumf>, %782, %cst_206 [1] : vector<2x6xf32> to vector<2xf32>
    %784 = vector.shape_cast %783 : vector<2xf32> to vector<2x1xf32>
    %785 = vector.broadcast %784 : vector<2x1xf32> to vector<2x6xf32>
    %786 = arith.subf %782, %785 : vector<2x6xf32>
    %787 = math.exp %786 : vector<2x6xf32>
    %cst_207 = arith.constant dense<0.000000e+00> : vector<2xf32>
    %788 = vector.multi_reduction <add>, %787, %cst_207 [1] : vector<2x6xf32> to vector<2xf32>
    %789 = vector.shape_cast %788 : vector<2xf32> to vector<2x1xf32>
    %790 = vector.broadcast %789 : vector<2x1xf32> to vector<2x6xf32>
    %791 = arith.divf %787, %790 : vector<2x6xf32>
    %792 = vector.shape_cast %791 : vector<2x6xf32> to vector<2x6x1xf32>
    %793 = vector.broadcast %792 : vector<2x6x1xf32> to vector<2x6x32xf32>
    %794 = arith.mulf %793, %470 : vector<2x6x32xf32>
    %cst_208 = arith.constant dense<0.000000e+00> : vector<2x32xf32>
    %795 = vector.multi_reduction <add>, %794, %cst_208 [1] : vector<2x6x32xf32> to vector<2x32xf32>
    %796 = tpu.concatenate %774, %795, %734 in 1 : vector<2x8xf32>, vector<2x32xf32>, vector<2x16xf32> -> vector<2x56xf32>
    %c0_209 = arith.constant 0 : index
    %c0_210 = arith.constant 0 : index
    %797 = vector.load %arg10[%c0_209, %c0_210] : memref<56x96xf32, #tpu.memory_space<vmem>>, vector<56x96xf32>
    %cst_211 = arith.constant dense<0.000000e+00> : vector<2x96xf32>
    %798 = tpu.matmul %796, %797, %cst_211 {dimension_numbers = #tpu.dot_dimension_numbers<[1], [0], [0], [1], [0, 0, 1, 1], [], []>} : vector<2x56xf32>, vector<56x96xf32>, vector<2x96xf32> -> vector<2x96xf32>
    %799 = arith.addf %798, %13 : vector<2x96xf32>
    %800 = vector.extract_strided_slice %799 {offsets = [0, 0], sizes = [2, 48], strides = [1, 1]} : vector<2x96xf32> to vector<2x48xf32>
    %801 = vector.extract_strided_slice %799 {offsets = [0, 48], sizes = [2, 48], strides = [1, 1]} : vector<2x96xf32> to vector<2x48xf32>
    %802 = vector.extract_strided_slice %800 {offsets = [0, 0], sizes = [2, 16], strides = [1, 1]} : vector<2x48xf32> to vector<2x16xf32>
    %803 = vector.extract_strided_slice %801 {offsets = [0, 0], sizes = [2, 16], strides = [1, 1]} : vector<2x48xf32> to vector<2x16xf32>
    %804 = arith.addf %802, %803 : vector<2x16xf32>
    %805 = arith.negf %804 : vector<2x16xf32>
    %806 = math.exp %805 : vector<2x16xf32>
    %cst_212 = arith.constant 1.000000e+00 : f32
    %807 = vector.broadcast %cst_212 : f32 to vector<2x16xf32>
    %808 = arith.addf %807, %806 : vector<2x16xf32>
    %809 = arith.divf %807, %808 : vector<2x16xf32>
    %810 = vector.extract_strided_slice %800 {offsets = [0, 16], sizes = [2, 16], strides = [1, 1]} : vector<2x48xf32> to vector<2x16xf32>
    %811 = vector.extract_strided_slice %801 {offsets = [0, 16], sizes = [2, 16], strides = [1, 1]} : vector<2x48xf32> to vector<2x16xf32>
    %812 = arith.addf %810, %811 : vector<2x16xf32>
    %813 = arith.negf %812 : vector<2x16xf32>
    %814 = math.exp %813 : vector<2x16xf32>
    %cst_213 = arith.constant 1.000000e+00 : f32
    %815 = vector.broadcast %cst_213 : f32 to vector<2x16xf32>
    %816 = arith.addf %815, %814 : vector<2x16xf32>
    %817 = arith.divf %815, %816 : vector<2x16xf32>
    %818 = vector.extract_strided_slice %800 {offsets = [0, 32], sizes = [2, 16], strides = [1, 1]} : vector<2x48xf32> to vector<2x16xf32>
    %819 = vector.extract_strided_slice %801 {offsets = [0, 32], sizes = [2, 16], strides = [1, 1]} : vector<2x48xf32> to vector<2x16xf32>
    %820 = arith.mulf %809, %819 : vector<2x16xf32>
    %821 = arith.addf %818, %820 : vector<2x16xf32>
    %822 = math.tanh %821 : vector<2x16xf32>
    %cst_214 = arith.constant 1.000000e+00 : f32
    %823 = vector.broadcast %cst_214 : f32 to vector<2x16xf32>
    %824 = arith.subf %823, %817 : vector<2x16xf32>
    %825 = arith.mulf %824, %822 : vector<2x16xf32>
    %826 = arith.mulf %817, %734 : vector<2x16xf32>
    %827 = arith.addf %825, %826 : vector<2x16xf32>
    %828 = tpu.concatenate %827, %795, %774 in 1 : vector<2x16xf32>, vector<2x32xf32>, vector<2x8xf32> -> vector<2x56xf32>
    %c0_215 = arith.constant 0 : index
    %c0_216 = arith.constant 0 : index
    %829 = vector.load %arg11[%c0_215, %c0_216] : memref<56x16xf32, #tpu.memory_space<vmem>>, vector<56x16xf32>
    %cst_217 = arith.constant dense<0.000000e+00> : vector<2x16xf32>
    %830 = tpu.matmul %828, %829, %cst_217 {dimension_numbers = #tpu.dot_dimension_numbers<[1], [0], [0], [1], [0, 0, 1, 1], [], []>} : vector<2x56xf32>, vector<56x16xf32>, vector<2x16xf32> -> vector<2x16xf32>
    %831 = arith.addf %830, %16 : vector<2x16xf32>
    %cst_218 = arith.constant dense<0xFF800000> : vector<2xf32>
    %832 = vector.multi_reduction <maximumf>, %831, %cst_218 [1] : vector<2x16xf32> to vector<2xf32>
    %833 = vector.shape_cast %832 : vector<2xf32> to vector<2x1xf32>
    %834 = tpu.iota {dimensions = array<i32: 1>} : vector<2x16xi32>
    %835 = vector.broadcast %833 : vector<2x1xf32> to vector<2x16xf32>
    %836 = arith.cmpf oeq, %831, %835 : vector<2x16xf32>
    %c16_i32_219 = arith.constant 16 : i32
    %837 = vector.broadcast %c16_i32_219 : i32 to vector<2x16xi32>
    %838 = arith.select %836, %834, %837 : vector<2x16xi1>, vector<2x16xi32>
    %cst_220 = arith.constant dense<2147483647> : vector<2xi32>
    %839 = vector.multi_reduction <minsi>, %838, %cst_220 [1] : vector<2x16xi32> to vector<2xi32>
    %840 = vector.shape_cast %839 : vector<2xi32> to vector<2x1xi32>
    %841 = vector.broadcast %840 : vector<2x1xi32> to vector<2x16xi32>
    %842 = arith.cmpi eq, %834, %841 : vector<2x16xi32>
    %843 = arith.extui %842 : vector<2x16xi1> to vector<2x16xi32>
    %844 = arith.sitofp %843 : vector<2x16xi32> to vector<2x16xf32>
    %c3_221 = arith.constant 3 : index
    %845 = memref.load %arg3[%c3_221] : memref<7xi32, #tpu.memory_space<smem>>
    %c1_i32_222 = arith.constant 1 : i32
    %846 = arith.cmpi eq, %845, %c1_i32_222 : i32
    %847 = arith.extui %846 : i1 to i32
    %848 = arith.sitofp %847 : i32 to f32
    %c4_223 = arith.constant 4 : index
    %c0_224 = arith.constant 0 : index
    %849 = memref.load %arg2[%c4_223, %c0_224] : memref<8x2xi32, #tpu.memory_space<smem>>
    %850 = vector.broadcast %849 : i32 to vector<1x16xi32>
    %851 = arith.cmpi eq, %481, %850 : vector<1x16xi32>
    %852 = arith.extui %851 : vector<1x16xi1> to vector<1x16xi32>
    %853 = arith.sitofp %852 : vector<1x16xi32> to vector<1x16xf32>
    %c4_225 = arith.constant 4 : index
    %c1_226 = arith.constant 1 : index
    %854 = memref.load %arg2[%c4_225, %c1_226] : memref<8x2xi32, #tpu.memory_space<smem>>
    %855 = vector.broadcast %854 : i32 to vector<1x16xi32>
    %856 = arith.cmpi eq, %481, %855 : vector<1x16xi32>
    %857 = arith.extui %856 : vector<1x16xi1> to vector<1x16xi32>
    %858 = arith.sitofp %857 : vector<1x16xi32> to vector<1x16xf32>
    %859 = tpu.concatenate %853, %858 in 0 : vector<1x16xf32>, vector<1x16xf32> -> vector<2x16xf32>
    %860 = vector.broadcast %848 : f32 to vector<2x16xf32>
    %861 = arith.mulf %860, %859 : vector<2x16xf32>
    %cst_227 = arith.constant 1.000000e+00 : f32
    %862 = arith.subf %cst_227, %848 : f32
    %863 = vector.broadcast %862 : f32 to vector<2x16xf32>
    %864 = arith.mulf %863, %844 : vector<2x16xf32>
    %865 = arith.addf %861, %864 : vector<2x16xf32>
    %c0_228 = arith.constant 0 : index
    %c0_229 = arith.constant 0 : index
    %866 = vector.load %arg9[%c0_228, %c0_229] : memref<16x8xf32, #tpu.memory_space<vmem>>, vector<16x8xf32>
    %cst_230 = arith.constant dense<0.000000e+00> : vector<2x8xf32>
    %867 = tpu.matmul %865, %866, %cst_230 {dimension_numbers = #tpu.dot_dimension_numbers<[1], [0], [0], [1], [0, 0, 1, 1], [], []>} : vector<2x16xf32>, vector<16x8xf32>, vector<2x8xf32> -> vector<2x8xf32>
    %c0_231 = arith.constant 0 : index
    %c0_232 = arith.constant 0 : index
    %868 = vector.load %arg7[%c0_231, %c0_232] : memref<16x16xf32, #tpu.memory_space<vmem>>, vector<16x16xf32>
    %cst_233 = arith.constant dense<0.000000e+00> : vector<2x16xf32>
    %869 = tpu.matmul %827, %868, %cst_233 {dimension_numbers = #tpu.dot_dimension_numbers<[1], [0], [0], [1], [0, 0, 1, 1], [], []>} : vector<2x16xf32>, vector<16x16xf32>, vector<2x16xf32> -> vector<2x16xf32>
    %870 = vector.shape_cast %869 : vector<2x16xf32> to vector<2x1x16xf32>
    %871 = vector.broadcast %870 : vector<2x1x16xf32> to vector<2x6x16xf32>
    %872 = arith.addf %480, %871 : vector<2x6x16xf32>
    %873 = math.tanh %872 : vector<2x6x16xf32>
    %874 = arith.mulf %873, %10 : vector<2x6x16xf32>
    %cst_234 = arith.constant dense<0.000000e+00> : vector<2x6xf32>
    %875 = vector.multi_reduction <add>, %874, %cst_234 [2] : vector<2x6x16xf32> to vector<2x6xf32>
    %cst_235 = arith.constant dense<0xFF800000> : vector<2xf32>
    %876 = vector.multi_reduction <maximumf>, %875, %cst_235 [1] : vector<2x6xf32> to vector<2xf32>
    %877 = vector.shape_cast %876 : vector<2xf32> to vector<2x1xf32>
    %878 = vector.broadcast %877 : vector<2x1xf32> to vector<2x6xf32>
    %879 = arith.subf %875, %878 : vector<2x6xf32>
    %880 = math.exp %879 : vector<2x6xf32>
    %cst_236 = arith.constant dense<0.000000e+00> : vector<2xf32>
    %881 = vector.multi_reduction <add>, %880, %cst_236 [1] : vector<2x6xf32> to vector<2xf32>
    %882 = vector.shape_cast %881 : vector<2xf32> to vector<2x1xf32>
    %883 = vector.broadcast %882 : vector<2x1xf32> to vector<2x6xf32>
    %884 = arith.divf %880, %883 : vector<2x6xf32>
    %885 = vector.shape_cast %884 : vector<2x6xf32> to vector<2x6x1xf32>
    %886 = vector.broadcast %885 : vector<2x6x1xf32> to vector<2x6x32xf32>
    %887 = arith.mulf %886, %470 : vector<2x6x32xf32>
    %cst_237 = arith.constant dense<0.000000e+00> : vector<2x32xf32>
    %888 = vector.multi_reduction <add>, %887, %cst_237 [1] : vector<2x6x32xf32> to vector<2x32xf32>
    %889 = tpu.concatenate %867, %888, %827 in 1 : vector<2x8xf32>, vector<2x32xf32>, vector<2x16xf32> -> vector<2x56xf32>
    %c0_238 = arith.constant 0 : index
    %c0_239 = arith.constant 0 : index
    %890 = vector.load %arg10[%c0_238, %c0_239] : memref<56x96xf32, #tpu.memory_space<vmem>>, vector<56x96xf32>
    %cst_240 = arith.constant dense<0.000000e+00> : vector<2x96xf32>
    %891 = tpu.matmul %889, %890, %cst_240 {dimension_numbers = #tpu.dot_dimension_numbers<[1], [0], [0], [1], [0, 0, 1, 1], [], []>} : vector<2x56xf32>, vector<56x96xf32>, vector<2x96xf32> -> vector<2x96xf32>
    %892 = arith.addf %891, %13 : vector<2x96xf32>
    %893 = vector.extract_strided_slice %892 {offsets = [0, 0], sizes = [2, 48], strides = [1, 1]} : vector<2x96xf32> to vector<2x48xf32>
    %894 = vector.extract_strided_slice %892 {offsets = [0, 48], sizes = [2, 48], strides = [1, 1]} : vector<2x96xf32> to vector<2x48xf32>
    %895 = vector.extract_strided_slice %893 {offsets = [0, 0], sizes = [2, 16], strides = [1, 1]} : vector<2x48xf32> to vector<2x16xf32>
    %896 = vector.extract_strided_slice %894 {offsets = [0, 0], sizes = [2, 16], strides = [1, 1]} : vector<2x48xf32> to vector<2x16xf32>
    %897 = arith.addf %895, %896 : vector<2x16xf32>
    %898 = arith.negf %897 : vector<2x16xf32>
    %899 = math.exp %898 : vector<2x16xf32>
    %cst_241 = arith.constant 1.000000e+00 : f32
    %900 = vector.broadcast %cst_241 : f32 to vector<2x16xf32>
    %901 = arith.addf %900, %899 : vector<2x16xf32>
    %902 = arith.divf %900, %901 : vector<2x16xf32>
    %903 = vector.extract_strided_slice %893 {offsets = [0, 16], sizes = [2, 16], strides = [1, 1]} : vector<2x48xf32> to vector<2x16xf32>
    %904 = vector.extract_strided_slice %894 {offsets = [0, 16], sizes = [2, 16], strides = [1, 1]} : vector<2x48xf32> to vector<2x16xf32>
    %905 = arith.addf %903, %904 : vector<2x16xf32>
    %906 = arith.negf %905 : vector<2x16xf32>
    %907 = math.exp %906 : vector<2x16xf32>
    %cst_242 = arith.constant 1.000000e+00 : f32
    %908 = vector.broadcast %cst_242 : f32 to vector<2x16xf32>
    %909 = arith.addf %908, %907 : vector<2x16xf32>
    %910 = arith.divf %908, %909 : vector<2x16xf32>
    %911 = vector.extract_strided_slice %893 {offsets = [0, 32], sizes = [2, 16], strides = [1, 1]} : vector<2x48xf32> to vector<2x16xf32>
    %912 = vector.extract_strided_slice %894 {offsets = [0, 32], sizes = [2, 16], strides = [1, 1]} : vector<2x48xf32> to vector<2x16xf32>
    %913 = arith.mulf %902, %912 : vector<2x16xf32>
    %914 = arith.addf %911, %913 : vector<2x16xf32>
    %915 = math.tanh %914 : vector<2x16xf32>
    %cst_243 = arith.constant 1.000000e+00 : f32
    %916 = vector.broadcast %cst_243 : f32 to vector<2x16xf32>
    %917 = arith.subf %916, %910 : vector<2x16xf32>
    %918 = arith.mulf %917, %915 : vector<2x16xf32>
    %919 = arith.mulf %910, %827 : vector<2x16xf32>
    %920 = arith.addf %918, %919 : vector<2x16xf32>
    %921 = tpu.concatenate %920, %888, %867 in 1 : vector<2x16xf32>, vector<2x32xf32>, vector<2x8xf32> -> vector<2x56xf32>
    %c0_244 = arith.constant 0 : index
    %c0_245 = arith.constant 0 : index
    %922 = vector.load %arg11[%c0_244, %c0_245] : memref<56x16xf32, #tpu.memory_space<vmem>>, vector<56x16xf32>
    %cst_246 = arith.constant dense<0.000000e+00> : vector<2x16xf32>
    %923 = tpu.matmul %921, %922, %cst_246 {dimension_numbers = #tpu.dot_dimension_numbers<[1], [0], [0], [1], [0, 0, 1, 1], [], []>} : vector<2x56xf32>, vector<56x16xf32>, vector<2x16xf32> -> vector<2x16xf32>
    %924 = arith.addf %923, %16 : vector<2x16xf32>
    %cst_247 = arith.constant dense<0xFF800000> : vector<2xf32>
    %925 = vector.multi_reduction <maximumf>, %924, %cst_247 [1] : vector<2x16xf32> to vector<2xf32>
    %926 = vector.shape_cast %925 : vector<2xf32> to vector<2x1xf32>
    %927 = tpu.iota {dimensions = array<i32: 1>} : vector<2x16xi32>
    %928 = vector.broadcast %926 : vector<2x1xf32> to vector<2x16xf32>
    %929 = arith.cmpf oeq, %924, %928 : vector<2x16xf32>
    %c16_i32_248 = arith.constant 16 : i32
    %930 = vector.broadcast %c16_i32_248 : i32 to vector<2x16xi32>
    %931 = arith.select %929, %927, %930 : vector<2x16xi1>, vector<2x16xi32>
    %cst_249 = arith.constant dense<2147483647> : vector<2xi32>
    %932 = vector.multi_reduction <minsi>, %931, %cst_249 [1] : vector<2x16xi32> to vector<2xi32>
    %933 = vector.shape_cast %932 : vector<2xi32> to vector<2x1xi32>
    %934 = vector.broadcast %933 : vector<2x1xi32> to vector<2x16xi32>
    %935 = arith.cmpi eq, %927, %934 : vector<2x16xi32>
    %936 = arith.extui %935 : vector<2x16xi1> to vector<2x16xi32>
    %937 = arith.sitofp %936 : vector<2x16xi32> to vector<2x16xf32>
    %c4_250 = arith.constant 4 : index
    %938 = memref.load %arg3[%c4_250] : memref<7xi32, #tpu.memory_space<smem>>
    %c1_i32_251 = arith.constant 1 : i32
    %939 = arith.cmpi eq, %938, %c1_i32_251 : i32
    %940 = arith.extui %939 : i1 to i32
    %941 = arith.sitofp %940 : i32 to f32
    %c5_252 = arith.constant 5 : index
    %c0_253 = arith.constant 0 : index
    %942 = memref.load %arg2[%c5_252, %c0_253] : memref<8x2xi32, #tpu.memory_space<smem>>
    %943 = vector.broadcast %942 : i32 to vector<1x16xi32>
    %944 = arith.cmpi eq, %481, %943 : vector<1x16xi32>
    %945 = arith.extui %944 : vector<1x16xi1> to vector<1x16xi32>
    %946 = arith.sitofp %945 : vector<1x16xi32> to vector<1x16xf32>
    %c5_254 = arith.constant 5 : index
    %c1_255 = arith.constant 1 : index
    %947 = memref.load %arg2[%c5_254, %c1_255] : memref<8x2xi32, #tpu.memory_space<smem>>
    %948 = vector.broadcast %947 : i32 to vector<1x16xi32>
    %949 = arith.cmpi eq, %481, %948 : vector<1x16xi32>
    %950 = arith.extui %949 : vector<1x16xi1> to vector<1x16xi32>
    %951 = arith.sitofp %950 : vector<1x16xi32> to vector<1x16xf32>
    %952 = tpu.concatenate %946, %951 in 0 : vector<1x16xf32>, vector<1x16xf32> -> vector<2x16xf32>
    %953 = vector.broadcast %941 : f32 to vector<2x16xf32>
    %954 = arith.mulf %953, %952 : vector<2x16xf32>
    %cst_256 = arith.constant 1.000000e+00 : f32
    %955 = arith.subf %cst_256, %941 : f32
    %956 = vector.broadcast %955 : f32 to vector<2x16xf32>
    %957 = arith.mulf %956, %937 : vector<2x16xf32>
    %958 = arith.addf %954, %957 : vector<2x16xf32>
    %c0_257 = arith.constant 0 : index
    %c0_258 = arith.constant 0 : index
    %959 = vector.load %arg9[%c0_257, %c0_258] : memref<16x8xf32, #tpu.memory_space<vmem>>, vector<16x8xf32>
    %cst_259 = arith.constant dense<0.000000e+00> : vector<2x8xf32>
    %960 = tpu.matmul %958, %959, %cst_259 {dimension_numbers = #tpu.dot_dimension_numbers<[1], [0], [0], [1], [0, 0, 1, 1], [], []>} : vector<2x16xf32>, vector<16x8xf32>, vector<2x8xf32> -> vector<2x8xf32>
    %c0_260 = arith.constant 0 : index
    %c0_261 = arith.constant 0 : index
    %961 = vector.load %arg7[%c0_260, %c0_261] : memref<16x16xf32, #tpu.memory_space<vmem>>, vector<16x16xf32>
    %cst_262 = arith.constant dense<0.000000e+00> : vector<2x16xf32>
    %962 = tpu.matmul %920, %961, %cst_262 {dimension_numbers = #tpu.dot_dimension_numbers<[1], [0], [0], [1], [0, 0, 1, 1], [], []>} : vector<2x16xf32>, vector<16x16xf32>, vector<2x16xf32> -> vector<2x16xf32>
    %963 = vector.shape_cast %962 : vector<2x16xf32> to vector<2x1x16xf32>
    %964 = vector.broadcast %963 : vector<2x1x16xf32> to vector<2x6x16xf32>
    %965 = arith.addf %480, %964 : vector<2x6x16xf32>
    %966 = math.tanh %965 : vector<2x6x16xf32>
    %967 = arith.mulf %966, %10 : vector<2x6x16xf32>
    %cst_263 = arith.constant dense<0.000000e+00> : vector<2x6xf32>
    %968 = vector.multi_reduction <add>, %967, %cst_263 [2] : vector<2x6x16xf32> to vector<2x6xf32>
    %cst_264 = arith.constant dense<0xFF800000> : vector<2xf32>
    %969 = vector.multi_reduction <maximumf>, %968, %cst_264 [1] : vector<2x6xf32> to vector<2xf32>
    %970 = vector.shape_cast %969 : vector<2xf32> to vector<2x1xf32>
    %971 = vector.broadcast %970 : vector<2x1xf32> to vector<2x6xf32>
    %972 = arith.subf %968, %971 : vector<2x6xf32>
    %973 = math.exp %972 : vector<2x6xf32>
    %cst_265 = arith.constant dense<0.000000e+00> : vector<2xf32>
    %974 = vector.multi_reduction <add>, %973, %cst_265 [1] : vector<2x6xf32> to vector<2xf32>
    %975 = vector.shape_cast %974 : vector<2xf32> to vector<2x1xf32>
    %976 = vector.broadcast %975 : vector<2x1xf32> to vector<2x6xf32>
    %977 = arith.divf %973, %976 : vector<2x6xf32>
    %978 = vector.shape_cast %977 : vector<2x6xf32> to vector<2x6x1xf32>
    %979 = vector.broadcast %978 : vector<2x6x1xf32> to vector<2x6x32xf32>
    %980 = arith.mulf %979, %470 : vector<2x6x32xf32>
    %cst_266 = arith.constant dense<0.000000e+00> : vector<2x32xf32>
    %981 = vector.multi_reduction <add>, %980, %cst_266 [1] : vector<2x6x32xf32> to vector<2x32xf32>
    %982 = tpu.concatenate %960, %981, %920 in 1 : vector<2x8xf32>, vector<2x32xf32>, vector<2x16xf32> -> vector<2x56xf32>
    %c0_267 = arith.constant 0 : index
    %c0_268 = arith.constant 0 : index
    %983 = vector.load %arg10[%c0_267, %c0_268] : memref<56x96xf32, #tpu.memory_space<vmem>>, vector<56x96xf32>
    %cst_269 = arith.constant dense<0.000000e+00> : vector<2x96xf32>
    %984 = tpu.matmul %982, %983, %cst_269 {dimension_numbers = #tpu.dot_dimension_numbers<[1], [0], [0], [1], [0, 0, 1, 1], [], []>} : vector<2x56xf32>, vector<56x96xf32>, vector<2x96xf32> -> vector<2x96xf32>
    %985 = arith.addf %984, %13 : vector<2x96xf32>
    %986 = vector.extract_strided_slice %985 {offsets = [0, 0], sizes = [2, 48], strides = [1, 1]} : vector<2x96xf32> to vector<2x48xf32>
    %987 = vector.extract_strided_slice %985 {offsets = [0, 48], sizes = [2, 48], strides = [1, 1]} : vector<2x96xf32> to vector<2x48xf32>
    %988 = vector.extract_strided_slice %986 {offsets = [0, 0], sizes = [2, 16], strides = [1, 1]} : vector<2x48xf32> to vector<2x16xf32>
    %989 = vector.extract_strided_slice %987 {offsets = [0, 0], sizes = [2, 16], strides = [1, 1]} : vector<2x48xf32> to vector<2x16xf32>
    %990 = arith.addf %988, %989 : vector<2x16xf32>
    %991 = arith.negf %990 : vector<2x16xf32>
    %992 = math.exp %991 : vector<2x16xf32>
    %cst_270 = arith.constant 1.000000e+00 : f32
    %993 = vector.broadcast %cst_270 : f32 to vector<2x16xf32>
    %994 = arith.addf %993, %992 : vector<2x16xf32>
    %995 = arith.divf %993, %994 : vector<2x16xf32>
    %996 = vector.extract_strided_slice %986 {offsets = [0, 16], sizes = [2, 16], strides = [1, 1]} : vector<2x48xf32> to vector<2x16xf32>
    %997 = vector.extract_strided_slice %987 {offsets = [0, 16], sizes = [2, 16], strides = [1, 1]} : vector<2x48xf32> to vector<2x16xf32>
    %998 = arith.addf %996, %997 : vector<2x16xf32>
    %999 = arith.negf %998 : vector<2x16xf32>
    %1000 = math.exp %999 : vector<2x16xf32>
    %cst_271 = arith.constant 1.000000e+00 : f32
    %1001 = vector.broadcast %cst_271 : f32 to vector<2x16xf32>
    %1002 = arith.addf %1001, %1000 : vector<2x16xf32>
    %1003 = arith.divf %1001, %1002 : vector<2x16xf32>
    %1004 = vector.extract_strided_slice %986 {offsets = [0, 32], sizes = [2, 16], strides = [1, 1]} : vector<2x48xf32> to vector<2x16xf32>
    %1005 = vector.extract_strided_slice %987 {offsets = [0, 32], sizes = [2, 16], strides = [1, 1]} : vector<2x48xf32> to vector<2x16xf32>
    %1006 = arith.mulf %995, %1005 : vector<2x16xf32>
    %1007 = arith.addf %1004, %1006 : vector<2x16xf32>
    %1008 = math.tanh %1007 : vector<2x16xf32>
    %cst_272 = arith.constant 1.000000e+00 : f32
    %1009 = vector.broadcast %cst_272 : f32 to vector<2x16xf32>
    %1010 = arith.subf %1009, %1003 : vector<2x16xf32>
    %1011 = arith.mulf %1010, %1008 : vector<2x16xf32>
    %1012 = arith.mulf %1003, %920 : vector<2x16xf32>
    %1013 = arith.addf %1011, %1012 : vector<2x16xf32>
    %1014 = tpu.concatenate %1013, %981, %960 in 1 : vector<2x16xf32>, vector<2x32xf32>, vector<2x8xf32> -> vector<2x56xf32>
    %c0_273 = arith.constant 0 : index
    %c0_274 = arith.constant 0 : index
    %1015 = vector.load %arg11[%c0_273, %c0_274] : memref<56x16xf32, #tpu.memory_space<vmem>>, vector<56x16xf32>
    %cst_275 = arith.constant dense<0.000000e+00> : vector<2x16xf32>
    %1016 = tpu.matmul %1014, %1015, %cst_275 {dimension_numbers = #tpu.dot_dimension_numbers<[1], [0], [0], [1], [0, 0, 1, 1], [], []>} : vector<2x56xf32>, vector<56x16xf32>, vector<2x16xf32> -> vector<2x16xf32>
    %1017 = arith.addf %1016, %16 : vector<2x16xf32>
    %cst_276 = arith.constant dense<0xFF800000> : vector<2xf32>
    %1018 = vector.multi_reduction <maximumf>, %1017, %cst_276 [1] : vector<2x16xf32> to vector<2xf32>
    %1019 = vector.shape_cast %1018 : vector<2xf32> to vector<2x1xf32>
    %1020 = tpu.iota {dimensions = array<i32: 1>} : vector<2x16xi32>
    %1021 = vector.broadcast %1019 : vector<2x1xf32> to vector<2x16xf32>
    %1022 = arith.cmpf oeq, %1017, %1021 : vector<2x16xf32>
    %c16_i32_277 = arith.constant 16 : i32
    %1023 = vector.broadcast %c16_i32_277 : i32 to vector<2x16xi32>
    %1024 = arith.select %1022, %1020, %1023 : vector<2x16xi1>, vector<2x16xi32>
    %cst_278 = arith.constant dense<2147483647> : vector<2xi32>
    %1025 = vector.multi_reduction <minsi>, %1024, %cst_278 [1] : vector<2x16xi32> to vector<2xi32>
    %1026 = vector.shape_cast %1025 : vector<2xi32> to vector<2x1xi32>
    %1027 = vector.broadcast %1026 : vector<2x1xi32> to vector<2x16xi32>
    %1028 = arith.cmpi eq, %1020, %1027 : vector<2x16xi32>
    %1029 = arith.extui %1028 : vector<2x16xi1> to vector<2x16xi32>
    %1030 = arith.sitofp %1029 : vector<2x16xi32> to vector<2x16xf32>
    %c5_279 = arith.constant 5 : index
    %1031 = memref.load %arg3[%c5_279] : memref<7xi32, #tpu.memory_space<smem>>
    %c1_i32_280 = arith.constant 1 : i32
    %1032 = arith.cmpi eq, %1031, %c1_i32_280 : i32
    %1033 = arith.extui %1032 : i1 to i32
    %1034 = arith.sitofp %1033 : i32 to f32
    %c6 = arith.constant 6 : index
    %c0_281 = arith.constant 0 : index
    %1035 = memref.load %arg2[%c6, %c0_281] : memref<8x2xi32, #tpu.memory_space<smem>>
    %1036 = vector.broadcast %1035 : i32 to vector<1x16xi32>
    %1037 = arith.cmpi eq, %481, %1036 : vector<1x16xi32>
    %1038 = arith.extui %1037 : vector<1x16xi1> to vector<1x16xi32>
    %1039 = arith.sitofp %1038 : vector<1x16xi32> to vector<1x16xf32>
    %c6_282 = arith.constant 6 : index
    %c1_283 = arith.constant 1 : index
    %1040 = memref.load %arg2[%c6_282, %c1_283] : memref<8x2xi32, #tpu.memory_space<smem>>
    %1041 = vector.broadcast %1040 : i32 to vector<1x16xi32>
    %1042 = arith.cmpi eq, %481, %1041 : vector<1x16xi32>
    %1043 = arith.extui %1042 : vector<1x16xi1> to vector<1x16xi32>
    %1044 = arith.sitofp %1043 : vector<1x16xi32> to vector<1x16xf32>
    %1045 = tpu.concatenate %1039, %1044 in 0 : vector<1x16xf32>, vector<1x16xf32> -> vector<2x16xf32>
    %1046 = vector.broadcast %1034 : f32 to vector<2x16xf32>
    %1047 = arith.mulf %1046, %1045 : vector<2x16xf32>
    %cst_284 = arith.constant 1.000000e+00 : f32
    %1048 = arith.subf %cst_284, %1034 : f32
    %1049 = vector.broadcast %1048 : f32 to vector<2x16xf32>
    %1050 = arith.mulf %1049, %1030 : vector<2x16xf32>
    %1051 = arith.addf %1047, %1050 : vector<2x16xf32>
    %c0_285 = arith.constant 0 : index
    %c0_286 = arith.constant 0 : index
    %1052 = vector.load %arg9[%c0_285, %c0_286] : memref<16x8xf32, #tpu.memory_space<vmem>>, vector<16x8xf32>
    %cst_287 = arith.constant dense<0.000000e+00> : vector<2x8xf32>
    %1053 = tpu.matmul %1051, %1052, %cst_287 {dimension_numbers = #tpu.dot_dimension_numbers<[1], [0], [0], [1], [0, 0, 1, 1], [], []>} : vector<2x16xf32>, vector<16x8xf32>, vector<2x8xf32> -> vector<2x8xf32>
    %c0_288 = arith.constant 0 : index
    %c0_289 = arith.constant 0 : index
    %1054 = vector.load %arg7[%c0_288, %c0_289] : memref<16x16xf32, #tpu.memory_space<vmem>>, vector<16x16xf32>
    %cst_290 = arith.constant dense<0.000000e+00> : vector<2x16xf32>
    %1055 = tpu.matmul %1013, %1054, %cst_290 {dimension_numbers = #tpu.dot_dimension_numbers<[1], [0], [0], [1], [0, 0, 1, 1], [], []>} : vector<2x16xf32>, vector<16x16xf32>, vector<2x16xf32> -> vector<2x16xf32>
    %1056 = vector.shape_cast %1055 : vector<2x16xf32> to vector<2x1x16xf32>
    %1057 = vector.broadcast %1056 : vector<2x1x16xf32> to vector<2x6x16xf32>
    %1058 = arith.addf %480, %1057 : vector<2x6x16xf32>
    %1059 = math.tanh %1058 : vector<2x6x16xf32>
    %1060 = arith.mulf %1059, %10 : vector<2x6x16xf32>
    %cst_291 = arith.constant dense<0.000000e+00> : vector<2x6xf32>
    %1061 = vector.multi_reduction <add>, %1060, %cst_291 [2] : vector<2x6x16xf32> to vector<2x6xf32>
    %cst_292 = arith.constant dense<0xFF800000> : vector<2xf32>
    %1062 = vector.multi_reduction <maximumf>, %1061, %cst_292 [1] : vector<2x6xf32> to vector<2xf32>
    %1063 = vector.shape_cast %1062 : vector<2xf32> to vector<2x1xf32>
    %1064 = vector.broadcast %1063 : vector<2x1xf32> to vector<2x6xf32>
    %1065 = arith.subf %1061, %1064 : vector<2x6xf32>
    %1066 = math.exp %1065 : vector<2x6xf32>
    %cst_293 = arith.constant dense<0.000000e+00> : vector<2xf32>
    %1067 = vector.multi_reduction <add>, %1066, %cst_293 [1] : vector<2x6xf32> to vector<2xf32>
    %1068 = vector.shape_cast %1067 : vector<2xf32> to vector<2x1xf32>
    %1069 = vector.broadcast %1068 : vector<2x1xf32> to vector<2x6xf32>
    %1070 = arith.divf %1066, %1069 : vector<2x6xf32>
    %1071 = vector.shape_cast %1070 : vector<2x6xf32> to vector<2x6x1xf32>
    %1072 = vector.broadcast %1071 : vector<2x6x1xf32> to vector<2x6x32xf32>
    %1073 = arith.mulf %1072, %470 : vector<2x6x32xf32>
    %cst_294 = arith.constant dense<0.000000e+00> : vector<2x32xf32>
    %1074 = vector.multi_reduction <add>, %1073, %cst_294 [1] : vector<2x6x32xf32> to vector<2x32xf32>
    %1075 = tpu.concatenate %1053, %1074, %1013 in 1 : vector<2x8xf32>, vector<2x32xf32>, vector<2x16xf32> -> vector<2x56xf32>
    %c0_295 = arith.constant 0 : index
    %c0_296 = arith.constant 0 : index
    %1076 = vector.load %arg10[%c0_295, %c0_296] : memref<56x96xf32, #tpu.memory_space<vmem>>, vector<56x96xf32>
    %cst_297 = arith.constant dense<0.000000e+00> : vector<2x96xf32>
    %1077 = tpu.matmul %1075, %1076, %cst_297 {dimension_numbers = #tpu.dot_dimension_numbers<[1], [0], [0], [1], [0, 0, 1, 1], [], []>} : vector<2x56xf32>, vector<56x96xf32>, vector<2x96xf32> -> vector<2x96xf32>
    %1078 = arith.addf %1077, %13 : vector<2x96xf32>
    %1079 = vector.extract_strided_slice %1078 {offsets = [0, 0], sizes = [2, 48], strides = [1, 1]} : vector<2x96xf32> to vector<2x48xf32>
    %1080 = vector.extract_strided_slice %1078 {offsets = [0, 48], sizes = [2, 48], strides = [1, 1]} : vector<2x96xf32> to vector<2x48xf32>
    %1081 = vector.extract_strided_slice %1079 {offsets = [0, 0], sizes = [2, 16], strides = [1, 1]} : vector<2x48xf32> to vector<2x16xf32>
    %1082 = vector.extract_strided_slice %1080 {offsets = [0, 0], sizes = [2, 16], strides = [1, 1]} : vector<2x48xf32> to vector<2x16xf32>
    %1083 = arith.addf %1081, %1082 : vector<2x16xf32>
    %1084 = arith.negf %1083 : vector<2x16xf32>
    %1085 = math.exp %1084 : vector<2x16xf32>
    %cst_298 = arith.constant 1.000000e+00 : f32
    %1086 = vector.broadcast %cst_298 : f32 to vector<2x16xf32>
    %1087 = arith.addf %1086, %1085 : vector<2x16xf32>
    %1088 = arith.divf %1086, %1087 : vector<2x16xf32>
    %1089 = vector.extract_strided_slice %1079 {offsets = [0, 16], sizes = [2, 16], strides = [1, 1]} : vector<2x48xf32> to vector<2x16xf32>
    %1090 = vector.extract_strided_slice %1080 {offsets = [0, 16], sizes = [2, 16], strides = [1, 1]} : vector<2x48xf32> to vector<2x16xf32>
    %1091 = arith.addf %1089, %1090 : vector<2x16xf32>
    %1092 = arith.negf %1091 : vector<2x16xf32>
    %1093 = math.exp %1092 : vector<2x16xf32>
    %cst_299 = arith.constant 1.000000e+00 : f32
    %1094 = vector.broadcast %cst_299 : f32 to vector<2x16xf32>
    %1095 = arith.addf %1094, %1093 : vector<2x16xf32>
    %1096 = arith.divf %1094, %1095 : vector<2x16xf32>
    %1097 = vector.extract_strided_slice %1079 {offsets = [0, 32], sizes = [2, 16], strides = [1, 1]} : vector<2x48xf32> to vector<2x16xf32>
    %1098 = vector.extract_strided_slice %1080 {offsets = [0, 32], sizes = [2, 16], strides = [1, 1]} : vector<2x48xf32> to vector<2x16xf32>
    %1099 = arith.mulf %1088, %1098 : vector<2x16xf32>
    %1100 = arith.addf %1097, %1099 : vector<2x16xf32>
    %1101 = math.tanh %1100 : vector<2x16xf32>
    %cst_300 = arith.constant 1.000000e+00 : f32
    %1102 = vector.broadcast %cst_300 : f32 to vector<2x16xf32>
    %1103 = arith.subf %1102, %1096 : vector<2x16xf32>
    %1104 = arith.mulf %1103, %1101 : vector<2x16xf32>
    %1105 = arith.mulf %1096, %1013 : vector<2x16xf32>
    %1106 = arith.addf %1104, %1105 : vector<2x16xf32>
    %1107 = tpu.concatenate %1106, %1074, %1053 in 1 : vector<2x16xf32>, vector<2x32xf32>, vector<2x8xf32> -> vector<2x56xf32>
    %c0_301 = arith.constant 0 : index
    %c0_302 = arith.constant 0 : index
    %1108 = vector.load %arg11[%c0_301, %c0_302] : memref<56x16xf32, #tpu.memory_space<vmem>>, vector<56x16xf32>
    %cst_303 = arith.constant dense<0.000000e+00> : vector<2x16xf32>
    %1109 = tpu.matmul %1107, %1108, %cst_303 {dimension_numbers = #tpu.dot_dimension_numbers<[1], [0], [0], [1], [0, 0, 1, 1], [], []>} : vector<2x56xf32>, vector<56x16xf32>, vector<2x16xf32> -> vector<2x16xf32>
    %1110 = arith.addf %1109, %16 : vector<2x16xf32>
    %1111 = vector.shape_cast %493 : vector<2x16xf32> to vector<1x2x16xf32>
    %1112 = vector.shape_cast %552 : vector<2x16xf32> to vector<1x2x16xf32>
    %1113 = vector.shape_cast %645 : vector<2x16xf32> to vector<1x2x16xf32>
    %1114 = vector.shape_cast %738 : vector<2x16xf32> to vector<1x2x16xf32>
    %1115 = vector.shape_cast %831 : vector<2x16xf32> to vector<1x2x16xf32>
    %1116 = vector.shape_cast %924 : vector<2x16xf32> to vector<1x2x16xf32>
    %1117 = vector.shape_cast %1017 : vector<2x16xf32> to vector<1x2x16xf32>
    %1118 = vector.shape_cast %1110 : vector<2x16xf32> to vector<1x2x16xf32>
    %1119 = tpu.concatenate %1111, %1112, %1113, %1114, %1115, %1116, %1117, %1118 in 0 : vector<1x2x16xf32>, vector<1x2x16xf32>, vector<1x2x16xf32>, vector<1x2x16xf32>, vector<1x2x16xf32>, vector<1x2x16xf32>, vector<1x2x16xf32>, vector<1x2x16xf32> -> vector<8x2x16xf32>
    %c0_304 = arith.constant 0 : index
    %c0_305 = arith.constant 0 : index
    %c0_306 = arith.constant 0 : index
    %1120 = vector.load %arg13[%c0_304, %c0_305, %c0_306] : memref<8x2x16xf32, #tpu.memory_space<vmem>>, vector<8x2x16xf32>
    tpu.vector_store %arg13[%c0_304, %c0_305, %c0_306], %1119 {strides = array<i32>} : memref<8x2x16xf32, #tpu.memory_space<vmem>>, vector<8x2x16xf32>,
    return
  }
  func.func @transform_0(%arg0: i32, %arg1: memref<6x2xi32, #tpu.memory_space<smem>>, %arg2: memref<8x2xi32, #tpu.memory_space<smem>>, %arg3: memref<7xi32, #tpu.memory_space<smem>>) -> (i32, i32) {
    %c0_i32 = arith.constant 0 : i32
    %c0_i32_0 = arith.constant 0 : i32
    %c0_i32_1 = arith.constant 0 : i32
    return %c0_i32, %c0_i32_0 : i32, i32
  }
  func.func @transform_1(%arg0: i32, %arg1: memref<6x2xi32, #tpu.memory_space<smem>>, %arg2: memref<8x2xi32, #tpu.memory_space<smem>>, %arg3: memref<7xi32, #tpu.memory_space<smem>>) -> (i32, i32) {
    %c0_i32 = arith.constant 0 : i32
    %c0_i32_0 = arith.constant 0 : i32
    %c0_i32_1 = arith.constant 0 : i32
    return %c0_i32, %c0_i32_0 : i32, i32
  }
  func.func @transform_2(%arg0: i32, %arg1: memref<6x2xi32, #tpu.memory_space<smem>>, %arg2: memref<8x2xi32, #tpu.memory_space<smem>>, %arg3: memref<7xi32, #tpu.memory_space<smem>>) -> (i32, i32) {
    %c0_i32 = arith.constant 0 : i32
    %c0_i32_0 = arith.constant 0 : i32
    %c0_i32_1 = arith.constant 0 : i32
    return %c0_i32, %c0_i32_0 : i32, i32
  }
  func.func @transform_3(%arg0: i32, %arg1: memref<6x2xi32, #tpu.memory_space<smem>>, %arg2: memref<8x2xi32, #tpu.memory_space<smem>>, %arg3: memref<7xi32, #tpu.memory_space<smem>>) -> (i32, i32) {
    %c0_i32 = arith.constant 0 : i32
    %c0_i32_0 = arith.constant 0 : i32
    %c0_i32_1 = arith.constant 0 : i32
    return %c0_i32, %c0_i32_0 : i32, i32
  }
  func.func @transform_4(%arg0: i32, %arg1: memref<6x2xi32, #tpu.memory_space<smem>>, %arg2: memref<8x2xi32, #tpu.memory_space<smem>>, %arg3: memref<7xi32, #tpu.memory_space<smem>>) -> (i32, i32) {
    %c0_i32 = arith.constant 0 : i32
    %c0_i32_0 = arith.constant 0 : i32
    %c0_i32_1 = arith.constant 0 : i32
    return %c0_i32, %c0_i32_0 : i32, i32
  }
  func.func @transform_5(%arg0: i32, %arg1: memref<6x2xi32, #tpu.memory_space<smem>>, %arg2: memref<8x2xi32, #tpu.memory_space<smem>>, %arg3: memref<7xi32, #tpu.memory_space<smem>>) -> (i32, i32) {
    %c0_i32 = arith.constant 0 : i32
    %c0_i32_0 = arith.constant 0 : i32
    %c0_i32_1 = arith.constant 0 : i32
    return %c0_i32, %c0_i32_0 : i32, i32
  }
  func.func @transform_6(%arg0: i32, %arg1: memref<6x2xi32, #tpu.memory_space<smem>>, %arg2: memref<8x2xi32, #tpu.memory_space<smem>>, %arg3: memref<7xi32, #tpu.memory_space<smem>>) -> (i32, i32) {
    %c0_i32 = arith.constant 0 : i32
    %c0_i32_0 = arith.constant 0 : i32
    %c0_i32_1 = arith.constant 0 : i32
    return %c0_i32, %c0_i32_0 : i32, i32
  }
  func.func @transform_7(%arg0: i32, %arg1: memref<6x2xi32, #tpu.memory_space<smem>>, %arg2: memref<8x2xi32, #tpu.memory_space<smem>>, %arg3: memref<7xi32, #tpu.memory_space<smem>>) -> (i32, i32) {
    %c0_i32 = arith.constant 0 : i32
    %c0_i32_0 = arith.constant 0 : i32
    %c0_i32_1 = arith.constant 0 : i32
    return %c0_i32, %c0_i32_0 : i32, i32
  }
  func.func @transform_8(%arg0: i32, %arg1: memref<6x2xi32, #tpu.memory_space<smem>>, %arg2: memref<8x2xi32, #tpu.memory_space<smem>>, %arg3: memref<7xi32, #tpu.memory_space<smem>>) -> (i32, i32) {
    %c0_i32 = arith.constant 0 : i32
    %c0_i32_0 = arith.constant 0 : i32
    %c0_i32_1 = arith.constant 0 : i32
    return %c0_i32, %c0_i32_0 : i32, i32
  }
  func.func @transform_9(%arg0: i32, %arg1: memref<6x2xi32, #tpu.memory_space<smem>>, %arg2: memref<8x2xi32, #tpu.memory_space<smem>>, %arg3: memref<7xi32, #tpu.memory_space<smem>>) -> (i32, i32, i32) {
    %c0_i32 = arith.constant 0 : i32
    %c0_i32_0 = arith.constant 0 : i32
    %c0_i32_1 = arith.constant 0 : i32
    %c0_i32_2 = arith.constant 0 : i32
    return %c0_i32, %c0_i32_0, %c0_i32_1 : i32, i32, i32
  }
}

</mosaic_0001>

<llo_original>
// kernel: seq2seq_forward.1
$region0: #{seq2seq_forward.1}
  #allocation0 [shape = 'u32[]', space=smem, size = 0x4, offset = 0x4, fixed_abs, tag = 'smem constant byte address 0x4 - core index']
  #allocation1 [shape = 'u32[144,128]{1,0:T(1,128)}', space=vmem, size = 0x12000, scoped, tag = 'internal scratch']
  #allocation2 [shape = 's32[1]{0}', space=sflag, size = 0x4, scoped, tag = 'scoped memory for seq2seq_forward.1']
  #allocation3 [shape = 'u8[4096]{0}', space=smem, size = 0x1000, scoped, tag = 'prefetched SMEM operand 0']
  #allocation4 [shape = 'u8[4096]{0}', space=smem, size = 0x1000, scoped, tag = 'prefetched SMEM operand 1']
  #allocation5 [shape = 'u8[512]{0}', space=smem, size = 0x200, scoped, tag = 'prefetched SMEM operand 2']
  %s0 = inlined_call_operand.vmem [shape: s32[6,2], index: 0, kind: input, shape index: {}]
  %s1 = inlined_call_operand.vmem [shape: s32[8,2], index: 1, kind: input, shape index: {}]
  %s2 = inlined_call_operand.vmem [shape: s32[7], index: 2, kind: input, shape index: {}]
  %s3 = inlined_call_operand.vmem [shape: f32[16,8], index: 3, kind: input, shape index: {}]
  %s4 = inlined_call_operand.vmem [shape: f32[48,192], index: 4, kind: input, shape index: {}]
  %s5 = inlined_call_operand.vmem [shape: f32[32,16], index: 5, kind: input, shape index: {}]
  %s6 = inlined_call_operand.vmem [shape: f32[16,16], index: 6, kind: input, shape index: {}]
  %s7 = inlined_call_operand.vmem [shape: f32[32,16], index: 7, kind: input, shape index: {}]
  %s8 = inlined_call_operand.vmem [shape: f32[16,8], index: 8, kind: input, shape index: {}]
  %s9 = inlined_call_operand.vmem [shape: f32[56,96], index: 9, kind: input, shape index: {}]
  %s10 = inlined_call_operand.vmem [shape: f32[56,16], index: 10, kind: input, shape index: {}]
  %s11 = inlined_call_operand.vmem [shape: f32[6,192], index: 11, kind: input, shape index: {}]
  %s12 = inlined_call_operand.hbm [shape: f32[8,2,16], index: 12, kind: output, shape index: {}]
  %s13 = sld [smem:[#allocation0]]
  $region46: #{seq2seq_forward.1} parent=0
    _
  %s15 = ssub.s32 1, %s13
  %s16 = scalar_select 0, %s15, %s13
  %s17 = sshll.u32 %s0, 4
  %s18 = int_to_ptr.vmem [resolvable:$true] %s17
  %20 = dma.vmem_to_smem %s18, 128, [#allocation3], [#allocation2]
  %s21 = sshll.u32 %s1, 4
  %s22 = int_to_ptr.vmem [resolvable:$true] %s21
  %24 = dma.vmem_to_smem %s22, 128, [#allocation4], [#allocation2]
  %s25 = sshll.u32 %s2, 4
  %s26 = int_to_ptr.vmem [resolvable:$true] %s25
  %28 = dma.vmem_to_smem %s26, 16, [#allocation5], [#allocation2]
  %29 = dma.done [#allocation2], 272
  %30 = sfence
  $region1: #{seq2seq_forward.1} parent=0
    #allocation6 [shape = 'u8[8192]{0}', space=vmem, size = 0x2000, scoped, tag = 'output window, operand 0, single buffered']
    #allocation7 [shape = 's32[1]{0}', space=sflag, size = 0x4, scoped, tag = 'scoped memory for seq2seq_forward.1']
    %31 = vsyncpa [#allocation7], 0
    // Predicated region
    $region2: #{seq2seq_forward.1} parent=1 // pred_check
      _
    $region3: #{seq2seq_forward.1} parent=1 // pred_check_branch
      %33 = sbr.rel (0) target = $region5
    $region4: #{seq2seq_forward.1} parent=1 // pred_region
      _
    $region5: #{seq2seq_forward.1} parent=1 // pred_fallthru
      _
    // Predicated region
    $region6: #{seq2seq_forward.1} parent=1 // pred_check
      _
    $region7: #{seq2seq_forward.1} parent=1 // pred_check_branch
      %35 = sbr.rel (0) target = $region9
    $region8: #{seq2seq_forward.1} parent=1 // pred_region
      _
    $region9: #{seq2seq_forward.1} parent=1 // pred_fallthru
      _
    // Predicated region
    $region10: #{seq2seq_forward.1} parent=1 // pred_check
      _
    $region11: #{seq2seq_forward.1} parent=1 // pred_check_branch
      %37 = sbr.rel (0) target = $region13
    $region12: #{seq2seq_forward.1} parent=1 // pred_region
      _
    $region13: #{seq2seq_forward.1} parent=1 // pred_fallthru
      _
    // Predicated region
    $region14: #{seq2seq_forward.1} parent=1 // pred_check
      _
    $region15: #{seq2seq_forward.1} parent=1 // pred_check_branch
      %39 = sbr.rel (0) target = $region17
    $region16: #{seq2seq_forward.1} parent=1 // pred_region
      _
    $region17: #{seq2seq_forward.1} parent=1 // pred_fallthru
      _
    // Predicated region
    $region18: #{seq2seq_forward.1} parent=1 // pred_check
      _
    $region19: #{seq2seq_forward.1} parent=1 // pred_check_branch
      %41 = sbr.rel (0) target = $region21
    $region20: #{seq2seq_forward.1} parent=1 // pred_region
      _
    $region21: #{seq2seq_forward.1} parent=1 // pred_fallthru
      _
    // Predicated region
    $region22: #{seq2seq_forward.1} parent=1 // pred_check
      _
    $region23: #{seq2seq_forward.1} parent=1 // pred_check_branch
      %43 = sbr.rel (0) target = $region25
    $region24: #{seq2seq_forward.1} parent=1 // pred_region
      _
    $region25: #{seq2seq_forward.1} parent=1 // pred_fallthru
      _
    // Predicated region
    $region26: #{seq2seq_forward.1} parent=1 // pred_check
      _
    $region27: #{seq2seq_forward.1} parent=1 // pred_check_branch
      %45 = sbr.rel (0) target = $region29
    $region28: #{seq2seq_forward.1} parent=1 // pred_region
      _
    $region29: #{seq2seq_forward.1} parent=1 // pred_fallthru
      _
    // Predicated region
    $region30: #{seq2seq_forward.1} parent=1 // pred_check
      _
    $region31: #{seq2seq_forward.1} parent=1 // pred_check_branch
      %47 = sbr.rel (0) target = $region33
    $region32: #{seq2seq_forward.1} parent=1 // pred_region
      _
    $region33: #{seq2seq_forward.1} parent=1 // pred_fallthru
      _
    // Predicated region
    $region34: #{seq2seq_forward.1} parent=1 // pred_check
      _
    $region35: #{seq2seq_forward.1} parent=1 // pred_check_branch
      %49 = sbr.rel (0) target = $region37
    $region36: #{seq2seq_forward.1} parent=1 // pred_region
      _
    $region37: #{seq2seq_forward.1} parent=1 // pred_fallthru
      _
    %v50 = vld [vmem:[%s11] ss:$8 sm:$0x3]
    %v52 = vlaneseq
    %v53 = vshrl.u32 %v52, 7
    %v54 = vsub.s32 0, %v53
    %v55 = vrot.slane %v50, %v54
    %v56 = vlaneseq
    %v57 = vshrl.u32 %v56, 7
    %v58 = vsub.s32 1, %v57
    %v59 = vrot.slane %v50, %v58
    %v62 = vld [vmem:[%s11 + $0x1] ss:$0 sm:$0xff]
    %v63 = vld [vmem:[%s11 + $0x2] ss:$0 sm:$0xff]
    %v64 = vld [vmem:[%s11 + $0x3] ss:$0 sm:$0xff]
    %v65 = vld [vmem:[%s11 + $0x4] ss:$0 sm:$0xff]
    %v66 = vld [vmem:[%s11 + $0x5] ss:$0 sm:$0xff]
    %v67 = vlaneseq
    %v68 = vand.u32 %v67, 127
    %s69 = sld [smem:[#allocation3]]
    %v70 = vstv %s69
    %vm71 = vcmp.eq.s32.totalorder %v68, %v70
    %v72 = vsel %vm71, 1, 0
    %v73 = vcvt.s32.f32 %v72
    %s74 = sld [smem:[#allocation3 + $0x1]]
    %v75 = vstv %s74
    %vm76 = vcmp.eq.s32.totalorder %v68, %v75
    %v77 = vsel %vm76, 1, 0
    %v78 = vcvt.s32.f32 %v77
    %vm79 = vcmask 1040384
    %v80 = vsel %vm79, %v73, %v78
    %v81 = vld [vmem:[%s3] sm:$0xff]
    %v82 = vld [vmem:[%s3 + $0x8] sm:$0xff]
    %vm83 = vcmask 130048
    %v85 = vsel %vm83, %v80, 0
    %87 = vmatprep.subr.mxu0 0.0
    %88 = vmatpush1.msra.mxu0 %v81
    %89 = vmatprep.subr.mxu0 0.0
    %90 = vmatpush1.msra.mxu0 %v82
    %91 = vmatprep.subr.mxu0 0.0
    %92 = vmatpush1.msra.mxu0 0.0
    %93 = vmatprep.subr.mxu0 0.0
    %94 = vmatpush1.msra.mxu0 0.0
    %95 = vmatprep.subr.mxu0 0.0
    %96 = vmatpush1.msra.mxu0 0.0
    %97 = vmatprep.subr.mxu0 0.0
    %98 = vmatpush1.msra.mxu0 0.0
    %99 = vmatprep.subr.mxu0 0.0
    %100 = vmatpush1.msra.mxu0 0.0
    %101 = vmatprep.subr.mxu0 0.0
    %102 = vmatpush1.msra.mxu0 0.0
    %103 = vmatprep.subr.mxu0 0.0
    %104 = vmatpush1.msra.mxu0 0.0
    %105 = vmatprep.subr.mxu0 0.0
    %106 = vmatpush1.msra.mxu0 0.0
    %107 = vmatprep.subr.mxu0 0.0
    %108 = vmatpush1.msra.mxu0 0.0
    %109 = vmatprep.subr.mxu0 0.0
    %110 = vmatpush1.msra.mxu0 0.0
    %111 = vmatprep.subr.mxu0 0.0
    %112 = vmatpush1.msra.mxu0 0.0
    %113 = vmatprep.subr.mxu0 0.0
    %114 = vmatpush1.msra.mxu0 0.0
    %115 = vmatprep.subr.mxu0 0.0
    %116 = vmatpush1.msra.mxu0 0.0
    %117 = vmatprep.subr.mxu0 0.0
    %118 = vmatpush1.msra.mxu0 0.0
    %119 = vmatprep.subr.mxu0 0.0
    %120 = vmatpush1.msra.mxu0 0.0
    %121 = vmatprep.subr.mxu0 0.0
    %122 = vmatpush1.msra.mxu0 0.0
    %123 = vmatprep.subr.mxu0 0.0
    %124 = vmatpush1.msra.mxu0 0.0
    %125 = vmatprep.subr.mxu0 0.0
    %126 = vmatpush1.msra.mxu0 0.0
    %127 = vmatprep.subr.mxu0 0.0
    %128 = vmatpush1.msra.mxu0 0.0
    %129 = vmatprep.subr.mxu0 0.0
    %130 = vmatpush1.msra.mxu0 0.0
    %131 = vmatprep.subr.mxu0 0.0
    %132 = vmatpush1.msra.mxu0 0.0
    %133 = vmatprep.subr.mxu0 0.0
    %134 = vmatpush1.msra.mxu0 0.0
    %135 = vmatprep.subr.mxu0 0.0
    %136 = vmatpush1.msra.mxu0 0.0
    %137 = vmatprep.subr.mxu0 0.0
    %138 = vmatpush1.msra.mxu0 0.0
    %139 = vmatprep.subr.mxu0 0.0
    %140 = vmatpush1.msra.mxu0 0.0
    %141 = vmatprep.subr.mxu0 0.0
    %142 = vmatpush1.msra.mxu0 0.0
    %143 = vmatprep.subr.mxu0 0.0
    %144 = vmatpush1.msra.mxu0 0.0
    %145 = vmatprep.subr.mxu0 0.0
    %146 = vmatpush1.msra.mxu0 0.0
    %147 = vmatprep.subr.mxu0 0.0
    %148 = vmatpush1.msra.mxu0 0.0
    %149 = vmatprep.subr.mxu0 0.0
    %150 = vmatpush1.msra.mxu0 0.0
    %151 = vmatprep.mubr.f32.mxu0 0.0
    %152 = vmatmul.mubr.f32.gmra.mrb[0].mxu0 %v85
    %v153 = vpop.f32.mrb[0].mxu0
    %v154 = vadd.f32 0.0, %v153
    %v155 = vpop.f32.mrb[0].mxu0
    %156 = vdwg.mxu0
    %s157 = sld [smem:[#allocation3 + $0x80]]
    %v158 = vstv %s157
    %vm159 = vcmp.eq.s32.totalorder %v68, %v158
    %v160 = vsel %vm159, 1, 0
    %v161 = vcvt.s32.f32 %v160
    %s162 = sld [smem:[#allocation3 + $0x81]]
    %v163 = vstv %s162
    %vm164 = vcmp.eq.s32.totalorder %v68, %v163
    %v165 = vsel %vm164, 1, 0
    %v166 = vcvt.s32.f32 %v165
    %v167 = vsel %vm79, %v161, %v166
    %v169 = vsel %vm83, %v167, 0
    %171 = vmatprep.subr.mxu0 0.0
    %172 = vmatpush1.msra.mxu0 %v81
    %173 = vmatprep.subr.mxu0 0.0
    %174 = vmatpush1.msra.mxu0 %v82
    %175 = vmatprep.subr.mxu0 0.0
    %176 = vmatpush1.msra.mxu0 0.0
    %177 = vmatprep.subr.mxu0 0.0
    %178 = vmatpush1.msra.mxu0 0.0
    %179 = vmatprep.subr.mxu0 0.0
    %180 = vmatpush1.msra.mxu0 0.0
    %181 = vmatprep.subr.mxu0 0.0
    %182 = vmatpush1.msra.mxu0 0.0
    %183 = vmatprep.subr.mxu0 0.0
    %184 = vmatpush1.msra.mxu0 0.0
    %185 = vmatprep.subr.mxu0 0.0
    %186 = vmatpush1.msra.mxu0 0.0
    %187 = vmatprep.subr.mxu0 0.0
    %188 = vmatpush1.msra.mxu0 0.0
    %189 = vmatprep.subr.mxu0 0.0
    %190 = vmatpush1.msra.mxu0 0.0
    %191 = vmatprep.subr.mxu0 0.0
    %192 = vmatpush1.msra.mxu0 0.0
    %193 = vmatprep.subr.mxu0 0.0
    %194 = vmatpush1.msra.mxu0 0.0
    %195 = vmatprep.subr.mxu0 0.0
    %196 = vmatpush1.msra.mxu0 0.0
    %197 = vmatprep.subr.mxu0 0.0
    %198 = vmatpush1.msra.mxu0 0.0
    %199 = vmatprep.subr.mxu0 0.0
    %200 = vmatpush1.msra.mxu0 0.0
    %201 = vmatprep.subr.mxu0 0.0
    %202 = vmatpush1.msra.mxu0 0.0
    %203 = vmatprep.subr.mxu0 0.0
    %204 = vmatpush1.msra.mxu0 0.0
    %205 = vmatprep.subr.mxu0 0.0
    %206 = vmatpush1.msra.mxu0 0.0
    %207 = vmatprep.subr.mxu0 0.0
    %208 = vmatpush1.msra.mxu0 0.0
    %209 = vmatprep.subr.mxu0 0.0
    %210 = vmatpush1.msra.mxu0 0.0
    %211 = vmatprep.subr.mxu0 0.0
    %212 = vmatpush1.msra.mxu0 0.0
    %213 = vmatprep.subr.mxu0 0.0
    %214 = vmatpush1.msra.mxu0 0.0
    %215 = vmatprep.subr.mxu0 0.0
    %216 = vmatpush1.msra.mxu0 0.0
    %217 = vmatprep.subr.mxu0 0.0
    %218 = vmatpush1.msra.mxu0 0.0
    %219 = vmatprep.subr.mxu0 0.0
    %220 = vmatpush1.msra.mxu0 0.0
    %221 = vmatprep.subr.mxu0 0.0
    %222 = vmatpush1.msra.mxu0 0.0
    %223 = vmatprep.subr.mxu0 0.0
    %224 = vmatpush1.msra.mxu0 0.0
    %225 = vmatprep.subr.mxu0 0.0
    %226 = vmatpush1.msra.mxu0 0.0
    %227 = vmatprep.subr.mxu0 0.0
    %228 = vmatpush1.msra.mxu0 0.0
    %229 = vmatprep.subr.mxu0 0.0
    %230 = vmatpush1.msra.mxu0 0.0
    %231 = vmatprep.subr.mxu0 0.0
    %232 = vmatpush1.msra.mxu0 0.0
    %233 = vmatprep.subr.mxu0 0.0
    %234 = vmatpush1.msra.mxu0 0.0
    %235 = vmatprep.mubr.f32.mxu0 0.0
    %236 = vmatmul.mubr.f32.gmra.mrb[0].mxu0 %v169
    %v237 = vpop.f32.mrb[0].mxu0
    %v238 = vadd.f32 0.0, %v237
    %v239 = vpop.f32.mrb[0].mxu0
    %240 = vdwg.mxu0
    %s241 = sld [smem:[#allocation3 + $0x100]]
    %v242 = vstv %s241
    %vm243 = vcmp.eq.s32.totalorder %v68, %v242
    %v244 = vsel %vm243, 1, 0
    %v245 = vcvt.s32.f32 %v244
    %s246 = sld [smem:[#allocation3 + $0x101]]
    %v247 = vstv %s246
    %vm248 = vcmp.eq.s32.totalorder %v68, %v247
    %v249 = vsel %vm248, 1, 0
    %v250 = vcvt.s32.f32 %v249
    %v251 = vsel %vm79, %v245, %v250
    %v253 = vsel %vm83, %v251, 0
    %255 = vmatprep.subr.mxu0 0.0
    %256 = vmatpush1.msra.mxu0 %v81
    %257 = vmatprep.subr.mxu0 0.0
    %258 = vmatpush1.msra.mxu0 %v82
    %259 = vmatprep.subr.mxu0 0.0
    %260 = vmatpush1.msra.mxu0 0.0
    %261 = vmatprep.subr.mxu0 0.0
    %262 = vmatpush1.msra.mxu0 0.0
    %263 = vmatprep.subr.mxu0 0.0
    %264 = vmatpush1.msra.mxu0 0.0
    %265 = vmatprep.subr.mxu0 0.0
    %266 = vmatpush1.msra.mxu0 0.0
    %267 = vmatprep.subr.mxu0 0.0
    %268 = vmatpush1.msra.mxu0 0.0
    %269 = vmatprep.subr.mxu0 0.0
    %270 = vmatpush1.msra.mxu0 0.0
    %271 = vmatprep.subr.mxu0 0.0
    %272 = vmatpush1.msra.mxu0 0.0
    %273 = vmatprep.subr.mxu0 0.0
    %274 = vmatpush1.msra.mxu0 0.0
    %275 = vmatprep.subr.mxu0 0.0
    %276 = vmatpush1.msra.mxu0 0.0
    %277 = vmatprep.subr.mxu0 0.0
    %278 = vmatpush1.msra.mxu0 0.0
    %279 = vmatprep.subr.mxu0 0.0
    %280 = vmatpush1.msra.mxu0 0.0
    %281 = vmatprep.subr.mxu0 0.0
    %282 = vmatpush1.msra.mxu0 0.0
    %283 = vmatprep.subr.mxu0 0.0
    %284 = vmatpush1.msra.mxu0 0.0
    %285 = vmatprep.subr.mxu0 0.0
    %286 = vmatpush1.msra.mxu0 0.0
    %287 = vmatprep.subr.mxu0 0.0
    %288 = vmatpush1.msra.mxu0 0.0
    %289 = vmatprep.subr.mxu0 0.0
    %290 = vmatpush1.msra.mxu0 0.0
    %291 = vmatprep.subr.mxu0 0.0
    %292 = vmatpush1.msra.mxu0 0.0
    %293 = vmatprep.subr.mxu0 0.0
    %294 = vmatpush1.msra.mxu0 0.0
    %295 = vmatprep.subr.mxu0 0.0
    %296 = vmatpush1.msra.mxu0 0.0
    %297 = vmatprep.subr.mxu0 0.0
    %298 = vmatpush1.msra.mxu0 0.0
    %299 = vmatprep.subr.mxu0 0.0
    %300 = vmatpush1.msra.mxu0 0.0
    %301 = vmatprep.subr.mxu0 0.0
    %302 = vmatpush1.msra.mxu0 0.0
    %303 = vmatprep.subr.mxu0 0.0
    %304 = vmatpush1.msra.mxu0 0.0
    %305 = vmatprep.subr.mxu0 0.0
    %306 = vmatpush1.msra.mxu0 0.0
    %307 = vmatprep.subr.mxu0 0.0
    %308 = vmatpush1.msra.mxu0 0.0
    %309 = vmatprep.subr.mxu0 0.0
    %310 = vmatpush1.msra.mxu0 0.0
    %311 = vmatprep.subr.mxu0 0.0
    %312 = vmatpush1.msra.mxu0 0.0
    %313 = vmatprep.subr.mxu0 0.0
    %314 = vmatpush1.msra.mxu0 0.0
    %315 = vmatprep.subr.mxu0 0.0
    %316 = vmatpush1.msra.mxu0 0.0
    %317 = vmatprep.subr.mxu0 0.0
    %318 = vmatpush1.msra.mxu0 0.0
    %319 = vmatprep.mubr.f32.mxu0 0.0
    %320 = vmatmul.mubr.f32.gmra.mrb[0].mxu0 %v253
    %v321 = vpop.f32.mrb[0].mxu0
    %v322 = vadd.f32 0.0, %v321
    %v323 = vpop.f32.mrb[0].mxu0
    %324 = vdwg.mxu0
    %s325 = sld [smem:[#allocation3 + $0x180]]
    %v326 = vstv %s325
    %vm327 = vcmp.eq.s32.totalorder %v68, %v326
    %v328 = vsel %vm327, 1, 0
    %v329 = vcvt.s32.f32 %v328
    %s330 = sld [smem:[#allocation3 + $0x181]]
    %v331 = vstv %s330
    %vm332 = vcmp.eq.s32.totalorder %v68, %v331
    %v333 = vsel %vm332, 1, 0
    %v334 = vcvt.s32.f32 %v333
    %v335 = vsel %vm79, %v329, %v334
    %v337 = vsel %vm83, %v335, 0
    %339 = vmatprep.subr.mxu0 0.0
    %340 = vmatpush1.msra.mxu0 %v81
    %341 = vmatprep.subr.mxu0 0.0
    %342 = vmatpush1.msra.mxu0 %v82
    %343 = vmatprep.subr.mxu0 0.0
    %344 = vmatpush1.msra.mxu0 0.0
    %345 = vmatprep.subr.mxu0 0.0
    %346 = vmatpush1.msra.mxu0 0.0
    %347 = vmatprep.subr.mxu0 0.0
    %348 = vmatpush1.msra.mxu0 0.0
    %349 = vmatprep.subr.mxu0 0.0
    %350 = vmatpush1.msra.mxu0 0.0
    %351 = vmatprep.subr.mxu0 0.0
    %352 = vmatpush1.msra.mxu0 0.0
    %353 = vmatprep.subr.mxu0 0.0
    %354 = vmatpush1.msra.mxu0 0.0
    %355 = vmatprep.subr.mxu0 0.0
    %356 = vmatpush1.msra.mxu0 0.0
    %357 = vmatprep.subr.mxu0 0.0
    %358 = vmatpush1.msra.mxu0 0.0
    %359 = vmatprep.subr.mxu0 0.0
    %360 = vmatpush1.msra.mxu0 0.0
    %361 = vmatprep.subr.mxu0 0.0
    %362 = vmatpush1.msra.mxu0 0.0
    %363 = vmatprep.subr.mxu0 0.0
    %364 = vmatpush1.msra.mxu0 0.0
    %365 = vmatprep.subr.mxu0 0.0
    %366 = vmatpush1.msra.mxu0 0.0
    %367 = vmatprep.subr.mxu0 0.0
    %368 = vmatpush1.msra.mxu0 0.0
    %369 = vmatprep.subr.mxu0 0.0
    %370 = vmatpush1.msra.mxu0 0.0
    %371 = vmatprep.subr.mxu0 0.0
    %372 = vmatpush1.msra.mxu0 0.0
    %373 = vmatprep.subr.mxu0 0.0
    %374 = vmatpush1.msra.mxu0 0.0
    %375 = vmatprep.subr.mxu0 0.0
    %376 = vmatpush1.msra.mxu0 0.0
    %377 = vmatprep.subr.mxu0 0.0
    %378 = vmatpush1.msra.mxu0 0.0
    %379 = vmatprep.subr.mxu0 0.0
    %380 = vmatpush1.msra.mxu0 0.0
    %381 = vmatprep.subr.mxu0 0.0
    %382 = vmatpush1.msra.mxu0 0.0
    %383 = vmatprep.subr.mxu0 0.0
    %384 = vmatpush1.msra.mxu0 0.0
    %385 = vmatprep.subr.mxu0 0.0
    %386 = vmatpush1.msra.mxu0 0.0
    %387 = vmatprep.subr.mxu0 0.0
    %388 = vmatpush1.msra.mxu0 0.0
    %389 = vmatprep.subr.mxu0 0.0
    %390 = vmatpush1.msra.mxu0 0.0
    %391 = vmatprep.subr.mxu0 0.0
    %392 = vmatpush1.msra.mxu0 0.0
    %393 = vmatprep.subr.mxu0 0.0
    %394 = vmatpush1.msra.mxu0 0.0
    %395 = vmatprep.subr.mxu0 0.0
    %396 = vmatpush1.msra.mxu0 0.0
    %397 = vmatprep.subr.mxu0 0.0
    %398 = vmatpush1.msra.mxu0 0.0
    %399 = vmatprep.subr.mxu0 0.0
    %400 = vmatpush1.msra.mxu0 0.0
    %401 = vmatprep.subr.mxu0 0.0
    %402 = vmatpush1.msra.mxu0 0.0
    %403 = vmatprep.mubr.f32.mxu0 0.0
    %404 = vmatmul.mubr.f32.gmra.mrb[0].mxu0 %v337
    %v405 = vpop.f32.mrb[0].mxu0
    %v406 = vadd.f32 0.0, %v405
    %v407 = vpop.f32.mrb[0].mxu0
    %408 = vdwg.mxu0
    %s409 = sld [smem:[#allocation3 + $0x200]]
    %v410 = vstv %s409
    %vm411 = vcmp.eq.s32.totalorder %v68, %v410
    %v412 = vsel %vm411, 1, 0
    %v413 = vcvt.s32.f32 %v412
    %s414 = sld [smem:[#allocation3 + $0x201]]
    %v415 = vstv %s414
    %vm416 = vcmp.eq.s32.totalorder %v68, %v415
    %v417 = vsel %vm416, 1, 0
    %v418 = vcvt.s32.f32 %v417
    %v419 = vsel %vm79, %v413, %v418
    %v421 = vsel %vm83, %v419, 0
    %423 = vmatprep.subr.mxu0 0.0
    %424 = vmatpush1.msra.mxu0 %v81
    %425 = vmatprep.subr.mxu0 0.0
    %426 = vmatpush1.msra.mxu0 %v82
    %427 = vmatprep.subr.mxu0 0.0
    %428 = vmatpush1.msra.mxu0 0.0
    %429 = vmatprep.subr.mxu0 0.0
    %430 = vmatpush1.msra.mxu0 0.0
    %431 = vmatprep.subr.mxu0 0.0
    %432 = vmatpush1.msra.mxu0 0.0
    %433 = vmatprep.subr.mxu0 0.0
    %434 = vmatpush1.msra.mxu0 0.0
    %435 = vmatprep.subr.mxu0 0.0
    %436 = vmatpush1.msra.mxu0 0.0
    %437 = vmatprep.subr.mxu0 0.0
    %438 = vmatpush1.msra.mxu0 0.0
    %439 = vmatprep.subr.mxu0 0.0
    %440 = vmatpush1.msra.mxu0 0.0
    %441 = vmatprep.subr.mxu0 0.0
    %442 = vmatpush1.msra.mxu0 0.0
    %443 = vmatprep.subr.mxu0 0.0
    %444 = vmatpush1.msra.mxu0 0.0
    %445 = vmatprep.subr.mxu0 0.0
    %446 = vmatpush1.msra.mxu0 0.0
    %447 = vmatprep.subr.mxu0 0.0
    %448 = vmatpush1.msra.mxu0 0.0
    %449 = vmatprep.subr.mxu0 0.0
    %450 = vmatpush1.msra.mxu0 0.0
    %451 = vmatprep.subr.mxu0 0.0
    %452 = vmatpush1.msra.mxu0 0.0
    %453 = vmatprep.subr.mxu0 0.0
    %454 = vmatpush1.msra.mxu0 0.0
    %455 = vmatprep.subr.mxu0 0.0
    %456 = vmatpush1.msra.mxu0 0.0
    %457 = vmatprep.subr.mxu0 0.0
    %458 = vmatpush1.msra.mxu0 0.0
    %459 = vmatprep.subr.mxu0 0.0
    %460 = vmatpush1.msra.mxu0 0.0
    %461 = vmatprep.subr.mxu0 0.0
    %462 = vmatpush1.msra.mxu0 0.0
    %463 = vmatprep.subr.mxu0 0.0
    %464 = vmatpush1.msra.mxu0 0.0
    %465 = vmatprep.subr.mxu0 0.0
    %466 = vmatpush1.msra.mxu0 0.0
    %467 = vmatprep.subr.mxu0 0.0
    %468 = vmatpush1.msra.mxu0 0.0
    %469 = vmatprep.subr.mxu0 0.0
    %470 = vmatpush1.msra.mxu0 0.0
    %471 = vmatprep.subr.mxu0 0.0
    %472 = vmatpush1.msra.mxu0 0.0
    %473 = vmatprep.subr.mxu0 0.0
    %474 = vmatpush1.msra.mxu0 0.0
    %475 = vmatprep.subr.mxu0 0.0
    %476 = vmatpush1.msra.mxu0 0.0
    %477 = vmatprep.subr.mxu0 0.0
    %478 = vmatpush1.msra.mxu0 0.0
    %479 = vmatprep.subr.mxu0 0.0
    %480 = vmatpush1.msra.mxu0 0.0
    %481 = vmatprep.subr.mxu0 0.0
    %482 = vmatpush1.msra.mxu0 0.0
    %483 = vmatprep.subr.mxu0 0.0
    %484 = vmatpush1.msra.mxu0 0.0
    %485 = vmatprep.subr.mxu0 0.0
    %486 = vmatpush1.msra.mxu0 0.0
    %487 = vmatprep.mubr.f32.mxu0 0.0
    %488 = vmatmul.mubr.f32.gmra.mrb[0].mxu0 %v421
    %v489 = vpop.f32.mrb[0].mxu0
    %v490 = vadd.f32 0.0, %v489
    %v491 = vpop.f32.mrb[0].mxu0
    %492 = vdwg.mxu0
    %s493 = sld [smem:[#allocation3 + $0x280]]
    %v494 = vstv %s493
    %vm495 = vcmp.eq.s32.totalorder %v68, %v494
    %v496 = vsel %vm495, 1, 0
    %v497 = vcvt.s32.f32 %v496
    %s498 = sld [smem:[#allocation3 + $0x281]]
    %v499 = vstv %s498
    %vm500 = vcmp.eq.s32.totalorder %v68, %v499
    %v501 = vsel %vm500, 1, 0
    %v502 = vcvt.s32.f32 %v501
    %v503 = vsel %vm79, %v497, %v502
    %v505 = vsel %vm83, %v503, 0
    %507 = vmatprep.subr.mxu0 0.0
    %508 = vmatpush1.msra.mxu0 %v81
    %509 = vmatprep.subr.mxu0 0.0
    %510 = vmatpush1.msra.mxu0 %v82
    %511 = vmatprep.subr.mxu0 0.0
    %512 = vmatpush1.msra.mxu0 0.0
    %513 = vmatprep.subr.mxu0 0.0
    %514 = vmatpush1.msra.mxu0 0.0
    %515 = vmatprep.subr.mxu0 0.0
    %516 = vmatpush1.msra.mxu0 0.0
    %517 = vmatprep.subr.mxu0 0.0
    %518 = vmatpush1.msra.mxu0 0.0
    %519 = vmatprep.subr.mxu0 0.0
    %520 = vmatpush1.msra.mxu0 0.0
    %521 = vmatprep.subr.mxu0 0.0
    %522 = vmatpush1.msra.mxu0 0.0
    %523 = vmatprep.subr.mxu0 0.0
    %524 = vmatpush1.msra.mxu0 0.0
    %525 = vmatprep.subr.mxu0 0.0
    %526 = vmatpush1.msra.mxu0 0.0
    %527 = vmatprep.subr.mxu0 0.0
    %528 = vmatpush1.msra.mxu0 0.0
    %529 = vmatprep.subr.mxu0 0.0
    %530 = vmatpush1.msra.mxu0 0.0
    %531 = vmatprep.subr.mxu0 0.0
    %532 = vmatpush1.msra.mxu0 0.0
    %533 = vmatprep.subr.mxu0 0.0
    %534 = vmatpush1.msra.mxu0 0.0
    %535 = vmatprep.subr.mxu0 0.0
    %536 = vmatpush1.msra.mxu0 0.0
    %537 = vmatprep.subr.mxu0 0.0
    %538 = vmatpush1.msra.mxu0 0.0
    %539 = vmatprep.subr.mxu0 0.0
    %540 = vmatpush1.msra.mxu0 0.0
    %541 = vmatprep.subr.mxu0 0.0
    %542 = vmatpush1.msra.mxu0 0.0
    %543 = vmatprep.subr.mxu0 0.0
    %544 = vmatpush1.msra.mxu0 0.0
    %545 = vmatprep.subr.mxu0 0.0
    %546 = vmatpush1.msra.mxu0 0.0
    %547 = vmatprep.subr.mxu0 0.0
    %548 = vmatpush1.msra.mxu0 0.0
    %549 = vmatprep.subr.mxu0 0.0
    %550 = vmatpush1.msra.mxu0 0.0
    %551 = vmatprep.subr.mxu0 0.0
    %552 = vmatpush1.msra.mxu0 0.0
    %553 = vmatprep.subr.mxu0 0.0
    %554 = vmatpush1.msra.mxu0 0.0
    %555 = vmatprep.subr.mxu0 0.0
    %556 = vmatpush1.msra.mxu0 0.0
    %557 = vmatprep.subr.mxu0 0.0
    %558 = vmatpush1.msra.mxu0 0.0
    %559 = vmatprep.subr.mxu0 0.0
    %560 = vmatpush1.msra.mxu0 0.0
    %561 = vmatprep.subr.mxu0 0.0
    %562 = vmatpush1.msra.mxu0 0.0
    %563 = vmatprep.subr.mxu0 0.0
    %564 = vmatpush1.msra.mxu0 0.0
    %565 = vmatprep.subr.mxu0 0.0
    %566 = vmatpush1.msra.mxu0 0.0
    %567 = vmatprep.subr.mxu0 0.0
    %568 = vmatpush1.msra.mxu0 0.0
    %569 = vmatprep.subr.mxu0 0.0
    %570 = vmatpush1.msra.mxu0 0.0
    %571 = vmatprep.mubr.f32.mxu0 0.0
    %572 = vmatmul.mubr.f32.gmra.mrb[0].mxu0 %v505
    %v573 = vpop.f32.mrb[0].mxu0
    %v574 = vadd.f32 0.0, %v573
    %v575 = vpop.f32.mrb[0].mxu0
    %576 = vdwg.mxu0
    %578 = vrot.lane.b32.xlu0 %v574, 24
    %v579 = vpop.permute.xlu0 %578
    %vm581 = vcmask 64512
    %v582 = vsel %vm581, %v154, 0.0
    %vm583 = vcmask 195584
    %v584 = vsel %vm583, %v582, %v579
    %vm585 = vcmask 261120
    %v586 = vsel %vm585, %v584, 0.0
    %v587 = vld [vmem:[%s4] sm:$0xff]
    %v588 = vld [vmem:[%s4 + $0x8] sm:$0xff]
    %v589 = vld [vmem:[%s4 + $0x10] sm:$0xff]
    %v590 = vld [vmem:[%s4 + $0x18] sm:$0xff]
    %v591 = vld [vmem:[%s4 + $0x20] sm:$0xff]
    %v592 = vld [vmem:[%s4 + $0x28] sm:$0xff]
    %v593 = vld [vmem:[%s4 + $0x30] sm:$0xff]
    %v594 = vld [vmem:[%s4 + $0x38] sm:$0xff]
    %v595 = vld [vmem:[%s4 + $0x40] sm:$0xff]
    %v596 = vld [vmem:[%s4 + $0x48] sm:$0xff]
    %v597 = vld [vmem:[%s4 + $0x50] sm:$0xff]
    %v598 = vld [vmem:[%s4 + $0x58] sm:$0xff]
    %vm599 = vcmask 392192
    %v601 = vsel %vm599, %v586, 0
    %603 = vmatprep.subr.mxu0 %v588
    %604 = vmatpush1.msra.mxu0 %v587
    %605 = vmatprep.subr.mxu0 %v590
    %606 = vmatpush1.msra.mxu0 %v589
    %607 = vmatprep.subr.mxu0 %v592
    %608 = vmatpush1.msra.mxu0 %v591
    %609 = vmatprep.subr.mxu0 %v594
    %610 = vmatpush1.msra.mxu0 %v593
    %611 = vmatprep.subr.mxu0 %v596
    %612 = vmatpush1.msra.mxu0 %v595
    %613 = vmatprep.subr.mxu0 %v598
    %614 = vmatpush1.msra.mxu0 %v597
    %615 = vmatprep.subr.mxu0 0.0
    %616 = vmatpush1.msra.mxu0 0.0
    %617 = vmatprep.subr.mxu0 0.0
    %618 = vmatpush1.msra.mxu0 0.0
    %619 = vmatprep.subr.mxu0 0.0
    %620 = vmatpush1.msra.mxu0 0.0
    %621 = vmatprep.subr.mxu0 0.0
    %622 = vmatpush1.msra.mxu0 0.0
    %623 = vmatprep.subr.mxu0 0.0
    %624 = vmatpush1.msra.mxu0 0.0
    %625 = vmatprep.subr.mxu0 0.0
    %626 = vmatpush1.msra.mxu0 0.0
    %627 = vmatprep.subr.mxu0 0.0
    %628 = vmatpush1.msra.mxu0 0.0
    %629 = vmatprep.subr.mxu0 0.0
    %630 = vmatpush1.msra.mxu0 0.0
    %631 = vmatprep.subr.mxu0 0.0
    %632 = vmatpush1.msra.mxu0 0.0
    %633 = vmatprep.subr.mxu0 0.0
    %634 = vmatpush1.msra.mxu0 0.0
    %635 = vmatprep.subr.mxu0 0.0
    %636 = vmatpush1.msra.mxu0 0.0
    %637 = vmatprep.subr.mxu0 0.0
    %638 = vmatpush1.msra.mxu0 0.0
    %639 = vmatprep.subr.mxu0 0.0
    %640 = vmatpush1.msra.mxu0 0.0
    %641 = vmatprep.subr.mxu0 0.0
    %642 = vmatpush1.msra.mxu0 0.0
    %643 = vmatprep.subr.mxu0 0.0
    %644 = vmatpush1.msra.mxu0 0.0
    %645 = vmatprep.subr.mxu0 0.0
    %646 = vmatpush1.msra.mxu0 0.0
    %647 = vmatprep.subr.mxu0 0.0
    %648 = vmatpush1.msra.mxu0 0.0
    %649 = vmatprep.subr.mxu0 0.0
    %650 = vmatpush1.msra.mxu0 0.0
    %651 = vmatprep.subr.mxu0 0.0
    %652 = vmatpush1.msra.mxu0 0.0
    %653 = vmatprep.subr.mxu0 0.0
    %654 = vmatpush1.msra.mxu0 0.0
    %655 = vmatprep.subr.mxu0 0.0
    %656 = vmatpush1.msra.mxu0 0.0
    %657 = vmatprep.subr.mxu0 0.0
    %658 = vmatpush1.msra.mxu0 0.0
    %659 = vmatprep.subr.mxu0 0.0
    %660 = vmatpush1.msra.mxu0 0.0
    %661 = vmatprep.subr.mxu0 0.0
    %662 = vmatpush1.msra.mxu0 0.0
    %663 = vmatprep.subr.mxu0 0.0
    %664 = vmatpush1.msra.mxu0 0.0
    %665 = vmatprep.subr.mxu0 0.0
    %666 = vmatpush1.msra.mxu0 0.0
    %667 = vmatprep.mubr.f32.mxu0 0.0
    %668 = vmatmul.mubr.f32.gmra.mrb[0].mxu0 %v601
    %v669 = vpop.f32.mrb[0].mxu0
    %v670 = vadd.f32 %v55, %v669
    %v671 = vpop.f32.mrb[0].mxu0
    %v672 = vadd.f32 %v59, %v671
    %673 = vdwg.mxu0
    %675 = vrot.lane.b32.xlu0 %v670, 80
    %v676 = vpop.permute.xlu0 %675
    %v678 = vadd.f32 %v670, %v676
    %v679 = vxor.u32 %v678, 2147483648
    %v680 = vmul.f32 %v679, 1.442695
    %v681 = vpow.pop %v680
    %v682 = vadd.f32 %v681, 1.0
    %v683 = vrcp.pop %v682
    %v684 = vmul.f32 1.0, %v683
    %685 = vrot.lane.b32.xlu0 %v670, 48
    %v686 = vpop.permute.xlu0 %685
    %v688 = vmul.f32 %v684, %v686
    %690 = vrot.lane.b32.xlu0 %v688, 32
    %v691 = vpop.permute.xlu0 %690
    %v693 = vadd.f32 %v670, %v691
    %v694 = vtanh.pop %v693
    %v695 = vsub.f32 1.0, %v684
    %697 = vrot.lane.b32.xlu0 %v694, 112
    %v698 = vpop.permute.xlu0 %697
    %v700 = vmul.f32 %v695, %v698
    %v701 = vmul.f32 %v684, 0.0
    %v702 = vadd.f32 %v700, %v701
    %704 = vrot.lane.b32.xlu0 %v672, 80
    %v705 = vpop.permute.xlu0 %704
    %v707 = vadd.f32 %v670, %v705
    %v708 = vxor.u32 %v707, 2147483648
    %v709 = vmul.f32 %v708, 1.442695
    %v710 = vpow.pop %v709
    %v711 = vadd.f32 %v710, 1.0
    %v712 = vrcp.pop %v711
    %v713 = vmul.f32 1.0, %v712
    %714 = vrot.lane.b32.xlu0 %v672, 48
    %v715 = vpop.permute.xlu0 %714
    %v717 = vmul.f32 %v713, %v715
    %719 = vrot.lane.b32.xlu0 %v717, 32
    %v720 = vpop.permute.xlu0 %719
    %v722 = vadd.f32 %v672, %v720
    %v723 = vtanh.pop %v722
    %v724 = vsub.f32 1.0, %v713
    %726 = vrot.lane.b32.xlu0 %v723, 112
    %v727 = vpop.permute.xlu0 %726
    %v729 = vmul.f32 %v724, %v727
    %v730 = vmul.f32 %v713, 0.0
    %v731 = vadd.f32 %v729, %v730
    %733 = vrot.lane.b32.xlu0 %v702, 120
    %v734 = vpop.permute.xlu0 %733
    %737 = vrot.lane.b32.xlu0 %v490, 24
    %v738 = vpop.permute.xlu0 %737
    %741 = vrot.lane.b32.xlu0 %v731, 48
    %v742 = vpop.permute.xlu0 %741
    %v744 = vsel %vm581, %v238, %v734
    %v745 = vsel %vm583, %v744, %v738
    %v746 = vsel %vm585, %v745, %v742
    %v748 = vsel %vm599, %v746, 0
    %750 = vmatprep.subr.mxu0 %v588
    %751 = vmatpush1.msra.mxu0 %v587
    %752 = vmatprep.subr.mxu0 %v590
    %753 = vmatpush1.msra.mxu0 %v589
    %754 = vmatprep.subr.mxu0 %v592
    %755 = vmatpush1.msra.mxu0 %v591
    %756 = vmatprep.subr.mxu0 %v594
    %757 = vmatpush1.msra.mxu0 %v593
    %758 = vmatprep.subr.mxu0 %v596
    %759 = vmatpush1.msra.mxu0 %v595
    %760 = vmatprep.subr.mxu0 %v598
    %761 = vmatpush1.msra.mxu0 %v597
    %762 = vmatprep.subr.mxu0 0.0
    %763 = vmatpush1.msra.mxu0 0.0
    %764 = vmatprep.subr.mxu0 0.0
    %765 = vmatpush1.msra.mxu0 0.0
    %766 = vmatprep.subr.mxu0 0.0
    %767 = vmatpush1.msra.mxu0 0.0
    %768 = vmatprep.subr.mxu0 0.0
    %769 = vmatpush1.msra.mxu0 0.0
    %770 = vmatprep.subr.mxu0 0.0
    %771 = vmatpush1.msra.mxu0 0.0
    %772 = vmatprep.subr.mxu0 0.0
    %773 = vmatpush1.msra.mxu0 0.0
    %774 = vmatprep.subr.mxu0 0.0
    %775 = vmatpush1.msra.mxu0 0.0
    %776 = vmatprep.subr.mxu0 0.0
    %777 = vmatpush1.msra.mxu0 0.0
    %778 = vmatprep.subr.mxu0 0.0
    %779 = vmatpush1.msra.mxu0 0.0
    %780 = vmatprep.subr.mxu0 0.0
    %781 = vmatpush1.msra.mxu0 0.0
    %782 = vmatprep.subr.mxu0 0.0
    %783 = vmatpush1.msra.mxu0 0.0
    %784 = vmatprep.subr.mxu0 0.0
    %785 = vmatpush1.msra.mxu0 0.0
    %786 = vmatprep.subr.mxu0 0.0
    %787 = vmatpush1.msra.mxu0 0.0
    %788 = vmatprep.subr.mxu0 0.0
    %789 = vmatpush1.msra.mxu0 0.0
    %790 = vmatprep.subr.mxu0 0.0
    %791 = vmatpush1.msra.mxu0 0.0
    %792 = vmatprep.subr.mxu0 0.0
    %793 = vmatpush1.msra.mxu0 0.0
    %794 = vmatprep.subr.mxu0 0.0
    %795 = vmatpush1.msra.mxu0 0.0
    %796 = vmatprep.subr.mxu0 0.0
    %797 = vmatpush1.msra.mxu0 0.0
    %798 = vmatprep.subr.mxu0 0.0
    %799 = vmatpush1.msra.mxu0 0.0
    %800 = vmatprep.subr.mxu0 0.0
    %801 = vmatpush1.msra.mxu0 0.0
    %802 = vmatprep.subr.mxu0 0.0
    %803 = vmatpush1.msra.mxu0 0.0
    %804 = vmatprep.subr.mxu0 0.0
    %805 = vmatpush1.msra.mxu0 0.0
    %806 = vmatprep.subr.mxu0 0.0
    %807 = vmatpush1.msra.mxu0 0.0
    %808 = vmatprep.subr.mxu0 0.0
    %809 = vmatpush1.msra.mxu0 0.0
    %810 = vmatprep.subr.mxu0 0.0
    %811 = vmatpush1.msra.mxu0 0.0
    %812 = vmatprep.subr.mxu0 0.0
    %813 = vmatpush1.msra.mxu0 0.0
    %814 = vmatprep.mubr.f32.mxu0 0.0
    %815 = vmatmul.mubr.f32.gmra.mrb[0].mxu0 %v748
    %v816 = vpop.f32.mrb[0].mxu0
    %v817 = vadd.f32 %v55, %v816
    %v818 = vpop.f32.mrb[0].mxu0
    %v819 = vadd.f32 %v59, %v818
    %820 = vdwg.mxu0
    %822 = vrot.lane.b32.xlu0 %v817, 80
    %v823 = vpop.permute.xlu0 %822
    %v825 = vadd.f32 %v817, %v823
    %v826 = vxor.u32 %v825, 2147483648
    %v827 = vmul.f32 %v826, 1.442695
    %v828 = vpow.pop %v827
    %v829 = vadd.f32 %v828, 1.0
    %v830 = vrcp.pop %v829
    %v831 = vmul.f32 1.0, %v830
    %832 = vrot.lane.b32.xlu0 %v817, 48
    %v833 = vpop.permute.xlu0 %832
    %v835 = vmul.f32 %v831, %v833
    %837 = vrot.lane.b32.xlu0 %v835, 32
    %v838 = vpop.permute.xlu0 %837
    %v840 = vadd.f32 %v817, %v838
    %v841 = vtanh.pop %v840
    %v842 = vsub.f32 1.0, %v831
    %844 = vrot.lane.b32.xlu0 %v841, 112
    %v845 = vpop.permute.xlu0 %844
    %v847 = vmul.f32 %v842, %v845
    %v848 = vmul.f32 %v831, %v702
    %v849 = vadd.f32 %v847, %v848
    %851 = vrot.lane.b32.xlu0 %v819, 80
    %v852 = vpop.permute.xlu0 %851
    %v854 = vadd.f32 %v817, %v852
    %v855 = vxor.u32 %v854, 2147483648
    %v856 = vmul.f32 %v855, 1.442695
    %v857 = vpow.pop %v856
    %v858 = vadd.f32 %v857, 1.0
    %v859 = vrcp.pop %v858
    %v860 = vmul.f32 1.0, %v859
    %861 = vrot.lane.b32.xlu0 %v819, 48
    %v862 = vpop.permute.xlu0 %861
    %v864 = vmul.f32 %v860, %v862
    %866 = vrot.lane.b32.xlu0 %v864, 32
    %v867 = vpop.permute.xlu0 %866
    %v869 = vadd.f32 %v819, %v867
    %v870 = vtanh.pop %v869
    %v871 = vsub.f32 1.0, %v860
    %873 = vrot.lane.b32.xlu0 %v870, 112
    %v874 = vpop.permute.xlu0 %873
    %v876 = vmul.f32 %v871, %v874
    %v877 = vmul.f32 %v860, %v731
    %v878 = vadd.f32 %v876, %v877
    %880 = vrot.lane.b32.xlu0 %v849, 120
    %v881 = vpop.permute.xlu0 %880
    %884 = vrot.lane.b32.xlu0 %v406, 24
    %v885 = vpop.permute.xlu0 %884
    %888 = vrot.lane.b32.xlu0 %v878, 48
    %v889 = vpop.permute.xlu0 %888
    %v891 = vsel %vm581, %v322, %v881
    %v892 = vsel %vm583, %v891, %v885
    %v893 = vsel %vm585, %v892, %v889
    %v895 = vsel %vm599, %v893, 0
    %897 = vmatprep.subr.mxu0 %v588
    %898 = vmatpush1.msra.mxu0 %v587
    %899 = vmatprep.subr.mxu0 %v590
    %900 = vmatpush1.msra.mxu0 %v589
    %901 = vmatprep.subr.mxu0 %v592
    %902 = vmatpush1.msra.mxu0 %v591
    %903 = vmatprep.subr.mxu0 %v594
    %904 = vmatpush1.msra.mxu0 %v593
    %905 = vmatprep.subr.mxu0 %v596
    %906 = vmatpush1.msra.mxu0 %v595
    %907 = vmatprep.subr.mxu0 %v598
    %908 = vmatpush1.msra.mxu0 %v597
    %909 = vmatprep.subr.mxu0 0.0
    %910 = vmatpush1.msra.mxu0 0.0
    %911 = vmatprep.subr.mxu0 0.0
    %912 = vmatpush1.msra.mxu0 0.0
    %913 = vmatprep.subr.mxu0 0.0
    %914 = vmatpush1.msra.mxu0 0.0
    %915 = vmatprep.subr.mxu0 0.0
    %916 = vmatpush1.msra.mxu0 0.0
    %917 = vmatprep.subr.mxu0 0.0
    %918 = vmatpush1.msra.mxu0 0.0
    %919 = vmatprep.subr.mxu0 0.0
    %920 = vmatpush1.msra.mxu0 0.0
    %921 = vmatprep.subr.mxu0 0.0
    %922 = vmatpush1.msra.mxu0 0.0
    %923 = vmatprep.subr.mxu0 0.0
    %924 = vmatpush1.msra.mxu0 0.0
    %925 = vmatprep.subr.mxu0 0.0
    %926 = vmatpush1.msra.mxu0 0.0
    %927 = vmatprep.subr.mxu0 0.0
    %928 = vmatpush1.msra.mxu0 0.0
    %929 = vmatprep.subr.mxu0 0.0
    %930 = vmatpush1.msra.mxu0 0.0
    %931 = vmatprep.subr.mxu0 0.0
    %932 = vmatpush1.msra.mxu0 0.0
    %933 = vmatprep.subr.mxu0 0.0
    %934 = vmatpush1.msra.mxu0 0.0
    %935 = vmatprep.subr.mxu0 0.0
    %936 = vmatpush1.msra.mxu0 0.0
    %937 = vmatprep.subr.mxu0 0.0
    %938 = vmatpush1.msra.mxu0 0.0
    %939 = vmatprep.subr.mxu0 0.0
    %940 = vmatpush1.msra.mxu0 0.0
    %941 = vmatprep.subr.mxu0 0.0
    %942 = vmatpush1.msra.mxu0 0.0
    %943 = vmatprep.subr.mxu0 0.0
    %944 = vmatpush1.msra.mxu0 0.0
    %945 = vmatprep.subr.mxu0 0.0
    %946 = vmatpush1.msra.mxu0 0.0
    %947 = vmatprep.subr.mxu0 0.0
    %948 = vmatpush1.msra.mxu0 0.0
    %949 = vmatprep.subr.mxu0 0.0
    %950 = vmatpush1.msra.mxu0 0.0
    %951 = vmatprep.subr.mxu0 0.0
    %952 = vmatpush1.msra.mxu0 0.0
    %953 = vmatprep.subr.mxu0 0.0
    %954 = vmatpush1.msra.mxu0 0.0
    %955 = vmatprep.subr.mxu0 0.0
    %956 = vmatpush1.msra.mxu0 0.0
    %957 = vmatprep.subr.mxu0 0.0
    %958 = vmatpush1.msra.mxu0 0.0
    %959 = vmatprep.subr.mxu0 0.0
    %960 = vmatpush1.msra.mxu0 0.0
    %961 = vmatprep.mubr.f32.mxu0 0.0
    %962 = vmatmul.mubr.f32.gmra.mrb[0].mxu0 %v895
    %v963 = vpop.f32.mrb[0].mxu0
    %v964 = vadd.f32 %v55, %v963
    %v965 = vpop.f32.mrb[0].mxu0
    %v966 = vadd.f32 %v59, %v965
    %967 = vdwg.mxu0
    %969 = vrot.lane.b32.xlu0 %v964, 80
    %v970 = vpop.permute.xlu0 %969
    %v972 = vadd.f32 %v964, %v970
    %v973 = vxor.u32 %v972, 2147483648
    %v974 = vmul.f32 %v973, 1.442695
    %v975 = vpow.pop %v974
    %v976 = vadd.f32 %v975, 1.0
    %v977 = vrcp.pop %v976
    %v978 = vmul.f32 1.0, %v977
    %979 = vrot.lane.b32.xlu0 %v964, 48
    %v980 = vpop.permute.xlu0 %979
    %v982 = vmul.f32 %v978, %v980
    %984 = vrot.lane.b32.xlu0 %v982, 32
    %v985 = vpop.permute.xlu0 %984
    %v987 = vadd.f32 %v964, %v985
    %v988 = vtanh.pop %v987
    %v989 = vsub.f32 1.0, %v978
    %991 = vrot.lane.b32.xlu0 %v988, 112
    %v992 = vpop.permute.xlu0 %991
    %v994 = vmul.f32 %v989, %v992
    %v995 = vmul.f32 %v978, %v849
    %v996 = vadd.f32 %v994, %v995
    %998 = vrot.lane.b32.xlu0 %v966, 80
    %v999 = vpop.permute.xlu0 %998
    %v1001 = vadd.f32 %v964, %v999
    %v1002 = vxor.u32 %v1001, 2147483648
    %v1003 = vmul.f32 %v1002, 1.442695
    %v1004 = vpow.pop %v1003
    %v1005 = vadd.f32 %v1004, 1.0
    %v1006 = vrcp.pop %v1005
    %v1007 = vmul.f32 1.0, %v1006
    %1008 = vrot.lane.b32.xlu0 %v966, 48
    %v1009 = vpop.permute.xlu0 %1008
    %v1011 = vmul.f32 %v1007, %v1009
    %1013 = vrot.lane.b32.xlu0 %v1011, 32
    %v1014 = vpop.permute.xlu0 %1013
    %v1016 = vadd.f32 %v966, %v1014
    %v1017 = vtanh.pop %v1016
    %v1018 = vsub.f32 1.0, %v1007
    %1020 = vrot.lane.b32.xlu0 %v1017, 112
    %v1021 = vpop.permute.xlu0 %1020
    %v1023 = vmul.f32 %v1018, %v1021
    %v1024 = vmul.f32 %v1007, %v878
    %v1025 = vadd.f32 %v1023, %v1024
    %1027 = vrot.lane.b32.xlu0 %v996, 120
    %v1028 = vpop.permute.xlu0 %1027
    %1031 = vrot.lane.b32.xlu0 %v322, 24
    %v1032 = vpop.permute.xlu0 %1031
    %1035 = vrot.lane.b32.xlu0 %v1025, 48
    %v1036 = vpop.permute.xlu0 %1035
    %v1038 = vsel %vm581, %v406, %v1028
    %v1039 = vsel %vm583, %v1038, %v1032
    %v1040 = vsel %vm585, %v1039, %v1036
    %v1042 = vsel %vm599, %v1040, 0
    %1044 = vmatprep.subr.mxu0 %v588
    %1045 = vmatpush1.msra.mxu0 %v587
    %1046 = vmatprep.subr.mxu0 %v590
    %1047 = vmatpush1.msra.mxu0 %v589
    %1048 = vmatprep.subr.mxu0 %v592
    %1049 = vmatpush1.msra.mxu0 %v591
    %1050 = vmatprep.subr.mxu0 %v594
    %1051 = vmatpush1.msra.mxu0 %v593
    %1052 = vmatprep.subr.mxu0 %v596
    %1053 = vmatpush1.msra.mxu0 %v595
    %1054 = vmatprep.subr.mxu0 %v598
    %1055 = vmatpush1.msra.mxu0 %v597
    %1056 = vmatprep.subr.mxu0 0.0
    %1057 = vmatpush1.msra.mxu0 0.0
    %1058 = vmatprep.subr.mxu0 0.0
    %1059 = vmatpush1.msra.mxu0 0.0
    %1060 = vmatprep.subr.mxu0 0.0
    %1061 = vmatpush1.msra.mxu0 0.0
    %1062 = vmatprep.subr.mxu0 0.0
    %1063 = vmatpush1.msra.mxu0 0.0
    %1064 = vmatprep.subr.mxu0 0.0
    %1065 = vmatpush1.msra.mxu0 0.0
    %1066 = vmatprep.subr.mxu0 0.0
    %1067 = vmatpush1.msra.mxu0 0.0
    %1068 = vmatprep.subr.mxu0 0.0
    %1069 = vmatpush1.msra.mxu0 0.0
    %1070 = vmatprep.subr.mxu0 0.0
    %1071 = vmatpush1.msra.mxu0 0.0
    %1072 = vmatprep.subr.mxu0 0.0
    %1073 = vmatpush1.msra.mxu0 0.0
    %1074 = vmatprep.subr.mxu0 0.0
    %1075 = vmatpush1.msra.mxu0 0.0
    %1076 = vmatprep.subr.mxu0 0.0
    %1077 = vmatpush1.msra.mxu0 0.0
    %1078 = vmatprep.subr.mxu0 0.0
    %1079 = vmatpush1.msra.mxu0 0.0
    %1080 = vmatprep.subr.mxu0 0.0
    %1081 = vmatpush1.msra.mxu0 0.0
    %1082 = vmatprep.subr.mxu0 0.0
    %1083 = vmatpush1.msra.mxu0 0.0
    %1084 = vmatprep.subr.mxu0 0.0
    %1085 = vmatpush1.msra.mxu0 0.0
    %1086 = vmatprep.subr.mxu0 0.0
    %1087 = vmatpush1.msra.mxu0 0.0
    %1088 = vmatprep.subr.mxu0 0.0
    %1089 = vmatpush1.msra.mxu0 0.0
    %1090 = vmatprep.subr.mxu0 0.0
    %1091 = vmatpush1.msra.mxu0 0.0
    %1092 = vmatprep.subr.mxu0 0.0
    %1093 = vmatpush1.msra.mxu0 0.0
    %1094 = vmatprep.subr.mxu0 0.0
    %1095 = vmatpush1.msra.mxu0 0.0
    %1096 = vmatprep.subr.mxu0 0.0
    %1097 = vmatpush1.msra.mxu0 0.0
    %1098 = vmatprep.subr.mxu0 0.0
    %1099 = vmatpush1.msra.mxu0 0.0
    %1100 = vmatprep.subr.mxu0 0.0
    %1101 = vmatpush1.msra.mxu0 0.0
    %1102 = vmatprep.subr.mxu0 0.0
    %1103 = vmatpush1.msra.mxu0 0.0
    %1104 = vmatprep.subr.mxu0 0.0
    %1105 = vmatpush1.msra.mxu0 0.0
    %1106 = vmatprep.subr.mxu0 0.0
    %1107 = vmatpush1.msra.mxu0 0.0
    %1108 = vmatprep.mubr.f32.mxu0 0.0
    %1109 = vmatmul.mubr.f32.gmra.mrb[0].mxu0 %v1042
    %v1110 = vpop.f32.mrb[0].mxu0
    %v1111 = vadd.f32 %v55, %v1110
    %v1112 = vpop.f32.mrb[0].mxu0
    %v1113 = vadd.f32 %v59, %v1112
    %1114 = vdwg.mxu0
    %1116 = vrot.lane.b32.xlu0 %v1111, 80
    %v1117 = vpop.permute.xlu0 %1116
    %v1119 = vadd.f32 %v1111, %v1117
    %v1120 = vxor.u32 %v1119, 2147483648
    %v1121 = vmul.f32 %v1120, 1.442695
    %v1122 = vpow.pop %v1121
    %v1123 = vadd.f32 %v1122, 1.0
    %v1124 = vrcp.pop %v1123
    %v1125 = vmul.f32 1.0, %v1124
    %1126 = vrot.lane.b32.xlu0 %v1111, 48
    %v1127 = vpop.permute.xlu0 %1126
    %v1129 = vmul.f32 %v1125, %v1127
    %1131 = vrot.lane.b32.xlu0 %v1129, 32
    %v1132 = vpop.permute.xlu0 %1131
    %v1134 = vadd.f32 %v1111, %v1132
    %v1135 = vtanh.pop %v1134
    %v1136 = vsub.f32 1.0, %v1125
    %1138 = vrot.lane.b32.xlu0 %v1135, 112
    %v1139 = vpop.permute.xlu0 %1138
    %v1141 = vmul.f32 %v1136, %v1139
    %v1142 = vmul.f32 %v1125, %v996
    %v1143 = vadd.f32 %v1141, %v1142
    %1145 = vrot.lane.b32.xlu0 %v1113, 80
    %v1146 = vpop.permute.xlu0 %1145
    %v1148 = vadd.f32 %v1111, %v1146
    %v1149 = vxor.u32 %v1148, 2147483648
    %v1150 = vmul.f32 %v1149, 1.442695
    %v1151 = vpow.pop %v1150
    %v1152 = vadd.f32 %v1151, 1.0
    %v1153 = vrcp.pop %v1152
    %v1154 = vmul.f32 1.0, %v1153
    %1155 = vrot.lane.b32.xlu0 %v1113, 48
    %v1156 = vpop.permute.xlu0 %1155
    %v1158 = vmul.f32 %v1154, %v1156
    %1160 = vrot.lane.b32.xlu0 %v1158, 32
    %v1161 = vpop.permute.xlu0 %1160
    %v1163 = vadd.f32 %v1113, %v1161
    %v1164 = vtanh.pop %v1163
    %v1165 = vsub.f32 1.0, %v1154
    %1167 = vrot.lane.b32.xlu0 %v1164, 112
    %v1168 = vpop.permute.xlu0 %1167
    %v1170 = vmul.f32 %v1165, %v1168
    %v1171 = vmul.f32 %v1154, %v1025
    %v1172 = vadd.f32 %v1170, %v1171
    %1174 = vrot.lane.b32.xlu0 %v1143, 120
    %v1175 = vpop.permute.xlu0 %1174
    %1178 = vrot.lane.b32.xlu0 %v238, 24
    %v1179 = vpop.permute.xlu0 %1178
    %1182 = vrot.lane.b32.xlu0 %v1172, 48
    %v1183 = vpop.permute.xlu0 %1182
    %v1185 = vsel %vm581, %v490, %v1175
    %v1186 = vsel %vm583, %v1185, %v1179
    %v1187 = vsel %vm585, %v1186, %v1183
    %v1189 = vsel %vm599, %v1187, 0
    %1191 = vmatprep.subr.mxu0 %v588
    %1192 = vmatpush1.msra.mxu0 %v587
    %1193 = vmatprep.subr.mxu0 %v590
    %1194 = vmatpush1.msra.mxu0 %v589
    %1195 = vmatprep.subr.mxu0 %v592
    %1196 = vmatpush1.msra.mxu0 %v591
    %1197 = vmatprep.subr.mxu0 %v594
    %1198 = vmatpush1.msra.mxu0 %v593
    %1199 = vmatprep.subr.mxu0 %v596
    %1200 = vmatpush1.msra.mxu0 %v595
    %1201 = vmatprep.subr.mxu0 %v598
    %1202 = vmatpush1.msra.mxu0 %v597
    %1203 = vmatprep.subr.mxu0 0.0
    %1204 = vmatpush1.msra.mxu0 0.0
    %1205 = vmatprep.subr.mxu0 0.0
    %1206 = vmatpush1.msra.mxu0 0.0
    %1207 = vmatprep.subr.mxu0 0.0
    %1208 = vmatpush1.msra.mxu0 0.0
    %1209 = vmatprep.subr.mxu0 0.0
    %1210 = vmatpush1.msra.mxu0 0.0
    %1211 = vmatprep.subr.mxu0 0.0
    %1212 = vmatpush1.msra.mxu0 0.0
    %1213 = vmatprep.subr.mxu0 0.0
    %1214 = vmatpush1.msra.mxu0 0.0
    %1215 = vmatprep.subr.mxu0 0.0
    %1216 = vmatpush1.msra.mxu0 0.0
    %1217 = vmatprep.subr.mxu0 0.0
    %1218 = vmatpush1.msra.mxu0 0.0
    %1219 = vmatprep.subr.mxu0 0.0
    %1220 = vmatpush1.msra.mxu0 0.0
    %1221 = vmatprep.subr.mxu0 0.0
    %1222 = vmatpush1.msra.mxu0 0.0
    %1223 = vmatprep.subr.mxu0 0.0
    %1224 = vmatpush1.msra.mxu0 0.0
    %1225 = vmatprep.subr.mxu0 0.0
    %1226 = vmatpush1.msra.mxu0 0.0
    %1227 = vmatprep.subr.mxu0 0.0
    %1228 = vmatpush1.msra.mxu0 0.0
    %1229 = vmatprep.subr.mxu0 0.0
    %1230 = vmatpush1.msra.mxu0 0.0
    %1231 = vmatprep.subr.mxu0 0.0
    %1232 = vmatpush1.msra.mxu0 0.0
    %1233 = vmatprep.subr.mxu0 0.0
    %1234 = vmatpush1.msra.mxu0 0.0
    %1235 = vmatprep.subr.mxu0 0.0
    %1236 = vmatpush1.msra.mxu0 0.0
    %1237 = vmatprep.subr.mxu0 0.0
    %1238 = vmatpush1.msra.mxu0 0.0
    %1239 = vmatprep.subr.mxu0 0.0
    %1240 = vmatpush1.msra.mxu0 0.0
    %1241 = vmatprep.subr.mxu0 0.0
    %1242 = vmatpush1.msra.mxu0 0.0
    %1243 = vmatprep.subr.mxu0 0.0
    %1244 = vmatpush1.msra.mxu0 0.0
    %1245 = vmatprep.subr.mxu0 0.0
    %1246 = vmatpush1.msra.mxu0 0.0
    %1247 = vmatprep.subr.mxu0 0.0
    %1248 = vmatpush1.msra.mxu0 0.0
    %1249 = vmatprep.subr.mxu0 0.0
    %1250 = vmatpush1.msra.mxu0 0.0
    %1251 = vmatprep.subr.mxu0 0.0
    %1252 = vmatpush1.msra.mxu0 0.0
    %1253 = vmatprep.subr.mxu0 0.0
    %1254 = vmatpush1.msra.mxu0 0.0
    %1255 = vmatprep.mubr.f32.mxu0 0.0
    %1256 = vmatmul.mubr.f32.gmra.mrb[0].mxu0 %v1189
    %v1257 = vpop.f32.mrb[0].mxu0
    %v1258 = vadd.f32 %v55, %v1257
    %v1259 = vpop.f32.mrb[0].mxu0
    %v1260 = vadd.f32 %v59, %v1259
    %1261 = vdwg.mxu0
    %1263 = vrot.lane.b32.xlu0 %v1258, 80
    %v1264 = vpop.permute.xlu0 %1263
    %v1266 = vadd.f32 %v1258, %v1264
    %v1267 = vxor.u32 %v1266, 2147483648
    %v1268 = vmul.f32 %v1267, 1.442695
    %v1269 = vpow.pop %v1268
    %v1270 = vadd.f32 %v1269, 1.0
    %v1271 = vrcp.pop %v1270
    %v1272 = vmul.f32 1.0, %v1271
    %1273 = vrot.lane.b32.xlu0 %v1258, 48
    %v1274 = vpop.permute.xlu0 %1273
    %v1276 = vmul.f32 %v1272, %v1274
    %1278 = vrot.lane.b32.xlu0 %v1276, 32
    %v1279 = vpop.permute.xlu0 %1278
    %v1281 = vadd.f32 %v1258, %v1279
    %v1282 = vtanh.pop %v1281
    %v1283 = vsub.f32 1.0, %v1272
    %1285 = vrot.lane.b32.xlu0 %v1282, 112
    %v1286 = vpop.permute.xlu0 %1285
    %v1288 = vmul.f32 %v1283, %v1286
    %v1289 = vmul.f32 %v1272, %v1143
    %v1290 = vadd.f32 %v1288, %v1289
    %1292 = vrot.lane.b32.xlu0 %v1260, 80
    %v1293 = vpop.permute.xlu0 %1292
    %v1295 = vadd.f32 %v1258, %v1293
    %v1296 = vxor.u32 %v1295, 2147483648
    %v1297 = vmul.f32 %v1296, 1.442695
    %v1298 = vpow.pop %v1297
    %v1299 = vadd.f32 %v1298, 1.0
    %v1300 = vrcp.pop %v1299
    %v1301 = vmul.f32 1.0, %v1300
    %1302 = vrot.lane.b32.xlu0 %v1260, 48
    %v1303 = vpop.permute.xlu0 %1302
    %v1305 = vmul.f32 %v1301, %v1303
    %1307 = vrot.lane.b32.xlu0 %v1305, 32
    %v1308 = vpop.permute.xlu0 %1307
    %v1310 = vadd.f32 %v1260, %v1308
    %v1311 = vtanh.pop %v1310
    %v1312 = vsub.f32 1.0, %v1301
    %1314 = vrot.lane.b32.xlu0 %v1311, 112
    %v1315 = vpop.permute.xlu0 %1314
    %v1317 = vmul.f32 %v1312, %v1315
    %v1318 = vmul.f32 %v1301, %v1172
    %v1319 = vadd.f32 %v1317, %v1318
    %1321 = vrot.lane.b32.xlu0 %v1290, 120
    %v1322 = vpop.permute.xlu0 %1321
    %1325 = vrot.lane.b32.xlu0 %v154, 24
    %v1326 = vpop.permute.xlu0 %1325
    %1329 = vrot.lane.b32.xlu0 %v1319, 48
    %v1330 = vpop.permute.xlu0 %1329
    %v1332 = vsel %vm581, %v574, %v1322
    %v1333 = vsel %vm583, %v1332, %v1326
    %v1334 = vsel %vm585, %v1333, %v1330
    %v1336 = vsel %vm599, %v1334, 0
    %1338 = vmatprep.subr.mxu0 %v588
    %1339 = vmatpush1.msra.mxu0 %v587
    %1340 = vmatprep.subr.mxu0 %v590
    %1341 = vmatpush1.msra.mxu0 %v589
    %1342 = vmatprep.subr.mxu0 %v592
    %1343 = vmatpush1.msra.mxu0 %v591
    %1344 = vmatprep.subr.mxu0 %v594
    %1345 = vmatpush1.msra.mxu0 %v593
    %1346 = vmatprep.subr.mxu0 %v596
    %1347 = vmatpush1.msra.mxu0 %v595
    %1348 = vmatprep.subr.mxu0 %v598
    %1349 = vmatpush1.msra.mxu0 %v597
    %1350 = vmatprep.subr.mxu0 0.0
    %1351 = vmatpush1.msra.mxu0 0.0
    %1352 = vmatprep.subr.mxu0 0.0
    %1353 = vmatpush1.msra.mxu0 0.0
    %1354 = vmatprep.subr.mxu0 0.0
    %1355 = vmatpush1.msra.mxu0 0.0
    %1356 = vmatprep.subr.mxu0 0.0
    %1357 = vmatpush1.msra.mxu0 0.0
    %1358 = vmatprep.subr.mxu0 0.0
    %1359 = vmatpush1.msra.mxu0 0.0
    %1360 = vmatprep.subr.mxu0 0.0
    %1361 = vmatpush1.msra.mxu0 0.0
    %1362 = vmatprep.subr.mxu0 0.0
    %1363 = vmatpush1.msra.mxu0 0.0
    %1364 = vmatprep.subr.mxu0 0.0
    %1365 = vmatpush1.msra.mxu0 0.0
    %1366 = vmatprep.subr.mxu0 0.0
    %1367 = vmatpush1.msra.mxu0 0.0
    %1368 = vmatprep.subr.mxu0 0.0
    %1369 = vmatpush1.msra.mxu0 0.0
    %1370 = vmatprep.subr.mxu0 0.0
    %1371 = vmatpush1.msra.mxu0 0.0
    %1372 = vmatprep.subr.mxu0 0.0
    %1373 = vmatpush1.msra.mxu0 0.0
    %1374 = vmatprep.subr.mxu0 0.0
    %1375 = vmatpush1.msra.mxu0 0.0
    %1376 = vmatprep.subr.mxu0 0.0
    %1377 = vmatpush1.msra.mxu0 0.0
    %1378 = vmatprep.subr.mxu0 0.0
    %1379 = vmatpush1.msra.mxu0 0.0
    %1380 = vmatprep.subr.mxu0 0.0
    %1381 = vmatpush1.msra.mxu0 0.0
    %1382 = vmatprep.subr.mxu0 0.0
    %1383 = vmatpush1.msra.mxu0 0.0
    %1384 = vmatprep.subr.mxu0 0.0
    %1385 = vmatpush1.msra.mxu0 0.0
    %1386 = vmatprep.subr.mxu0 0.0
    %1387 = vmatpush1.msra.mxu0 0.0
    %1388 = vmatprep.subr.mxu0 0.0
    %1389 = vmatpush1.msra.mxu0 0.0
    %1390 = vmatprep.subr.mxu0 0.0
    %1391 = vmatpush1.msra.mxu0 0.0
    %1392 = vmatprep.subr.mxu0 0.0
    %1393 = vmatpush1.msra.mxu0 0.0
    %1394 = vmatprep.subr.mxu0 0.0
    %1395 = vmatpush1.msra.mxu0 0.0
    %1396 = vmatprep.subr.mxu0 0.0
    %1397 = vmatpush1.msra.mxu0 0.0
    %1398 = vmatprep.subr.mxu0 0.0
    %1399 = vmatpush1.msra.mxu0 0.0
    %1400 = vmatprep.subr.mxu0 0.0
    %1401 = vmatpush1.msra.mxu0 0.0
    %1402 = vmatprep.mubr.f32.mxu0 0.0
    %1403 = vmatmul.mubr.f32.gmra.mrb[0].mxu0 %v1336
    %v1404 = vpop.f32.mrb[0].mxu0
    %v1405 = vadd.f32 %v55, %v1404
    %v1406 = vpop.f32.mrb[0].mxu0
    %v1407 = vadd.f32 %v59, %v1406
    %1408 = vdwg.mxu0
    %1410 = vrot.lane.b32.xlu0 %v1405, 80
    %v1411 = vpop.permute.xlu0 %1410
    %v1413 = vadd.f32 %v1405, %v1411
    %v1414 = vxor.u32 %v1413, 2147483648
    %v1415 = vmul.f32 %v1414, 1.442695
    %v1416 = vpow.pop %v1415
    %v1417 = vadd.f32 %v1416, 1.0
    %v1418 = vrcp.pop %v1417
    %v1419 = vmul.f32 1.0, %v1418
    %1420 = vrot.lane.b32.xlu0 %v1405, 48
    %v1421 = vpop.permute.xlu0 %1420
    %v1423 = vmul.f32 %v1419, %v1421
    %1425 = vrot.lane.b32.xlu0 %v1423, 32
    %v1426 = vpop.permute.xlu0 %1425
    %v1428 = vadd.f32 %v1405, %v1426
    %v1429 = vtanh.pop %v1428
    %v1430 = vsub.f32 1.0, %v1419
    %1432 = vrot.lane.b32.xlu0 %v1429, 112
    %v1433 = vpop.permute.xlu0 %1432
    %v1435 = vmul.f32 %v1430, %v1433
    %v1436 = vmul.f32 %v1419, %v1290
    %v1437 = vadd.f32 %v1435, %v1436
    %1439 = vrot.lane.b32.xlu0 %v1407, 80
    %v1440 = vpop.permute.xlu0 %1439
    %v1442 = vadd.f32 %v1405, %v1440
    %v1443 = vxor.u32 %v1442, 2147483648
    %v1444 = vmul.f32 %v1443, 1.442695
    %v1445 = vpow.pop %v1444
    %v1446 = vadd.f32 %v1445, 1.0
    %v1447 = vrcp.pop %v1446
    %v1448 = vmul.f32 1.0, %v1447
    %1449 = vrot.lane.b32.xlu0 %v1407, 48
    %v1450 = vpop.permute.xlu0 %1449
    %v1452 = vmul.f32 %v1448, %v1450
    %1454 = vrot.lane.b32.xlu0 %v1452, 32
    %v1455 = vpop.permute.xlu0 %1454
    %v1457 = vadd.f32 %v1407, %v1455
    %v1458 = vtanh.pop %v1457
    %v1459 = vsub.f32 1.0, %v1448
    %1461 = vrot.lane.b32.xlu0 %v1458, 112
    %v1462 = vpop.permute.xlu0 %1461
    %v1464 = vmul.f32 %v1459, %v1462
    %v1465 = vmul.f32 %v1448, %v1319
    %v1466 = vadd.f32 %v1464, %v1465
    %1467 = vrot.lane.b32.xlu0 %v702, 112
    %v1468 = vpop.permute.xlu0 %1467
    %1471 = vrot.lane.b32.xlu0 %v1466, 32
    %v1472 = vpop.permute.xlu0 %1471
    %v1474 = vsel %vm83, %v1468, %v1472
    %1475 = vrot.lane.b32.xlu0 %v849, 112
    %v1476 = vpop.permute.xlu0 %1475
    %1478 = vrot.lane.b32.xlu0 %v1319, 32
    %v1479 = vpop.permute.xlu0 %1478
    %v1481 = vsel %vm83, %v1476, %v1479
    %1482 = vrot.lane.b32.xlu0 %v996, 112
    %v1483 = vpop.permute.xlu0 %1482
    %1485 = vrot.lane.b32.xlu0 %v1172, 32
    %v1486 = vpop.permute.xlu0 %1485
    %v1488 = vsel %vm83, %v1483, %v1486
    %1489 = vrot.lane.b32.xlu0 %v1143, 112
    %v1490 = vpop.permute.xlu0 %1489
    %1492 = vrot.lane.b32.xlu0 %v1025, 32
    %v1493 = vpop.permute.xlu0 %1492
    %v1495 = vsel %vm83, %v1490, %v1493
    %1496 = vrot.lane.b32.xlu0 %v1290, 112
    %v1497 = vpop.permute.xlu0 %1496
    %1499 = vrot.lane.b32.xlu0 %v878, 32
    %v1500 = vpop.permute.xlu0 %1499
    %v1502 = vsel %vm83, %v1497, %v1500
    %1504 = vrot.lane.b32.xlu0 %v1437, 112
    %v1505 = vpop.permute.xlu0 %1504
    %1507 = vrot.lane.b32.xlu0 %v731, 32
    %v1508 = vpop.permute.xlu0 %1507
    %v1510 = vsel %vm83, %v1505, %v1508
    %v1513 = vunpack.c.l.s4 1966171168
    %v1514 = vunpack.c.0.s8 %v1513
    %v1515 = vlaneseq
    %v1516 = vshrl.u32 %v1515, 7
    %v1517 = vsub.s32 %v1514, %v1516
    %v1518 = vrot.slane %v1474, %v1517
    %v1519 = vcombine.high %v1518, %v1518
    %v1521 = vunpack.c.l.s4 1966171168
    %v1522 = vunpack.c.0.s8 %v1521
    %v1523 = vlaneseq
    %v1524 = vshrl.u32 %v1523, 7
    %v1525 = vsub.s32 %v1522, %v1524
    %v1526 = vrot.slane %v1518, %v1525
    %v1528 = vunpack.c.l.s4 1966171168
    %v1529 = vunpack.c.0.s8 %v1528
    %v1530 = vlaneseq
    %v1531 = vshrl.u32 %v1530, 7
    %v1532 = vsub.s32 %v1529, %v1531
    %v1533 = vrot.slane %v1519, %v1532
    %v1538 = vunpack.c.l.s4 1966171168
    %v1539 = vunpack.c.0.s8 %v1538
    %v1540 = vlaneseq
    %v1541 = vshrl.u32 %v1540, 7
    %v1542 = vsub.s32 %v1539, %v1541
    %v1543 = vrot.slane %v1481, %v1542
    %v1544 = vcombine.high %v1543, %v1543
    %v1546 = vunpack.c.l.s4 1966171168
    %v1547 = vunpack.c.0.s8 %v1546
    %v1548 = vlaneseq
    %v1549 = vshrl.u32 %v1548, 7
    %v1550 = vsub.s32 %v1547, %v1549
    %v1551 = vrot.slane %v1543, %v1550
    %v1553 = vunpack.c.l.s4 1966171168
    %v1554 = vunpack.c.0.s8 %v1553
    %v1555 = vlaneseq
    %v1556 = vshrl.u32 %v1555, 7
    %v1557 = vsub.s32 %v1554, %v1556
    %v1558 = vrot.slane %v1544, %v1557
    %v1561 = vunpack.c.l.s4 1966171168
    %v1562 = vunpack.c.0.s8 %v1561
    %v1563 = vlaneseq
    %v1564 = vshrl.u32 %v1563, 7
    %v1565 = vsub.s32 %v1562, %v1564
    %v1566 = vrot.slane %v1488, %v1565
    %v1567 = vcombine.high %v1566, %v1566
    %v1569 = vunpack.c.l.s4 1966171168
    %v1570 = vunpack.c.0.s8 %v1569
    %v1571 = vlaneseq
    %v1572 = vshrl.u32 %v1571, 7
    %v1573 = vsub.s32 %v1570, %v1572
    %v1574 = vrot.slane %v1566, %v1573
    %v1576 = vunpack.c.l.s4 1966171168
    %v1577 = vunpack.c.0.s8 %v1576
    %v1578 = vlaneseq
    %v1579 = vshrl.u32 %v1578, 7
    %v1580 = vsub.s32 %v1577, %v1579
    %v1581 = vrot.slane %v1567, %v1580
    %v1584 = vunpack.c.l.s4 1966171168
    %v1585 = vunpack.c.0.s8 %v1584
    %v1586 = vlaneseq
    %v1587 = vshrl.u32 %v1586, 7
    %v1588 = vsub.s32 %v1585, %v1587
    %v1589 = vrot.slane %v1495, %v1588
    %v1590 = vcombine.high %v1589, %v1589
    %v1592 = vunpack.c.l.s4 1966171168
    %v1593 = vunpack.c.0.s8 %v1592
    %v1594 = vlaneseq
    %v1595 = vshrl.u32 %v1594, 7
    %v1596 = vsub.s32 %v1593, %v1595
    %v1597 = vrot.slane %v1589, %v1596
    %v1599 = vunpack.c.l.s4 1966171168
    %v1600 = vunpack.c.0.s8 %v1599
    %v1601 = vlaneseq
    %v1602 = vshrl.u32 %v1601, 7
    %v1603 = vsub.s32 %v1600, %v1602
    %v1604 = vrot.slane %v1590, %v1603
    %v1607 = vunpack.c.l.s4 1966171168
    %v1608 = vunpack.c.0.s8 %v1607
    %v1609 = vlaneseq
    %v1610 = vshrl.u32 %v1609, 7
    %v1611 = vsub.s32 %v1608, %v1610
    %v1612 = vrot.slane %v1502, %v1611
    %v1613 = vcombine.high %v1612, %v1612
    %v1615 = vunpack.c.l.s4 1966171168
    %v1616 = vunpack.c.0.s8 %v1615
    %v1617 = vlaneseq
    %v1618 = vshrl.u32 %v1617, 7
    %v1619 = vsub.s32 %v1616, %v1618
    %v1620 = vrot.slane %v1612, %v1619
    %v1622 = vunpack.c.l.s4 1966171168
    %v1623 = vunpack.c.0.s8 %v1622
    %v1624 = vlaneseq
    %v1625 = vshrl.u32 %v1624, 7
    %v1626 = vsub.s32 %v1623, %v1625
    %v1627 = vrot.slane %v1613, %v1626
    %v1630 = vunpack.c.l.s4 1966171168
    %v1631 = vunpack.c.0.s8 %v1630
    %v1632 = vlaneseq
    %v1633 = vshrl.u32 %v1632, 7
    %v1634 = vsub.s32 %v1631, %v1633
    %v1635 = vrot.slane %v1510, %v1634
    %v1636 = vcombine.high %v1635, %v1635
    %v1638 = vunpack.c.l.s4 1966171168
    %v1639 = vunpack.c.0.s8 %v1638
    %v1640 = vlaneseq
    %v1641 = vshrl.u32 %v1640, 7
    %v1642 = vsub.s32 %v1639, %v1641
    %v1643 = vrot.slane %v1635, %v1642
    %v1645 = vunpack.c.l.s4 1966171168
    %v1646 = vunpack.c.0.s8 %v1645
    %v1647 = vlaneseq
    %v1648 = vshrl.u32 %v1647, 7
    %v1649 = vsub.s32 %v1646, %v1648
    %v1650 = vrot.slane %v1636, %v1649
    %v1651 = vlaneseq
    %v1652 = vshrl.u32 %v1651, 7
    %v1653 = vsub.s32 0, %v1652
    %v1654 = vrot.slane %v1551, %v1653
    %v1655 = vlaneseq
    %v1656 = vshrl.u32 %v1655, 7
    %v1657 = vsub.s32 0, %v1656
    %v1658 = vrot.slane %v1558, %v1657
    %v1661 = vlaneseq
    %v1662 = vshrl.u32 %v1661, 7
    %v1663 = vsub.s32 0, %v1662
    %v1664 = vrot.slane %v1574, %v1663
    %v1665 = vlaneseq
    %v1666 = vshrl.u32 %v1665, 7
    %v1667 = vsub.s32 0, %v1666
    %v1668 = vrot.slane %v1581, %v1667
    %v1671 = vlaneseq
    %v1672 = vshrl.u32 %v1671, 7
    %v1673 = vsub.s32 0, %v1672
    %v1674 = vrot.slane %v1597, %v1673
    %v1675 = vlaneseq
    %v1676 = vshrl.u32 %v1675, 7
    %v1677 = vsub.s32 0, %v1676
    %v1678 = vrot.slane %v1604, %v1677
    %v1681 = vlaneseq
    %v1682 = vshrl.u32 %v1681, 7
    %v1683 = vsub.s32 0, %v1682
    %v1684 = vrot.slane %v1620, %v1683
    %v1685 = vlaneseq
    %v1686 = vshrl.u32 %v1685, 7
    %v1687 = vsub.s32 0, %v1686
    %v1688 = vrot.slane %v1627, %v1687
    %v1691 = vlaneseq
    %v1692 = vshrl.u32 %v1691, 7
    %v1693 = vsub.s32 0, %v1692
    %v1694 = vrot.slane %v1643, %v1693
    %v1695 = vlaneseq
    %v1696 = vshrl.u32 %v1695, 7
    %v1697 = vsub.s32 0, %v1696
    %v1698 = vrot.slane %v1650, %v1697
    %v1701 = vsel %vm79, %v1526, %v1654
    %v1702 = vsel %vm79, %v1533, %v1658
    %vm1703 = vcmask 1041408
    %v1704 = vsel %vm1703, %v1701, %v1664
    %v1705 = vsel %vm1703, %v1702, %v1668
    %vm1706 = vcmask 1042432
    %v1707 = vsel %vm1706, %v1704, %v1674
    %v1708 = vsel %vm1706, %v1705, %v1678
    %vm1709 = vcmask 1043456
    %v1710 = vsel %vm1709, %v1707, %v1684
    %v1711 = vsel %vm1709, %v1708, %v1688
    %vm1712 = vcmask 1044480
    %v1713 = vsel %vm1712, %v1710, %v1694
    %v1714 = vsel %vm1712, %v1711, %v1698
    %v1715 = vsel %vm83, %v1505, %v1472
    %v1716 = vld [vmem:[%s5] sm:$0xff]
    %v1717 = vld [vmem:[%s5 + $0x8] sm:$0xff]
    %v1718 = vld [vmem:[%s5 + $0x10] sm:$0xff]
    %v1719 = vld [vmem:[%s5 + $0x18] sm:$0xff]
    %v1721 = vsel %vm585, %v1715, 0
    %1723 = vmatprep.subr.mxu0 0.0
    %1724 = vmatpush1.msra.mxu0 %v1716
    %1725 = vmatprep.subr.mxu0 0.0
    %1726 = vmatpush1.msra.mxu0 %v1717
    %1727 = vmatprep.subr.mxu0 0.0
    %1728 = vmatpush1.msra.mxu0 %v1718
    %1729 = vmatprep.subr.mxu0 0.0
    %1730 = vmatpush1.msra.mxu0 %v1719
    %1731 = vmatprep.subr.mxu0 0.0
    %1732 = vmatpush1.msra.mxu0 0.0
    %1733 = vmatprep.subr.mxu0 0.0
    %1734 = vmatpush1.msra.mxu0 0.0
    %1735 = vmatprep.subr.mxu0 0.0
    %1736 = vmatpush1.msra.mxu0 0.0
    %1737 = vmatprep.subr.mxu0 0.0
    %1738 = vmatpush1.msra.mxu0 0.0
    %1739 = vmatprep.subr.mxu0 0.0
    %1740 = vmatpush1.msra.mxu0 0.0
    %1741 = vmatprep.subr.mxu0 0.0
    %1742 = vmatpush1.msra.mxu0 0.0
    %1743 = vmatprep.subr.mxu0 0.0
    %1744 = vmatpush1.msra.mxu0 0.0
    %1745 = vmatprep.subr.mxu0 0.0
    %1746 = vmatpush1.msra.mxu0 0.0
    %1747 = vmatprep.subr.mxu0 0.0
    %1748 = vmatpush1.msra.mxu0 0.0
    %1749 = vmatprep.subr.mxu0 0.0
    %1750 = vmatpush1.msra.mxu0 0.0
    %1751 = vmatprep.subr.mxu0 0.0
    %1752 = vmatpush1.msra.mxu0 0.0
    %1753 = vmatprep.subr.mxu0 0.0
    %1754 = vmatpush1.msra.mxu0 0.0
    %1755 = vmatprep.subr.mxu0 0.0
    %1756 = vmatpush1.msra.mxu0 0.0
    %1757 = vmatprep.subr.mxu0 0.0
    %1758 = vmatpush1.msra.mxu0 0.0
    %1759 = vmatprep.subr.mxu0 0.0
    %1760 = vmatpush1.msra.mxu0 0.0
    %1761 = vmatprep.subr.mxu0 0.0
    %1762 = vmatpush1.msra.mxu0 0.0
    %1763 = vmatprep.subr.mxu0 0.0
    %1764 = vmatpush1.msra.mxu0 0.0
    %1765 = vmatprep.subr.mxu0 0.0
    %1766 = vmatpush1.msra.mxu0 0.0
    %1767 = vmatprep.subr.mxu0 0.0
    %1768 = vmatpush1.msra.mxu0 0.0
    %1769 = vmatprep.subr.mxu0 0.0
    %1770 = vmatpush1.msra.mxu0 0.0
    %1771 = vmatprep.subr.mxu0 0.0
    %1772 = vmatpush1.msra.mxu0 0.0
    %1773 = vmatprep.subr.mxu0 0.0
    %1774 = vmatpush1.msra.mxu0 0.0
    %1775 = vmatprep.subr.mxu0 0.0
    %1776 = vmatpush1.msra.mxu0 0.0
    %1777 = vmatprep.subr.mxu0 0.0
    %1778 = vmatpush1.msra.mxu0 0.0
    %1779 = vmatprep.subr.mxu0 0.0
    %1780 = vmatpush1.msra.mxu0 0.0
    %1781 = vmatprep.subr.mxu0 0.0
    %1782 = vmatpush1.msra.mxu0 0.0
    %1783 = vmatprep.subr.mxu0 0.0
    %1784 = vmatpush1.msra.mxu0 0.0
    %1785 = vmatprep.subr.mxu0 0.0
    %1786 = vmatpush1.msra.mxu0 0.0
    %1787 = vmatprep.mubr.f32.mxu0 0.0
    %1788 = vmatmul.mubr.f32.gmra.mrb[0].mxu0 %v1721
    %v1789 = vpop.f32.mrb[0].mxu0
    %v1790 = vadd.f32 %v62, %v1789
    %v1791 = vpop.f32.mrb[0].mxu0
    %1792 = vdwg.mxu0
    %v1793 = vtanh.pop %v1790
    %v1794 = vld [vmem:[%s7] sm:$0xff]
    %v1795 = vld [vmem:[%s7 + $0x8] sm:$0xff]
    %v1796 = vld [vmem:[%s7 + $0x10] sm:$0xff]
    %v1797 = vld [vmem:[%s7 + $0x18] sm:$0xff]
    %v1800 = vcombine.high %v1713, %v1713
    %v1802 = vunpack.c.l.s4 1983009808
    %v1803 = vunpack.c.0.s8 %v1802
    %v1804 = vlaneseq
    %v1805 = vshrl.u32 %v1804, 7
    %v1806 = vsub.s32 %v1803, %v1805
    %v1807 = vrot.slane %v1713, %v1806
    %v1809 = vunpack.c.l.s4 1983009808
    %v1810 = vunpack.c.0.s8 %v1809
    %v1811 = vlaneseq
    %v1812 = vshrl.u32 %v1811, 7
    %v1813 = vsub.s32 %v1810, %v1812
    %v1814 = vrot.slane %v1800, %v1813
    %v1815 = vcombine.high %v1807, %v1807
    %v1816 = vcombine.high %v1714, %v1714
    %v1818 = vunpack.c.l.s4 1983009808
    %v1819 = vunpack.c.0.s8 %v1818
    %v1820 = vlaneseq
    %v1821 = vshrl.u32 %v1820, 7
    %v1822 = vsub.s32 %v1819, %v1821
    %v1823 = vrot.slane %v1714, %v1822
    %v1825 = vunpack.c.l.s4 1983009808
    %v1826 = vunpack.c.0.s8 %v1825
    %v1827 = vlaneseq
    %v1828 = vshrl.u32 %v1827, 7
    %v1829 = vsub.s32 %v1826, %v1828
    %v1830 = vrot.slane %v1816, %v1829
    %v1831 = vcombine.high %v1823, %v1823
    %v1833 = vcombine.high %v63, %v63
    %v1835 = vunpack.c.l.s4 1983009808
    %v1836 = vunpack.c.0.s8 %v1835
    %v1837 = vlaneseq
    %v1838 = vshrl.u32 %v1837, 7
    %v1839 = vsub.s32 %v1836, %v1838
    %v1840 = vrot.slane %v63, %v1839
    %v1842 = vunpack.c.l.s4 1983009808
    %v1843 = vunpack.c.0.s8 %v1842
    %v1844 = vlaneseq
    %v1845 = vshrl.u32 %v1844, 7
    %v1846 = vsub.s32 %v1843, %v1845
    %v1847 = vrot.slane %v1833, %v1846
    %v1848 = vcombine.high %v1840, %v1840
    %v1849 = vcombine.low %v1807, %v1815
    %v1850 = vcombine.low %v1814, %v1823
    %v1852 = vunpack.c.l.s4 1983009808
    %v1853 = vunpack.c.0.s8 %v1852
    %v1854 = vlaneseq
    %v1855 = vshrl.u32 %v1854, 7
    %v1856 = vsub.s32 %v1853, %v1855
    %v1857 = vrot.slane %v1849, %v1856
    %v1859 = vunpack.c.l.s4 1983009808
    %v1860 = vunpack.c.0.s8 %v1859
    %v1861 = vlaneseq
    %v1862 = vshrl.u32 %v1861, 7
    %v1863 = vsub.s32 %v1860, %v1862
    %v1864 = vrot.slane %v1850, %v1863
    %v1865 = vcombine.low %v1857, %v1864
    %v1866 = vcombine.low %v1831, %v1830
    %v1868 = vunpack.c.l.s4 1983009808
    %v1869 = vunpack.c.0.s8 %v1868
    %v1870 = vlaneseq
    %v1871 = vshrl.u32 %v1870, 7
    %v1872 = vsub.s32 %v1869, %v1871
    %v1873 = vrot.slane %v1866, %v1872
    %v1874 = vcombine.low %v1840, %v1848
    %v1875 = vcombine.low %v1847, %v1840
    %v1877 = vunpack.c.l.s4 1983009808
    %v1878 = vunpack.c.0.s8 %v1877
    %v1879 = vlaneseq
    %v1880 = vshrl.u32 %v1879, 7
    %v1881 = vsub.s32 %v1878, %v1880
    %v1882 = vrot.slane %v1874, %v1881
    %v1884 = vunpack.c.l.s4 1983009808
    %v1885 = vunpack.c.0.s8 %v1884
    %v1886 = vlaneseq
    %v1887 = vshrl.u32 %v1886, 7
    %v1888 = vsub.s32 %v1885, %v1887
    %v1889 = vrot.slane %v1875, %v1888
    %v1890 = vcombine.low %v1882, %v1889
    %v1891 = vcombine.low %v1848, %v1847
    %v1893 = vunpack.c.l.s4 1983009808
    %v1894 = vunpack.c.0.s8 %v1893
    %v1895 = vlaneseq
    %v1896 = vshrl.u32 %v1895, 7
    %v1897 = vsub.s32 %v1894, %v1896
    %v1898 = vrot.slane %v1891, %v1897
    %v1901 = vsel %vm585, %v1865, 0
    %v1903 = vsel %vm585, %v1873, 0
    %1905 = vmatprep.subr.mxu0 0.0
    %1906 = vmatpush1.msra.mxu0 %v1794
    %1907 = vmatprep.subr.mxu0 0.0
    %1908 = vmatpush1.msra.mxu0 %v1795
    %1909 = vmatprep.subr.mxu0 0.0
    %1910 = vmatpush1.msra.mxu0 %v1796
    %1911 = vmatprep.subr.mxu0 0.0
    %1912 = vmatpush1.msra.mxu0 %v1797
    %1913 = vmatprep.subr.mxu0 0.0
    %1914 = vmatpush1.msra.mxu0 0.0
    %1915 = vmatprep.subr.mxu0 0.0
    %1916 = vmatpush1.msra.mxu0 0.0
    %1917 = vmatprep.subr.mxu0 0.0
    %1918 = vmatpush1.msra.mxu0 0.0
    %1919 = vmatprep.subr.mxu0 0.0
    %1920 = vmatpush1.msra.mxu0 0.0
    %1921 = vmatprep.subr.mxu0 0.0
    %1922 = vmatpush1.msra.mxu0 0.0
    %1923 = vmatprep.subr.mxu0 0.0
    %1924 = vmatpush1.msra.mxu0 0.0
    %1925 = vmatprep.subr.mxu0 0.0
    %1926 = vmatpush1.msra.mxu0 0.0
    %1927 = vmatprep.subr.mxu0 0.0
    %1928 = vmatpush1.msra.mxu0 0.0
    %1929 = vmatprep.subr.mxu0 0.0
    %1930 = vmatpush1.msra.mxu0 0.0
    %1931 = vmatprep.subr.mxu0 0.0
    %1932 = vmatpush1.msra.mxu0 0.0
    %1933 = vmatprep.subr.mxu0 0.0
    %1934 = vmatpush1.msra.mxu0 0.0
    %1935 = vmatprep.subr.mxu0 0.0
    %1936 = vmatpush1.msra.mxu0 0.0
    %1937 = vmatprep.subr.mxu0 0.0
    %1938 = vmatpush1.msra.mxu0 0.0
    %1939 = vmatprep.subr.mxu0 0.0
    %1940 = vmatpush1.msra.mxu0 0.0
    %1941 = vmatprep.subr.mxu0 0.0
    %1942 = vmatpush1.msra.mxu0 0.0
    %1943 = vmatprep.subr.mxu0 0.0
    %1944 = vmatpush1.msra.mxu0 0.0
    %1945 = vmatprep.subr.mxu0 0.0
    %1946 = vmatpush1.msra.mxu0 0.0
    %1947 = vmatprep.subr.mxu0 0.0
    %1948 = vmatpush1.msra.mxu0 0.0
    %1949 = vmatprep.subr.mxu0 0.0
    %1950 = vmatpush1.msra.mxu0 0.0
    %1951 = vmatprep.subr.mxu0 0.0
    %1952 = vmatpush1.msra.mxu0 0.0
    %1953 = vmatprep.subr.mxu0 0.0
    %1954 = vmatpush1.msra.mxu0 0.0
    %1955 = vmatprep.subr.mxu0 0.0
    %1956 = vmatpush1.msra.mxu0 0.0
    %1957 = vmatprep.subr.mxu0 0.0
    %1958 = vmatpush1.msra.mxu0 0.0
    %1959 = vmatprep.subr.mxu0 0.0
    %1960 = vmatpush1.msra.mxu0 0.0
    %1961 = vmatprep.subr.mxu0 0.0
    %1962 = vmatpush1.msra.mxu0 0.0
    %1963 = vmatprep.subr.mxu0 0.0
    %1964 = vmatpush1.msra.mxu0 0.0
    %1965 = vmatprep.subr.mxu0 0.0
    %1966 = vmatpush1.msra.mxu0 0.0
    %1967 = vmatprep.subr.mxu0 0.0
    %1968 = vmatpush1.msra.mxu0 0.0
    %1969 = vmatprep.mubr.f32.mxu0 0.0
    %1970 = vmatmul.mubr.f32.gmra.mrb[0].mxu0 %v1901
    %v1971 = vpop.f32.mrb[0].mxu0
    %v1972 = vadd.f32 %v1890, %v1971
    %v1973 = vpop.f32.mrb[0].mxu0
    %1974 = vmatprep.mubr.f32.mxu0 0.0
    %1975 = vmatmul.mubr.f32.gmra.mrb[0].mxu0 %v1903
    %v1976 = vpop.f32.mrb[0].mxu0
    %v1977 = vadd.f32 %v1898, %v1976
    %v1978 = vpop.f32.mrb[0].mxu0
    %1979 = vdwg.mxu0
    %v1982 = vcombine.high %v1972, %v1972
    %v1984 = vunpack.c.l.s4 1983009808
    %v1985 = vunpack.c.0.s8 %v1984
    %v1986 = vlaneseq
    %v1987 = vshrl.u32 %v1986, 7
    %v1988 = vsub.s32 %v1985, %v1987
    %v1989 = vrot.slane %v1972, %v1988
    %v1991 = vunpack.c.l.s4 1983009808
    %v1992 = vunpack.c.0.s8 %v1991
    %v1993 = vlaneseq
    %v1994 = vshrl.u32 %v1993, 7
    %v1995 = vsub.s32 %v1992, %v1994
    %v1996 = vrot.slane %v1982, %v1995
    %v1997 = vcombine.high %v1989, %v1989
    %v1998 = vcombine.high %v1996, %v1996
    %v2000 = vunpack.c.l.s4 1983009808
    %v2001 = vunpack.c.0.s8 %v2000
    %v2002 = vlaneseq
    %v2003 = vshrl.u32 %v2002, 7
    %v2004 = vsub.s32 %v2001, %v2003
    %v2005 = vrot.slane %v1977, %v2004
    %v2006 = vcombine.high %v2005, %v2005
    %s2013 = sld [smem:[#allocation4]]
    %v2014 = vstv %s2013
    %vm2015 = vcmp.eq.s32.totalorder %v68, %v2014
    %v2016 = vsel %vm2015, 1, 0
    %v2017 = vcvt.s32.f32 %v2016
    %s2018 = sld [smem:[#allocation4 + $0x1]]
    %v2019 = vstv %s2018
    %vm2020 = vcmp.eq.s32.totalorder %v68, %v2019
    %v2021 = vsel %vm2020, 1, 0
    %v2022 = vcvt.s32.f32 %v2021
    %v2023 = vsel %vm79, %v2017, %v2022
    %v2024 = vld [vmem:[%s8] sm:$0xff]
    %v2025 = vld [vmem:[%s8 + $0x8] sm:$0xff]
    %v2027 = vsel %vm83, %v2023, 0
    %2029 = vmatprep.subr.mxu0 0.0
    %2030 = vmatpush1.msra.mxu0 %v2024
    %2031 = vmatprep.subr.mxu0 0.0
    %2032 = vmatpush1.msra.mxu0 %v2025
    %2033 = vmatprep.subr.mxu0 0.0
    %2034 = vmatpush1.msra.mxu0 0.0
    %2035 = vmatprep.subr.mxu0 0.0
    %2036 = vmatpush1.msra.mxu0 0.0
    %2037 = vmatprep.subr.mxu0 0.0
    %2038 = vmatpush1.msra.mxu0 0.0
    %2039 = vmatprep.subr.mxu0 0.0
    %2040 = vmatpush1.msra.mxu0 0.0
    %2041 = vmatprep.subr.mxu0 0.0
    %2042 = vmatpush1.msra.mxu0 0.0
    %2043 = vmatprep.subr.mxu0 0.0
    %2044 = vmatpush1.msra.mxu0 0.0
    %2045 = vmatprep.subr.mxu0 0.0
    %2046 = vmatpush1.msra.mxu0 0.0
    %2047 = vmatprep.subr.mxu0 0.0
    %2048 = vmatpush1.msra.mxu0 0.0
    %2049 = vmatprep.subr.mxu0 0.0
    %2050 = vmatpush1.msra.mxu0 0.0
    %2051 = vmatprep.subr.mxu0 0.0
    %2052 = vmatpush1.msra.mxu0 0.0
    %2053 = vmatprep.subr.mxu0 0.0
    %2054 = vmatpush1.msra.mxu0 0.0
    %2055 = vmatprep.subr.mxu0 0.0
    %2056 = vmatpush1.msra.mxu0 0.0
    %2057 = vmatprep.subr.mxu0 0.0
    %2058 = vmatpush1.msra.mxu0 0.0
    %2059 = vmatprep.subr.mxu0 0.0
    %2060 = vmatpush1.msra.mxu0 0.0
    %2061 = vmatprep.subr.mxu0 0.0
    %2062 = vmatpush1.msra.mxu0 0.0
    %2063 = vmatprep.subr.mxu0 0.0
    %2064 = vmatpush1.msra.mxu0 0.0
    %2065 = vmatprep.subr.mxu0 0.0
    %2066 = vmatpush1.msra.mxu0 0.0
    %2067 = vmatprep.subr.mxu0 0.0
    %2068 = vmatpush1.msra.mxu0 0.0
    %2069 = vmatprep.subr.mxu0 0.0
    %2070 = vmatpush1.msra.mxu0 0.0
    %2071 = vmatprep.subr.mxu0 0.0
    %2072 = vmatpush1.msra.mxu0 0.0
    %2073 = vmatprep.subr.mxu0 0.0
    %2074 = vmatpush1.msra.mxu0 0.0
    %2075 = vmatprep.subr.mxu0 0.0
    %2076 = vmatpush1.msra.mxu0 0.0
    %2077 = vmatprep.subr.mxu0 0.0
    %2078 = vmatpush1.msra.mxu0 0.0
    %2079 = vmatprep.subr.mxu0 0.0
    %2080 = vmatpush1.msra.mxu0 0.0
    %2081 = vmatprep.subr.mxu0 0.0
    %2082 = vmatpush1.msra.mxu0 0.0
    %2083 = vmatprep.subr.mxu0 0.0
    %2084 = vmatpush1.msra.mxu0 0.0
    %2085 = vmatprep.subr.mxu0 0.0
    %2086 = vmatpush1.msra.mxu0 0.0
    %2087 = vmatprep.subr.mxu0 0.0
    %2088 = vmatpush1.msra.mxu0 0.0
    %2089 = vmatprep.subr.mxu0 0.0
    %2090 = vmatpush1.msra.mxu0 0.0
    %2091 = vmatprep.subr.mxu0 0.0
    %2092 = vmatpush1.msra.mxu0 0.0
    %2093 = vmatprep.mubr.f32.mxu0 0.0
    %2094 = vmatmul.mubr.f32.gmra.mrb[0].mxu0 %v2027
    %v2095 = vpop.f32.mrb[0].mxu0
    %v2096 = vadd.f32 0.0, %v2095
    %v2097 = vpop.f32.mrb[0].mxu0
    %2098 = vdwg.mxu0
    %v2099 = vld [vmem:[%s6] sm:$0xff]
    %v2100 = vld [vmem:[%s6 + $0x8] sm:$0xff]
    %v2102 = vsel %vm83, %v1793, 0
    %2104 = vmatprep.subr.mxu0 0.0
    %2105 = vmatpush1.msra.mxu0 %v2099
    %2106 = vmatprep.subr.mxu0 0.0
    %2107 = vmatpush1.msra.mxu0 %v2100
    %2108 = vmatprep.subr.mxu0 0.0
    %2109 = vmatpush1.msra.mxu0 0.0
    %2110 = vmatprep.subr.mxu0 0.0
    %2111 = vmatpush1.msra.mxu0 0.0
    %2112 = vmatprep.subr.mxu0 0.0
    %2113 = vmatpush1.msra.mxu0 0.0
    %2114 = vmatprep.subr.mxu0 0.0
    %2115 = vmatpush1.msra.mxu0 0.0
    %2116 = vmatprep.subr.mxu0 0.0
    %2117 = vmatpush1.msra.mxu0 0.0
    %2118 = vmatprep.subr.mxu0 0.0
    %2119 = vmatpush1.msra.mxu0 0.0
    %2120 = vmatprep.subr.mxu0 0.0
    %2121 = vmatpush1.msra.mxu0 0.0
    %2122 = vmatprep.subr.mxu0 0.0
    %2123 = vmatpush1.msra.mxu0 0.0
    %2124 = vmatprep.subr.mxu0 0.0
    %2125 = vmatpush1.msra.mxu0 0.0
    %2126 = vmatprep.subr.mxu0 0.0
    %2127 = vmatpush1.msra.mxu0 0.0
    %2128 = vmatprep.subr.mxu0 0.0
    %2129 = vmatpush1.msra.mxu0 0.0
    %2130 = vmatprep.subr.mxu0 0.0
    %2131 = vmatpush1.msra.mxu0 0.0
    %2132 = vmatprep.subr.mxu0 0.0
    %2133 = vmatpush1.msra.mxu0 0.0
    %2134 = vmatprep.subr.mxu0 0.0
    %2135 = vmatpush1.msra.mxu0 0.0
    %2136 = vmatprep.subr.mxu0 0.0
    %2137 = vmatpush1.msra.mxu0 0.0
    %2138 = vmatprep.subr.mxu0 0.0
    %2139 = vmatpush1.msra.mxu0 0.0
    %2140 = vmatprep.subr.mxu0 0.0
    %2141 = vmatpush1.msra.mxu0 0.0
    %2142 = vmatprep.subr.mxu0 0.0
    %2143 = vmatpush1.msra.mxu0 0.0
    %2144 = vmatprep.subr.mxu0 0.0
    %2145 = vmatpush1.msra.mxu0 0.0
    %2146 = vmatprep.subr.mxu0 0.0
    %2147 = vmatpush1.msra.mxu0 0.0
    %2148 = vmatprep.subr.mxu0 0.0
    %2149 = vmatpush1.msra.mxu0 0.0
    %2150 = vmatprep.subr.mxu0 0.0
    %2151 = vmatpush1.msra.mxu0 0.0
    %2152 = vmatprep.subr.mxu0 0.0
    %2153 = vmatpush1.msra.mxu0 0.0
    %2154 = vmatprep.subr.mxu0 0.0
    %2155 = vmatpush1.msra.mxu0 0.0
    %2156 = vmatprep.subr.mxu0 0.0
    %2157 = vmatpush1.msra.mxu0 0.0
    %2158 = vmatprep.subr.mxu0 0.0
    %2159 = vmatpush1.msra.mxu0 0.0
    %2160 = vmatprep.subr.mxu0 0.0
    %2161 = vmatpush1.msra.mxu0 0.0
    %2162 = vmatprep.subr.mxu0 0.0
    %2163 = vmatpush1.msra.mxu0 0.0
    %2164 = vmatprep.subr.mxu0 0.0
    %2165 = vmatpush1.msra.mxu0 0.0
    %2166 = vmatprep.subr.mxu0 0.0
    %2167 = vmatpush1.msra.mxu0 0.0
    %2168 = vmatprep.mubr.f32.mxu0 0.0
    %2169 = vmatmul.mubr.f32.gmra.mrb[0].mxu0 %v2102
    %v2170 = vpop.f32.mrb[0].mxu0
    %v2171 = vadd.f32 0.0, %v2170
    %v2172 = vpop.f32.mrb[0].mxu0
    %2173 = vdwg.mxu0
    %v2176 = vunpack.c.l.s4 1966171168
    %v2177 = vunpack.c.0.s8 %v2176
    %v2178 = vlaneseq
    %v2179 = vshrl.u32 %v2178, 7
    %v2180 = vsub.s32 %v2177, %v2179
    %v2181 = vrot.slane %v2171, %v2180
    %v2182 = vcombine.high %v2181, %v2181
    %v2184 = vunpack.c.l.s4 1966171168
    %v2185 = vunpack.c.0.s8 %v2184
    %v2186 = vlaneseq
    %v2187 = vshrl.u32 %v2186, 7
    %v2188 = vsub.s32 %v2185, %v2187
    %v2189 = vrot.slane %v2181, %v2188
    %v2191 = vunpack.c.l.s4 1966171168
    %v2192 = vunpack.c.0.s8 %v2191
    %v2193 = vlaneseq
    %v2194 = vshrl.u32 %v2193, 7
    %v2195 = vsub.s32 %v2192, %v2194
    %v2196 = vrot.slane %v2182, %v2195
    %v2197 = vlaneseq
    %v2198 = vshrl.u32 %v2197, 7
    %v2199 = vsub.s32 0, %v2198
    %v2200 = vrot.slane %v2189, %v2199
    %v2201 = vlaneseq
    %v2202 = vshrl.u32 %v2201, 7
    %v2203 = vsub.s32 0, %v2202
    %v2204 = vrot.slane %v2196, %v2203
    %v2205 = vcombine.high %v2200, %v2200
    %v2207 = vunpack.c.l.s4 1983009808
    %v2208 = vunpack.c.0.s8 %v2207
    %v2209 = vlaneseq
    %v2210 = vshrl.u32 %v2209, 7
    %v2211 = vsub.s32 %v2208, %v2210
    %v2212 = vrot.slane %v2200, %v2211
    %v2214 = vunpack.c.l.s4 1983009808
    %v2215 = vunpack.c.0.s8 %v2214
    %v2216 = vlaneseq
    %v2217 = vshrl.u32 %v2216, 7
    %v2218 = vsub.s32 %v2215, %v2217
    %v2219 = vrot.slane %v2205, %v2218
    %v2220 = vcombine.high %v2212, %v2212
    %v2221 = vcombine.high %v2204, %v2204
    %v2223 = vunpack.c.l.s4 1983009808
    %v2224 = vunpack.c.0.s8 %v2223
    %v2225 = vlaneseq
    %v2226 = vshrl.u32 %v2225, 7
    %v2227 = vsub.s32 %v2224, %v2226
    %v2228 = vrot.slane %v2204, %v2227
    %v2230 = vunpack.c.l.s4 1983009808
    %v2231 = vunpack.c.0.s8 %v2230
    %v2232 = vlaneseq
    %v2233 = vshrl.u32 %v2232, 7
    %v2234 = vsub.s32 %v2231, %v2233
    %v2235 = vrot.slane %v2221, %v2234
    %v2236 = vcombine.high %v2228, %v2228
    %v2243 = vadd.f32 %v1989, %v2212
    %v2244 = vadd.f32 %v1997, %v2220
    %v2245 = vadd.f32 %v1996, %v2219
    %v2246 = vadd.f32 %v1998, %v2228
    %v2247 = vadd.f32 %v2005, %v2236
    %v2248 = vadd.f32 %v2006, %v2235
    %v2249 = vtanh.pop %v2243
    %v2250 = vtanh.pop %v2244
    %v2251 = vtanh.pop %v2245
    %v2252 = vtanh.pop %v2246
    %v2253 = vtanh.pop %v2247
    %v2254 = vtanh.pop %v2248
    %v2256 = vcombine.high %v64, %v64
    %v2258 = vunpack.c.l.s4 1983009808
    %v2259 = vunpack.c.0.s8 %v2258
    %v2260 = vlaneseq
    %v2261 = vshrl.u32 %v2260, 7
    %v2262 = vsub.s32 %v2259, %v2261
    %v2263 = vrot.slane %v64, %v2262
    %v2265 = vunpack.c.l.s4 1983009808
    %v2266 = vunpack.c.0.s8 %v2265
    %v2267 = vlaneseq
    %v2268 = vshrl.u32 %v2267, 7
    %v2269 = vsub.s32 %v2266, %v2268
    %v2270 = vrot.slane %v2256, %v2269
    %v2271 = vcombine.high %v2263, %v2263
    %v2275 = vmul.f32 %v2249, %v2263
    %v2276 = vmul.f32 %v2250, %v2271
    %v2277 = vmul.f32 %v2251, %v2270
    %v2278 = vmul.f32 %v2252, %v2263
    %v2279 = vmul.f32 %v2253, %v2271
    %v2280 = vmul.f32 %v2254, %v2270
    %v2287 = vcombine.low %v2275, %v2276
    %v2289 = vunpack.c.l.s4 1983009808
    %v2290 = vunpack.c.0.s8 %v2289
    %v2291 = vlaneseq
    %v2292 = vshrl.u32 %v2291, 7
    %v2293 = vsub.s32 %v2290, %v2292
    %v2294 = vrot.slane %v2287, %v2293
    %v2296 = vunpack.c.l.s4 1983009808
    %v2297 = vunpack.c.0.s8 %v2296
    %v2298 = vlaneseq
    %v2299 = vshrl.u32 %v2298, 7
    %v2300 = vsub.s32 %v2297, %v2299
    %v2301 = vrot.slane %v2277, %v2300
    %v2302 = vcombine.low %v2294, %v2301
    %v2303 = vcombine.low %v2278, %v2279
    %v2305 = vunpack.c.l.s4 1983009808
    %v2306 = vunpack.c.0.s8 %v2305
    %v2307 = vlaneseq
    %v2308 = vshrl.u32 %v2307, 7
    %v2309 = vsub.s32 %v2306, %v2308
    %v2310 = vrot.slane %v2303, %v2309
    %v2312 = vunpack.c.l.s4 1983009808
    %v2313 = vunpack.c.0.s8 %v2312
    %v2314 = vlaneseq
    %v2315 = vshrl.u32 %v2314, 7
    %v2316 = vsub.s32 %v2313, %v2315
    %v2317 = vrot.slane %v2280, %v2316
    %v2318 = vcombine.low %v2310, %v2317
    %vm2321 = vcmask 128000
    %v2322 = vsel %vm2321, %v2302, 0.0
    %2323 = vadd.xlane.f32.xlu0 %v2322
    %v2324 = vpop.xlane.xlu0 %2323
    %v2325 = vsel %vm2321, %v2318, 0.0
    %2326 = vadd.xlane.f32.xlu0 %v2325
    %v2327 = vpop.xlane.xlu0 %2326
    %v2330 = vlaneseq
    %v2331 = vshrl.u32 %v2330, 7
    %v2332 = vsub.s32 %v68, %v2331
    %v2333 = vrot.slane %v2324, %v2332
    %v2334 = vlaneseq
    %v2335 = vshrl.u32 %v2334, 7
    %v2336 = vsub.s32 %v68, %v2335
    %v2337 = vrot.slane %v2327, %v2336
    %vm2338 = vcmask 1041409
    %v2339 = vsel %vm2338, %v2337, %v2333
    %vm2341 = vcmask 41984
    %v2342 = vsel %vm2341, %v2339, -inf
    %2343 = vmax.xlane.f32.xlu0 %v2342
    %v2344 = vpop.xlane.xlu0 %2343
    %v2346 = vlaneseq
    %v2347 = vshrl.u32 %v2346, 7
    %v2348 = vsub.s32 0, %v2347
    %v2349 = vrot.slane %v2344, %v2348
    %v2350 = vlaneseq
    %v2351 = vshrl.u32 %v2350, 7
    %v2352 = vsub.s32 1, %v2351
    %v2353 = vrot.slane %v2344, %v2352
    %v2356 = vsub.f32 %v2324, %v2349
    %v2357 = vsub.f32 %v2327, %v2353
    %v2358 = vmul.f32 %v2356, 1.442695
    %v2359 = vpow.pop %v2358
    %v2360 = vmul.f32 %v2357, 1.442695
    %v2361 = vpow.pop %v2360
    %2364 = vset.pattern.permute.xlu0 0
    %2365 = vperm.xlu0 %2364, %v2359
    %v2366 = vpop.permute.xlu0 %2365
    %2367 = vset.pattern.permute.xlu0 0
    %2368 = vperm.xlu0 %2367, %v2361
    %v2369 = vpop.permute.xlu0 %2368
    %v2370 = vlaneseq
    %v2371 = vshrl.u32 %v2370, 7
    %v2372 = vsub.s32 %v68, %v2371
    %v2373 = vrot.slane %v2366, %v2372
    %v2374 = vlaneseq
    %v2375 = vshrl.u32 %v2374, 7
    %v2376 = vsub.s32 %v68, %v2375
    %v2377 = vrot.slane %v2369, %v2376
    %v2378 = vsel %vm2338, %v2377, %v2373
    %v2380 = vsel %vm2341, %v2378, 0.0
    %2381 = vadd.xlane.f32.xlu0 %v2380
    %v2382 = vpop.xlane.xlu0 %2381
    %v2384 = vlaneseq
    %v2385 = vshrl.u32 %v2384, 7
    %v2386 = vsub.s32 0, %v2385
    %v2387 = vrot.slane %v2382, %v2386
    %v2388 = vlaneseq
    %v2389 = vshrl.u32 %v2388, 7
    %v2390 = vsub.s32 1, %v2389
    %v2391 = vrot.slane %v2382, %v2390
    %v2394 = vrcp.pop %v2387
    %v2395 = vmul.f32 %v2359, %v2394
    %v2396 = vrcp.pop %v2391
    %v2397 = vmul.f32 %v2361, %v2396
    %2399 = vset.pattern.permute.xlu0 0
    %2400 = vperm.xlu0 %2399, %v2395
    %v2401 = vpop.permute.xlu0 %2400
    %2404 = vset.pattern.permute.xlu0 0
    %2405 = vperm.xlu0 %2404, %v2397
    %v2406 = vpop.permute.xlu0 %2405
    %v2408 = vmul.f32 %v2401, %v1713
    %v2409 = vmul.f32 %v2406, %v1714
    %vm2410 = vcmask 259072
    %v2411 = vsel %vm2410, %v2408, 0.0
    %v2412 = vrot.slane %v2411, 4
    %v2413 = vadd.f32 %v2411, %v2412
    %v2414 = vrot.slane %v2413, 2
    %v2415 = vadd.f32 %v2413, %v2414
    %v2416 = vrot.slane %v2415, 1
    %v2417 = vadd.f32 %v2415, %v2416
    %v2418 = vsel %vm2410, %v2409, 0.0
    %v2419 = vrot.slane %v2418, 4
    %v2420 = vadd.f32 %v2418, %v2419
    %v2421 = vrot.slane %v2420, 2
    %v2422 = vadd.f32 %v2420, %v2421
    %v2423 = vrot.slane %v2422, 1
    %v2424 = vadd.f32 %v2422, %v2423
    %v2427 = vsel %vm2338, %v2424, %v2417
    %2428 = vrot.lane.b32.xlu0 %v2427, 8
    %v2429 = vpop.permute.xlu0 %2428
    %2431 = vrot.lane.b32.xlu0 %v1793, 40
    %v2432 = vpop.permute.xlu0 %2431
    %v2434 = vsel %vm581, %v2096, %v2429
    %vm2435 = vcmask 326656
    %v2436 = vsel %vm2435, %v2434, %v2432
    %v2437 = vld [vmem:[%s9] sm:$0xff]
    %v2438 = vld [vmem:[%s9 + $0x8] sm:$0xff]
    %v2439 = vld [vmem:[%s9 + $0x10] sm:$0xff]
    %v2440 = vld [vmem:[%s9 + $0x18] sm:$0xff]
    %v2441 = vld [vmem:[%s9 + $0x20] sm:$0xff]
    %v2442 = vld [vmem:[%s9 + $0x28] sm:$0xff]
    %v2443 = vld [vmem:[%s9 + $0x30] sm:$0xff]
    %vm2444 = vcmask 457728
    %v2446 = vsel %vm2444, %v2436, 0
    %2448 = vmatprep.subr.mxu0 0.0
    %2449 = vmatpush1.msra.mxu0 %v2437
    %2450 = vmatprep.subr.mxu0 0.0
    %2451 = vmatpush1.msra.mxu0 %v2438
    %2452 = vmatprep.subr.mxu0 0.0
    %2453 = vmatpush1.msra.mxu0 %v2439
    %2454 = vmatprep.subr.mxu0 0.0
    %2455 = vmatpush1.msra.mxu0 %v2440
    %2456 = vmatprep.subr.mxu0 0.0
    %2457 = vmatpush1.msra.mxu0 %v2441
    %2458 = vmatprep.subr.mxu0 0.0
    %2459 = vmatpush1.msra.mxu0 %v2442
    %2460 = vmatprep.subr.mxu0 0.0
    %2461 = vmatpush1.msra.mxu0 %v2443
    %2462 = vmatprep.subr.mxu0 0.0
    %2463 = vmatpush1.msra.mxu0 0.0
    %2464 = vmatprep.subr.mxu0 0.0
    %2465 = vmatpush1.msra.mxu0 0.0
    %2466 = vmatprep.subr.mxu0 0.0
    %2467 = vmatpush1.msra.mxu0 0.0
    %2468 = vmatprep.subr.mxu0 0.0
    %2469 = vmatpush1.msra.mxu0 0.0
    %2470 = vmatprep.subr.mxu0 0.0
    %2471 = vmatpush1.msra.mxu0 0.0
    %2472 = vmatprep.subr.mxu0 0.0
    %2473 = vmatpush1.msra.mxu0 0.0
    %2474 = vmatprep.subr.mxu0 0.0
    %2475 = vmatpush1.msra.mxu0 0.0
    %2476 = vmatprep.subr.mxu0 0.0
    %2477 = vmatpush1.msra.mxu0 0.0
    %2478 = vmatprep.subr.mxu0 0.0
    %2479 = vmatpush1.msra.mxu0 0.0
    %2480 = vmatprep.subr.mxu0 0.0
    %2481 = vmatpush1.msra.mxu0 0.0
    %2482 = vmatprep.subr.mxu0 0.0
    %2483 = vmatpush1.msra.mxu0 0.0
    %2484 = vmatprep.subr.mxu0 0.0
    %2485 = vmatpush1.msra.mxu0 0.0
    %2486 = vmatprep.subr.mxu0 0.0
    %2487 = vmatpush1.msra.mxu0 0.0
    %2488 = vmatprep.subr.mxu0 0.0
    %2489 = vmatpush1.msra.mxu0 0.0
    %2490 = vmatprep.subr.mxu0 0.0
    %2491 = vmatpush1.msra.mxu0 0.0
    %2492 = vmatprep.subr.mxu0 0.0
    %2493 = vmatpush1.msra.mxu0 0.0
    %2494 = vmatprep.subr.mxu0 0.0
    %2495 = vmatpush1.msra.mxu0 0.0
    %2496 = vmatprep.subr.mxu0 0.0
    %2497 = vmatpush1.msra.mxu0 0.0
    %2498 = vmatprep.subr.mxu0 0.0
    %2499 = vmatpush1.msra.mxu0 0.0
    %2500 = vmatprep.subr.mxu0 0.0
    %2501 = vmatpush1.msra.mxu0 0.0
    %2502 = vmatprep.subr.mxu0 0.0
    %2503 = vmatpush1.msra.mxu0 0.0
    %2504 = vmatprep.subr.mxu0 0.0
    %2505 = vmatpush1.msra.mxu0 0.0
    %2506 = vmatprep.subr.mxu0 0.0
    %2507 = vmatpush1.msra.mxu0 0.0
    %2508 = vmatprep.subr.mxu0 0.0
    %2509 = vmatpush1.msra.mxu0 0.0
    %2510 = vmatprep.subr.mxu0 0.0
    %2511 = vmatpush1.msra.mxu0 0.0
    %2512 = vmatprep.mubr.f32.mxu0 0.0
    %2513 = vmatmul.mubr.f32.gmra.mrb[0].mxu0 %v2446
    %v2514 = vpop.f32.mrb[0].mxu0
    %v2515 = vadd.f32 %v65, %v2514
    %v2516 = vpop.f32.mrb[0].mxu0
    %2517 = vdwg.mxu0
    %2519 = vrot.lane.b32.xlu0 %v2515, 80
    %v2520 = vpop.permute.xlu0 %2519
    %v2522 = vadd.f32 %v2515, %v2520
    %v2523 = vxor.u32 %v2522, 2147483648
    %v2524 = vmul.f32 %v2523, 1.442695
    %v2525 = vpow.pop %v2524
    %v2526 = vadd.f32 %v2525, 1.0
    %v2527 = vrcp.pop %v2526
    %v2528 = vmul.f32 1.0, %v2527
    %2529 = vrot.lane.b32.xlu0 %v2515, 48
    %v2530 = vpop.permute.xlu0 %2529
    %v2532 = vmul.f32 %v2528, %v2530
    %2534 = vrot.lane.b32.xlu0 %v2532, 32
    %v2535 = vpop.permute.xlu0 %2534
    %v2537 = vadd.f32 %v2515, %v2535
    %v2538 = vtanh.pop %v2537
    %v2539 = vsub.f32 1.0, %v2528
    %2541 = vrot.lane.b32.xlu0 %v2538, 112
    %v2542 = vpop.permute.xlu0 %2541
    %v2544 = vmul.f32 %v2539, %v2542
    %2545 = vrot.lane.b32.xlu0 %v1793, 16
    %v2546 = vpop.permute.xlu0 %2545
    %v2548 = vmul.f32 %v2528, %v2546
    %v2549 = vadd.f32 %v2544, %v2548
    %2551 = vrot.lane.b32.xlu0 %v2549, 112
    %v2552 = vpop.permute.xlu0 %2551
    %2554 = vrot.lane.b32.xlu0 %v2427, 16
    %v2555 = vpop.permute.xlu0 %2554
    %2558 = vrot.lane.b32.xlu0 %v2096, 48
    %v2559 = vpop.permute.xlu0 %2558
    %v2561 = vsel %vm83, %v2552, %v2555
    %v2562 = vsel %vm599, %v2561, %v2559
    %v2563 = vld [vmem:[%s10] sm:$0xff]
    %v2564 = vld [vmem:[%s10 + $0x8] sm:$0xff]
    %v2565 = vld [vmem:[%s10 + $0x10] sm:$0xff]
    %v2566 = vld [vmem:[%s10 + $0x18] sm:$0xff]
    %v2567 = vld [vmem:[%s10 + $0x20] sm:$0xff]
    %v2568 = vld [vmem:[%s10 + $0x28] sm:$0xff]
    %v2569 = vld [vmem:[%s10 + $0x30] sm:$0xff]
    %v2571 = vsel %vm2444, %v2562, 0
    %2573 = vmatprep.subr.mxu0 0.0
    %2574 = vmatpush1.msra.mxu0 %v2563
    %2575 = vmatprep.subr.mxu0 0.0
    %2576 = vmatpush1.msra.mxu0 %v2564
    %2577 = vmatprep.subr.mxu0 0.0
    %2578 = vmatpush1.msra.mxu0 %v2565
    %2579 = vmatprep.subr.mxu0 0.0
    %2580 = vmatpush1.msra.mxu0 %v2566
    %2581 = vmatprep.subr.mxu0 0.0
    %2582 = vmatpush1.msra.mxu0 %v2567
    %2583 = vmatprep.subr.mxu0 0.0
    %2584 = vmatpush1.msra.mxu0 %v2568
    %2585 = vmatprep.subr.mxu0 0.0
    %2586 = vmatpush1.msra.mxu0 %v2569
    %2587 = vmatprep.subr.mxu0 0.0
    %2588 = vmatpush1.msra.mxu0 0.0
    %2589 = vmatprep.subr.mxu0 0.0
    %2590 = vmatpush1.msra.mxu0 0.0
    %2591 = vmatprep.subr.mxu0 0.0
    %2592 = vmatpush1.msra.mxu0 0.0
    %2593 = vmatprep.subr.mxu0 0.0
    %2594 = vmatpush1.msra.mxu0 0.0
    %2595 = vmatprep.subr.mxu0 0.0
    %2596 = vmatpush1.msra.mxu0 0.0
    %2597 = vmatprep.subr.mxu0 0.0
    %2598 = vmatpush1.msra.mxu0 0.0
    %2599 = vmatprep.subr.mxu0 0.0
    %2600 = vmatpush1.msra.mxu0 0.0
    %2601 = vmatprep.subr.mxu0 0.0
    %2602 = vmatpush1.msra.mxu0 0.0
    %2603 = vmatprep.subr.mxu0 0.0
    %2604 = vmatpush1.msra.mxu0 0.0
    %2605 = vmatprep.subr.mxu0 0.0
    %2606 = vmatpush1.msra.mxu0 0.0
    %2607 = vmatprep.subr.mxu0 0.0
    %2608 = vmatpush1.msra.mxu0 0.0
    %2609 = vmatprep.subr.mxu0 0.0
    %2610 = vmatpush1.msra.mxu0 0.0
    %2611 = vmatprep.subr.mxu0 0.0
    %2612 = vmatpush1.msra.mxu0 0.0
    %2613 = vmatprep.subr.mxu0 0.0
    %2614 = vmatpush1.msra.mxu0 0.0
    %2615 = vmatprep.subr.mxu0 0.0
    %2616 = vmatpush1.msra.mxu0 0.0
    %2617 = vmatprep.subr.mxu0 0.0
    %2618 = vmatpush1.msra.mxu0 0.0
    %2619 = vmatprep.subr.mxu0 0.0
    %2620 = vmatpush1.msra.mxu0 0.0
    %2621 = vmatprep.subr.mxu0 0.0
    %2622 = vmatpush1.msra.mxu0 0.0
    %2623 = vmatprep.subr.mxu0 0.0
    %2624 = vmatpush1.msra.mxu0 0.0
    %2625 = vmatprep.subr.mxu0 0.0
    %2626 = vmatpush1.msra.mxu0 0.0
    %2627 = vmatprep.subr.mxu0 0.0
    %2628 = vmatpush1.msra.mxu0 0.0
    %2629 = vmatprep.subr.mxu0 0.0
    %2630 = vmatpush1.msra.mxu0 0.0
    %2631 = vmatprep.subr.mxu0 0.0
    %2632 = vmatpush1.msra.mxu0 0.0
    %2633 = vmatprep.subr.mxu0 0.0
    %2634 = vmatpush1.msra.mxu0 0.0
    %2635 = vmatprep.subr.mxu0 0.0
    %2636 = vmatpush1.msra.mxu0 0.0
    %2637 = vmatprep.mubr.f32.mxu0 0.0
    %2638 = vmatmul.mubr.f32.gmra.mrb[0].mxu0 %v2571
    %v2639 = vpop.f32.mrb[0].mxu0
    %v2640 = vadd.f32 %v66, %v2639
    %v2641 = vpop.f32.mrb[0].mxu0
    %2642 = vdwg.mxu0
    %vm2643 = vcmask 123904
    %v2644 = vsel %vm2643, %v2640, -inf
    %2645 = vmax.xlane.f32.xlu0 %v2644
    %v2646 = vpop.xlane.xlu0 %2645
    %vm2647 = vcmp.eq.f32.partialorder %v2640, %v2646
    %v2648 = vsel %vm2647, %v68, 16
    %v2649 = vsel %vm2643, %v2648, 2147483647
    %v2650 = vand.u32 %v2649, 65535
    %v2651 = vshra.s32 %v2649, 16
    %v2652 = vcvt.s32.f32 %v2650
    %v2653 = vcvt.s32.f32 %v2651
    %2654 = vmin.xlane.f32.xlu0 %v2653
    %v2655 = vpop.xlane.xlu0 %2654
    %vm2656 = vcmp.eq.f32.partialorder %v2653, %v2655
    %v2657 = vsel %vm2656, %v2652, inf
    %2658 = vmin.xlane.f32.xlu0 %v2657
    %v2659 = vpop.xlane.xlu0 %2658
    %v2660 = vcvt.f32.s32 %v2659
    %v2661 = vcvt.f32.s32 %v2655
    %v2662 = vshll.u32 %v2661, 16
    %v2663 = vadd.s32 %v2662, %v2660
    %vm2664 = vcmp.eq.s32.totalorder %v68, %v2663
    %v2665 = vsel %vm2664, 1, 0
    %v2666 = vcvt.s32.f32 %v2665
    %s2667 = sld [smem:[#allocation5]]
    %p2668 = scmp.eq.s32.totalorder %s2667, 1
    %s2669 = scalar_select %p2668, 1, 0
    %s2670 = scvt.s32.f32 %s2669
    %s2671 = sld [smem:[#allocation4 + $0x80]]
    %v2672 = vstv %s2671
    %vm2673 = vcmp.eq.s32.totalorder %v68, %v2672
    %v2674 = vsel %vm2673, 1, 0
    %v2675 = vcvt.s32.f32 %v2674
    %s2676 = sld [smem:[#allocation4 + $0x81]]
    %v2677 = vstv %s2676
    %vm2678 = vcmp.eq.s32.totalorder %v68, %v2677
    %v2679 = vsel %vm2678, 1, 0
    %v2680 = vcvt.s32.f32 %v2679
    %v2681 = vsel %vm79, %v2675, %v2680
    %v2682 = vstv %s2670
    %v2683 = vmul.f32 %v2682, %v2681
    %s2684 = ssub.f32 1.0, %s2670
    %v2685 = vstv %s2684
    %v2686 = vmul.f32 %v2685, %v2666
    %v2687 = vadd.f32 %v2683, %v2686
    %v2689 = vsel %vm83, %v2687, 0
    %2691 = vmatprep.subr.mxu0 0.0
    %2692 = vmatpush1.msra.mxu0 %v2024
    %2693 = vmatprep.subr.mxu0 0.0
    %2694 = vmatpush1.msra.mxu0 %v2025
    %2695 = vmatprep.subr.mxu0 0.0
    %2696 = vmatpush1.msra.mxu0 0.0
    %2697 = vmatprep.subr.mxu0 0.0
    %2698 = vmatpush1.msra.mxu0 0.0
    %2699 = vmatprep.subr.mxu0 0.0
    %2700 = vmatpush1.msra.mxu0 0.0
    %2701 = vmatprep.subr.mxu0 0.0
    %2702 = vmatpush1.msra.mxu0 0.0
    %2703 = vmatprep.subr.mxu0 0.0
    %2704 = vmatpush1.msra.mxu0 0.0
    %2705 = vmatprep.subr.mxu0 0.0
    %2706 = vmatpush1.msra.mxu0 0.0
    %2707 = vmatprep.subr.mxu0 0.0
    %2708 = vmatpush1.msra.mxu0 0.0
    %2709 = vmatprep.subr.mxu0 0.0
    %2710 = vmatpush1.msra.mxu0 0.0
    %2711 = vmatprep.subr.mxu0 0.0
    %2712 = vmatpush1.msra.mxu0 0.0
    %2713 = vmatprep.subr.mxu0 0.0
    %2714 = vmatpush1.msra.mxu0 0.0
    %2715 = vmatprep.subr.mxu0 0.0
    %2716 = vmatpush1.msra.mxu0 0.0
    %2717 = vmatprep.subr.mxu0 0.0
    %2718 = vmatpush1.msra.mxu0 0.0
    %2719 = vmatprep.subr.mxu0 0.0
    %2720 = vmatpush1.msra.mxu0 0.0
    %2721 = vmatprep.subr.mxu0 0.0
    %2722 = vmatpush1.msra.mxu0 0.0
    %2723 = vmatprep.subr.mxu0 0.0
    %2724 = vmatpush1.msra.mxu0 0.0
    %2725 = vmatprep.subr.mxu0 0.0
    %2726 = vmatpush1.msra.mxu0 0.0
    %2727 = vmatprep.subr.mxu0 0.0
    %2728 = vmatpush1.msra.mxu0 0.0
    %2729 = vmatprep.subr.mxu0 0.0
    %2730 = vmatpush1.msra.mxu0 0.0
    %2731 = vmatprep.subr.mxu0 0.0
    %2732 = vmatpush1.msra.mxu0 0.0
    %2733 = vmatprep.subr.mxu0 0.0
    %2734 = vmatpush1.msra.mxu0 0.0
    %2735 = vmatprep.subr.mxu0 0.0
    %2736 = vmatpush1.msra.mxu0 0.0
    %2737 = vmatprep.subr.mxu0 0.0
    %2738 = vmatpush1.msra.mxu0 0.0
    %2739 = vmatprep.subr.mxu0 0.0
    %2740 = vmatpush1.msra.mxu0 0.0
    %2741 = vmatprep.subr.mxu0 0.0
    %2742 = vmatpush1.msra.mxu0 0.0
    %2743 = vmatprep.subr.mxu0 0.0
    %2744 = vmatpush1.msra.mxu0 0.0
    %2745 = vmatprep.subr.mxu0 0.0
    %2746 = vmatpush1.msra.mxu0 0.0
    %2747 = vmatprep.subr.mxu0 0.0
    %2748 = vmatpush1.msra.mxu0 0.0
    %2749 = vmatprep.subr.mxu0 0.0
    %2750 = vmatpush1.msra.mxu0 0.0
    %2751 = vmatprep.subr.mxu0 0.0
    %2752 = vmatpush1.msra.mxu0 0.0
    %2753 = vmatprep.subr.mxu0 0.0
    %2754 = vmatpush1.msra.mxu0 0.0
    %2755 = vmatprep.mubr.f32.mxu0 0.0
    %2756 = vmatmul.mubr.f32.gmra.mrb[0].mxu0 %v2689
    %v2757 = vpop.f32.mrb[0].mxu0
    %v2758 = vadd.f32 0.0, %v2757
    %v2759 = vpop.f32.mrb[0].mxu0
    %2760 = vdwg.mxu0
    %v2761 = vsel %vm83, %v2552, 0
    %2763 = vmatprep.subr.mxu0 0.0
    %2764 = vmatpush1.msra.mxu0 %v2099
    %2765 = vmatprep.subr.mxu0 0.0
    %2766 = vmatpush1.msra.mxu0 %v2100
    %2767 = vmatprep.subr.mxu0 0.0
    %2768 = vmatpush1.msra.mxu0 0.0
    %2769 = vmatprep.subr.mxu0 0.0
    %2770 = vmatpush1.msra.mxu0 0.0
    %2771 = vmatprep.subr.mxu0 0.0
    %2772 = vmatpush1.msra.mxu0 0.0
    %2773 = vmatprep.subr.mxu0 0.0
    %2774 = vmatpush1.msra.mxu0 0.0
    %2775 = vmatprep.subr.mxu0 0.0
    %2776 = vmatpush1.msra.mxu0 0.0
    %2777 = vmatprep.subr.mxu0 0.0
    %2778 = vmatpush1.msra.mxu0 0.0
    %2779 = vmatprep.subr.mxu0 0.0
    %2780 = vmatpush1.msra.mxu0 0.0
    %2781 = vmatprep.subr.mxu0 0.0
    %2782 = vmatpush1.msra.mxu0 0.0
    %2783 = vmatprep.subr.mxu0 0.0
    %2784 = vmatpush1.msra.mxu0 0.0
    %2785 = vmatprep.subr.mxu0 0.0
    %2786 = vmatpush1.msra.mxu0 0.0
    %2787 = vmatprep.subr.mxu0 0.0
    %2788 = vmatpush1.msra.mxu0 0.0
    %2789 = vmatprep.subr.mxu0 0.0
    %2790 = vmatpush1.msra.mxu0 0.0
    %2791 = vmatprep.subr.mxu0 0.0
    %2792 = vmatpush1.msra.mxu0 0.0
    %2793 = vmatprep.subr.mxu0 0.0
    %2794 = vmatpush1.msra.mxu0 0.0
    %2795 = vmatprep.subr.mxu0 0.0
    %2796 = vmatpush1.msra.mxu0 0.0
    %2797 = vmatprep.subr.mxu0 0.0
    %2798 = vmatpush1.msra.mxu0 0.0
    %2799 = vmatprep.subr.mxu0 0.0
    %2800 = vmatpush1.msra.mxu0 0.0
    %2801 = vmatprep.subr.mxu0 0.0
    %2802 = vmatpush1.msra.mxu0 0.0
    %2803 = vmatprep.subr.mxu0 0.0
    %2804 = vmatpush1.msra.mxu0 0.0
    %2805 = vmatprep.subr.mxu0 0.0
    %2806 = vmatpush1.msra.mxu0 0.0
    %2807 = vmatprep.subr.mxu0 0.0
    %2808 = vmatpush1.msra.mxu0 0.0
    %2809 = vmatprep.subr.mxu0 0.0
    %2810 = vmatpush1.msra.mxu0 0.0
    %2811 = vmatprep.subr.mxu0 0.0
    %2812 = vmatpush1.msra.mxu0 0.0
    %2813 = vmatprep.subr.mxu0 0.0
    %2814 = vmatpush1.msra.mxu0 0.0
    %2815 = vmatprep.subr.mxu0 0.0
    %2816 = vmatpush1.msra.mxu0 0.0
    %2817 = vmatprep.subr.mxu0 0.0
    %2818 = vmatpush1.msra.mxu0 0.0
    %2819 = vmatprep.subr.mxu0 0.0
    %2820 = vmatpush1.msra.mxu0 0.0
    %2821 = vmatprep.subr.mxu0 0.0
    %2822 = vmatpush1.msra.mxu0 0.0
    %2823 = vmatprep.subr.mxu0 0.0
    %2824 = vmatpush1.msra.mxu0 0.0
    %2825 = vmatprep.subr.mxu0 0.0
    %2826 = vmatpush1.msra.mxu0 0.0
    %2827 = vmatprep.mubr.f32.mxu0 0.0
    %2828 = vmatmul.mubr.f32.gmra.mrb[0].mxu0 %v2761
    %v2829 = vpop.f32.mrb[0].mxu0
    %v2830 = vadd.f32 0.0, %v2829
    %v2831 = vpop.f32.mrb[0].mxu0
    %2832 = vdwg.mxu0
    %v2835 = vunpack.c.l.s4 1966171168
    %v2836 = vunpack.c.0.s8 %v2835
    %v2837 = vlaneseq
    %v2838 = vshrl.u32 %v2837, 7
    %v2839 = vsub.s32 %v2836, %v2838
    %v2840 = vrot.slane %v2830, %v2839
    %v2841 = vcombine.high %v2840, %v2840
    %v2843 = vunpack.c.l.s4 1966171168
    %v2844 = vunpack.c.0.s8 %v2843
    %v2845 = vlaneseq
    %v2846 = vshrl.u32 %v2845, 7
    %v2847 = vsub.s32 %v2844, %v2846
    %v2848 = vrot.slane %v2840, %v2847
    %v2850 = vunpack.c.l.s4 1966171168
    %v2851 = vunpack.c.0.s8 %v2850
    %v2852 = vlaneseq
    %v2853 = vshrl.u32 %v2852, 7
    %v2854 = vsub.s32 %v2851, %v2853
    %v2855 = vrot.slane %v2841, %v2854
    %v2856 = vlaneseq
    %v2857 = vshrl.u32 %v2856, 7
    %v2858 = vsub.s32 0, %v2857
    %v2859 = vrot.slane %v2848, %v2858
    %v2860 = vlaneseq
    %v2861 = vshrl.u32 %v2860, 7
    %v2862 = vsub.s32 0, %v2861
    %v2863 = vrot.slane %v2855, %v2862
    %v2864 = vcombine.high %v2859, %v2859
    %v2866 = vunpack.c.l.s4 1983009808
    %v2867 = vunpack.c.0.s8 %v2866
    %v2868 = vlaneseq
    %v2869 = vshrl.u32 %v2868, 7
    %v2870 = vsub.s32 %v2867, %v2869
    %v2871 = vrot.slane %v2859, %v2870
    %v2873 = vunpack.c.l.s4 1983009808
    %v2874 = vunpack.c.0.s8 %v2873
    %v2875 = vlaneseq
    %v2876 = vshrl.u32 %v2875, 7
    %v2877 = vsub.s32 %v2874, %v2876
    %v2878 = vrot.slane %v2864, %v2877
    %v2879 = vcombine.high %v2871, %v2871
    %v2880 = vcombine.high %v2863, %v2863
    %v2882 = vunpack.c.l.s4 1983009808
    %v2883 = vunpack.c.0.s8 %v2882
    %v2884 = vlaneseq
    %v2885 = vshrl.u32 %v2884, 7
    %v2886 = vsub.s32 %v2883, %v2885
    %v2887 = vrot.slane %v2863, %v2886
    %v2889 = vunpack.c.l.s4 1983009808
    %v2890 = vunpack.c.0.s8 %v2889
    %v2891 = vlaneseq
    %v2892 = vshrl.u32 %v2891, 7
    %v2893 = vsub.s32 %v2890, %v2892
    %v2894 = vrot.slane %v2880, %v2893
    %v2895 = vcombine.high %v2887, %v2887
    %v2902 = vadd.f32 %v1989, %v2871
    %v2903 = vadd.f32 %v1997, %v2879
    %v2904 = vadd.f32 %v1996, %v2878
    %v2905 = vadd.f32 %v1998, %v2887
    %v2906 = vadd.f32 %v2005, %v2895
    %v2907 = vadd.f32 %v2006, %v2894
    %v2908 = vtanh.pop %v2902
    %v2909 = vtanh.pop %v2903
    %v2910 = vtanh.pop %v2904
    %v2911 = vtanh.pop %v2905
    %v2912 = vtanh.pop %v2906
    %v2913 = vtanh.pop %v2907
    %v2914 = vmul.f32 %v2908, %v2263
    %v2915 = vmul.f32 %v2909, %v2271
    %v2916 = vmul.f32 %v2910, %v2270
    %v2917 = vmul.f32 %v2911, %v2263
    %v2918 = vmul.f32 %v2912, %v2271
    %v2919 = vmul.f32 %v2913, %v2270
    %v2926 = vcombine.low %v2914, %v2915
    %v2928 = vunpack.c.l.s4 1983009808
    %v2929 = vunpack.c.0.s8 %v2928
    %v2930 = vlaneseq
    %v2931 = vshrl.u32 %v2930, 7
    %v2932 = vsub.s32 %v2929, %v2931
    %v2933 = vrot.slane %v2926, %v2932
    %v2935 = vunpack.c.l.s4 1983009808
    %v2936 = vunpack.c.0.s8 %v2935
    %v2937 = vlaneseq
    %v2938 = vshrl.u32 %v2937, 7
    %v2939 = vsub.s32 %v2936, %v2938
    %v2940 = vrot.slane %v2916, %v2939
    %v2941 = vcombine.low %v2933, %v2940
    %v2942 = vcombine.low %v2917, %v2918
    %v2944 = vunpack.c.l.s4 1983009808
    %v2945 = vunpack.c.0.s8 %v2944
    %v2946 = vlaneseq
    %v2947 = vshrl.u32 %v2946, 7
    %v2948 = vsub.s32 %v2945, %v2947
    %v2949 = vrot.slane %v2942, %v2948
    %v2951 = vunpack.c.l.s4 1983009808
    %v2952 = vunpack.c.0.s8 %v2951
    %v2953 = vlaneseq
    %v2954 = vshrl.u32 %v2953, 7
    %v2955 = vsub.s32 %v2952, %v2954
    %v2956 = vrot.slane %v2919, %v2955
    %v2957 = vcombine.low %v2949, %v2956
    %v2960 = vsel %vm2321, %v2941, 0.0
    %2961 = vadd.xlane.f32.xlu0 %v2960
    %v2962 = vpop.xlane.xlu0 %2961
    %v2963 = vsel %vm2321, %v2957, 0.0
    %2964 = vadd.xlane.f32.xlu0 %v2963
    %v2965 = vpop.xlane.xlu0 %2964
    %v2968 = vlaneseq
    %v2969 = vshrl.u32 %v2968, 7
    %v2970 = vsub.s32 %v68, %v2969
    %v2971 = vrot.slane %v2962, %v2970
    %v2972 = vlaneseq
    %v2973 = vshrl.u32 %v2972, 7
    %v2974 = vsub.s32 %v68, %v2973
    %v2975 = vrot.slane %v2965, %v2974
    %v2976 = vsel %vm2338, %v2975, %v2971
    %v2978 = vsel %vm2341, %v2976, -inf
    %2979 = vmax.xlane.f32.xlu0 %v2978
    %v2980 = vpop.xlane.xlu0 %2979
    %v2982 = vlaneseq
    %v2983 = vshrl.u32 %v2982, 7
    %v2984 = vsub.s32 0, %v2983
    %v2985 = vrot.slane %v2980, %v2984
    %v2986 = vlaneseq
    %v2987 = vshrl.u32 %v2986, 7
    %v2988 = vsub.s32 1, %v2987
    %v2989 = vrot.slane %v2980, %v2988
    %v2992 = vsub.f32 %v2962, %v2985
    %v2993 = vsub.f32 %v2965, %v2989
    %v2994 = vmul.f32 %v2992, 1.442695
    %v2995 = vpow.pop %v2994
    %v2996 = vmul.f32 %v2993, 1.442695
    %v2997 = vpow.pop %v2996
    %3000 = vset.pattern.permute.xlu0 0
    %3001 = vperm.xlu0 %3000, %v2995
    %v3002 = vpop.permute.xlu0 %3001
    %3003 = vset.pattern.permute.xlu0 0
    %3004 = vperm.xlu0 %3003, %v2997
    %v3005 = vpop.permute.xlu0 %3004
    %v3006 = vlaneseq
    %v3007 = vshrl.u32 %v3006, 7
    %v3008 = vsub.s32 %v68, %v3007
    %v3009 = vrot.slane %v3002, %v3008
    %v3010 = vlaneseq
    %v3011 = vshrl.u32 %v3010, 7
    %v3012 = vsub.s32 %v68, %v3011
    %v3013 = vrot.slane %v3005, %v3012
    %v3014 = vsel %vm2338, %v3013, %v3009
    %v3016 = vsel %vm2341, %v3014, 0.0
    %3017 = vadd.xlane.f32.xlu0 %v3016
    %v3018 = vpop.xlane.xlu0 %3017
    %v3020 = vlaneseq
    %v3021 = vshrl.u32 %v3020, 7
    %v3022 = vsub.s32 0, %v3021
    %v3023 = vrot.slane %v3018, %v3022
    %v3024 = vlaneseq
    %v3025 = vshrl.u32 %v3024, 7
    %v3026 = vsub.s32 1, %v3025
    %v3027 = vrot.slane %v3018, %v3026
    %v3030 = vrcp.pop %v3023
    %v3031 = vmul.f32 %v2995, %v3030
    %v3032 = vrcp.pop %v3027
    %v3033 = vmul.f32 %v2997, %v3032
    %3035 = vset.pattern.permute.xlu0 0
    %3036 = vperm.xlu0 %3035, %v3031
    %v3037 = vpop.permute.xlu0 %3036
    %3040 = vset.pattern.permute.xlu0 0
    %3041 = vperm.xlu0 %3040, %v3033
    %v3042 = vpop.permute.xlu0 %3041
    %v3044 = vmul.f32 %v3037, %v1713
    %v3045 = vmul.f32 %v3042, %v1714
    %v3046 = vsel %vm2410, %v3044, 0.0
    %v3047 = vrot.slane %v3046, 4
    %v3048 = vadd.f32 %v3046, %v3047
    %v3049 = vrot.slane %v3048, 2
    %v3050 = vadd.f32 %v3048, %v3049
    %v3051 = vrot.slane %v3050, 1
    %v3052 = vadd.f32 %v3050, %v3051
    %v3053 = vsel %vm2410, %v3045, 0.0
    %v3054 = vrot.slane %v3053, 4
    %v3055 = vadd.f32 %v3053, %v3054
    %v3056 = vrot.slane %v3055, 2
    %v3057 = vadd.f32 %v3055, %v3056
    %v3058 = vrot.slane %v3057, 1
    %v3059 = vadd.f32 %v3057, %v3058
    %v3062 = vsel %vm2338, %v3059, %v3052
    %3063 = vrot.lane.b32.xlu0 %v3062, 8
    %v3064 = vpop.permute.xlu0 %3063
    %3066 = vrot.lane.b32.xlu0 %v2549, 24
    %v3067 = vpop.permute.xlu0 %3066
    %v3069 = vsel %vm581, %v2758, %v3064
    %v3070 = vsel %vm2435, %v3069, %v3067
    %v3072 = vsel %vm2444, %v3070, 0
    %3074 = vmatprep.subr.mxu0 0.0
    %3075 = vmatpush1.msra.mxu0 %v2437
    %3076 = vmatprep.subr.mxu0 0.0
    %3077 = vmatpush1.msra.mxu0 %v2438
    %3078 = vmatprep.subr.mxu0 0.0
    %3079 = vmatpush1.msra.mxu0 %v2439
    %3080 = vmatprep.subr.mxu0 0.0
    %3081 = vmatpush1.msra.mxu0 %v2440
    %3082 = vmatprep.subr.mxu0 0.0
    %3083 = vmatpush1.msra.mxu0 %v2441
    %3084 = vmatprep.subr.mxu0 0.0
    %3085 = vmatpush1.msra.mxu0 %v2442
    %3086 = vmatprep.subr.mxu0 0.0
    %3087 = vmatpush1.msra.mxu0 %v2443
    %3088 = vmatprep.subr.mxu0 0.0
    %3089 = vmatpush1.msra.mxu0 0.0
    %3090 = vmatprep.subr.mxu0 0.0
    %3091 = vmatpush1.msra.mxu0 0.0
    %3092 = vmatprep.subr.mxu0 0.0
    %3093 = vmatpush1.msra.mxu0 0.0
    %3094 = vmatprep.subr.mxu0 0.0
    %3095 = vmatpush1.msra.mxu0 0.0
    %3096 = vmatprep.subr.mxu0 0.0
    %3097 = vmatpush1.msra.mxu0 0.0
    %3098 = vmatprep.subr.mxu0 0.0
    %3099 = vmatpush1.msra.mxu0 0.0
    %3100 = vmatprep.subr.mxu0 0.0
    %3101 = vmatpush1.msra.mxu0 0.0
    %3102 = vmatprep.subr.mxu0 0.0
    %3103 = vmatpush1.msra.mxu0 0.0
    %3104 = vmatprep.subr.mxu0 0.0
    %3105 = vmatpush1.msra.mxu0 0.0
    %3106 = vmatprep.subr.mxu0 0.0
    %3107 = vmatpush1.msra.mxu0 0.0
    %3108 = vmatprep.subr.mxu0 0.0
    %3109 = vmatpush1.msra.mxu0 0.0
    %3110 = vmatprep.subr.mxu0 0.0
    %3111 = vmatpush1.msra.mxu0 0.0
    %3112 = vmatprep.subr.mxu0 0.0
    %3113 = vmatpush1.msra.mxu0 0.0
    %3114 = vmatprep.subr.mxu0 0.0
    %3115 = vmatpush1.msra.mxu0 0.0
    %3116 = vmatprep.subr.mxu0 0.0
    %3117 = vmatpush1.msra.mxu0 0.0
    %3118 = vmatprep.subr.mxu0 0.0
    %3119 = vmatpush1.msra.mxu0 0.0
    %3120 = vmatprep.subr.mxu0 0.0
    %3121 = vmatpush1.msra.mxu0 0.0
    %3122 = vmatprep.subr.mxu0 0.0
    %3123 = vmatpush1.msra.mxu0 0.0
    %3124 = vmatprep.subr.mxu0 0.0
    %3125 = vmatpush1.msra.mxu0 0.0
    %3126 = vmatprep.subr.mxu0 0.0
    %3127 = vmatpush1.msra.mxu0 0.0
    %3128 = vmatprep.subr.mxu0 0.0
    %3129 = vmatpush1.msra.mxu0 0.0
    %3130 = vmatprep.subr.mxu0 0.0
    %3131 = vmatpush1.msra.mxu0 0.0
    %3132 = vmatprep.subr.mxu0 0.0
    %3133 = vmatpush1.msra.mxu0 0.0
    %3134 = vmatprep.subr.mxu0 0.0
    %3135 = vmatpush1.msra.mxu0 0.0
    %3136 = vmatprep.subr.mxu0 0.0
    %3137 = vmatpush1.msra.mxu0 0.0
    %3138 = vmatprep.mubr.f32.mxu0 0.0
    %3139 = vmatmul.mubr.f32.gmra.mrb[0].mxu0 %v3072
    %v3140 = vpop.f32.mrb[0].mxu0
    %v3141 = vadd.f32 %v65, %v3140
    %v3142 = vpop.f32.mrb[0].mxu0
    %3143 = vdwg.mxu0
    %3145 = vrot.lane.b32.xlu0 %v3141, 80
    %v3146 = vpop.permute.xlu0 %3145
    %v3148 = vadd.f32 %v3141, %v3146
    %v3149 = vxor.u32 %v3148, 2147483648
    %v3150 = vmul.f32 %v3149, 1.442695
    %v3151 = vpow.pop %v3150
    %v3152 = vadd.f32 %v3151, 1.0
    %v3153 = vrcp.pop %v3152
    %v3154 = vmul.f32 1.0, %v3153
    %3155 = vrot.lane.b32.xlu0 %v3141, 48
    %v3156 = vpop.permute.xlu0 %3155
    %v3158 = vmul.f32 %v3154, %v3156
    %3160 = vrot.lane.b32.xlu0 %v3158, 32
    %v3161 = vpop.permute.xlu0 %3160
    %v3163 = vadd.f32 %v3141, %v3161
    %v3164 = vtanh.pop %v3163
    %v3165 = vsub.f32 1.0, %v3154
    %3167 = vrot.lane.b32.xlu0 %v3164, 112
    %v3168 = vpop.permute.xlu0 %3167
    %v3170 = vmul.f32 %v3165, %v3168
    %v3171 = vmul.f32 %v3154, %v2549
    %v3172 = vadd.f32 %v3170, %v3171
    %3174 = vrot.lane.b32.xlu0 %v3172, 112
    %v3175 = vpop.permute.xlu0 %3174
    %3177 = vrot.lane.b32.xlu0 %v3062, 16
    %v3178 = vpop.permute.xlu0 %3177
    %3181 = vrot.lane.b32.xlu0 %v2758, 48
    %v3182 = vpop.permute.xlu0 %3181
    %v3184 = vsel %vm83, %v3175, %v3178
    %v3185 = vsel %vm599, %v3184, %v3182
    %v3187 = vsel %vm2444, %v3185, 0
    %3189 = vmatprep.subr.mxu0 0.0
    %3190 = vmatpush1.msra.mxu0 %v2563
    %3191 = vmatprep.subr.mxu0 0.0
    %3192 = vmatpush1.msra.mxu0 %v2564
    %3193 = vmatprep.subr.mxu0 0.0
    %3194 = vmatpush1.msra.mxu0 %v2565
    %3195 = vmatprep.subr.mxu0 0.0
    %3196 = vmatpush1.msra.mxu0 %v2566
    %3197 = vmatprep.subr.mxu0 0.0
    %3198 = vmatpush1.msra.mxu0 %v2567
    %3199 = vmatprep.subr.mxu0 0.0
    %3200 = vmatpush1.msra.mxu0 %v2568
    %3201 = vmatprep.subr.mxu0 0.0
    %3202 = vmatpush1.msra.mxu0 %v2569
    %3203 = vmatprep.subr.mxu0 0.0
    %3204 = vmatpush1.msra.mxu0 0.0
    %3205 = vmatprep.subr.mxu0 0.0
    %3206 = vmatpush1.msra.mxu0 0.0
    %3207 = vmatprep.subr.mxu0 0.0
    %3208 = vmatpush1.msra.mxu0 0.0
    %3209 = vmatprep.subr.mxu0 0.0
    %3210 = vmatpush1.msra.mxu0 0.0
    %3211 = vmatprep.subr.mxu0 0.0
    %3212 = vmatpush1.msra.mxu0 0.0
    %3213 = vmatprep.subr.mxu0 0.0
    %3214 = vmatpush1.msra.mxu0 0.0
    %3215 = vmatprep.subr.mxu0 0.0
    %3216 = vmatpush1.msra.mxu0 0.0
    %3217 = vmatprep.subr.mxu0 0.0
    %3218 = vmatpush1.msra.mxu0 0.0
    %3219 = vmatprep.subr.mxu0 0.0
    %3220 = vmatpush1.msra.mxu0 0.0
    %3221 = vmatprep.subr.mxu0 0.0
    %3222 = vmatpush1.msra.mxu0 0.0
    %3223 = vmatprep.subr.mxu0 0.0
    %3224 = vmatpush1.msra.mxu0 0.0
    %3225 = vmatprep.subr.mxu0 0.0
    %3226 = vmatpush1.msra.mxu0 0.0
    %3227 = vmatprep.subr.mxu0 0.0
    %3228 = vmatpush1.msra.mxu0 0.0
    %3229 = vmatprep.subr.mxu0 0.0
    %3230 = vmatpush1.msra.mxu0 0.0
    %3231 = vmatprep.subr.mxu0 0.0
    %3232 = vmatpush1.msra.mxu0 0.0
    %3233 = vmatprep.subr.mxu0 0.0
    %3234 = vmatpush1.msra.mxu0 0.0
    %3235 = vmatprep.subr.mxu0 0.0
    %3236 = vmatpush1.msra.mxu0 0.0
    %3237 = vmatprep.subr.mxu0 0.0
    %3238 = vmatpush1.msra.mxu0 0.0
    %3239 = vmatprep.subr.mxu0 0.0
    %3240 = vmatpush1.msra.mxu0 0.0
    %3241 = vmatprep.subr.mxu0 0.0
    %3242 = vmatpush1.msra.mxu0 0.0
    %3243 = vmatprep.subr.mxu0 0.0
    %3244 = vmatpush1.msra.mxu0 0.0
    %3245 = vmatprep.subr.mxu0 0.0
    %3246 = vmatpush1.msra.mxu0 0.0
    %3247 = vmatprep.subr.mxu0 0.0
    %3248 = vmatpush1.msra.mxu0 0.0
    %3249 = vmatprep.subr.mxu0 0.0
    %3250 = vmatpush1.msra.mxu0 0.0
    %3251 = vmatprep.subr.mxu0 0.0
    %3252 = vmatpush1.msra.mxu0 0.0
    %3253 = vmatprep.mubr.f32.mxu0 0.0
    %3254 = vmatmul.mubr.f32.gmra.mrb[0].mxu0 %v3187
    %v3255 = vpop.f32.mrb[0].mxu0
    %v3256 = vadd.f32 %v66, %v3255
    %v3257 = vpop.f32.mrb[0].mxu0
    %3258 = vdwg.mxu0
    %v3259 = vsel %vm2643, %v3256, -inf
    %3260 = vmax.xlane.f32.xlu0 %v3259
    %v3261 = vpop.xlane.xlu0 %3260
    %vm3262 = vcmp.eq.f32.partialorder %v3256, %v3261
    %v3263 = vsel %vm3262, %v68, 16
    %v3264 = vsel %vm2643, %v3263, 2147483647
    %v3265 = vand.u32 %v3264, 65535
    %v3266 = vshra.s32 %v3264, 16
    %v3267 = vcvt.s32.f32 %v3265
    %v3268 = vcvt.s32.f32 %v3266
    %3269 = vmin.xlane.f32.xlu0 %v3268
    %v3270 = vpop.xlane.xlu0 %3269
    %vm3271 = vcmp.eq.f32.partialorder %v3268, %v3270
    %v3272 = vsel %vm3271, %v3267, inf
    %3273 = vmin.xlane.f32.xlu0 %v3272
    %v3274 = vpop.xlane.xlu0 %3273
    %v3275 = vcvt.f32.s32 %v3274
    %v3276 = vcvt.f32.s32 %v3270
    %v3277 = vshll.u32 %v3276, 16
    %v3278 = vadd.s32 %v3277, %v3275
    %vm3279 = vcmp.eq.s32.totalorder %v68, %v3278
    %v3280 = vsel %vm3279, 1, 0
    %v3281 = vcvt.s32.f32 %v3280
    %s3282 = sld [smem:[#allocation5 + $0x1]]
    %p3283 = scmp.eq.s32.totalorder %s3282, 1
    %s3284 = scalar_select %p3283, 1, 0
    %s3285 = scvt.s32.f32 %s3284
    %s3286 = sld [smem:[#allocation4 + $0x100]]
    %v3287 = vstv %s3286
    %vm3288 = vcmp.eq.s32.totalorder %v68, %v3287
    %v3289 = vsel %vm3288, 1, 0
    %v3290 = vcvt.s32.f32 %v3289
    %s3291 = sld [smem:[#allocation4 + $0x101]]
    %v3292 = vstv %s3291
    %vm3293 = vcmp.eq.s32.totalorder %v68, %v3292
    %v3294 = vsel %vm3293, 1, 0
    %v3295 = vcvt.s32.f32 %v3294
    %v3296 = vsel %vm79, %v3290, %v3295
    %v3297 = vstv %s3285
    %v3298 = vmul.f32 %v3297, %v3296
    %s3299 = ssub.f32 1.0, %s3285
    %v3300 = vstv %s3299
    %v3301 = vmul.f32 %v3300, %v3281
    %v3302 = vadd.f32 %v3298, %v3301
    %v3304 = vsel %vm83, %v3302, 0
    %3306 = vmatprep.subr.mxu0 0.0
    %3307 = vmatpush1.msra.mxu0 %v2024
    %3308 = vmatprep.subr.mxu0 0.0
    %3309 = vmatpush1.msra.mxu0 %v2025
    %3310 = vmatprep.subr.mxu0 0.0
    %3311 = vmatpush1.msra.mxu0 0.0
    %3312 = vmatprep.subr.mxu0 0.0
    %3313 = vmatpush1.msra.mxu0 0.0
    %3314 = vmatprep.subr.mxu0 0.0
    %3315 = vmatpush1.msra.mxu0 0.0
    %3316 = vmatprep.subr.mxu0 0.0
    %3317 = vmatpush1.msra.mxu0 0.0
    %3318 = vmatprep.subr.mxu0 0.0
    %3319 = vmatpush1.msra.mxu0 0.0
    %3320 = vmatprep.subr.mxu0 0.0
    %3321 = vmatpush1.msra.mxu0 0.0
    %3322 = vmatprep.subr.mxu0 0.0
    %3323 = vmatpush1.msra.mxu0 0.0
    %3324 = vmatprep.subr.mxu0 0.0
    %3325 = vmatpush1.msra.mxu0 0.0
    %3326 = vmatprep.subr.mxu0 0.0
    %3327 = vmatpush1.msra.mxu0 0.0
    %3328 = vmatprep.subr.mxu0 0.0
    %3329 = vmatpush1.msra.mxu0 0.0
    %3330 = vmatprep.subr.mxu0 0.0
    %3331 = vmatpush1.msra.mxu0 0.0
    %3332 = vmatprep.subr.mxu0 0.0
    %3333 = vmatpush1.msra.mxu0 0.0
    %3334 = vmatprep.subr.mxu0 0.0
    %3335 = vmatpush1.msra.mxu0 0.0
    %3336 = vmatprep.subr.mxu0 0.0
    %3337 = vmatpush1.msra.mxu0 0.0
    %3338 = vmatprep.subr.mxu0 0.0
    %3339 = vmatpush1.msra.mxu0 0.0
    %3340 = vmatprep.subr.mxu0 0.0
    %3341 = vmatpush1.msra.mxu0 0.0
    %3342 = vmatprep.subr.mxu0 0.0
    %3343 = vmatpush1.msra.mxu0 0.0
    %3344 = vmatprep.subr.mxu0 0.0
    %3345 = vmatpush1.msra.mxu0 0.0
    %3346 = vmatprep.subr.mxu0 0.0
    %3347 = vmatpush1.msra.mxu0 0.0
    %3348 = vmatprep.subr.mxu0 0.0
    %3349 = vmatpush1.msra.mxu0 0.0
    %3350 = vmatprep.subr.mxu0 0.0
    %3351 = vmatpush1.msra.mxu0 0.0
    %3352 = vmatprep.subr.mxu0 0.0
    %3353 = vmatpush1.msra.mxu0 0.0
    %3354 = vmatprep.subr.mxu0 0.0
    %3355 = vmatpush1.msra.mxu0 0.0
    %3356 = vmatprep.subr.mxu0 0.0
    %3357 = vmatpush1.msra.mxu0 0.0
    %3358 = vmatprep.subr.mxu0 0.0
    %3359 = vmatpush1.msra.mxu0 0.0
    %3360 = vmatprep.subr.mxu0 0.0
    %3361 = vmatpush1.msra.mxu0 0.0
    %3362 = vmatprep.subr.mxu0 0.0
    %3363 = vmatpush1.msra.mxu0 0.0
    %3364 = vmatprep.subr.mxu0 0.0
    %3365 = vmatpush1.msra.mxu0 0.0
    %3366 = vmatprep.subr.mxu0 0.0
    %3367 = vmatpush1.msra.mxu0 0.0
    %3368 = vmatprep.subr.mxu0 0.0
    %3369 = vmatpush1.msra.mxu0 0.0
    %3370 = vmatprep.mubr.f32.mxu0 0.0
    %3371 = vmatmul.mubr.f32.gmra.mrb[0].mxu0 %v3304
    %v3372 = vpop.f32.mrb[0].mxu0
    %v3373 = vadd.f32 0.0, %v3372
    %v3374 = vpop.f32.mrb[0].mxu0
    %3375 = vdwg.mxu0
    %v3376 = vsel %vm83, %v3175, 0
    %3378 = vmatprep.subr.mxu0 0.0
    %3379 = vmatpush1.msra.mxu0 %v2099
    %3380 = vmatprep.subr.mxu0 0.0
    %3381 = vmatpush1.msra.mxu0 %v2100
    %3382 = vmatprep.subr.mxu0 0.0
    %3383 = vmatpush1.msra.mxu0 0.0
    %3384 = vmatprep.subr.mxu0 0.0
    %3385 = vmatpush1.msra.mxu0 0.0
    %3386 = vmatprep.subr.mxu0 0.0
    %3387 = vmatpush1.msra.mxu0 0.0
    %3388 = vmatprep.subr.mxu0 0.0
    %3389 = vmatpush1.msra.mxu0 0.0
    %3390 = vmatprep.subr.mxu0 0.0
    %3391 = vmatpush1.msra.mxu0 0.0
    %3392 = vmatprep.subr.mxu0 0.0
    %3393 = vmatpush1.msra.mxu0 0.0
    %3394 = vmatprep.subr.mxu0 0.0
    %3395 = vmatpush1.msra.mxu0 0.0
    %3396 = vmatprep.subr.mxu0 0.0
    %3397 = vmatpush1.msra.mxu0 0.0
    %3398 = vmatprep.subr.mxu0 0.0
    %3399 = vmatpush1.msra.mxu0 0.0
    %3400 = vmatprep.subr.mxu0 0.0
    %3401 = vmatpush1.msra.mxu0 0.0
    %3402 = vmatprep.subr.mxu0 0.0
    %3403 = vmatpush1.msra.mxu0 0.0
    %3404 = vmatprep.subr.mxu0 0.0
    %3405 = vmatpush1.msra.mxu0 0.0
    %3406 = vmatprep.subr.mxu0 0.0
    %3407 = vmatpush1.msra.mxu0 0.0
    %3408 = vmatprep.subr.mxu0 0.0
    %3409 = vmatpush1.msra.mxu0 0.0
    %3410 = vmatprep.subr.mxu0 0.0
    %3411 = vmatpush1.msra.mxu0 0.0
    %3412 = vmatprep.subr.mxu0 0.0
    %3413 = vmatpush1.msra.mxu0 0.0
    %3414 = vmatprep.subr.mxu0 0.0
    %3415 = vmatpush1.msra.mxu0 0.0
    %3416 = vmatprep.subr.mxu0 0.0
    %3417 = vmatpush1.msra.mxu0 0.0
    %3418 = vmatprep.subr.mxu0 0.0
    %3419 = vmatpush1.msra.mxu0 0.0
    %3420 = vmatprep.subr.mxu0 0.0
    %3421 = vmatpush1.msra.mxu0 0.0
    %3422 = vmatprep.subr.mxu0 0.0
    %3423 = vmatpush1.msra.mxu0 0.0
    %3424 = vmatprep.subr.mxu0 0.0
    %3425 = vmatpush1.msra.mxu0 0.0
    %3426 = vmatprep.subr.mxu0 0.0
    %3427 = vmatpush1.msra.mxu0 0.0
    %3428 = vmatprep.subr.mxu0 0.0
    %3429 = vmatpush1.msra.mxu0 0.0
    %3430 = vmatprep.subr.mxu0 0.0
    %3431 = vmatpush1.msra.mxu0 0.0
    %3432 = vmatprep.subr.mxu0 0.0
    %3433 = vmatpush1.msra.mxu0 0.0
    %3434 = vmatprep.subr.mxu0 0.0
    %3435 = vmatpush1.msra.mxu0 0.0
    %3436 = vmatprep.subr.mxu0 0.0
    %3437 = vmatpush1.msra.mxu0 0.0
    %3438 = vmatprep.subr.mxu0 0.0
    %3439 = vmatpush1.msra.mxu0 0.0
    %3440 = vmatprep.subr.mxu0 0.0
    %3441 = vmatpush1.msra.mxu0 0.0
    %3442 = vmatprep.mubr.f32.mxu0 0.0
    %3443 = vmatmul.mubr.f32.gmra.mrb[0].mxu0 %v3376
    %v3444 = vpop.f32.mrb[0].mxu0
    %v3445 = vadd.f32 0.0, %v3444
    %v3446 = vpop.f32.mrb[0].mxu0
    %3447 = vdwg.mxu0
    %v3450 = vunpack.c.l.s4 1966171168
    %v3451 = vunpack.c.0.s8 %v3450
    %v3452 = vlaneseq
    %v3453 = vshrl.u32 %v3452, 7
    %v3454 = vsub.s32 %v3451, %v3453
    %v3455 = vrot.slane %v3445, %v3454
    %v3456 = vcombine.high %v3455, %v3455
    %v3458 = vunpack.c.l.s4 1966171168
    %v3459 = vunpack.c.0.s8 %v3458
    %v3460 = vlaneseq
    %v3461 = vshrl.u32 %v3460, 7
    %v3462 = vsub.s32 %v3459, %v3461
    %v3463 = vrot.slane %v3455, %v3462
    %v3465 = vunpack.c.l.s4 1966171168
    %v3466 = vunpack.c.0.s8 %v3465
    %v3467 = vlaneseq
    %v3468 = vshrl.u32 %v3467, 7
    %v3469 = vsub.s32 %v3466, %v3468
    %v3470 = vrot.slane %v3456, %v3469
    %v3471 = vlaneseq
    %v3472 = vshrl.u32 %v3471, 7
    %v3473 = vsub.s32 0, %v3472
    %v3474 = vrot.slane %v3463, %v3473
    %v3475 = vlaneseq
    %v3476 = vshrl.u32 %v3475, 7
    %v3477 = vsub.s32 0, %v3476
    %v3478 = vrot.slane %v3470, %v3477
    %v3479 = vcombine.high %v3474, %v3474
    %v3481 = vunpack.c.l.s4 1983009808
    %v3482 = vunpack.c.0.s8 %v3481
    %v3483 = vlaneseq
    %v3484 = vshrl.u32 %v3483, 7
    %v3485 = vsub.s32 %v3482, %v3484
    %v3486 = vrot.slane %v3474, %v3485
    %v3488 = vunpack.c.l.s4 1983009808
    %v3489 = vunpack.c.0.s8 %v3488
    %v3490 = vlaneseq
    %v3491 = vshrl.u32 %v3490, 7
    %v3492 = vsub.s32 %v3489, %v3491
    %v3493 = vrot.slane %v3479, %v3492
    %v3494 = vcombine.high %v3486, %v3486
    %v3495 = vcombine.high %v3478, %v3478
    %v3497 = vunpack.c.l.s4 1983009808
    %v3498 = vunpack.c.0.s8 %v3497
    %v3499 = vlaneseq
    %v3500 = vshrl.u32 %v3499, 7
    %v3501 = vsub.s32 %v3498, %v3500
    %v3502 = vrot.slane %v3478, %v3501
    %v3504 = vunpack.c.l.s4 1983009808
    %v3505 = vunpack.c.0.s8 %v3504
    %v3506 = vlaneseq
    %v3507 = vshrl.u32 %v3506, 7
    %v3508 = vsub.s32 %v3505, %v3507
    %v3509 = vrot.slane %v3495, %v3508
    %v3510 = vcombine.high %v3502, %v3502
    %v3517 = vadd.f32 %v1989, %v3486
    %v3518 = vadd.f32 %v1997, %v3494
    %v3519 = vadd.f32 %v1996, %v3493
    %v3520 = vadd.f32 %v1998, %v3502
    %v3521 = vadd.f32 %v2005, %v3510
    %v3522 = vadd.f32 %v2006, %v3509
    %v3523 = vtanh.pop %v3517
    %v3524 = vtanh.pop %v3518
    %v3525 = vtanh.pop %v3519
    %v3526 = vtanh.pop %v3520
    %v3527 = vtanh.pop %v3521
    %v3528 = vtanh.pop %v3522
    %v3529 = vmul.f32 %v3523, %v2263
    %v3530 = vmul.f32 %v3524, %v2271
    %v3531 = vmul.f32 %v3525, %v2270
    %v3532 = vmul.f32 %v3526, %v2263
    %v3533 = vmul.f32 %v3527, %v2271
    %v3534 = vmul.f32 %v3528, %v2270
    %v3541 = vcombine.low %v3529, %v3530
    %v3543 = vunpack.c.l.s4 1983009808
    %v3544 = vunpack.c.0.s8 %v3543
    %v3545 = vlaneseq
    %v3546 = vshrl.u32 %v3545, 7
    %v3547 = vsub.s32 %v3544, %v3546
    %v3548 = vrot.slane %v3541, %v3547
    %v3550 = vunpack.c.l.s4 1983009808
    %v3551 = vunpack.c.0.s8 %v3550
    %v3552 = vlaneseq
    %v3553 = vshrl.u32 %v3552, 7
    %v3554 = vsub.s32 %v3551, %v3553
    %v3555 = vrot.slane %v3531, %v3554
    %v3556 = vcombine.low %v3548, %v3555
    %v3557 = vcombine.low %v3532, %v3533
    %v3559 = vunpack.c.l.s4 1983009808
    %v3560 = vunpack.c.0.s8 %v3559
    %v3561 = vlaneseq
    %v3562 = vshrl.u32 %v3561, 7
    %v3563 = vsub.s32 %v3560, %v3562
    %v3564 = vrot.slane %v3557, %v3563
    %v3566 = vunpack.c.l.s4 1983009808
    %v3567 = vunpack.c.0.s8 %v3566
    %v3568 = vlaneseq
    %v3569 = vshrl.u32 %v3568, 7
    %v3570 = vsub.s32 %v3567, %v3569
    %v3571 = vrot.slane %v3534, %v3570
    %v3572 = vcombine.low %v3564, %v3571
    %v3575 = vsel %vm2321, %v3556, 0.0
    %3576 = vadd.xlane.f32.xlu0 %v3575
    %v3577 = vpop.xlane.xlu0 %3576
    %v3578 = vsel %vm2321, %v3572, 0.0
    %3579 = vadd.xlane.f32.xlu0 %v3578
    %v3580 = vpop.xlane.xlu0 %3579
    %v3583 = vlaneseq
    %v3584 = vshrl.u32 %v3583, 7
    %v3585 = vsub.s32 %v68, %v3584
    %v3586 = vrot.slane %v3577, %v3585
    %v3587 = vlaneseq
    %v3588 = vshrl.u32 %v3587, 7
    %v3589 = vsub.s32 %v68, %v3588
    %v3590 = vrot.slane %v3580, %v3589
    %v3591 = vsel %vm2338, %v3590, %v3586
    %v3593 = vsel %vm2341, %v3591, -inf
    %3594 = vmax.xlane.f32.xlu0 %v3593
    %v3595 = vpop.xlane.xlu0 %3594
    %v3597 = vlaneseq
    %v3598 = vshrl.u32 %v3597, 7
    %v3599 = vsub.s32 0, %v3598
    %v3600 = vrot.slane %v3595, %v3599
    %v3601 = vlaneseq
    %v3602 = vshrl.u32 %v3601, 7
    %v3603 = vsub.s32 1, %v3602
    %v3604 = vrot.slane %v3595, %v3603
    %v3607 = vsub.f32 %v3577, %v3600
    %v3608 = vsub.f32 %v3580, %v3604
    %v3609 = vmul.f32 %v3607, 1.442695
    %v3610 = vpow.pop %v3609
    %v3611 = vmul.f32 %v3608, 1.442695
    %v3612 = vpow.pop %v3611
    %3615 = vset.pattern.permute.xlu0 0
    %3616 = vperm.xlu0 %3615, %v3610
    %v3617 = vpop.permute.xlu0 %3616
    %3618 = vset.pattern.permute.xlu0 0
    %3619 = vperm.xlu0 %3618, %v3612
    %v3620 = vpop.permute.xlu0 %3619
    %v3621 = vlaneseq
    %v3622 = vshrl.u32 %v3621, 7
    %v3623 = vsub.s32 %v68, %v3622
    %v3624 = vrot.slane %v3617, %v3623
    %v3625 = vlaneseq
    %v3626 = vshrl.u32 %v3625, 7
    %v3627 = vsub.s32 %v68, %v3626
    %v3628 = vrot.slane %v3620, %v3627
    %v3629 = vsel %vm2338, %v3628, %v3624
    %v3631 = vsel %vm2341, %v3629, 0.0
    %3632 = vadd.xlane.f32.xlu0 %v3631
    %v3633 = vpop.xlane.xlu0 %3632
    %v3635 = vlaneseq
    %v3636 = vshrl.u32 %v3635, 7
    %v3637 = vsub.s32 0, %v3636
    %v3638 = vrot.slane %v3633, %v3637
    %v3639 = vlaneseq
    %v3640 = vshrl.u32 %v3639, 7
    %v3641 = vsub.s32 1, %v3640
    %v3642 = vrot.slane %v3633, %v3641
    %v3645 = vrcp.pop %v3638
    %v3646 = vmul.f32 %v3610, %v3645
    %v3647 = vrcp.pop %v3642
    %v3648 = vmul.f32 %v3612, %v3647
    %3650 = vset.pattern.permute.xlu0 0
    %3651 = vperm.xlu0 %3650, %v3646
    %v3652 = vpop.permute.xlu0 %3651
    %3655 = vset.pattern.permute.xlu0 0
    %3656 = vperm.xlu0 %3655, %v3648
    %v3657 = vpop.permute.xlu0 %3656
    %v3659 = vmul.f32 %v3652, %v1713
    %v3660 = vmul.f32 %v3657, %v1714
    %v3661 = vsel %vm2410, %v3659, 0.0
    %v3662 = vrot.slane %v3661, 4
    %v3663 = vadd.f32 %v3661, %v3662
    %v3664 = vrot.slane %v3663, 2
    %v3665 = vadd.f32 %v3663, %v3664
    %v3666 = vrot.slane %v3665, 1
    %v3667 = vadd.f32 %v3665, %v3666
    %v3668 = vsel %vm2410, %v3660, 0.0
    %v3669 = vrot.slane %v3668, 4
    %v3670 = vadd.f32 %v3668, %v3669
    %v3671 = vrot.slane %v3670, 2
    %v3672 = vadd.f32 %v3670, %v3671
    %v3673 = vrot.slane %v3672, 1
    %v3674 = vadd.f32 %v3672, %v3673
    %v3677 = vsel %vm2338, %v3674, %v3667
    %3678 = vrot.lane.b32.xlu0 %v3677, 8
    %v3679 = vpop.permute.xlu0 %3678
    %3681 = vrot.lane.b32.xlu0 %v3172, 24
    %v3682 = vpop.permute.xlu0 %3681
    %v3684 = vsel %vm581, %v3373, %v3679
    %v3685 = vsel %vm2435, %v3684, %v3682
    %v3687 = vsel %vm2444, %v3685, 0
    %3689 = vmatprep.subr.mxu0 0.0
    %3690 = vmatpush1.msra.mxu0 %v2437
    %3691 = vmatprep.subr.mxu0 0.0
    %3692 = vmatpush1.msra.mxu0 %v2438
    %3693 = vmatprep.subr.mxu0 0.0
    %3694 = vmatpush1.msra.mxu0 %v2439
    %3695 = vmatprep.subr.mxu0 0.0
    %3696 = vmatpush1.msra.mxu0 %v2440
    %3697 = vmatprep.subr.mxu0 0.0
    %3698 = vmatpush1.msra.mxu0 %v2441
    %3699 = vmatprep.subr.mxu0 0.0
    %3700 = vmatpush1.msra.mxu0 %v2442
    %3701 = vmatprep.subr.mxu0 0.0
    %3702 = vmatpush1.msra.mxu0 %v2443
    %3703 = vmatprep.subr.mxu0 0.0
    %3704 = vmatpush1.msra.mxu0 0.0
    %3705 = vmatprep.subr.mxu0 0.0
    %3706 = vmatpush1.msra.mxu0 0.0
    %3707 = vmatprep.subr.mxu0 0.0
    %3708 = vmatpush1.msra.mxu0 0.0
    %3709 = vmatprep.subr.mxu0 0.0
    %3710 = vmatpush1.msra.mxu0 0.0
    %3711 = vmatprep.subr.mxu0 0.0
    %3712 = vmatpush1.msra.mxu0 0.0
    %3713 = vmatprep.subr.mxu0 0.0
    %3714 = vmatpush1.msra.mxu0 0.0
    %3715 = vmatprep.subr.mxu0 0.0
    %3716 = vmatpush1.msra.mxu0 0.0
    %3717 = vmatprep.subr.mxu0 0.0
    %3718 = vmatpush1.msra.mxu0 0.0
    %3719 = vmatprep.subr.mxu0 0.0
    %3720 = vmatpush1.msra.mxu0 0.0
    %3721 = vmatprep.subr.mxu0 0.0
    %3722 = vmatpush1.msra.mxu0 0.0
    %3723 = vmatprep.subr.mxu0 0.0
    %3724 = vmatpush1.msra.mxu0 0.0
    %3725 = vmatprep.subr.mxu0 0.0
    %3726 = vmatpush1.msra.mxu0 0.0
    %3727 = vmatprep.subr.mxu0 0.0
    %3728 = vmatpush1.msra.mxu0 0.0
    %3729 = vmatprep.subr.mxu0 0.0
    %3730 = vmatpush1.msra.mxu0 0.0
    %3731 = vmatprep.subr.mxu0 0.0
    %3732 = vmatpush1.msra.mxu0 0.0
    %3733 = vmatprep.subr.mxu0 0.0
    %3734 = vmatpush1.msra.mxu0 0.0
    %3735 = vmatprep.subr.mxu0 0.0
    %3736 = vmatpush1.msra.mxu0 0.0
    %3737 = vmatprep.subr.mxu0 0.0
    %3738 = vmatpush1.msra.mxu0 0.0
    %3739 = vmatprep.subr.mxu0 0.0
    %3740 = vmatpush1.msra.mxu0 0.0
    %3741 = vmatprep.subr.mxu0 0.0
    %3742 = vmatpush1.msra.mxu0 0.0
    %3743 = vmatprep.subr.mxu0 0.0
    %3744 = vmatpush1.msra.mxu0 0.0
    %3745 = vmatprep.subr.mxu0 0.0
    %3746 = vmatpush1.msra.mxu0 0.0
    %3747 = vmatprep.subr.mxu0 0.0
    %3748 = vmatpush1.msra.mxu0 0.0
    %3749 = vmatprep.subr.mxu0 0.0
    %3750 = vmatpush1.msra.mxu0 0.0
    %3751 = vmatprep.subr.mxu0 0.0
    %3752 = vmatpush1.msra.mxu0 0.0
    %3753 = vmatprep.mubr.f32.mxu0 0.0
    %3754 = vmatmul.mubr.f32.gmra.mrb[0].mxu0 %v3687
    %v3755 = vpop.f32.mrb[0].mxu0
    %v3756 = vadd.f32 %v65, %v3755
    %v3757 = vpop.f32.mrb[0].mxu0
    %3758 = vdwg.mxu0
    %3760 = vrot.lane.b32.xlu0 %v3756, 80
    %v3761 = vpop.permute.xlu0 %3760
    %v3763 = vadd.f32 %v3756, %v3761
    %v3764 = vxor.u32 %v3763, 2147483648
    %v3765 = vmul.f32 %v3764, 1.442695
    %v3766 = vpow.pop %v3765
    %v3767 = vadd.f32 %v3766, 1.0
    %v3768 = vrcp.pop %v3767
    %v3769 = vmul.f32 1.0, %v3768
    %3770 = vrot.lane.b32.xlu0 %v3756, 48
    %v3771 = vpop.permute.xlu0 %3770
    %v3773 = vmul.f32 %v3769, %v3771
    %3775 = vrot.lane.b32.xlu0 %v3773, 32
    %v3776 = vpop.permute.xlu0 %3775
    %v3778 = vadd.f32 %v3756, %v3776
    %v3779 = vtanh.pop %v3778
    %v3780 = vsub.f32 1.0, %v3769
    %3782 = vrot.lane.b32.xlu0 %v3779, 112
    %v3783 = vpop.permute.xlu0 %3782
    %v3785 = vmul.f32 %v3780, %v3783
    %v3786 = vmul.f32 %v3769, %v3172
    %v3787 = vadd.f32 %v3785, %v3786
    %3789 = vrot.lane.b32.xlu0 %v3787, 112
    %v3790 = vpop.permute.xlu0 %3789
    %3792 = vrot.lane.b32.xlu0 %v3677, 16
    %v3793 = vpop.permute.xlu0 %3792
    %3796 = vrot.lane.b32.xlu0 %v3373, 48
    %v3797 = vpop.permute.xlu0 %3796
    %v3799 = vsel %vm83, %v3790, %v3793
    %v3800 = vsel %vm599, %v3799, %v3797
    %v3802 = vsel %vm2444, %v3800, 0
    %3804 = vmatprep.subr.mxu0 0.0
    %3805 = vmatpush1.msra.mxu0 %v2563
    %3806 = vmatprep.subr.mxu0 0.0
    %3807 = vmatpush1.msra.mxu0 %v2564
    %3808 = vmatprep.subr.mxu0 0.0
    %3809 = vmatpush1.msra.mxu0 %v2565
    %3810 = vmatprep.subr.mxu0 0.0
    %3811 = vmatpush1.msra.mxu0 %v2566
    %3812 = vmatprep.subr.mxu0 0.0
    %3813 = vmatpush1.msra.mxu0 %v2567
    %3814 = vmatprep.subr.mxu0 0.0
    %3815 = vmatpush1.msra.mxu0 %v2568
    %3816 = vmatprep.subr.mxu0 0.0
    %3817 = vmatpush1.msra.mxu0 %v2569
    %3818 = vmatprep.subr.mxu0 0.0
    %3819 = vmatpush1.msra.mxu0 0.0
    %3820 = vmatprep.subr.mxu0 0.0
    %3821 = vmatpush1.msra.mxu0 0.0
    %3822 = vmatprep.subr.mxu0 0.0
    %3823 = vmatpush1.msra.mxu0 0.0
    %3824 = vmatprep.subr.mxu0 0.0
    %3825 = vmatpush1.msra.mxu0 0.0
    %3826 = vmatprep.subr.mxu0 0.0
    %3827 = vmatpush1.msra.mxu0 0.0
    %3828 = vmatprep.subr.mxu0 0.0
    %3829 = vmatpush1.msra.mxu0 0.0
    %3830 = vmatprep.subr.mxu0 0.0
    %3831 = vmatpush1.msra.mxu0 0.0
    %3832 = vmatprep.subr.mxu0 0.0
    %3833 = vmatpush1.msra.mxu0 0.0
    %3834 = vmatprep.subr.mxu0 0.0
    %3835 = vmatpush1.msra.mxu0 0.0
    %3836 = vmatprep.subr.mxu0 0.0
    %3837 = vmatpush1.msra.mxu0 0.0
    %3838 = vmatprep.subr.mxu0 0.0
    %3839 = vmatpush1.msra.mxu0 0.0
    %3840 = vmatprep.subr.mxu0 0.0
    %3841 = vmatpush1.msra.mxu0 0.0
    %3842 = vmatprep.subr.mxu0 0.0
    %3843 = vmatpush1.msra.mxu0 0.0
    %3844 = vmatprep.subr.mxu0 0.0
    %3845 = vmatpush1.msra.mxu0 0.0
    %3846 = vmatprep.subr.mxu0 0.0
    %3847 = vmatpush1.msra.mxu0 0.0
    %3848 = vmatprep.subr.mxu0 0.0
    %3849 = vmatpush1.msra.mxu0 0.0
    %3850 = vmatprep.subr.mxu0 0.0
    %3851 = vmatpush1.msra.mxu0 0.0
    %3852 = vmatprep.subr.mxu0 0.0
    %3853 = vmatpush1.msra.mxu0 0.0
    %3854 = vmatprep.subr.mxu0 0.0
    %3855 = vmatpush1.msra.mxu0 0.0
    %3856 = vmatprep.subr.mxu0 0.0
    %3857 = vmatpush1.msra.mxu0 0.0
    %3858 = vmatprep.subr.mxu0 0.0
    %3859 = vmatpush1.msra.mxu0 0.0
    %3860 = vmatprep.subr.mxu0 0.0
    %3861 = vmatpush1.msra.mxu0 0.0
    %3862 = vmatprep.subr.mxu0 0.0
    %3863 = vmatpush1.msra.mxu0 0.0
    %3864 = vmatprep.subr.mxu0 0.0
    %3865 = vmatpush1.msra.mxu0 0.0
    %3866 = vmatprep.subr.mxu0 0.0
    %3867 = vmatpush1.msra.mxu0 0.0
    %3868 = vmatprep.mubr.f32.mxu0 0.0
    %3869 = vmatmul.mubr.f32.gmra.mrb[0].mxu0 %v3802
    %v3870 = vpop.f32.mrb[0].mxu0
    %v3871 = vadd.f32 %v66, %v3870
    %v3872 = vpop.f32.mrb[0].mxu0
    %3873 = vdwg.mxu0
    %v3874 = vsel %vm2643, %v3871, -inf
    %3875 = vmax.xlane.f32.xlu0 %v3874
    %v3876 = vpop.xlane.xlu0 %3875
    %vm3877 = vcmp.eq.f32.partialorder %v3871, %v3876
    %v3878 = vsel %vm3877, %v68, 16
    %v3879 = vsel %vm2643, %v3878, 2147483647
    %v3880 = vand.u32 %v3879, 65535
    %v3881 = vshra.s32 %v3879, 16
    %v3882 = vcvt.s32.f32 %v3880
    %v3883 = vcvt.s32.f32 %v3881
    %3884 = vmin.xlane.f32.xlu0 %v3883
    %v3885 = vpop.xlane.xlu0 %3884
    %vm3886 = vcmp.eq.f32.partialorder %v3883, %v3885
    %v3887 = vsel %vm3886, %v3882, inf
    %3888 = vmin.xlane.f32.xlu0 %v3887
    %v3889 = vpop.xlane.xlu0 %3888
    %v3890 = vcvt.f32.s32 %v3889
    %v3891 = vcvt.f32.s32 %v3885
    %v3892 = vshll.u32 %v3891, 16
    %v3893 = vadd.s32 %v3892, %v3890
    %vm3894 = vcmp.eq.s32.totalorder %v68, %v3893
    %v3895 = vsel %vm3894, 1, 0
    %v3896 = vcvt.s32.f32 %v3895
    %s3897 = sld [smem:[#allocation5 + $0x2]]
    %p3898 = scmp.eq.s32.totalorder %s3897, 1
    %s3899 = scalar_select %p3898, 1, 0
    %s3900 = scvt.s32.f32 %s3899
    %s3901 = sld [smem:[#allocation4 + $0x180]]
    %v3902 = vstv %s3901
    %vm3903 = vcmp.eq.s32.totalorder %v68, %v3902
    %v3904 = vsel %vm3903, 1, 0
    %v3905 = vcvt.s32.f32 %v3904
    %s3906 = sld [smem:[#allocation4 + $0x181]]
    %v3907 = vstv %s3906
    %vm3908 = vcmp.eq.s32.totalorder %v68, %v3907
    %v3909 = vsel %vm3908, 1, 0
    %v3910 = vcvt.s32.f32 %v3909
    %v3911 = vsel %vm79, %v3905, %v3910
    %v3912 = vstv %s3900
    %v3913 = vmul.f32 %v3912, %v3911
    %s3914 = ssub.f32 1.0, %s3900
    %v3915 = vstv %s3914
    %v3916 = vmul.f32 %v3915, %v3896
    %v3917 = vadd.f32 %v3913, %v3916
    %v3919 = vsel %vm83, %v3917, 0
    %3921 = vmatprep.subr.mxu0 0.0
    %3922 = vmatpush1.msra.mxu0 %v2024
    %3923 = vmatprep.subr.mxu0 0.0
    %3924 = vmatpush1.msra.mxu0 %v2025
    %3925 = vmatprep.subr.mxu0 0.0
    %3926 = vmatpush1.msra.mxu0 0.0
    %3927 = vmatprep.subr.mxu0 0.0
    %3928 = vmatpush1.msra.mxu0 0.0
    %3929 = vmatprep.subr.mxu0 0.0
    %3930 = vmatpush1.msra.mxu0 0.0
    %3931 = vmatprep.subr.mxu0 0.0
    %3932 = vmatpush1.msra.mxu0 0.0
    %3933 = vmatprep.subr.mxu0 0.0
    %3934 = vmatpush1.msra.mxu0 0.0
    %3935 = vmatprep.subr.mxu0 0.0
    %3936 = vmatpush1.msra.mxu0 0.0
    %3937 = vmatprep.subr.mxu0 0.0
    %3938 = vmatpush1.msra.mxu0 0.0
    %3939 = vmatprep.subr.mxu0 0.0
    %3940 = vmatpush1.msra.mxu0 0.0
    %3941 = vmatprep.subr.mxu0 0.0
    %3942 = vmatpush1.msra.mxu0 0.0
    %3943 = vmatprep.subr.mxu0 0.0
    %3944 = vmatpush1.msra.mxu0 0.0
    %3945 = vmatprep.subr.mxu0 0.0
    %3946 = vmatpush1.msra.mxu0 0.0
    %3947 = vmatprep.subr.mxu0 0.0
    %3948 = vmatpush1.msra.mxu0 0.0
    %3949 = vmatprep.subr.mxu0 0.0
    %3950 = vmatpush1.msra.mxu0 0.0
    %3951 = vmatprep.subr.mxu0 0.0
    %3952 = vmatpush1.msra.mxu0 0.0
    %3953 = vmatprep.subr.mxu0 0.0
    %3954 = vmatpush1.msra.mxu0 0.0
    %3955 = vmatprep.subr.mxu0 0.0
    %3956 = vmatpush1.msra.mxu0 0.0
    %3957 = vmatprep.subr.mxu0 0.0
    %3958 = vmatpush1.msra.mxu0 0.0
    %3959 = vmatprep.subr.mxu0 0.0
    %3960 = vmatpush1.msra.mxu0 0.0
    %3961 = vmatprep.subr.mxu0 0.0
    %3962 = vmatpush1.msra.mxu0 0.0
    %3963 = vmatprep.subr.mxu0 0.0
    %3964 = vmatpush1.msra.mxu0 0.0
    %3965 = vmatprep.subr.mxu0 0.0
    %3966 = vmatpush1.msra.mxu0 0.0
    %3967 = vmatprep.subr.mxu0 0.0
    %3968 = vmatpush1.msra.mxu0 0.0
    %3969 = vmatprep.subr.mxu0 0.0
    %3970 = vmatpush1.msra.mxu0 0.0
    %3971 = vmatprep.subr.mxu0 0.0
    %3972 = vmatpush1.msra.mxu0 0.0
    %3973 = vmatprep.subr.mxu0 0.0
    %3974 = vmatpush1.msra.mxu0 0.0
    %3975 = vmatprep.subr.mxu0 0.0
    %3976 = vmatpush1.msra.mxu0 0.0
    %3977 = vmatprep.subr.mxu0 0.0
    %3978 = vmatpush1.msra.mxu0 0.0
    %3979 = vmatprep.subr.mxu0 0.0
    %3980 = vmatpush1.msra.mxu0 0.0
    %3981 = vmatprep.subr.mxu0 0.0
    %3982 = vmatpush1.msra.mxu0 0.0
    %3983 = vmatprep.subr.mxu0 0.0
    %3984 = vmatpush1.msra.mxu0 0.0
    %3985 = vmatprep.mubr.f32.mxu0 0.0
    %3986 = vmatmul.mubr.f32.gmra.mrb[0].mxu0 %v3919
    %v3987 = vpop.f32.mrb[0].mxu0
    %v3988 = vadd.f32 0.0, %v3987
    %v3989 = vpop.f32.mrb[0].mxu0
    %3990 = vdwg.mxu0
    %v3991 = vsel %vm83, %v3790, 0
    %3993 = vmatprep.subr.mxu0 0.0
    %3994 = vmatpush1.msra.mxu0 %v2099
    %3995 = vmatprep.subr.mxu0 0.0
    %3996 = vmatpush1.msra.mxu0 %v2100
    %3997 = vmatprep.subr.mxu0 0.0
    %3998 = vmatpush1.msra.mxu0 0.0
    %3999 = vmatprep.subr.mxu0 0.0
    %4000 = vmatpush1.msra.mxu0 0.0
    %4001 = vmatprep.subr.mxu0 0.0
    %4002 = vmatpush1.msra.mxu0 0.0
    %4003 = vmatprep.subr.mxu0 0.0
    %4004 = vmatpush1.msra.mxu0 0.0
    %4005 = vmatprep.subr.mxu0 0.0
    %4006 = vmatpush1.msra.mxu0 0.0
    %4007 = vmatprep.subr.mxu0 0.0
    %4008 = vmatpush1.msra.mxu0 0.0
    %4009 = vmatprep.subr.mxu0 0.0
    %4010 = vmatpush1.msra.mxu0 0.0
    %4011 = vmatprep.subr.mxu0 0.0
    %4012 = vmatpush1.msra.mxu0 0.0
    %4013 = vmatprep.subr.mxu0 0.0
    %4014 = vmatpush1.msra.mxu0 0.0
    %4015 = vmatprep.subr.mxu0 0.0
    %4016 = vmatpush1.msra.mxu0 0.0
    %4017 = vmatprep.subr.mxu0 0.0
    %4018 = vmatpush1.msra.mxu0 0.0
    %4019 = vmatprep.subr.mxu0 0.0
    %4020 = vmatpush1.msra.mxu0 0.0
    %4021 = vmatprep.subr.mxu0 0.0
    %4022 = vmatpush1.msra.mxu0 0.0
    %4023 = vmatprep.subr.mxu0 0.0
    %4024 = vmatpush1.msra.mxu0 0.0
    %4025 = vmatprep.subr.mxu0 0.0
    %4026 = vmatpush1.msra.mxu0 0.0
    %4027 = vmatprep.subr.mxu0 0.0
    %4028 = vmatpush1.msra.mxu0 0.0
    %4029 = vmatprep.subr.mxu0 0.0
    %4030 = vmatpush1.msra.mxu0 0.0
    %4031 = vmatprep.subr.mxu0 0.0
    %4032 = vmatpush1.msra.mxu0 0.0
    %4033 = vmatprep.subr.mxu0 0.0
    %4034 = vmatpush1.msra.mxu0 0.0
    %4035 = vmatprep.subr.mxu0 0.0
    %4036 = vmatpush1.msra.mxu0 0.0
    %4037 = vmatprep.subr.mxu0 0.0
    %4038 = vmatpush1.msra.mxu0 0.0
    %4039 = vmatprep.subr.mxu0 0.0
    %4040 = vmatpush1.msra.mxu0 0.0
    %4041 = vmatprep.subr.mxu0 0.0
    %4042 = vmatpush1.msra.mxu0 0.0
    %4043 = vmatprep.subr.mxu0 0.0
    %4044 = vmatpush1.msra.mxu0 0.0
    %4045 = vmatprep.subr.mxu0 0.0
    %4046 = vmatpush1.msra.mxu0 0.0
    %4047 = vmatprep.subr.mxu0 0.0
    %4048 = vmatpush1.msra.mxu0 0.0
    %4049 = vmatprep.subr.mxu0 0.0
    %4050 = vmatpush1.msra.mxu0 0.0
    %4051 = vmatprep.subr.mxu0 0.0
    %4052 = vmatpush1.msra.mxu0 0.0
    %4053 = vmatprep.subr.mxu0 0.0
    %4054 = vmatpush1.msra.mxu0 0.0
    %4055 = vmatprep.subr.mxu0 0.0
    %4056 = vmatpush1.msra.mxu0 0.0
    %4057 = vmatprep.mubr.f32.mxu0 0.0
    %4058 = vmatmul.mubr.f32.gmra.mrb[0].mxu0 %v3991
    %v4059 = vpop.f32.mrb[0].mxu0
    %v4060 = vadd.f32 0.0, %v4059
    %v4061 = vpop.f32.mrb[0].mxu0
    %4062 = vdwg.mxu0
    %v4065 = vunpack.c.l.s4 1966171168
    %v4066 = vunpack.c.0.s8 %v4065
    %v4067 = vlaneseq
    %v4068 = vshrl.u32 %v4067, 7
    %v4069 = vsub.s32 %v4066, %v4068
    %v4070 = vrot.slane %v4060, %v4069
    %v4071 = vcombine.high %v4070, %v4070
    %v4073 = vunpack.c.l.s4 1966171168
    %v4074 = vunpack.c.0.s8 %v4073
    %v4075 = vlaneseq
    %v4076 = vshrl.u32 %v4075, 7
    %v4077 = vsub.s32 %v4074, %v4076
    %v4078 = vrot.slane %v4070, %v4077
    %v4080 = vunpack.c.l.s4 1966171168
    %v4081 = vunpack.c.0.s8 %v4080
    %v4082 = vlaneseq
    %v4083 = vshrl.u32 %v4082, 7
    %v4084 = vsub.s32 %v4081, %v4083
    %v4085 = vrot.slane %v4071, %v4084
    %v4086 = vlaneseq
    %v4087 = vshrl.u32 %v4086, 7
    %v4088 = vsub.s32 0, %v4087
    %v4089 = vrot.slane %v4078, %v4088
    %v4090 = vlaneseq
    %v4091 = vshrl.u32 %v4090, 7
    %v4092 = vsub.s32 0, %v4091
    %v4093 = vrot.slane %v4085, %v4092
    %v4094 = vcombine.high %v4089, %v4089
    %v4096 = vunpack.c.l.s4 1983009808
    %v4097 = vunpack.c.0.s8 %v4096
    %v4098 = vlaneseq
    %v4099 = vshrl.u32 %v4098, 7
    %v4100 = vsub.s32 %v4097, %v4099
    %v4101 = vrot.slane %v4089, %v4100
    %v4103 = vunpack.c.l.s4 1983009808
    %v4104 = vunpack.c.0.s8 %v4103
    %v4105 = vlaneseq
    %v4106 = vshrl.u32 %v4105, 7
    %v4107 = vsub.s32 %v4104, %v4106
    %v4108 = vrot.slane %v4094, %v4107
    %v4109 = vcombine.high %v4101, %v4101
    %v4110 = vcombine.high %v4093, %v4093
    %v4112 = vunpack.c.l.s4 1983009808
    %v4113 = vunpack.c.0.s8 %v4112
    %v4114 = vlaneseq
    %v4115 = vshrl.u32 %v4114, 7
    %v4116 = vsub.s32 %v4113, %v4115
    %v4117 = vrot.slane %v4093, %v4116
    %v4119 = vunpack.c.l.s4 1983009808
    %v4120 = vunpack.c.0.s8 %v4119
    %v4121 = vlaneseq
    %v4122 = vshrl.u32 %v4121, 7
    %v4123 = vsub.s32 %v4120, %v4122
    %v4124 = vrot.slane %v4110, %v4123
    %v4125 = vcombine.high %v4117, %v4117
    %v4132 = vadd.f32 %v1989, %v4101
    %v4133 = vadd.f32 %v1997, %v4109
    %v4134 = vadd.f32 %v1996, %v4108
    %v4135 = vadd.f32 %v1998, %v4117
    %v4136 = vadd.f32 %v2005, %v4125
    %v4137 = vadd.f32 %v2006, %v4124
    %v4138 = vtanh.pop %v4132
    %v4139 = vtanh.pop %v4133
    %v4140 = vtanh.pop %v4134
    %v4141 = vtanh.pop %v4135
    %v4142 = vtanh.pop %v4136
    %v4143 = vtanh.pop %v4137
    %v4144 = vmul.f32 %v4138, %v2263
    %v4145 = vmul.f32 %v4139, %v2271
    %v4146 = vmul.f32 %v4140, %v2270
    %v4147 = vmul.f32 %v4141, %v2263
    %v4148 = vmul.f32 %v4142, %v2271
    %v4149 = vmul.f32 %v4143, %v2270
    %v4156 = vcombine.low %v4144, %v4145
    %v4158 = vunpack.c.l.s4 1983009808
    %v4159 = vunpack.c.0.s8 %v4158
    %v4160 = vlaneseq
    %v4161 = vshrl.u32 %v4160, 7
    %v4162 = vsub.s32 %v4159, %v4161
    %v4163 = vrot.slane %v4156, %v4162
    %v4165 = vunpack.c.l.s4 1983009808
    %v4166 = vunpack.c.0.s8 %v4165
    %v4167 = vlaneseq
    %v4168 = vshrl.u32 %v4167, 7
    %v4169 = vsub.s32 %v4166, %v4168
    %v4170 = vrot.slane %v4146, %v4169
    %v4171 = vcombine.low %v4163, %v4170
    %v4172 = vcombine.low %v4147, %v4148
    %v4174 = vunpack.c.l.s4 1983009808
    %v4175 = vunpack.c.0.s8 %v4174
    %v4176 = vlaneseq
    %v4177 = vshrl.u32 %v4176, 7
    %v4178 = vsub.s32 %v4175, %v4177
    %v4179 = vrot.slane %v4172, %v4178
    %v4181 = vunpack.c.l.s4 1983009808
    %v4182 = vunpack.c.0.s8 %v4181
    %v4183 = vlaneseq
    %v4184 = vshrl.u32 %v4183, 7
    %v4185 = vsub.s32 %v4182, %v4184
    %v4186 = vrot.slane %v4149, %v4185
    %v4187 = vcombine.low %v4179, %v4186
    %v4190 = vsel %vm2321, %v4171, 0.0
    %4191 = vadd.xlane.f32.xlu0 %v4190
    %v4192 = vpop.xlane.xlu0 %4191
    %v4193 = vsel %vm2321, %v4187, 0.0
    %4194 = vadd.xlane.f32.xlu0 %v4193
    %v4195 = vpop.xlane.xlu0 %4194
    %v4198 = vlaneseq
    %v4199 = vshrl.u32 %v4198, 7
    %v4200 = vsub.s32 %v68, %v4199
    %v4201 = vrot.slane %v4192, %v4200
    %v4202 = vlaneseq
    %v4203 = vshrl.u32 %v4202, 7
    %v4204 = vsub.s32 %v68, %v4203
    %v4205 = vrot.slane %v4195, %v4204
    %v4206 = vsel %vm2338, %v4205, %v4201
    %v4208 = vsel %vm2341, %v4206, -inf
    %4209 = vmax.xlane.f32.xlu0 %v4208
    %v4210 = vpop.xlane.xlu0 %4209
    %v4212 = vlaneseq
    %v4213 = vshrl.u32 %v4212, 7
    %v4214 = vsub.s32 0, %v4213
    %v4215 = vrot.slane %v4210, %v4214
    %v4216 = vlaneseq
    %v4217 = vshrl.u32 %v4216, 7
    %v4218 = vsub.s32 1, %v4217
    %v4219 = vrot.slane %v4210, %v4218
    %v4222 = vsub.f32 %v4192, %v4215
    %v4223 = vsub.f32 %v4195, %v4219
    %v4224 = vmul.f32 %v4222, 1.442695
    %v4225 = vpow.pop %v4224
    %v4226 = vmul.f32 %v4223, 1.442695
    %v4227 = vpow.pop %v4226
    %4230 = vset.pattern.permute.xlu0 0
    %4231 = vperm.xlu0 %4230, %v4225
    %v4232 = vpop.permute.xlu0 %4231
    %4233 = vset.pattern.permute.xlu0 0
    %4234 = vperm.xlu0 %4233, %v4227
    %v4235 = vpop.permute.xlu0 %4234
    %v4236 = vlaneseq
    %v4237 = vshrl.u32 %v4236, 7
    %v4238 = vsub.s32 %v68, %v4237
    %v4239 = vrot.slane %v4232, %v4238
    %v4240 = vlaneseq
    %v4241 = vshrl.u32 %v4240, 7
    %v4242 = vsub.s32 %v68, %v4241
    %v4243 = vrot.slane %v4235, %v4242
    %v4244 = vsel %vm2338, %v4243, %v4239
    %v4246 = vsel %vm2341, %v4244, 0.0
    %4247 = vadd.xlane.f32.xlu0 %v4246
    %v4248 = vpop.xlane.xlu0 %4247
    %v4250 = vlaneseq
    %v4251 = vshrl.u32 %v4250, 7
    %v4252 = vsub.s32 0, %v4251
    %v4253 = vrot.slane %v4248, %v4252
    %v4254 = vlaneseq
    %v4255 = vshrl.u32 %v4254, 7
    %v4256 = vsub.s32 1, %v4255
    %v4257 = vrot.slane %v4248, %v4256
    %v4260 = vrcp.pop %v4253
    %v4261 = vmul.f32 %v4225, %v4260
    %v4262 = vrcp.pop %v4257
    %v4263 = vmul.f32 %v4227, %v4262
    %4265 = vset.pattern.permute.xlu0 0
    %4266 = vperm.xlu0 %4265, %v4261
    %v4267 = vpop.permute.xlu0 %4266
    %4270 = vset.pattern.permute.xlu0 0
    %4271 = vperm.xlu0 %4270, %v4263
    %v4272 = vpop.permute.xlu0 %4271
    %v4274 = vmul.f32 %v4267, %v1713
    %v4275 = vmul.f32 %v4272, %v1714
    %v4276 = vsel %vm2410, %v4274, 0.0
    %v4277 = vrot.slane %v4276, 4
    %v4278 = vadd.f32 %v4276, %v4277
    %v4279 = vrot.slane %v4278, 2
    %v4280 = vadd.f32 %v4278, %v4279
    %v4281 = vrot.slane %v4280, 1
    %v4282 = vadd.f32 %v4280, %v4281
    %v4283 = vsel %vm2410, %v4275, 0.0
    %v4284 = vrot.slane %v4283, 4
    %v4285 = vadd.f32 %v4283, %v4284
    %v4286 = vrot.slane %v4285, 2
    %v4287 = vadd.f32 %v4285, %v4286
    %v4288 = vrot.slane %v4287, 1
    %v4289 = vadd.f32 %v4287, %v4288
    %v4292 = vsel %vm2338, %v4289, %v4282
    %4293 = vrot.lane.b32.xlu0 %v4292, 8
    %v4294 = vpop.permute.xlu0 %4293
    %4296 = vrot.lane.b32.xlu0 %v3787, 24
    %v4297 = vpop.permute.xlu0 %4296
    %v4299 = vsel %vm581, %v3988, %v4294
    %v4300 = vsel %vm2435, %v4299, %v4297
    %v4302 = vsel %vm2444, %v4300, 0
    %4304 = vmatprep.subr.mxu0 0.0
    %4305 = vmatpush1.msra.mxu0 %v2437
    %4306 = vmatprep.subr.mxu0 0.0
    %4307 = vmatpush1.msra.mxu0 %v2438
    %4308 = vmatprep.subr.mxu0 0.0
    %4309 = vmatpush1.msra.mxu0 %v2439
    %4310 = vmatprep.subr.mxu0 0.0
    %4311 = vmatpush1.msra.mxu0 %v2440
    %4312 = vmatprep.subr.mxu0 0.0
    %4313 = vmatpush1.msra.mxu0 %v2441
    %4314 = vmatprep.subr.mxu0 0.0
    %4315 = vmatpush1.msra.mxu0 %v2442
    %4316 = vmatprep.subr.mxu0 0.0
    %4317 = vmatpush1.msra.mxu0 %v2443
    %4318 = vmatprep.subr.mxu0 0.0
    %4319 = vmatpush1.msra.mxu0 0.0
    %4320 = vmatprep.subr.mxu0 0.0
    %4321 = vmatpush1.msra.mxu0 0.0
    %4322 = vmatprep.subr.mxu0 0.0
    %4323 = vmatpush1.msra.mxu0 0.0
    %4324 = vmatprep.subr.mxu0 0.0
    %4325 = vmatpush1.msra.mxu0 0.0
    %4326 = vmatprep.subr.mxu0 0.0
    %4327 = vmatpush1.msra.mxu0 0.0
    %4328 = vmatprep.subr.mxu0 0.0
    %4329 = vmatpush1.msra.mxu0 0.0
    %4330 = vmatprep.subr.mxu0 0.0
    %4331 = vmatpush1.msra.mxu0 0.0
    %4332 = vmatprep.subr.mxu0 0.0
    %4333 = vmatpush1.msra.mxu0 0.0
    %4334 = vmatprep.subr.mxu0 0.0
    %4335 = vmatpush1.msra.mxu0 0.0
    %4336 = vmatprep.subr.mxu0 0.0
    %4337 = vmatpush1.msra.mxu0 0.0
    %4338 = vmatprep.subr.mxu0 0.0
    %4339 = vmatpush1.msra.mxu0 0.0
    %4340 = vmatprep.subr.mxu0 0.0
    %4341 = vmatpush1.msra.mxu0 0.0
    %4342 = vmatprep.subr.mxu0 0.0
    %4343 = vmatpush1.msra.mxu0 0.0
    %4344 = vmatprep.subr.mxu0 0.0
    %4345 = vmatpush1.msra.mxu0 0.0
    %4346 = vmatprep.subr.mxu0 0.0
    %4347 = vmatpush1.msra.mxu0 0.0
    %4348 = vmatprep.subr.mxu0 0.0
    %4349 = vmatpush1.msra.mxu0 0.0
    %4350 = vmatprep.subr.mxu0 0.0
    %4351 = vmatpush1.msra.mxu0 0.0
    %4352 = vmatprep.subr.mxu0 0.0
    %4353 = vmatpush1.msra.mxu0 0.0
    %4354 = vmatprep.subr.mxu0 0.0
    %4355 = vmatpush1.msra.mxu0 0.0
    %4356 = vmatprep.subr.mxu0 0.0
    %4357 = vmatpush1.msra.mxu0 0.0
    %4358 = vmatprep.subr.mxu0 0.0
    %4359 = vmatpush1.msra.mxu0 0.0
    %4360 = vmatprep.subr.mxu0 0.0
    %4361 = vmatpush1.msra.mxu0 0.0
    %4362 = vmatprep.subr.mxu0 0.0
    %4363 = vmatpush1.msra.mxu0 0.0
    %4364 = vmatprep.subr.mxu0 0.0
    %4365 = vmatpush1.msra.mxu0 0.0
    %4366 = vmatprep.subr.mxu0 0.0
    %4367 = vmatpush1.msra.mxu0 0.0
    %4368 = vmatprep.mubr.f32.mxu0 0.0
    %4369 = vmatmul.mubr.f32.gmra.mrb[0].mxu0 %v4302
    %v4370 = vpop.f32.mrb[0].mxu0
    %v4371 = vadd.f32 %v65, %v4370
    %v4372 = vpop.f32.mrb[0].mxu0
    %4373 = vdwg.mxu0
    %4375 = vrot.lane.b32.xlu0 %v4371, 80
    %v4376 = vpop.permute.xlu0 %4375
    %v4378 = vadd.f32 %v4371, %v4376
    %v4379 = vxor.u32 %v4378, 2147483648
    %v4380 = vmul.f32 %v4379, 1.442695
    %v4381 = vpow.pop %v4380
    %v4382 = vadd.f32 %v4381, 1.0
    %v4383 = vrcp.pop %v4382
    %v4384 = vmul.f32 1.0, %v4383
    %4385 = vrot.lane.b32.xlu0 %v4371, 48
    %v4386 = vpop.permute.xlu0 %4385
    %v4388 = vmul.f32 %v4384, %v4386
    %4390 = vrot.lane.b32.xlu0 %v4388, 32
    %v4391 = vpop.permute.xlu0 %4390
    %v4393 = vadd.f32 %v4371, %v4391
    %v4394 = vtanh.pop %v4393
    %v4395 = vsub.f32 1.0, %v4384
    %4397 = vrot.lane.b32.xlu0 %v4394, 112
    %v4398 = vpop.permute.xlu0 %4397
    %v4400 = vmul.f32 %v4395, %v4398
    %v4401 = vmul.f32 %v4384, %v3787
    %v4402 = vadd.f32 %v4400, %v4401
    %4404 = vrot.lane.b32.xlu0 %v4402, 112
    %v4405 = vpop.permute.xlu0 %4404
    %4407 = vrot.lane.b32.xlu0 %v4292, 16
    %v4408 = vpop.permute.xlu0 %4407
    %4411 = vrot.lane.b32.xlu0 %v3988, 48
    %v4412 = vpop.permute.xlu0 %4411
    %v4414 = vsel %vm83, %v4405, %v4408
    %v4415 = vsel %vm599, %v4414, %v4412
    %v4417 = vsel %vm2444, %v4415, 0
    %4419 = vmatprep.subr.mxu0 0.0
    %4420 = vmatpush1.msra.mxu0 %v2563
    %4421 = vmatprep.subr.mxu0 0.0
    %4422 = vmatpush1.msra.mxu0 %v2564
    %4423 = vmatprep.subr.mxu0 0.0
    %4424 = vmatpush1.msra.mxu0 %v2565
    %4425 = vmatprep.subr.mxu0 0.0
    %4426 = vmatpush1.msra.mxu0 %v2566
    %4427 = vmatprep.subr.mxu0 0.0
    %4428 = vmatpush1.msra.mxu0 %v2567
    %4429 = vmatprep.subr.mxu0 0.0
    %4430 = vmatpush1.msra.mxu0 %v2568
    %4431 = vmatprep.subr.mxu0 0.0
    %4432 = vmatpush1.msra.mxu0 %v2569
    %4433 = vmatprep.subr.mxu0 0.0
    %4434 = vmatpush1.msra.mxu0 0.0
    %4435 = vmatprep.subr.mxu0 0.0
    %4436 = vmatpush1.msra.mxu0 0.0
    %4437 = vmatprep.subr.mxu0 0.0
    %4438 = vmatpush1.msra.mxu0 0.0
    %4439 = vmatprep.subr.mxu0 0.0
    %4440 = vmatpush1.msra.mxu0 0.0
    %4441 = vmatprep.subr.mxu0 0.0
    %4442 = vmatpush1.msra.mxu0 0.0
    %4443 = vmatprep.subr.mxu0 0.0
    %4444 = vmatpush1.msra.mxu0 0.0
    %4445 = vmatprep.subr.mxu0 0.0
    %4446 = vmatpush1.msra.mxu0 0.0
    %4447 = vmatprep.subr.mxu0 0.0
    %4448 = vmatpush1.msra.mxu0 0.0
    %4449 = vmatprep.subr.mxu0 0.0
    %4450 = vmatpush1.msra.mxu0 0.0
    %4451 = vmatprep.subr.mxu0 0.0
    %4452 = vmatpush1.msra.mxu0 0.0
    %4453 = vmatprep.subr.mxu0 0.0
    %4454 = vmatpush1.msra.mxu0 0.0
    %4455 = vmatprep.subr.mxu0 0.0
    %4456 = vmatpush1.msra.mxu0 0.0
    %4457 = vmatprep.subr.mxu0 0.0
    %4458 = vmatpush1.msra.mxu0 0.0
    %4459 = vmatprep.subr.mxu0 0.0
    %4460 = vmatpush1.msra.mxu0 0.0
    %4461 = vmatprep.subr.mxu0 0.0
    %4462 = vmatpush1.msra.mxu0 0.0
    %4463 = vmatprep.subr.mxu0 0.0
    %4464 = vmatpush1.msra.mxu0 0.0
    %4465 = vmatprep.subr.mxu0 0.0
    %4466 = vmatpush1.msra.mxu0 0.0
    %4467 = vmatprep.subr.mxu0 0.0
    %4468 = vmatpush1.msra.mxu0 0.0
    %4469 = vmatprep.subr.mxu0 0.0
    %4470 = vmatpush1.msra.mxu0 0.0
    %4471 = vmatprep.subr.mxu0 0.0
    %4472 = vmatpush1.msra.mxu0 0.0
    %4473 = vmatprep.subr.mxu0 0.0
    %4474 = vmatpush1.msra.mxu0 0.0
    %4475 = vmatprep.subr.mxu0 0.0
    %4476 = vmatpush1.msra.mxu0 0.0
    %4477 = vmatprep.subr.mxu0 0.0
    %4478 = vmatpush1.msra.mxu0 0.0
    %4479 = vmatprep.subr.mxu0 0.0
    %4480 = vmatpush1.msra.mxu0 0.0
    %4481 = vmatprep.subr.mxu0 0.0
    %4482 = vmatpush1.msra.mxu0 0.0
    %4483 = vmatprep.mubr.f32.mxu0 0.0
    %4484 = vmatmul.mubr.f32.gmra.mrb[0].mxu0 %v4417
    %v4485 = vpop.f32.mrb[0].mxu0
    %v4486 = vadd.f32 %v66, %v4485
    %v4487 = vpop.f32.mrb[0].mxu0
    %4488 = vdwg.mxu0
    %v4489 = vsel %vm2643, %v4486, -inf
    %4490 = vmax.xlane.f32.xlu0 %v4489
    %v4491 = vpop.xlane.xlu0 %4490
    %vm4492 = vcmp.eq.f32.partialorder %v4486, %v4491
    %v4493 = vsel %vm4492, %v68, 16
    %v4494 = vsel %vm2643, %v4493, 2147483647
    %v4495 = vand.u32 %v4494, 65535
    %v4496 = vshra.s32 %v4494, 16
    %v4497 = vcvt.s32.f32 %v4495
    %v4498 = vcvt.s32.f32 %v4496
    %4499 = vmin.xlane.f32.xlu0 %v4498
    %v4500 = vpop.xlane.xlu0 %4499
    %vm4501 = vcmp.eq.f32.partialorder %v4498, %v4500
    %v4502 = vsel %vm4501, %v4497, inf
    %4503 = vmin.xlane.f32.xlu0 %v4502
    %v4504 = vpop.xlane.xlu0 %4503
    %v4505 = vcvt.f32.s32 %v4504
    %v4506 = vcvt.f32.s32 %v4500
    %v4507 = vshll.u32 %v4506, 16
    %v4508 = vadd.s32 %v4507, %v4505
    %vm4509 = vcmp.eq.s32.totalorder %v68, %v4508
    %v4510 = vsel %vm4509, 1, 0
    %v4511 = vcvt.s32.f32 %v4510
    %s4512 = sld [smem:[#allocation5 + $0x3]]
    %p4513 = scmp.eq.s32.totalorder %s4512, 1
    %s4514 = scalar_select %p4513, 1, 0
    %s4515 = scvt.s32.f32 %s4514
    %s4516 = sld [smem:[#allocation4 + $0x200]]
    %v4517 = vstv %s4516
    %vm4518 = vcmp.eq.s32.totalorder %v68, %v4517
    %v4519 = vsel %vm4518, 1, 0
    %v4520 = vcvt.s32.f32 %v4519
    %s4521 = sld [smem:[#allocation4 + $0x201]]
    %v4522 = vstv %s4521
    %vm4523 = vcmp.eq.s32.totalorder %v68, %v4522
    %v4524 = vsel %vm4523, 1, 0
    %v4525 = vcvt.s32.f32 %v4524
    %v4526 = vsel %vm79, %v4520, %v4525
    %v4527 = vstv %s4515
    %v4528 = vmul.f32 %v4527, %v4526
    %s4529 = ssub.f32 1.0, %s4515
    %v4530 = vstv %s4529
    %v4531 = vmul.f32 %v4530, %v4511
    %v4532 = vadd.f32 %v4528, %v4531
    %v4534 = vsel %vm83, %v4532, 0
    %4536 = vmatprep.subr.mxu0 0.0
    %4537 = vmatpush1.msra.mxu0 %v2024
    %4538 = vmatprep.subr.mxu0 0.0
    %4539 = vmatpush1.msra.mxu0 %v2025
    %4540 = vmatprep.subr.mxu0 0.0
    %4541 = vmatpush1.msra.mxu0 0.0
    %4542 = vmatprep.subr.mxu0 0.0
    %4543 = vmatpush1.msra.mxu0 0.0
    %4544 = vmatprep.subr.mxu0 0.0
    %4545 = vmatpush1.msra.mxu0 0.0
    %4546 = vmatprep.subr.mxu0 0.0
    %4547 = vmatpush1.msra.mxu0 0.0
    %4548 = vmatprep.subr.mxu0 0.0
    %4549 = vmatpush1.msra.mxu0 0.0
    %4550 = vmatprep.subr.mxu0 0.0
    %4551 = vmatpush1.msra.mxu0 0.0
    %4552 = vmatprep.subr.mxu0 0.0
    %4553 = vmatpush1.msra.mxu0 0.0
    %4554 = vmatprep.subr.mxu0 0.0
    %4555 = vmatpush1.msra.mxu0 0.0
    %4556 = vmatprep.subr.mxu0 0.0
    %4557 = vmatpush1.msra.mxu0 0.0
    %4558 = vmatprep.subr.mxu0 0.0
    %4559 = vmatpush1.msra.mxu0 0.0
    %4560 = vmatprep.subr.mxu0 0.0
    %4561 = vmatpush1.msra.mxu0 0.0
    %4562 = vmatprep.subr.mxu0 0.0
    %4563 = vmatpush1.msra.mxu0 0.0
    %4564 = vmatprep.subr.mxu0 0.0
    %4565 = vmatpush1.msra.mxu0 0.0
    %4566 = vmatprep.subr.mxu0 0.0
    %4567 = vmatpush1.msra.mxu0 0.0
    %4568 = vmatprep.subr.mxu0 0.0
    %4569 = vmatpush1.msra.mxu0 0.0
    %4570 = vmatprep.subr.mxu0 0.0
    %4571 = vmatpush1.msra.mxu0 0.0
    %4572 = vmatprep.subr.mxu0 0.0
    %4573 = vmatpush1.msra.mxu0 0.0
    %4574 = vmatprep.subr.mxu0 0.0
    %4575 = vmatpush1.msra.mxu0 0.0
    %4576 = vmatprep.subr.mxu0 0.0
    %4577 = vmatpush1.msra.mxu0 0.0
    %4578 = vmatprep.subr.mxu0 0.0
    %4579 = vmatpush1.msra.mxu0 0.0
    %4580 = vmatprep.subr.mxu0 0.0
    %4581 = vmatpush1.msra.mxu0 0.0
    %4582 = vmatprep.subr.mxu0 0.0
    %4583 = vmatpush1.msra.mxu0 0.0
    %4584 = vmatprep.subr.mxu0 0.0
    %4585 = vmatpush1.msra.mxu0 0.0
    %4586 = vmatprep.subr.mxu0 0.0
    %4587 = vmatpush1.msra.mxu0 0.0
    %4588 = vmatprep.subr.mxu0 0.0
    %4589 = vmatpush1.msra.mxu0 0.0
    %4590 = vmatprep.subr.mxu0 0.0
    %4591 = vmatpush1.msra.mxu0 0.0
    %4592 = vmatprep.subr.mxu0 0.0
    %4593 = vmatpush1.msra.mxu0 0.0
    %4594 = vmatprep.subr.mxu0 0.0
    %4595 = vmatpush1.msra.mxu0 0.0
    %4596 = vmatprep.subr.mxu0 0.0
    %4597 = vmatpush1.msra.mxu0 0.0
    %4598 = vmatprep.subr.mxu0 0.0
    %4599 = vmatpush1.msra.mxu0 0.0
    %4600 = vmatprep.mubr.f32.mxu0 0.0
    %4601 = vmatmul.mubr.f32.gmra.mrb[0].mxu0 %v4534
    %v4602 = vpop.f32.mrb[0].mxu0
    %v4603 = vadd.f32 0.0, %v4602
    %v4604 = vpop.f32.mrb[0].mxu0
    %4605 = vdwg.mxu0
    %v4606 = vsel %vm83, %v4405, 0
    %4608 = vmatprep.subr.mxu0 0.0
    %4609 = vmatpush1.msra.mxu0 %v2099
    %4610 = vmatprep.subr.mxu0 0.0
    %4611 = vmatpush1.msra.mxu0 %v2100
    %4612 = vmatprep.subr.mxu0 0.0
    %4613 = vmatpush1.msra.mxu0 0.0
    %4614 = vmatprep.subr.mxu0 0.0
    %4615 = vmatpush1.msra.mxu0 0.0
    %4616 = vmatprep.subr.mxu0 0.0
    %4617 = vmatpush1.msra.mxu0 0.0
    %4618 = vmatprep.subr.mxu0 0.0
    %4619 = vmatpush1.msra.mxu0 0.0
    %4620 = vmatprep.subr.mxu0 0.0
    %4621 = vmatpush1.msra.mxu0 0.0
    %4622 = vmatprep.subr.mxu0 0.0
    %4623 = vmatpush1.msra.mxu0 0.0
    %4624 = vmatprep.subr.mxu0 0.0
    %4625 = vmatpush1.msra.mxu0 0.0
    %4626 = vmatprep.subr.mxu0 0.0
    %4627 = vmatpush1.msra.mxu0 0.0
    %4628 = vmatprep.subr.mxu0 0.0
    %4629 = vmatpush1.msra.mxu0 0.0
    %4630 = vmatprep.subr.mxu0 0.0
    %4631 = vmatpush1.msra.mxu0 0.0
    %4632 = vmatprep.subr.mxu0 0.0
    %4633 = vmatpush1.msra.mxu0 0.0
    %4634 = vmatprep.subr.mxu0 0.0
    %4635 = vmatpush1.msra.mxu0 0.0
    %4636 = vmatprep.subr.mxu0 0.0
    %4637 = vmatpush1.msra.mxu0 0.0
    %4638 = vmatprep.subr.mxu0 0.0
    %4639 = vmatpush1.msra.mxu0 0.0
    %4640 = vmatprep.subr.mxu0 0.0
    %4641 = vmatpush1.msra.mxu0 0.0
    %4642 = vmatprep.subr.mxu0 0.0
    %4643 = vmatpush1.msra.mxu0 0.0
    %4644 = vmatprep.subr.mxu0 0.0
    %4645 = vmatpush1.msra.mxu0 0.0
    %4646 = vmatprep.subr.mxu0 0.0
    %4647 = vmatpush1.msra.mxu0 0.0
    %4648 = vmatprep.subr.mxu0 0.0
    %4649 = vmatpush1.msra.mxu0 0.0
    %4650 = vmatprep.subr.mxu0 0.0
    %4651 = vmatpush1.msra.mxu0 0.0
    %4652 = vmatprep.subr.mxu0 0.0
    %4653 = vmatpush1.msra.mxu0 0.0
    %4654 = vmatprep.subr.mxu0 0.0
    %4655 = vmatpush1.msra.mxu0 0.0
    %4656 = vmatprep.subr.mxu0 0.0
    %4657 = vmatpush1.msra.mxu0 0.0
    %4658 = vmatprep.subr.mxu0 0.0
    %4659 = vmatpush1.msra.mxu0 0.0
    %4660 = vmatprep.subr.mxu0 0.0
    %4661 = vmatpush1.msra.mxu0 0.0
    %4662 = vmatprep.subr.mxu0 0.0
    %4663 = vmatpush1.msra.mxu0 0.0
    %4664 = vmatprep.subr.mxu0 0.0
    %4665 = vmatpush1.msra.mxu0 0.0
    %4666 = vmatprep.subr.mxu0 0.0
    %4667 = vmatpush1.msra.mxu0 0.0
    %4668 = vmatprep.subr.mxu0 0.0
    %4669 = vmatpush1.msra.mxu0 0.0
    %4670 = vmatprep.subr.mxu0 0.0
    %4671 = vmatpush1.msra.mxu0 0.0
    %4672 = vmatprep.mubr.f32.mxu0 0.0
    %4673 = vmatmul.mubr.f32.gmra.mrb[0].mxu0 %v4606
    %v4674 = vpop.f32.mrb[0].mxu0
    %v4675 = vadd.f32 0.0, %v4674
    %v4676 = vpop.f32.mrb[0].mxu0
    %4677 = vdwg.mxu0
    %v4680 = vunpack.c.l.s4 1966171168
    %v4681 = vunpack.c.0.s8 %v4680
    %v4682 = vlaneseq
    %v4683 = vshrl.u32 %v4682, 7
    %v4684 = vsub.s32 %v4681, %v4683
    %v4685 = vrot.slane %v4675, %v4684
    %v4686 = vcombine.high %v4685, %v4685
    %v4688 = vunpack.c.l.s4 1966171168
    %v4689 = vunpack.c.0.s8 %v4688
    %v4690 = vlaneseq
    %v4691 = vshrl.u32 %v4690, 7
    %v4692 = vsub.s32 %v4689, %v4691
    %v4693 = vrot.slane %v4685, %v4692
    %v4695 = vunpack.c.l.s4 1966171168
    %v4696 = vunpack.c.0.s8 %v4695
    %v4697 = vlaneseq
    %v4698 = vshrl.u32 %v4697, 7
    %v4699 = vsub.s32 %v4696, %v4698
    %v4700 = vrot.slane %v4686, %v4699
    %v4701 = vlaneseq
    %v4702 = vshrl.u32 %v4701, 7
    %v4703 = vsub.s32 0, %v4702
    %v4704 = vrot.slane %v4693, %v4703
    %v4705 = vlaneseq
    %v4706 = vshrl.u32 %v4705, 7
    %v4707 = vsub.s32 0, %v4706
    %v4708 = vrot.slane %v4700, %v4707
    %v4709 = vcombine.high %v4704, %v4704
    %v4711 = vunpack.c.l.s4 1983009808
    %v4712 = vunpack.c.0.s8 %v4711
    %v4713 = vlaneseq
    %v4714 = vshrl.u32 %v4713, 7
    %v4715 = vsub.s32 %v4712, %v4714
    %v4716 = vrot.slane %v4704, %v4715
    %v4718 = vunpack.c.l.s4 1983009808
    %v4719 = vunpack.c.0.s8 %v4718
    %v4720 = vlaneseq
    %v4721 = vshrl.u32 %v4720, 7
    %v4722 = vsub.s32 %v4719, %v4721
    %v4723 = vrot.slane %v4709, %v4722
    %v4724 = vcombine.high %v4716, %v4716
    %v4725 = vcombine.high %v4708, %v4708
    %v4727 = vunpack.c.l.s4 1983009808
    %v4728 = vunpack.c.0.s8 %v4727
    %v4729 = vlaneseq
    %v4730 = vshrl.u32 %v4729, 7
    %v4731 = vsub.s32 %v4728, %v4730
    %v4732 = vrot.slane %v4708, %v4731
    %v4734 = vunpack.c.l.s4 1983009808
    %v4735 = vunpack.c.0.s8 %v4734
    %v4736 = vlaneseq
    %v4737 = vshrl.u32 %v4736, 7
    %v4738 = vsub.s32 %v4735, %v4737
    %v4739 = vrot.slane %v4725, %v4738
    %v4740 = vcombine.high %v4732, %v4732
    %v4747 = vadd.f32 %v1989, %v4716
    %v4748 = vadd.f32 %v1997, %v4724
    %v4749 = vadd.f32 %v1996, %v4723
    %v4750 = vadd.f32 %v1998, %v4732
    %v4751 = vadd.f32 %v2005, %v4740
    %v4752 = vadd.f32 %v2006, %v4739
    %v4753 = vtanh.pop %v4747
    %v4754 = vtanh.pop %v4748
    %v4755 = vtanh.pop %v4749
    %v4756 = vtanh.pop %v4750
    %v4757 = vtanh.pop %v4751
    %v4758 = vtanh.pop %v4752
    %v4759 = vmul.f32 %v4753, %v2263
    %v4760 = vmul.f32 %v4754, %v2271
    %v4761 = vmul.f32 %v4755, %v2270
    %v4762 = vmul.f32 %v4756, %v2263
    %v4763 = vmul.f32 %v4757, %v2271
    %v4764 = vmul.f32 %v4758, %v2270
    %v4771 = vcombine.low %v4759, %v4760
    %v4773 = vunpack.c.l.s4 1983009808
    %v4774 = vunpack.c.0.s8 %v4773
    %v4775 = vlaneseq
    %v4776 = vshrl.u32 %v4775, 7
    %v4777 = vsub.s32 %v4774, %v4776
    %v4778 = vrot.slane %v4771, %v4777
    %v4780 = vunpack.c.l.s4 1983009808
    %v4781 = vunpack.c.0.s8 %v4780
    %v4782 = vlaneseq
    %v4783 = vshrl.u32 %v4782, 7
    %v4784 = vsub.s32 %v4781, %v4783
    %v4785 = vrot.slane %v4761, %v4784
    %v4786 = vcombine.low %v4778, %v4785
    %v4787 = vcombine.low %v4762, %v4763
    %v4789 = vunpack.c.l.s4 1983009808
    %v4790 = vunpack.c.0.s8 %v4789
    %v4791 = vlaneseq
    %v4792 = vshrl.u32 %v4791, 7
    %v4793 = vsub.s32 %v4790, %v4792
    %v4794 = vrot.slane %v4787, %v4793
    %v4796 = vunpack.c.l.s4 1983009808
    %v4797 = vunpack.c.0.s8 %v4796
    %v4798 = vlaneseq
    %v4799 = vshrl.u32 %v4798, 7
    %v4800 = vsub.s32 %v4797, %v4799
    %v4801 = vrot.slane %v4764, %v4800
    %v4802 = vcombine.low %v4794, %v4801
    %v4805 = vsel %vm2321, %v4786, 0.0
    %4806 = vadd.xlane.f32.xlu0 %v4805
    %v4807 = vpop.xlane.xlu0 %4806
    %v4808 = vsel %vm2321, %v4802, 0.0
    %4809 = vadd.xlane.f32.xlu0 %v4808
    %v4810 = vpop.xlane.xlu0 %4809
    %v4813 = vlaneseq
    %v4814 = vshrl.u32 %v4813, 7
    %v4815 = vsub.s32 %v68, %v4814
    %v4816 = vrot.slane %v4807, %v4815
    %v4817 = vlaneseq
    %v4818 = vshrl.u32 %v4817, 7
    %v4819 = vsub.s32 %v68, %v4818
    %v4820 = vrot.slane %v4810, %v4819
    %v4821 = vsel %vm2338, %v4820, %v4816
    %v4823 = vsel %vm2341, %v4821, -inf
    %4824 = vmax.xlane.f32.xlu0 %v4823
    %v4825 = vpop.xlane.xlu0 %4824
    %v4827 = vlaneseq
    %v4828 = vshrl.u32 %v4827, 7
    %v4829 = vsub.s32 0, %v4828
    %v4830 = vrot.slane %v4825, %v4829
    %v4831 = vlaneseq
    %v4832 = vshrl.u32 %v4831, 7
    %v4833 = vsub.s32 1, %v4832
    %v4834 = vrot.slane %v4825, %v4833
    %v4837 = vsub.f32 %v4807, %v4830
    %v4838 = vsub.f32 %v4810, %v4834
    %v4839 = vmul.f32 %v4837, 1.442695
    %v4840 = vpow.pop %v4839
    %v4841 = vmul.f32 %v4838, 1.442695
    %v4842 = vpow.pop %v4841
    %4845 = vset.pattern.permute.xlu0 0
    %4846 = vperm.xlu0 %4845, %v4840
    %v4847 = vpop.permute.xlu0 %4846
    %4848 = vset.pattern.permute.xlu0 0
    %4849 = vperm.xlu0 %4848, %v4842
    %v4850 = vpop.permute.xlu0 %4849
    %v4851 = vlaneseq
    %v4852 = vshrl.u32 %v4851, 7
    %v4853 = vsub.s32 %v68, %v4852
    %v4854 = vrot.slane %v4847, %v4853
    %v4855 = vlaneseq
    %v4856 = vshrl.u32 %v4855, 7
    %v4857 = vsub.s32 %v68, %v4856
    %v4858 = vrot.slane %v4850, %v4857
    %v4859 = vsel %vm2338, %v4858, %v4854
    %v4861 = vsel %vm2341, %v4859, 0.0
    %4862 = vadd.xlane.f32.xlu0 %v4861
    %v4863 = vpop.xlane.xlu0 %4862
    %v4865 = vlaneseq
    %v4866 = vshrl.u32 %v4865, 7
    %v4867 = vsub.s32 0, %v4866
    %v4868 = vrot.slane %v4863, %v4867
    %v4869 = vlaneseq
    %v4870 = vshrl.u32 %v4869, 7
    %v4871 = vsub.s32 1, %v4870
    %v4872 = vrot.slane %v4863, %v4871
    %v4875 = vrcp.pop %v4868
    %v4876 = vmul.f32 %v4840, %v4875
    %v4877 = vrcp.pop %v4872
    %v4878 = vmul.f32 %v4842, %v4877
    %4880 = vset.pattern.permute.xlu0 0
    %4881 = vperm.xlu0 %4880, %v4876
    %v4882 = vpop.permute.xlu0 %4881
    %4885 = vset.pattern.permute.xlu0 0
    %4886 = vperm.xlu0 %4885, %v4878
    %v4887 = vpop.permute.xlu0 %4886
    %v4889 = vmul.f32 %v4882, %v1713
    %v4890 = vmul.f32 %v4887, %v1714
    %v4891 = vsel %vm2410, %v4889, 0.0
    %v4892 = vrot.slane %v4891, 4
    %v4893 = vadd.f32 %v4891, %v4892
    %v4894 = vrot.slane %v4893, 2
    %v4895 = vadd.f32 %v4893, %v4894
    %v4896 = vrot.slane %v4895, 1
    %v4897 = vadd.f32 %v4895, %v4896
    %v4898 = vsel %vm2410, %v4890, 0.0
    %v4899 = vrot.slane %v4898, 4
    %v4900 = vadd.f32 %v4898, %v4899
    %v4901 = vrot.slane %v4900, 2
    %v4902 = vadd.f32 %v4900, %v4901
    %v4903 = vrot.slane %v4902, 1
    %v4904 = vadd.f32 %v4902, %v4903
    %v4907 = vsel %vm2338, %v4904, %v4897
    %4908 = vrot.lane.b32.xlu0 %v4907, 8
    %v4909 = vpop.permute.xlu0 %4908
    %4911 = vrot.lane.b32.xlu0 %v4402, 24
    %v4912 = vpop.permute.xlu0 %4911
    %v4914 = vsel %vm581, %v4603, %v4909
    %v4915 = vsel %vm2435, %v4914, %v4912
    %v4917 = vsel %vm2444, %v4915, 0
    %4919 = vmatprep.subr.mxu0 0.0
    %4920 = vmatpush1.msra.mxu0 %v2437
    %4921 = vmatprep.subr.mxu0 0.0
    %4922 = vmatpush1.msra.mxu0 %v2438
    %4923 = vmatprep.subr.mxu0 0.0
    %4924 = vmatpush1.msra.mxu0 %v2439
    %4925 = vmatprep.subr.mxu0 0.0
    %4926 = vmatpush1.msra.mxu0 %v2440
    %4927 = vmatprep.subr.mxu0 0.0
    %4928 = vmatpush1.msra.mxu0 %v2441
    %4929 = vmatprep.subr.mxu0 0.0
    %4930 = vmatpush1.msra.mxu0 %v2442
    %4931 = vmatprep.subr.mxu0 0.0
    %4932 = vmatpush1.msra.mxu0 %v2443
    %4933 = vmatprep.subr.mxu0 0.0
    %4934 = vmatpush1.msra.mxu0 0.0
    %4935 = vmatprep.subr.mxu0 0.0
    %4936 = vmatpush1.msra.mxu0 0.0
    %4937 = vmatprep.subr.mxu0 0.0
    %4938 = vmatpush1.msra.mxu0 0.0
    %4939 = vmatprep.subr.mxu0 0.0
    %4940 = vmatpush1.msra.mxu0 0.0
    %4941 = vmatprep.subr.mxu0 0.0
    %4942 = vmatpush1.msra.mxu0 0.0
    %4943 = vmatprep.subr.mxu0 0.0
    %4944 = vmatpush1.msra.mxu0 0.0
    %4945 = vmatprep.subr.mxu0 0.0
    %4946 = vmatpush1.msra.mxu0 0.0
    %4947 = vmatprep.subr.mxu0 0.0
    %4948 = vmatpush1.msra.mxu0 0.0
    %4949 = vmatprep.subr.mxu0 0.0
    %4950 = vmatpush1.msra.mxu0 0.0
    %4951 = vmatprep.subr.mxu0 0.0
    %4952 = vmatpush1.msra.mxu0 0.0
    %4953 = vmatprep.subr.mxu0 0.0
    %4954 = vmatpush1.msra.mxu0 0.0
    %4955 = vmatprep.subr.mxu0 0.0
    %4956 = vmatpush1.msra.mxu0 0.0
    %4957 = vmatprep.subr.mxu0 0.0
    %4958 = vmatpush1.msra.mxu0 0.0
    %4959 = vmatprep.subr.mxu0 0.0
    %4960 = vmatpush1.msra.mxu0 0.0
    %4961 = vmatprep.subr.mxu0 0.0
    %4962 = vmatpush1.msra.mxu0 0.0
    %4963 = vmatprep.subr.mxu0 0.0
    %4964 = vmatpush1.msra.mxu0 0.0
    %4965 = vmatprep.subr.mxu0 0.0
    %4966 = vmatpush1.msra.mxu0 0.0
    %4967 = vmatprep.subr.mxu0 0.0
    %4968 = vmatpush1.msra.mxu0 0.0
    %4969 = vmatprep.subr.mxu0 0.0
    %4970 = vmatpush1.msra.mxu0 0.0
    %4971 = vmatprep.subr.mxu0 0.0
    %4972 = vmatpush1.msra.mxu0 0.0
    %4973 = vmatprep.subr.mxu0 0.0
    %4974 = vmatpush1.msra.mxu0 0.0
    %4975 = vmatprep.subr.mxu0 0.0
    %4976 = vmatpush1.msra.mxu0 0.0
    %4977 = vmatprep.subr.mxu0 0.0
    %4978 = vmatpush1.msra.mxu0 0.0
    %4979 = vmatprep.subr.mxu0 0.0
    %4980 = vmatpush1.msra.mxu0 0.0
    %4981 = vmatprep.subr.mxu0 0.0
    %4982 = vmatpush1.msra.mxu0 0.0
    %4983 = vmatprep.mubr.f32.mxu0 0.0
    %4984 = vmatmul.mubr.f32.gmra.mrb[0].mxu0 %v4917
    %v4985 = vpop.f32.mrb[0].mxu0
    %v4986 = vadd.f32 %v65, %v4985
    %v4987 = vpop.f32.mrb[0].mxu0
    %4988 = vdwg.mxu0
    %4990 = vrot.lane.b32.xlu0 %v4986, 80
    %v4991 = vpop.permute.xlu0 %4990
    %v4993 = vadd.f32 %v4986, %v4991
    %v4994 = vxor.u32 %v4993, 2147483648
    %v4995 = vmul.f32 %v4994, 1.442695
    %v4996 = vpow.pop %v4995
    %v4997 = vadd.f32 %v4996, 1.0
    %v4998 = vrcp.pop %v4997
    %v4999 = vmul.f32 1.0, %v4998
    %5000 = vrot.lane.b32.xlu0 %v4986, 48
    %v5001 = vpop.permute.xlu0 %5000
    %v5003 = vmul.f32 %v4999, %v5001
    %5005 = vrot.lane.b32.xlu0 %v5003, 32
    %v5006 = vpop.permute.xlu0 %5005
    %v5008 = vadd.f32 %v4986, %v5006
    %v5009 = vtanh.pop %v5008
    %v5010 = vsub.f32 1.0, %v4999
    %5012 = vrot.lane.b32.xlu0 %v5009, 112
    %v5013 = vpop.permute.xlu0 %5012
    %v5015 = vmul.f32 %v5010, %v5013
    %v5016 = vmul.f32 %v4999, %v4402
    %v5017 = vadd.f32 %v5015, %v5016
    %5019 = vrot.lane.b32.xlu0 %v5017, 112
    %v5020 = vpop.permute.xlu0 %5019
    %5022 = vrot.lane.b32.xlu0 %v4907, 16
    %v5023 = vpop.permute.xlu0 %5022
    %5026 = vrot.lane.b32.xlu0 %v4603, 48
    %v5027 = vpop.permute.xlu0 %5026
    %v5029 = vsel %vm83, %v5020, %v5023
    %v5030 = vsel %vm599, %v5029, %v5027
    %v5032 = vsel %vm2444, %v5030, 0
    %5034 = vmatprep.subr.mxu0 0.0
    %5035 = vmatpush1.msra.mxu0 %v2563
    %5036 = vmatprep.subr.mxu0 0.0
    %5037 = vmatpush1.msra.mxu0 %v2564
    %5038 = vmatprep.subr.mxu0 0.0
    %5039 = vmatpush1.msra.mxu0 %v2565
    %5040 = vmatprep.subr.mxu0 0.0
    %5041 = vmatpush1.msra.mxu0 %v2566
    %5042 = vmatprep.subr.mxu0 0.0
    %5043 = vmatpush1.msra.mxu0 %v2567
    %5044 = vmatprep.subr.mxu0 0.0
    %5045 = vmatpush1.msra.mxu0 %v2568
    %5046 = vmatprep.subr.mxu0 0.0
    %5047 = vmatpush1.msra.mxu0 %v2569
    %5048 = vmatprep.subr.mxu0 0.0
    %5049 = vmatpush1.msra.mxu0 0.0
    %5050 = vmatprep.subr.mxu0 0.0
    %5051 = vmatpush1.msra.mxu0 0.0
    %5052 = vmatprep.subr.mxu0 0.0
    %5053 = vmatpush1.msra.mxu0 0.0
    %5054 = vmatprep.subr.mxu0 0.0
    %5055 = vmatpush1.msra.mxu0 0.0
    %5056 = vmatprep.subr.mxu0 0.0
    %5057 = vmatpush1.msra.mxu0 0.0
    %5058 = vmatprep.subr.mxu0 0.0
    %5059 = vmatpush1.msra.mxu0 0.0
    %5060 = vmatprep.subr.mxu0 0.0
    %5061 = vmatpush1.msra.mxu0 0.0
    %5062 = vmatprep.subr.mxu0 0.0
    %5063 = vmatpush1.msra.mxu0 0.0
    %5064 = vmatprep.subr.mxu0 0.0
    %5065 = vmatpush1.msra.mxu0 0.0
    %5066 = vmatprep.subr.mxu0 0.0
    %5067 = vmatpush1.msra.mxu0 0.0
    %5068 = vmatprep.subr.mxu0 0.0
    %5069 = vmatpush1.msra.mxu0 0.0
    %5070 = vmatprep.subr.mxu0 0.0
    %5071 = vmatpush1.msra.mxu0 0.0
    %5072 = vmatprep.subr.mxu0 0.0
    %5073 = vmatpush1.msra.mxu0 0.0
    %5074 = vmatprep.subr.mxu0 0.0
    %5075 = vmatpush1.msra.mxu0 0.0
    %5076 = vmatprep.subr.mxu0 0.0
    %5077 = vmatpush1.msra.mxu0 0.0
    %5078 = vmatprep.subr.mxu0 0.0
    %5079 = vmatpush1.msra.mxu0 0.0
    %5080 = vmatprep.subr.mxu0 0.0
    %5081 = vmatpush1.msra.mxu0 0.0
    %5082 = vmatprep.subr.mxu0 0.0
    %5083 = vmatpush1.msra.mxu0 0.0
    %5084 = vmatprep.subr.mxu0 0.0
    %5085 = vmatpush1.msra.mxu0 0.0
    %5086 = vmatprep.subr.mxu0 0.0
    %5087 = vmatpush1.msra.mxu0 0.0
    %5088 = vmatprep.subr.mxu0 0.0
    %5089 = vmatpush1.msra.mxu0 0.0
    %5090 = vmatprep.subr.mxu0 0.0
    %5091 = vmatpush1.msra.mxu0 0.0
    %5092 = vmatprep.subr.mxu0 0.0
    %5093 = vmatpush1.msra.mxu0 0.0
    %5094 = vmatprep.subr.mxu0 0.0
    %5095 = vmatpush1.msra.mxu0 0.0
    %5096 = vmatprep.subr.mxu0 0.0
    %5097 = vmatpush1.msra.mxu0 0.0
    %5098 = vmatprep.mubr.f32.mxu0 0.0
    %5099 = vmatmul.mubr.f32.gmra.mrb[0].mxu0 %v5032
    %v5100 = vpop.f32.mrb[0].mxu0
    %v5101 = vadd.f32 %v66, %v5100
    %v5102 = vpop.f32.mrb[0].mxu0
    %5103 = vdwg.mxu0
    %v5104 = vsel %vm2643, %v5101, -inf
    %5105 = vmax.xlane.f32.xlu0 %v5104
    %v5106 = vpop.xlane.xlu0 %5105
    %vm5107 = vcmp.eq.f32.partialorder %v5101, %v5106
    %v5108 = vsel %vm5107, %v68, 16
    %v5109 = vsel %vm2643, %v5108, 2147483647
    %v5110 = vand.u32 %v5109, 65535
    %v5111 = vshra.s32 %v5109, 16
    %v5112 = vcvt.s32.f32 %v5110
    %v5113 = vcvt.s32.f32 %v5111
    %5114 = vmin.xlane.f32.xlu0 %v5113
    %v5115 = vpop.xlane.xlu0 %5114
    %vm5116 = vcmp.eq.f32.partialorder %v5113, %v5115
    %v5117 = vsel %vm5116, %v5112, inf
    %5118 = vmin.xlane.f32.xlu0 %v5117
    %v5119 = vpop.xlane.xlu0 %5118
    %v5120 = vcvt.f32.s32 %v5119
    %v5121 = vcvt.f32.s32 %v5115
    %v5122 = vshll.u32 %v5121, 16
    %v5123 = vadd.s32 %v5122, %v5120
    %vm5124 = vcmp.eq.s32.totalorder %v68, %v5123
    %v5125 = vsel %vm5124, 1, 0
    %v5126 = vcvt.s32.f32 %v5125
    %s5127 = sld [smem:[#allocation5 + $0x4]]
    %p5128 = scmp.eq.s32.totalorder %s5127, 1
    %s5129 = scalar_select %p5128, 1, 0
    %s5130 = scvt.s32.f32 %s5129
    %s5131 = sld [smem:[#allocation4 + $0x280]]
    %v5132 = vstv %s5131
    %vm5133 = vcmp.eq.s32.totalorder %v68, %v5132
    %v5134 = vsel %vm5133, 1, 0
    %v5135 = vcvt.s32.f32 %v5134
    %s5136 = sld [smem:[#allocation4 + $0x281]]
    %v5137 = vstv %s5136
    %vm5138 = vcmp.eq.s32.totalorder %v68, %v5137
    %v5139 = vsel %vm5138, 1, 0
    %v5140 = vcvt.s32.f32 %v5139
    %v5141 = vsel %vm79, %v5135, %v5140
    %v5142 = vstv %s5130
    %v5143 = vmul.f32 %v5142, %v5141
    %s5144 = ssub.f32 1.0, %s5130
    %v5145 = vstv %s5144
    %v5146 = vmul.f32 %v5145, %v5126
    %v5147 = vadd.f32 %v5143, %v5146
    %v5149 = vsel %vm83, %v5147, 0
    %5151 = vmatprep.subr.mxu0 0.0
    %5152 = vmatpush1.msra.mxu0 %v2024
    %5153 = vmatprep.subr.mxu0 0.0
    %5154 = vmatpush1.msra.mxu0 %v2025
    %5155 = vmatprep.subr.mxu0 0.0
    %5156 = vmatpush1.msra.mxu0 0.0
    %5157 = vmatprep.subr.mxu0 0.0
    %5158 = vmatpush1.msra.mxu0 0.0
    %5159 = vmatprep.subr.mxu0 0.0
    %5160 = vmatpush1.msra.mxu0 0.0
    %5161 = vmatprep.subr.mxu0 0.0
    %5162 = vmatpush1.msra.mxu0 0.0
    %5163 = vmatprep.subr.mxu0 0.0
    %5164 = vmatpush1.msra.mxu0 0.0
    %5165 = vmatprep.subr.mxu0 0.0
    %5166 = vmatpush1.msra.mxu0 0.0
    %5167 = vmatprep.subr.mxu0 0.0
    %5168 = vmatpush1.msra.mxu0 0.0
    %5169 = vmatprep.subr.mxu0 0.0
    %5170 = vmatpush1.msra.mxu0 0.0
    %5171 = vmatprep.subr.mxu0 0.0
    %5172 = vmatpush1.msra.mxu0 0.0
    %5173 = vmatprep.subr.mxu0 0.0
    %5174 = vmatpush1.msra.mxu0 0.0
    %5175 = vmatprep.subr.mxu0 0.0
    %5176 = vmatpush1.msra.mxu0 0.0
    %5177 = vmatprep.subr.mxu0 0.0
    %5178 = vmatpush1.msra.mxu0 0.0
    %5179 = vmatprep.subr.mxu0 0.0
    %5180 = vmatpush1.msra.mxu0 0.0
    %5181 = vmatprep.subr.mxu0 0.0
    %5182 = vmatpush1.msra.mxu0 0.0
    %5183 = vmatprep.subr.mxu0 0.0
    %5184 = vmatpush1.msra.mxu0 0.0
    %5185 = vmatprep.subr.mxu0 0.0
    %5186 = vmatpush1.msra.mxu0 0.0
    %5187 = vmatprep.subr.mxu0 0.0
    %5188 = vmatpush1.msra.mxu0 0.0
    %5189 = vmatprep.subr.mxu0 0.0
    %5190 = vmatpush1.msra.mxu0 0.0
    %5191 = vmatprep.subr.mxu0 0.0
    %5192 = vmatpush1.msra.mxu0 0.0
    %5193 = vmatprep.subr.mxu0 0.0
    %5194 = vmatpush1.msra.mxu0 0.0
    %5195 = vmatprep.subr.mxu0 0.0
    %5196 = vmatpush1.msra.mxu0 0.0
    %5197 = vmatprep.subr.mxu0 0.0
    %5198 = vmatpush1.msra.mxu0 0.0
    %5199 = vmatprep.subr.mxu0 0.0
    %5200 = vmatpush1.msra.mxu0 0.0
    %5201 = vmatprep.subr.mxu0 0.0
    %5202 = vmatpush1.msra.mxu0 0.0
    %5203 = vmatprep.subr.mxu0 0.0
    %5204 = vmatpush1.msra.mxu0 0.0
    %5205 = vmatprep.subr.mxu0 0.0
    %5206 = vmatpush1.msra.mxu0 0.0
    %5207 = vmatprep.subr.mxu0 0.0
    %5208 = vmatpush1.msra.mxu0 0.0
    %5209 = vmatprep.subr.mxu0 0.0
    %5210 = vmatpush1.msra.mxu0 0.0
    %5211 = vmatprep.subr.mxu0 0.0
    %5212 = vmatpush1.msra.mxu0 0.0
    %5213 = vmatprep.subr.mxu0 0.0
    %5214 = vmatpush1.msra.mxu0 0.0
    %5215 = vmatprep.mubr.f32.mxu0 0.0
    %5216 = vmatmul.mubr.f32.gmra.mrb[0].mxu0 %v5149
    %v5217 = vpop.f32.mrb[0].mxu0
    %v5218 = vadd.f32 0.0, %v5217
    %v5219 = vpop.f32.mrb[0].mxu0
    %5220 = vdwg.mxu0
    %v5221 = vsel %vm83, %v5020, 0
    %5223 = vmatprep.subr.mxu0 0.0
    %5224 = vmatpush1.msra.mxu0 %v2099
    %5225 = vmatprep.subr.mxu0 0.0
    %5226 = vmatpush1.msra.mxu0 %v2100
    %5227 = vmatprep.subr.mxu0 0.0
    %5228 = vmatpush1.msra.mxu0 0.0
    %5229 = vmatprep.subr.mxu0 0.0
    %5230 = vmatpush1.msra.mxu0 0.0
    %5231 = vmatprep.subr.mxu0 0.0
    %5232 = vmatpush1.msra.mxu0 0.0
    %5233 = vmatprep.subr.mxu0 0.0
    %5234 = vmatpush1.msra.mxu0 0.0
    %5235 = vmatprep.subr.mxu0 0.0
    %5236 = vmatpush1.msra.mxu0 0.0
    %5237 = vmatprep.subr.mxu0 0.0
    %5238 = vmatpush1.msra.mxu0 0.0
    %5239 = vmatprep.subr.mxu0 0.0
    %5240 = vmatpush1.msra.mxu0 0.0
    %5241 = vmatprep.subr.mxu0 0.0
    %5242 = vmatpush1.msra.mxu0 0.0
    %5243 = vmatprep.subr.mxu0 0.0
    %5244 = vmatpush1.msra.mxu0 0.0
    %5245 = vmatprep.subr.mxu0 0.0
    %5246 = vmatpush1.msra.mxu0 0.0
    %5247 = vmatprep.subr.mxu0 0.0
    %5248 = vmatpush1.msra.mxu0 0.0
    %5249 = vmatprep.subr.mxu0 0.0
    %5250 = vmatpush1.msra.mxu0 0.0
    %5251 = vmatprep.subr.mxu0 0.0
    %5252 = vmatpush1.msra.mxu0 0.0
    %5253 = vmatprep.subr.mxu0 0.0
    %5254 = vmatpush1.msra.mxu0 0.0
    %5255 = vmatprep.subr.mxu0 0.0
    %5256 = vmatpush1.msra.mxu0 0.0
    %5257 = vmatprep.subr.mxu0 0.0
    %5258 = vmatpush1.msra.mxu0 0.0
    %5259 = vmatprep.subr.mxu0 0.0
    %5260 = vmatpush1.msra.mxu0 0.0
    %5261 = vmatprep.subr.mxu0 0.0
    %5262 = vmatpush1.msra.mxu0 0.0
    %5263 = vmatprep.subr.mxu0 0.0
    %5264 = vmatpush1.msra.mxu0 0.0
    %5265 = vmatprep.subr.mxu0 0.0
    %5266 = vmatpush1.msra.mxu0 0.0
    %5267 = vmatprep.subr.mxu0 0.0
    %5268 = vmatpush1.msra.mxu0 0.0
    %5269 = vmatprep.subr.mxu0 0.0
    %5270 = vmatpush1.msra.mxu0 0.0
    %5271 = vmatprep.subr.mxu0 0.0
    %5272 = vmatpush1.msra.mxu0 0.0
    %5273 = vmatprep.subr.mxu0 0.0
    %5274 = vmatpush1.msra.mxu0 0.0
    %5275 = vmatprep.subr.mxu0 0.0
    %5276 = vmatpush1.msra.mxu0 0.0
    %5277 = vmatprep.subr.mxu0 0.0
    %5278 = vmatpush1.msra.mxu0 0.0
    %5279 = vmatprep.subr.mxu0 0.0
    %5280 = vmatpush1.msra.mxu0 0.0
    %5281 = vmatprep.subr.mxu0 0.0
    %5282 = vmatpush1.msra.mxu0 0.0
    %5283 = vmatprep.subr.mxu0 0.0
    %5284 = vmatpush1.msra.mxu0 0.0
    %5285 = vmatprep.subr.mxu0 0.0
    %5286 = vmatpush1.msra.mxu0 0.0
    %5287 = vmatprep.mubr.f32.mxu0 0.0
    %5288 = vmatmul.mubr.f32.gmra.mrb[0].mxu0 %v5221
    %v5289 = vpop.f32.mrb[0].mxu0
    %v5290 = vadd.f32 0.0, %v5289
    %v5291 = vpop.f32.mrb[0].mxu0
    %5292 = vdwg.mxu0
    %v5295 = vunpack.c.l.s4 1966171168
    %v5296 = vunpack.c.0.s8 %v5295
    %v5297 = vlaneseq
    %v5298 = vshrl.u32 %v5297, 7
    %v5299 = vsub.s32 %v5296, %v5298
    %v5300 = vrot.slane %v5290, %v5299
    %v5301 = vcombine.high %v5300, %v5300
    %v5303 = vunpack.c.l.s4 1966171168
    %v5304 = vunpack.c.0.s8 %v5303
    %v5305 = vlaneseq
    %v5306 = vshrl.u32 %v5305, 7
    %v5307 = vsub.s32 %v5304, %v5306
    %v5308 = vrot.slane %v5300, %v5307
    %v5310 = vunpack.c.l.s4 1966171168
    %v5311 = vunpack.c.0.s8 %v5310
    %v5312 = vlaneseq
    %v5313 = vshrl.u32 %v5312, 7
    %v5314 = vsub.s32 %v5311, %v5313
    %v5315 = vrot.slane %v5301, %v5314
    %v5316 = vlaneseq
    %v5317 = vshrl.u32 %v5316, 7
    %v5318 = vsub.s32 0, %v5317
    %v5319 = vrot.slane %v5308, %v5318
    %v5320 = vlaneseq
    %v5321 = vshrl.u32 %v5320, 7
    %v5322 = vsub.s32 0, %v5321
    %v5323 = vrot.slane %v5315, %v5322
    %v5324 = vcombine.high %v5319, %v5319
    %v5326 = vunpack.c.l.s4 1983009808
    %v5327 = vunpack.c.0.s8 %v5326
    %v5328 = vlaneseq
    %v5329 = vshrl.u32 %v5328, 7
    %v5330 = vsub.s32 %v5327, %v5329
    %v5331 = vrot.slane %v5319, %v5330
    %v5333 = vunpack.c.l.s4 1983009808
    %v5334 = vunpack.c.0.s8 %v5333
    %v5335 = vlaneseq
    %v5336 = vshrl.u32 %v5335, 7
    %v5337 = vsub.s32 %v5334, %v5336
    %v5338 = vrot.slane %v5324, %v5337
    %v5339 = vcombine.high %v5331, %v5331
    %v5340 = vcombine.high %v5323, %v5323
    %v5342 = vunpack.c.l.s4 1983009808
    %v5343 = vunpack.c.0.s8 %v5342
    %v5344 = vlaneseq
    %v5345 = vshrl.u32 %v5344, 7
    %v5346 = vsub.s32 %v5343, %v5345
    %v5347 = vrot.slane %v5323, %v5346
    %v5349 = vunpack.c.l.s4 1983009808
    %v5350 = vunpack.c.0.s8 %v5349
    %v5351 = vlaneseq
    %v5352 = vshrl.u32 %v5351, 7
    %v5353 = vsub.s32 %v5350, %v5352
    %v5354 = vrot.slane %v5340, %v5353
    %v5355 = vcombine.high %v5347, %v5347
    %v5362 = vadd.f32 %v1989, %v5331
    %v5363 = vadd.f32 %v1997, %v5339
    %v5364 = vadd.f32 %v1996, %v5338
    %v5365 = vadd.f32 %v1998, %v5347
    %v5366 = vadd.f32 %v2005, %v5355
    %v5367 = vadd.f32 %v2006, %v5354
    %v5368 = vtanh.pop %v5362
    %v5369 = vtanh.pop %v5363
    %v5370 = vtanh.pop %v5364
    %v5371 = vtanh.pop %v5365
    %v5372 = vtanh.pop %v5366
    %v5373 = vtanh.pop %v5367
    %v5374 = vmul.f32 %v5368, %v2263
    %v5375 = vmul.f32 %v5369, %v2271
    %v5376 = vmul.f32 %v5370, %v2270
    %v5377 = vmul.f32 %v5371, %v2263
    %v5378 = vmul.f32 %v5372, %v2271
    %v5379 = vmul.f32 %v5373, %v2270
    %v5386 = vcombine.low %v5374, %v5375
    %v5388 = vunpack.c.l.s4 1983009808
    %v5389 = vunpack.c.0.s8 %v5388
    %v5390 = vlaneseq
    %v5391 = vshrl.u32 %v5390, 7
    %v5392 = vsub.s32 %v5389, %v5391
    %v5393 = vrot.slane %v5386, %v5392
    %v5395 = vunpack.c.l.s4 1983009808
    %v5396 = vunpack.c.0.s8 %v5395
    %v5397 = vlaneseq
    %v5398 = vshrl.u32 %v5397, 7
    %v5399 = vsub.s32 %v5396, %v5398
    %v5400 = vrot.slane %v5376, %v5399
    %v5401 = vcombine.low %v5393, %v5400
    %v5402 = vcombine.low %v5377, %v5378
    %v5404 = vunpack.c.l.s4 1983009808
    %v5405 = vunpack.c.0.s8 %v5404
    %v5406 = vlaneseq
    %v5407 = vshrl.u32 %v5406, 7
    %v5408 = vsub.s32 %v5405, %v5407
    %v5409 = vrot.slane %v5402, %v5408
    %v5411 = vunpack.c.l.s4 1983009808
    %v5412 = vunpack.c.0.s8 %v5411
    %v5413 = vlaneseq
    %v5414 = vshrl.u32 %v5413, 7
    %v5415 = vsub.s32 %v5412, %v5414
    %v5416 = vrot.slane %v5379, %v5415
    %v5417 = vcombine.low %v5409, %v5416
    %v5420 = vsel %vm2321, %v5401, 0.0
    %5421 = vadd.xlane.f32.xlu0 %v5420
    %v5422 = vpop.xlane.xlu0 %5421
    %v5423 = vsel %vm2321, %v5417, 0.0
    %5424 = vadd.xlane.f32.xlu0 %v5423
    %v5425 = vpop.xlane.xlu0 %5424
    %v5428 = vlaneseq
    %v5429 = vshrl.u32 %v5428, 7
    %v5430 = vsub.s32 %v68, %v5429
    %v5431 = vrot.slane %v5422, %v5430
    %v5432 = vlaneseq
    %v5433 = vshrl.u32 %v5432, 7
    %v5434 = vsub.s32 %v68, %v5433
    %v5435 = vrot.slane %v5425, %v5434
    %v5436 = vsel %vm2338, %v5435, %v5431
    %v5438 = vsel %vm2341, %v5436, -inf
    %5439 = vmax.xlane.f32.xlu0 %v5438
    %v5440 = vpop.xlane.xlu0 %5439
    %v5442 = vlaneseq
    %v5443 = vshrl.u32 %v5442, 7
    %v5444 = vsub.s32 0, %v5443
    %v5445 = vrot.slane %v5440, %v5444
    %v5446 = vlaneseq
    %v5447 = vshrl.u32 %v5446, 7
    %v5448 = vsub.s32 1, %v5447
    %v5449 = vrot.slane %v5440, %v5448
    %v5452 = vsub.f32 %v5422, %v5445
    %v5453 = vsub.f32 %v5425, %v5449
    %v5454 = vmul.f32 %v5452, 1.442695
    %v5455 = vpow.pop %v5454
    %v5456 = vmul.f32 %v5453, 1.442695
    %v5457 = vpow.pop %v5456
    %5460 = vset.pattern.permute.xlu0 0
    %5461 = vperm.xlu0 %5460, %v5455
    %v5462 = vpop.permute.xlu0 %5461
    %5463 = vset.pattern.permute.xlu0 0
    %5464 = vperm.xlu0 %5463, %v5457
    %v5465 = vpop.permute.xlu0 %5464
    %v5466 = vlaneseq
    %v5467 = vshrl.u32 %v5466, 7
    %v5468 = vsub.s32 %v68, %v5467
    %v5469 = vrot.slane %v5462, %v5468
    %v5470 = vlaneseq
    %v5471 = vshrl.u32 %v5470, 7
    %v5472 = vsub.s32 %v68, %v5471
    %v5473 = vrot.slane %v5465, %v5472
    %v5474 = vsel %vm2338, %v5473, %v5469
    %v5476 = vsel %vm2341, %v5474, 0.0
    %5477 = vadd.xlane.f32.xlu0 %v5476
    %v5478 = vpop.xlane.xlu0 %5477
    %v5480 = vlaneseq
    %v5481 = vshrl.u32 %v5480, 7
    %v5482 = vsub.s32 0, %v5481
    %v5483 = vrot.slane %v5478, %v5482
    %v5484 = vlaneseq
    %v5485 = vshrl.u32 %v5484, 7
    %v5486 = vsub.s32 1, %v5485
    %v5487 = vrot.slane %v5478, %v5486
    %v5490 = vrcp.pop %v5483
    %v5491 = vmul.f32 %v5455, %v5490
    %v5492 = vrcp.pop %v5487
    %v5493 = vmul.f32 %v5457, %v5492
    %5495 = vset.pattern.permute.xlu0 0
    %5496 = vperm.xlu0 %5495, %v5491
    %v5497 = vpop.permute.xlu0 %5496
    %5500 = vset.pattern.permute.xlu0 0
    %5501 = vperm.xlu0 %5500, %v5493
    %v5502 = vpop.permute.xlu0 %5501
    %v5504 = vmul.f32 %v5497, %v1713
    %v5505 = vmul.f32 %v5502, %v1714
    %v5506 = vsel %vm2410, %v5504, 0.0
    %v5507 = vrot.slane %v5506, 4
    %v5508 = vadd.f32 %v5506, %v5507
    %v5509 = vrot.slane %v5508, 2
    %v5510 = vadd.f32 %v5508, %v5509
    %v5511 = vrot.slane %v5510, 1
    %v5512 = vadd.f32 %v5510, %v5511
    %v5513 = vsel %vm2410, %v5505, 0.0
    %v5514 = vrot.slane %v5513, 4
    %v5515 = vadd.f32 %v5513, %v5514
    %v5516 = vrot.slane %v5515, 2
    %v5517 = vadd.f32 %v5515, %v5516
    %v5518 = vrot.slane %v5517, 1
    %v5519 = vadd.f32 %v5517, %v5518
    %v5522 = vsel %vm2338, %v5519, %v5512
    %5523 = vrot.lane.b32.xlu0 %v5522, 8
    %v5524 = vpop.permute.xlu0 %5523
    %5526 = vrot.lane.b32.xlu0 %v5017, 24
    %v5527 = vpop.permute.xlu0 %5526
    %v5529 = vsel %vm581, %v5218, %v5524
    %v5530 = vsel %vm2435, %v5529, %v5527
    %v5532 = vsel %vm2444, %v5530, 0
    %5534 = vmatprep.subr.mxu0 0.0
    %5535 = vmatpush1.msra.mxu0 %v2437
    %5536 = vmatprep.subr.mxu0 0.0
    %5537 = vmatpush1.msra.mxu0 %v2438
    %5538 = vmatprep.subr.mxu0 0.0
    %5539 = vmatpush1.msra.mxu0 %v2439
    %5540 = vmatprep.subr.mxu0 0.0
    %5541 = vmatpush1.msra.mxu0 %v2440
    %5542 = vmatprep.subr.mxu0 0.0
    %5543 = vmatpush1.msra.mxu0 %v2441
    %5544 = vmatprep.subr.mxu0 0.0
    %5545 = vmatpush1.msra.mxu0 %v2442
    %5546 = vmatprep.subr.mxu0 0.0
    %5547 = vmatpush1.msra.mxu0 %v2443
    %5548 = vmatprep.subr.mxu0 0.0
    %5549 = vmatpush1.msra.mxu0 0.0
    %5550 = vmatprep.subr.mxu0 0.0
    %5551 = vmatpush1.msra.mxu0 0.0
    %5552 = vmatprep.subr.mxu0 0.0
    %5553 = vmatpush1.msra.mxu0 0.0
    %5554 = vmatprep.subr.mxu0 0.0
    %5555 = vmatpush1.msra.mxu0 0.0
    %5556 = vmatprep.subr.mxu0 0.0
    %5557 = vmatpush1.msra.mxu0 0.0
    %5558 = vmatprep.subr.mxu0 0.0
    %5559 = vmatpush1.msra.mxu0 0.0
    %5560 = vmatprep.subr.mxu0 0.0
    %5561 = vmatpush1.msra.mxu0 0.0
    %5562 = vmatprep.subr.mxu0 0.0
    %5563 = vmatpush1.msra.mxu0 0.0
    %5564 = vmatprep.subr.mxu0 0.0
    %5565 = vmatpush1.msra.mxu0 0.0
    %5566 = vmatprep.subr.mxu0 0.0
    %5567 = vmatpush1.msra.mxu0 0.0
    %5568 = vmatprep.subr.mxu0 0.0
    %5569 = vmatpush1.msra.mxu0 0.0
    %5570 = vmatprep.subr.mxu0 0.0
    %5571 = vmatpush1.msra.mxu0 0.0
    %5572 = vmatprep.subr.mxu0 0.0
    %5573 = vmatpush1.msra.mxu0 0.0
    %5574 = vmatprep.subr.mxu0 0.0
    %5575 = vmatpush1.msra.mxu0 0.0
    %5576 = vmatprep.subr.mxu0 0.0
    %5577 = vmatpush1.msra.mxu0 0.0
    %5578 = vmatprep.subr.mxu0 0.0
    %5579 = vmatpush1.msra.mxu0 0.0
    %5580 = vmatprep.subr.mxu0 0.0
    %5581 = vmatpush1.msra.mxu0 0.0
    %5582 = vmatprep.subr.mxu0 0.0
    %5583 = vmatpush1.msra.mxu0 0.0
    %5584 = vmatprep.subr.mxu0 0.0
    %5585 = vmatpush1.msra.mxu0 0.0
    %5586 = vmatprep.subr.mxu0 0.0
    %5587 = vmatpush1.msra.mxu0 0.0
    %5588 = vmatprep.subr.mxu0 0.0
    %5589 = vmatpush1.msra.mxu0 0.0
    %5590 = vmatprep.subr.mxu0 0.0
    %5591 = vmatpush1.msra.mxu0 0.0
    %5592 = vmatprep.subr.mxu0 0.0
    %5593 = vmatpush1.msra.mxu0 0.0
    %5594 = vmatprep.subr.mxu0 0.0
    %5595 = vmatpush1.msra.mxu0 0.0
    %5596 = vmatprep.subr.mxu0 0.0
    %5597 = vmatpush1.msra.mxu0 0.0
    %5598 = vmatprep.mubr.f32.mxu0 0.0
    %5599 = vmatmul.mubr.f32.gmra.mrb[0].mxu0 %v5532
    %v5600 = vpop.f32.mrb[0].mxu0
    %v5601 = vadd.f32 %v65, %v5600
    %v5602 = vpop.f32.mrb[0].mxu0
    %5603 = vdwg.mxu0
    %5605 = vrot.lane.b32.xlu0 %v5601, 80
    %v5606 = vpop.permute.xlu0 %5605
    %v5608 = vadd.f32 %v5601, %v5606
    %v5609 = vxor.u32 %v5608, 2147483648
    %v5610 = vmul.f32 %v5609, 1.442695
    %v5611 = vpow.pop %v5610
    %v5612 = vadd.f32 %v5611, 1.0
    %v5613 = vrcp.pop %v5612
    %v5614 = vmul.f32 1.0, %v5613
    %5615 = vrot.lane.b32.xlu0 %v5601, 48
    %v5616 = vpop.permute.xlu0 %5615
    %v5618 = vmul.f32 %v5614, %v5616
    %5620 = vrot.lane.b32.xlu0 %v5618, 32
    %v5621 = vpop.permute.xlu0 %5620
    %v5623 = vadd.f32 %v5601, %v5621
    %v5624 = vtanh.pop %v5623
    %v5625 = vsub.f32 1.0, %v5614
    %5627 = vrot.lane.b32.xlu0 %v5624, 112
    %v5628 = vpop.permute.xlu0 %5627
    %v5630 = vmul.f32 %v5625, %v5628
    %v5631 = vmul.f32 %v5614, %v5017
    %v5632 = vadd.f32 %v5630, %v5631
    %5634 = vrot.lane.b32.xlu0 %v5632, 112
    %v5635 = vpop.permute.xlu0 %5634
    %5637 = vrot.lane.b32.xlu0 %v5522, 16
    %v5638 = vpop.permute.xlu0 %5637
    %5641 = vrot.lane.b32.xlu0 %v5218, 48
    %v5642 = vpop.permute.xlu0 %5641
    %v5644 = vsel %vm83, %v5635, %v5638
    %v5645 = vsel %vm599, %v5644, %v5642
    %v5647 = vsel %vm2444, %v5645, 0
    %5649 = vmatprep.subr.mxu0 0.0
    %5650 = vmatpush1.msra.mxu0 %v2563
    %5651 = vmatprep.subr.mxu0 0.0
    %5652 = vmatpush1.msra.mxu0 %v2564
    %5653 = vmatprep.subr.mxu0 0.0
    %5654 = vmatpush1.msra.mxu0 %v2565
    %5655 = vmatprep.subr.mxu0 0.0
    %5656 = vmatpush1.msra.mxu0 %v2566
    %5657 = vmatprep.subr.mxu0 0.0
    %5658 = vmatpush1.msra.mxu0 %v2567
    %5659 = vmatprep.subr.mxu0 0.0
    %5660 = vmatpush1.msra.mxu0 %v2568
    %5661 = vmatprep.subr.mxu0 0.0
    %5662 = vmatpush1.msra.mxu0 %v2569
    %5663 = vmatprep.subr.mxu0 0.0
    %5664 = vmatpush1.msra.mxu0 0.0
    %5665 = vmatprep.subr.mxu0 0.0
    %5666 = vmatpush1.msra.mxu0 0.0
    %5667 = vmatprep.subr.mxu0 0.0
    %5668 = vmatpush1.msra.mxu0 0.0
    %5669 = vmatprep.subr.mxu0 0.0
    %5670 = vmatpush1.msra.mxu0 0.0
    %5671 = vmatprep.subr.mxu0 0.0
    %5672 = vmatpush1.msra.mxu0 0.0
    %5673 = vmatprep.subr.mxu0 0.0
    %5674 = vmatpush1.msra.mxu0 0.0
    %5675 = vmatprep.subr.mxu0 0.0
    %5676 = vmatpush1.msra.mxu0 0.0
    %5677 = vmatprep.subr.mxu0 0.0
    %5678 = vmatpush1.msra.mxu0 0.0
    %5679 = vmatprep.subr.mxu0 0.0
    %5680 = vmatpush1.msra.mxu0 0.0
    %5681 = vmatprep.subr.mxu0 0.0
    %5682 = vmatpush1.msra.mxu0 0.0
    %5683 = vmatprep.subr.mxu0 0.0
    %5684 = vmatpush1.msra.mxu0 0.0
    %5685 = vmatprep.subr.mxu0 0.0
    %5686 = vmatpush1.msra.mxu0 0.0
    %5687 = vmatprep.subr.mxu0 0.0
    %5688 = vmatpush1.msra.mxu0 0.0
    %5689 = vmatprep.subr.mxu0 0.0
    %5690 = vmatpush1.msra.mxu0 0.0
    %5691 = vmatprep.subr.mxu0 0.0
    %5692 = vmatpush1.msra.mxu0 0.0
    %5693 = vmatprep.subr.mxu0 0.0
    %5694 = vmatpush1.msra.mxu0 0.0
    %5695 = vmatprep.subr.mxu0 0.0
    %5696 = vmatpush1.msra.mxu0 0.0
    %5697 = vmatprep.subr.mxu0 0.0
    %5698 = vmatpush1.msra.mxu0 0.0
    %5699 = vmatprep.subr.mxu0 0.0
    %5700 = vmatpush1.msra.mxu0 0.0
    %5701 = vmatprep.subr.mxu0 0.0
    %5702 = vmatpush1.msra.mxu0 0.0
    %5703 = vmatprep.subr.mxu0 0.0
    %5704 = vmatpush1.msra.mxu0 0.0
    %5705 = vmatprep.subr.mxu0 0.0
    %5706 = vmatpush1.msra.mxu0 0.0
    %5707 = vmatprep.subr.mxu0 0.0
    %5708 = vmatpush1.msra.mxu0 0.0
    %5709 = vmatprep.subr.mxu0 0.0
    %5710 = vmatpush1.msra.mxu0 0.0
    %5711 = vmatprep.subr.mxu0 0.0
    %5712 = vmatpush1.msra.mxu0 0.0
    %5713 = vmatprep.mubr.f32.mxu0 0.0
    %5714 = vmatmul.mubr.f32.gmra.mrb[0].mxu0 %v5647
    %v5715 = vpop.f32.mrb[0].mxu0
    %v5716 = vadd.f32 %v66, %v5715
    %v5717 = vpop.f32.mrb[0].mxu0
    %5718 = vdwg.mxu0
    %v5719 = vsel %vm2643, %v5716, -inf
    %5720 = vmax.xlane.f32.xlu0 %v5719
    %v5721 = vpop.xlane.xlu0 %5720
    %vm5722 = vcmp.eq.f32.partialorder %v5716, %v5721
    %v5723 = vsel %vm5722, %v68, 16
    %v5724 = vsel %vm2643, %v5723, 2147483647
    %v5725 = vand.u32 %v5724, 65535
    %v5726 = vshra.s32 %v5724, 16
    %v5727 = vcvt.s32.f32 %v5725
    %v5728 = vcvt.s32.f32 %v5726
    %5729 = vmin.xlane.f32.xlu0 %v5728
    %v5730 = vpop.xlane.xlu0 %5729
    %vm5731 = vcmp.eq.f32.partialorder %v5728, %v5730
    %v5732 = vsel %vm5731, %v5727, inf
    %5733 = vmin.xlane.f32.xlu0 %v5732
    %v5734 = vpop.xlane.xlu0 %5733
    %v5735 = vcvt.f32.s32 %v5734
    %v5736 = vcvt.f32.s32 %v5730
    %v5737 = vshll.u32 %v5736, 16
    %v5738 = vadd.s32 %v5737, %v5735
    %vm5739 = vcmp.eq.s32.totalorder %v68, %v5738
    %v5740 = vsel %vm5739, 1, 0
    %v5741 = vcvt.s32.f32 %v5740
    %s5742 = sld [smem:[#allocation5 + $0x5]]
    %p5743 = scmp.eq.s32.totalorder %s5742, 1
    %s5744 = scalar_select %p5743, 1, 0
    %s5745 = scvt.s32.f32 %s5744
    %s5746 = sld [smem:[#allocation4 + $0x300]]
    %v5747 = vstv %s5746
    %vm5748 = vcmp.eq.s32.totalorder %v68, %v5747
    %v5749 = vsel %vm5748, 1, 0
    %v5750 = vcvt.s32.f32 %v5749
    %s5751 = sld [smem:[#allocation4 + $0x301]]
    %v5752 = vstv %s5751
    %vm5753 = vcmp.eq.s32.totalorder %v68, %v5752
    %v5754 = vsel %vm5753, 1, 0
    %v5755 = vcvt.s32.f32 %v5754
    %v5756 = vsel %vm79, %v5750, %v5755
    %v5757 = vstv %s5745
    %v5758 = vmul.f32 %v5757, %v5756
    %s5759 = ssub.f32 1.0, %s5745
    %v5760 = vstv %s5759
    %v5761 = vmul.f32 %v5760, %v5741
    %v5762 = vadd.f32 %v5758, %v5761
    %v5764 = vsel %vm83, %v5762, 0
    %5766 = vmatprep.subr.mxu0 0.0
    %5767 = vmatpush1.msra.mxu0 %v2024
    %5768 = vmatprep.subr.mxu0 0.0
    %5769 = vmatpush1.msra.mxu0 %v2025
    %5770 = vmatprep.subr.mxu0 0.0
    %5771 = vmatpush1.msra.mxu0 0.0
    %5772 = vmatprep.subr.mxu0 0.0
    %5773 = vmatpush1.msra.mxu0 0.0
    %5774 = vmatprep.subr.mxu0 0.0
    %5775 = vmatpush1.msra.mxu0 0.0
    %5776 = vmatprep.subr.mxu0 0.0
    %5777 = vmatpush1.msra.mxu0 0.0
    %5778 = vmatprep.subr.mxu0 0.0
    %5779 = vmatpush1.msra.mxu0 0.0
    %5780 = vmatprep.subr.mxu0 0.0
    %5781 = vmatpush1.msra.mxu0 0.0
    %5782 = vmatprep.subr.mxu0 0.0
    %5783 = vmatpush1.msra.mxu0 0.0
    %5784 = vmatprep.subr.mxu0 0.0
    %5785 = vmatpush1.msra.mxu0 0.0
    %5786 = vmatprep.subr.mxu0 0.0
    %5787 = vmatpush1.msra.mxu0 0.0
    %5788 = vmatprep.subr.mxu0 0.0
    %5789 = vmatpush1.msra.mxu0 0.0
    %5790 = vmatprep.subr.mxu0 0.0
    %5791 = vmatpush1.msra.mxu0 0.0
    %5792 = vmatprep.subr.mxu0 0.0
    %5793 = vmatpush1.msra.mxu0 0.0
    %5794 = vmatprep.subr.mxu0 0.0
    %5795 = vmatpush1.msra.mxu0 0.0
    %5796 = vmatprep.subr.mxu0 0.0
    %5797 = vmatpush1.msra.mxu0 0.0
    %5798 = vmatprep.subr.mxu0 0.0
    %5799 = vmatpush1.msra.mxu0 0.0
    %5800 = vmatprep.subr.mxu0 0.0
    %5801 = vmatpush1.msra.mxu0 0.0
    %5802 = vmatprep.subr.mxu0 0.0
    %5803 = vmatpush1.msra.mxu0 0.0
    %5804 = vmatprep.subr.mxu0 0.0
    %5805 = vmatpush1.msra.mxu0 0.0
    %5806 = vmatprep.subr.mxu0 0.0
    %5807 = vmatpush1.msra.mxu0 0.0
    %5808 = vmatprep.subr.mxu0 0.0
    %5809 = vmatpush1.msra.mxu0 0.0
    %5810 = vmatprep.subr.mxu0 0.0
    %5811 = vmatpush1.msra.mxu0 0.0
    %5812 = vmatprep.subr.mxu0 0.0
    %5813 = vmatpush1.msra.mxu0 0.0
    %5814 = vmatprep.subr.mxu0 0.0
    %5815 = vmatpush1.msra.mxu0 0.0
    %5816 = vmatprep.subr.mxu0 0.0
    %5817 = vmatpush1.msra.mxu0 0.0
    %5818 = vmatprep.subr.mxu0 0.0
    %5819 = vmatpush1.msra.mxu0 0.0
    %5820 = vmatprep.subr.mxu0 0.0
    %5821 = vmatpush1.msra.mxu0 0.0
    %5822 = vmatprep.subr.mxu0 0.0
    %5823 = vmatpush1.msra.mxu0 0.0
    %5824 = vmatprep.subr.mxu0 0.0
    %5825 = vmatpush1.msra.mxu0 0.0
    %5826 = vmatprep.subr.mxu0 0.0
    %5827 = vmatpush1.msra.mxu0 0.0
    %5828 = vmatprep.subr.mxu0 0.0
    %5829 = vmatpush1.msra.mxu0 0.0
    %5830 = vmatprep.mubr.f32.mxu0 0.0
    %5831 = vmatmul.mubr.f32.gmra.mrb[0].mxu0 %v5764
    %v5832 = vpop.f32.mrb[0].mxu0
    %v5833 = vadd.f32 0.0, %v5832
    %v5834 = vpop.f32.mrb[0].mxu0
    %5835 = vdwg.mxu0
    %v5836 = vsel %vm83, %v5635, 0
    %5838 = vmatprep.subr.mxu0 0.0
    %5839 = vmatpush1.msra.mxu0 %v2099
    %5840 = vmatprep.subr.mxu0 0.0
    %5841 = vmatpush1.msra.mxu0 %v2100
    %5842 = vmatprep.subr.mxu0 0.0
    %5843 = vmatpush1.msra.mxu0 0.0
    %5844 = vmatprep.subr.mxu0 0.0
    %5845 = vmatpush1.msra.mxu0 0.0
    %5846 = vmatprep.subr.mxu0 0.0
    %5847 = vmatpush1.msra.mxu0 0.0
    %5848 = vmatprep.subr.mxu0 0.0
    %5849 = vmatpush1.msra.mxu0 0.0
    %5850 = vmatprep.subr.mxu0 0.0
    %5851 = vmatpush1.msra.mxu0 0.0
    %5852 = vmatprep.subr.mxu0 0.0
    %5853 = vmatpush1.msra.mxu0 0.0
    %5854 = vmatprep.subr.mxu0 0.0
    %5855 = vmatpush1.msra.mxu0 0.0
    %5856 = vmatprep.subr.mxu0 0.0
    %5857 = vmatpush1.msra.mxu0 0.0
    %5858 = vmatprep.subr.mxu0 0.0
    %5859 = vmatpush1.msra.mxu0 0.0
    %5860 = vmatprep.subr.mxu0 0.0
    %5861 = vmatpush1.msra.mxu0 0.0
    %5862 = vmatprep.subr.mxu0 0.0
    %5863 = vmatpush1.msra.mxu0 0.0
    %5864 = vmatprep.subr.mxu0 0.0
    %5865 = vmatpush1.msra.mxu0 0.0
    %5866 = vmatprep.subr.mxu0 0.0
    %5867 = vmatpush1.msra.mxu0 0.0
    %5868 = vmatprep.subr.mxu0 0.0
    %5869 = vmatpush1.msra.mxu0 0.0
    %5870 = vmatprep.subr.mxu0 0.0
    %5871 = vmatpush1.msra.mxu0 0.0
    %5872 = vmatprep.subr.mxu0 0.0
    %5873 = vmatpush1.msra.mxu0 0.0
    %5874 = vmatprep.subr.mxu0 0.0
    %5875 = vmatpush1.msra.mxu0 0.0
    %5876 = vmatprep.subr.mxu0 0.0
    %5877 = vmatpush1.msra.mxu0 0.0
    %5878 = vmatprep.subr.mxu0 0.0
    %5879 = vmatpush1.msra.mxu0 0.0
    %5880 = vmatprep.subr.mxu0 0.0
    %5881 = vmatpush1.msra.mxu0 0.0
    %5882 = vmatprep.subr.mxu0 0.0
    %5883 = vmatpush1.msra.mxu0 0.0
    %5884 = vmatprep.subr.mxu0 0.0
    %5885 = vmatpush1.msra.mxu0 0.0
    %5886 = vmatprep.subr.mxu0 0.0
    %5887 = vmatpush1.msra.mxu0 0.0
    %5888 = vmatprep.subr.mxu0 0.0
    %5889 = vmatpush1.msra.mxu0 0.0
    %5890 = vmatprep.subr.mxu0 0.0
    %5891 = vmatpush1.msra.mxu0 0.0
    %5892 = vmatprep.subr.mxu0 0.0
    %5893 = vmatpush1.msra.mxu0 0.0
    %5894 = vmatprep.subr.mxu0 0.0
    %5895 = vmatpush1.msra.mxu0 0.0
    %5896 = vmatprep.subr.mxu0 0.0
    %5897 = vmatpush1.msra.mxu0 0.0
    %5898 = vmatprep.subr.mxu0 0.0
    %5899 = vmatpush1.msra.mxu0 0.0
    %5900 = vmatprep.subr.mxu0 0.0
    %5901 = vmatpush1.msra.mxu0 0.0
    %5902 = vmatprep.mubr.f32.mxu0 0.0
    %5903 = vmatmul.mubr.f32.gmra.mrb[0].mxu0 %v5836
    %v5904 = vpop.f32.mrb[0].mxu0
    %v5905 = vadd.f32 0.0, %v5904
    %v5906 = vpop.f32.mrb[0].mxu0
    %5907 = vdwg.mxu0
    %v5910 = vunpack.c.l.s4 1966171168
    %v5911 = vunpack.c.0.s8 %v5910
    %v5912 = vlaneseq
    %v5913 = vshrl.u32 %v5912, 7
    %v5914 = vsub.s32 %v5911, %v5913
    %v5915 = vrot.slane %v5905, %v5914
    %v5916 = vcombine.high %v5915, %v5915
    %v5918 = vunpack.c.l.s4 1966171168
    %v5919 = vunpack.c.0.s8 %v5918
    %v5920 = vlaneseq
    %v5921 = vshrl.u32 %v5920, 7
    %v5922 = vsub.s32 %v5919, %v5921
    %v5923 = vrot.slane %v5915, %v5922
    %v5925 = vunpack.c.l.s4 1966171168
    %v5926 = vunpack.c.0.s8 %v5925
    %v5927 = vlaneseq
    %v5928 = vshrl.u32 %v5927, 7
    %v5929 = vsub.s32 %v5926, %v5928
    %v5930 = vrot.slane %v5916, %v5929
    %v5931 = vlaneseq
    %v5932 = vshrl.u32 %v5931, 7
    %v5933 = vsub.s32 0, %v5932
    %v5934 = vrot.slane %v5923, %v5933
    %v5935 = vlaneseq
    %v5936 = vshrl.u32 %v5935, 7
    %v5937 = vsub.s32 0, %v5936
    %v5938 = vrot.slane %v5930, %v5937
    %v5939 = vcombine.high %v5934, %v5934
    %v5941 = vunpack.c.l.s4 1983009808
    %v5942 = vunpack.c.0.s8 %v5941
    %v5943 = vlaneseq
    %v5944 = vshrl.u32 %v5943, 7
    %v5945 = vsub.s32 %v5942, %v5944
    %v5946 = vrot.slane %v5934, %v5945
    %v5948 = vunpack.c.l.s4 1983009808
    %v5949 = vunpack.c.0.s8 %v5948
    %v5950 = vlaneseq
    %v5951 = vshrl.u32 %v5950, 7
    %v5952 = vsub.s32 %v5949, %v5951
    %v5953 = vrot.slane %v5939, %v5952
    %v5954 = vcombine.high %v5946, %v5946
    %v5955 = vcombine.high %v5938, %v5938
    %v5957 = vunpack.c.l.s4 1983009808
    %v5958 = vunpack.c.0.s8 %v5957
    %v5959 = vlaneseq
    %v5960 = vshrl.u32 %v5959, 7
    %v5961 = vsub.s32 %v5958, %v5960
    %v5962 = vrot.slane %v5938, %v5961
    %v5964 = vunpack.c.l.s4 1983009808
    %v5965 = vunpack.c.0.s8 %v5964
    %v5966 = vlaneseq
    %v5967 = vshrl.u32 %v5966, 7
    %v5968 = vsub.s32 %v5965, %v5967
    %v5969 = vrot.slane %v5955, %v5968
    %v5970 = vcombine.high %v5962, %v5962
    %v5977 = vadd.f32 %v1989, %v5946
    %v5978 = vadd.f32 %v1997, %v5954
    %v5979 = vadd.f32 %v1996, %v5953
    %v5980 = vadd.f32 %v1998, %v5962
    %v5981 = vadd.f32 %v2005, %v5970
    %v5982 = vadd.f32 %v2006, %v5969
    %v5983 = vtanh.pop %v5977
    %v5984 = vtanh.pop %v5978
    %v5985 = vtanh.pop %v5979
    %v5986 = vtanh.pop %v5980
    %v5987 = vtanh.pop %v5981
    %v5988 = vtanh.pop %v5982
    %v5989 = vmul.f32 %v5983, %v2263
    %v5990 = vmul.f32 %v5984, %v2271
    %v5991 = vmul.f32 %v5985, %v2270
    %v5992 = vmul.f32 %v5986, %v2263
    %v5993 = vmul.f32 %v5987, %v2271
    %v5994 = vmul.f32 %v5988, %v2270
    %v6001 = vcombine.low %v5989, %v5990
    %v6003 = vunpack.c.l.s4 1983009808
    %v6004 = vunpack.c.0.s8 %v6003
    %v6005 = vlaneseq
    %v6006 = vshrl.u32 %v6005, 7
    %v6007 = vsub.s32 %v6004, %v6006
    %v6008 = vrot.slane %v6001, %v6007
    %v6010 = vunpack.c.l.s4 1983009808
    %v6011 = vunpack.c.0.s8 %v6010
    %v6012 = vlaneseq
    %v6013 = vshrl.u32 %v6012, 7
    %v6014 = vsub.s32 %v6011, %v6013
    %v6015 = vrot.slane %v5991, %v6014
    %v6016 = vcombine.low %v6008, %v6015
    %v6017 = vcombine.low %v5992, %v5993
    %v6019 = vunpack.c.l.s4 1983009808
    %v6020 = vunpack.c.0.s8 %v6019
    %v6021 = vlaneseq
    %v6022 = vshrl.u32 %v6021, 7
    %v6023 = vsub.s32 %v6020, %v6022
    %v6024 = vrot.slane %v6017, %v6023
    %v6026 = vunpack.c.l.s4 1983009808
    %v6027 = vunpack.c.0.s8 %v6026
    %v6028 = vlaneseq
    %v6029 = vshrl.u32 %v6028, 7
    %v6030 = vsub.s32 %v6027, %v6029
    %v6031 = vrot.slane %v5994, %v6030
    %v6032 = vcombine.low %v6024, %v6031
    %v6035 = vsel %vm2321, %v6016, 0.0
    %6036 = vadd.xlane.f32.xlu0 %v6035
    %v6037 = vpop.xlane.xlu0 %6036
    %v6038 = vsel %vm2321, %v6032, 0.0
    %6039 = vadd.xlane.f32.xlu0 %v6038
    %v6040 = vpop.xlane.xlu0 %6039
    %v6043 = vlaneseq
    %v6044 = vshrl.u32 %v6043, 7
    %v6045 = vsub.s32 %v68, %v6044
    %v6046 = vrot.slane %v6037, %v6045
    %v6047 = vlaneseq
    %v6048 = vshrl.u32 %v6047, 7
    %v6049 = vsub.s32 %v68, %v6048
    %v6050 = vrot.slane %v6040, %v6049
    %v6051 = vsel %vm2338, %v6050, %v6046
    %v6053 = vsel %vm2341, %v6051, -inf
    %6054 = vmax.xlane.f32.xlu0 %v6053
    %v6055 = vpop.xlane.xlu0 %6054
    %v6057 = vlaneseq
    %v6058 = vshrl.u32 %v6057, 7
    %v6059 = vsub.s32 0, %v6058
    %v6060 = vrot.slane %v6055, %v6059
    %v6061 = vlaneseq
    %v6062 = vshrl.u32 %v6061, 7
    %v6063 = vsub.s32 1, %v6062
    %v6064 = vrot.slane %v6055, %v6063
    %v6067 = vsub.f32 %v6037, %v6060
    %v6068 = vsub.f32 %v6040, %v6064
    %v6069 = vmul.f32 %v6067, 1.442695
    %v6070 = vpow.pop %v6069
    %v6071 = vmul.f32 %v6068, 1.442695
    %v6072 = vpow.pop %v6071
    %6075 = vset.pattern.permute.xlu0 0
    %6076 = vperm.xlu0 %6075, %v6070
    %v6077 = vpop.permute.xlu0 %6076
    %6078 = vset.pattern.permute.xlu0 0
    %6079 = vperm.xlu0 %6078, %v6072
    %v6080 = vpop.permute.xlu0 %6079
    %v6081 = vlaneseq
    %v6082 = vshrl.u32 %v6081, 7
    %v6083 = vsub.s32 %v68, %v6082
    %v6084 = vrot.slane %v6077, %v6083
    %v6085 = vlaneseq
    %v6086 = vshrl.u32 %v6085, 7
    %v6087 = vsub.s32 %v68, %v6086
    %v6088 = vrot.slane %v6080, %v6087
    %v6089 = vsel %vm2338, %v6088, %v6084
    %v6091 = vsel %vm2341, %v6089, 0.0
    %6092 = vadd.xlane.f32.xlu0 %v6091
    %v6093 = vpop.xlane.xlu0 %6092
    %v6095 = vlaneseq
    %v6096 = vshrl.u32 %v6095, 7
    %v6097 = vsub.s32 0, %v6096
    %v6098 = vrot.slane %v6093, %v6097
    %v6099 = vlaneseq
    %v6100 = vshrl.u32 %v6099, 7
    %v6101 = vsub.s32 1, %v6100
    %v6102 = vrot.slane %v6093, %v6101
    %v6105 = vrcp.pop %v6098
    %v6106 = vmul.f32 %v6070, %v6105
    %v6107 = vrcp.pop %v6102
    %v6108 = vmul.f32 %v6072, %v6107
    %6110 = vset.pattern.permute.xlu0 0
    %6111 = vperm.xlu0 %6110, %v6106
    %v6112 = vpop.permute.xlu0 %6111
    %6115 = vset.pattern.permute.xlu0 0
    %6116 = vperm.xlu0 %6115, %v6108
    %v6117 = vpop.permute.xlu0 %6116
    %v6119 = vmul.f32 %v6112, %v1713
    %v6120 = vmul.f32 %v6117, %v1714
    %v6121 = vsel %vm2410, %v6119, 0.0
    %v6122 = vrot.slane %v6121, 4
    %v6123 = vadd.f32 %v6121, %v6122
    %v6124 = vrot.slane %v6123, 2
    %v6125 = vadd.f32 %v6123, %v6124
    %v6126 = vrot.slane %v6125, 1
    %v6127 = vadd.f32 %v6125, %v6126
    %v6128 = vsel %vm2410, %v6120, 0.0
    %v6129 = vrot.slane %v6128, 4
    %v6130 = vadd.f32 %v6128, %v6129
    %v6131 = vrot.slane %v6130, 2
    %v6132 = vadd.f32 %v6130, %v6131
    %v6133 = vrot.slane %v6132, 1
    %v6134 = vadd.f32 %v6132, %v6133
    %v6137 = vsel %vm2338, %v6134, %v6127
    %6138 = vrot.lane.b32.xlu0 %v6137, 8
    %v6139 = vpop.permute.xlu0 %6138
    %6141 = vrot.lane.b32.xlu0 %v5632, 24
    %v6142 = vpop.permute.xlu0 %6141
    %v6144 = vsel %vm581, %v5833, %v6139
    %v6145 = vsel %vm2435, %v6144, %v6142
    %v6147 = vsel %vm2444, %v6145, 0
    %6149 = vmatprep.subr.mxu0 0.0
    %6150 = vmatpush1.msra.mxu0 %v2437
    %6151 = vmatprep.subr.mxu0 0.0
    %6152 = vmatpush1.msra.mxu0 %v2438
    %6153 = vmatprep.subr.mxu0 0.0
    %6154 = vmatpush1.msra.mxu0 %v2439
    %6155 = vmatprep.subr.mxu0 0.0
    %6156 = vmatpush1.msra.mxu0 %v2440
    %6157 = vmatprep.subr.mxu0 0.0
    %6158 = vmatpush1.msra.mxu0 %v2441
    %6159 = vmatprep.subr.mxu0 0.0
    %6160 = vmatpush1.msra.mxu0 %v2442
    %6161 = vmatprep.subr.mxu0 0.0
    %6162 = vmatpush1.msra.mxu0 %v2443
    %6163 = vmatprep.subr.mxu0 0.0
    %6164 = vmatpush1.msra.mxu0 0.0
    %6165 = vmatprep.subr.mxu0 0.0
    %6166 = vmatpush1.msra.mxu0 0.0
    %6167 = vmatprep.subr.mxu0 0.0
    %6168 = vmatpush1.msra.mxu0 0.0
    %6169 = vmatprep.subr.mxu0 0.0
    %6170 = vmatpush1.msra.mxu0 0.0
    %6171 = vmatprep.subr.mxu0 0.0
    %6172 = vmatpush1.msra.mxu0 0.0
    %6173 = vmatprep.subr.mxu0 0.0
    %6174 = vmatpush1.msra.mxu0 0.0
    %6175 = vmatprep.subr.mxu0 0.0
    %6176 = vmatpush1.msra.mxu0 0.0
    %6177 = vmatprep.subr.mxu0 0.0
    %6178 = vmatpush1.msra.mxu0 0.0
    %6179 = vmatprep.subr.mxu0 0.0
    %6180 = vmatpush1.msra.mxu0 0.0
    %6181 = vmatprep.subr.mxu0 0.0
    %6182 = vmatpush1.msra.mxu0 0.0
    %6183 = vmatprep.subr.mxu0 0.0
    %6184 = vmatpush1.msra.mxu0 0.0
    %6185 = vmatprep.subr.mxu0 0.0
    %6186 = vmatpush1.msra.mxu0 0.0
    %6187 = vmatprep.subr.mxu0 0.0
    %6188 = vmatpush1.msra.mxu0 0.0
    %6189 = vmatprep.subr.mxu0 0.0
    %6190 = vmatpush1.msra.mxu0 0.0
    %6191 = vmatprep.subr.mxu0 0.0
    %6192 = vmatpush1.msra.mxu0 0.0
    %6193 = vmatprep.subr.mxu0 0.0
    %6194 = vmatpush1.msra.mxu0 0.0
    %6195 = vmatprep.subr.mxu0 0.0
    %6196 = vmatpush1.msra.mxu0 0.0
    %6197 = vmatprep.subr.mxu0 0.0
    %6198 = vmatpush1.msra.mxu0 0.0
    %6199 = vmatprep.subr.mxu0 0.0
    %6200 = vmatpush1.msra.mxu0 0.0
    %6201 = vmatprep.subr.mxu0 0.0
    %6202 = vmatpush1.msra.mxu0 0.0
    %6203 = vmatprep.subr.mxu0 0.0
    %6204 = vmatpush1.msra.mxu0 0.0
    %6205 = vmatprep.subr.mxu0 0.0
    %6206 = vmatpush1.msra.mxu0 0.0
    %6207 = vmatprep.subr.mxu0 0.0
    %6208 = vmatpush1.msra.mxu0 0.0
    %6209 = vmatprep.subr.mxu0 0.0
    %6210 = vmatpush1.msra.mxu0 0.0
    %6211 = vmatprep.subr.mxu0 0.0
    %6212 = vmatpush1.msra.mxu0 0.0
    %6213 = vmatprep.mubr.f32.mxu0 0.0
    %6214 = vmatmul.mubr.f32.gmra.mrb[0].mxu0 %v6147
    %v6215 = vpop.f32.mrb[0].mxu0
    %v6216 = vadd.f32 %v65, %v6215
    %v6217 = vpop.f32.mrb[0].mxu0
    %6218 = vdwg.mxu0
    %6220 = vrot.lane.b32.xlu0 %v6216, 80
    %v6221 = vpop.permute.xlu0 %6220
    %v6223 = vadd.f32 %v6216, %v6221
    %v6224 = vxor.u32 %v6223, 2147483648
    %v6225 = vmul.f32 %v6224, 1.442695
    %v6226 = vpow.pop %v6225
    %v6227 = vadd.f32 %v6226, 1.0
    %v6228 = vrcp.pop %v6227
    %v6229 = vmul.f32 1.0, %v6228
    %6230 = vrot.lane.b32.xlu0 %v6216, 48
    %v6231 = vpop.permute.xlu0 %6230
    %v6233 = vmul.f32 %v6229, %v6231
    %6235 = vrot.lane.b32.xlu0 %v6233, 32
    %v6236 = vpop.permute.xlu0 %6235
    %v6238 = vadd.f32 %v6216, %v6236
    %v6239 = vtanh.pop %v6238
    %v6240 = vsub.f32 1.0, %v6229
    %6242 = vrot.lane.b32.xlu0 %v6239, 112
    %v6243 = vpop.permute.xlu0 %6242
    %v6245 = vmul.f32 %v6240, %v6243
    %v6246 = vmul.f32 %v6229, %v5632
    %v6247 = vadd.f32 %v6245, %v6246
    %6249 = vrot.lane.b32.xlu0 %v6247, 112
    %v6250 = vpop.permute.xlu0 %6249
    %6252 = vrot.lane.b32.xlu0 %v6137, 16
    %v6253 = vpop.permute.xlu0 %6252
    %6256 = vrot.lane.b32.xlu0 %v5833, 48
    %v6257 = vpop.permute.xlu0 %6256
    %v6259 = vsel %vm83, %v6250, %v6253
    %v6260 = vsel %vm599, %v6259, %v6257
    %v6262 = vsel %vm2444, %v6260, 0
    %6264 = vmatprep.subr.mxu0 0.0
    %6265 = vmatpush1.msra.mxu0 %v2563
    %6266 = vmatprep.subr.mxu0 0.0
    %6267 = vmatpush1.msra.mxu0 %v2564
    %6268 = vmatprep.subr.mxu0 0.0
    %6269 = vmatpush1.msra.mxu0 %v2565
    %6270 = vmatprep.subr.mxu0 0.0
    %6271 = vmatpush1.msra.mxu0 %v2566
    %6272 = vmatprep.subr.mxu0 0.0
    %6273 = vmatpush1.msra.mxu0 %v2567
    %6274 = vmatprep.subr.mxu0 0.0
    %6275 = vmatpush1.msra.mxu0 %v2568
    %6276 = vmatprep.subr.mxu0 0.0
    %6277 = vmatpush1.msra.mxu0 %v2569
    %6278 = vmatprep.subr.mxu0 0.0
    %6279 = vmatpush1.msra.mxu0 0.0
    %6280 = vmatprep.subr.mxu0 0.0
    %6281 = vmatpush1.msra.mxu0 0.0
    %6282 = vmatprep.subr.mxu0 0.0
    %6283 = vmatpush1.msra.mxu0 0.0
    %6284 = vmatprep.subr.mxu0 0.0
    %6285 = vmatpush1.msra.mxu0 0.0
    %6286 = vmatprep.subr.mxu0 0.0
    %6287 = vmatpush1.msra.mxu0 0.0
    %6288 = vmatprep.subr.mxu0 0.0
    %6289 = vmatpush1.msra.mxu0 0.0
    %6290 = vmatprep.subr.mxu0 0.0
    %6291 = vmatpush1.msra.mxu0 0.0
    %6292 = vmatprep.subr.mxu0 0.0
    %6293 = vmatpush1.msra.mxu0 0.0
    %6294 = vmatprep.subr.mxu0 0.0
    %6295 = vmatpush1.msra.mxu0 0.0
    %6296 = vmatprep.subr.mxu0 0.0
    %6297 = vmatpush1.msra.mxu0 0.0
    %6298 = vmatprep.subr.mxu0 0.0
    %6299 = vmatpush1.msra.mxu0 0.0
    %6300 = vmatprep.subr.mxu0 0.0
    %6301 = vmatpush1.msra.mxu0 0.0
    %6302 = vmatprep.subr.mxu0 0.0
    %6303 = vmatpush1.msra.mxu0 0.0
    %6304 = vmatprep.subr.mxu0 0.0
    %6305 = vmatpush1.msra.mxu0 0.0
    %6306 = vmatprep.subr.mxu0 0.0
    %6307 = vmatpush1.msra.mxu0 0.0
    %6308 = vmatprep.subr.mxu0 0.0
    %6309 = vmatpush1.msra.mxu0 0.0
    %6310 = vmatprep.subr.mxu0 0.0
    %6311 = vmatpush1.msra.mxu0 0.0
    %6312 = vmatprep.subr.mxu0 0.0
    %6313 = vmatpush1.msra.mxu0 0.0
    %6314 = vmatprep.subr.mxu0 0.0
    %6315 = vmatpush1.msra.mxu0 0.0
    %6316 = vmatprep.subr.mxu0 0.0
    %6317 = vmatpush1.msra.mxu0 0.0
    %6318 = vmatprep.subr.mxu0 0.0
    %6319 = vmatpush1.msra.mxu0 0.0
    %6320 = vmatprep.subr.mxu0 0.0
    %6321 = vmatpush1.msra.mxu0 0.0
    %6322 = vmatprep.subr.mxu0 0.0
    %6323 = vmatpush1.msra.mxu0 0.0
    %6324 = vmatprep.subr.mxu0 0.0
    %6325 = vmatpush1.msra.mxu0 0.0
    %6326 = vmatprep.subr.mxu0 0.0
    %6327 = vmatpush1.msra.mxu0 0.0
    %6328 = vmatprep.mubr.f32.mxu0 0.0
    %6329 = vmatmul.mubr.f32.gmra.mrb[0].mxu0 %v6262
    %v6330 = vpop.f32.mrb[0].mxu0
    %v6331 = vadd.f32 %v66, %v6330
    %v6332 = vpop.f32.mrb[0].mxu0
    %6333 = vdwg.mxu0
    %6334 = vst.msk [vmem:[#allocation6] sm:$0x3] %vm2643, 0.0
    %6335 = vst.msk [vmem:[#allocation6 + $0x2] sm:$0x3] %vm2643, %v2640
    %6336 = vst.msk [vmem:[#allocation6 + $0x4] sm:$0x3] %vm2643, %v3256
    %6337 = vst.msk [vmem:[#allocation6 + $0x6] sm:$0x3] %vm2643, %v3871
    %6338 = vst.msk [vmem:[#allocation6 + $0x8] sm:$0x3] %vm2643, %v4486
    %6339 = vst.msk [vmem:[#allocation6 + $0xa] sm:$0x3] %vm2643, %v5101
    %6340 = vst.msk [vmem:[#allocation6 + $0xc] sm:$0x3] %vm2643, %v5716
    %6341 = vst.msk [vmem:[#allocation6 + $0xe] sm:$0x3] %vm2643, %v6331
    // Predicated region
    $region38: #{seq2seq_forward.1} parent=1 // pred_check
      _
    $region39: #{seq2seq_forward.1} parent=1 // pred_check_branch
      %6343 = sbr.rel (0) target = $region41
    $region40: #{seq2seq_forward.1} parent=1 // pred_region
      %s6345 = ssub.s32 256, 256
      %6346 = vsyncadd [#allocation7], %s6345
      %s6347 = sshll.u32 [#allocation6], 4
      %s6348 = int_to_ptr.vmem [resolvable:$true] %s6347
      %6353 = dma.vmem_to_hbm [thread:$0]  %s6348, 256, %s12, [#allocation7], 32, 32, 2
    $region41: #{seq2seq_forward.1} parent=1 // pred_fallthru
      _
    // Predicated region
    $region42: #{seq2seq_forward.1} parent=1 // pred_check
      _
    $region43: #{seq2seq_forward.1} parent=1 // pred_check_branch
      %6355 = sbr.rel (0) target = $region45
    $region44: #{seq2seq_forward.1} parent=1 // pred_region
      %6356 = dma.done [#allocation7], 256
    $region45: #{seq2seq_forward.1} parent=1 // pred_fallthru
      _
    %6357 = vsyncpa [#allocation7], 1

</llo_original>
